<compile_context>
chip_gen: v7x
topology: tpu7x:2x2x1
jax: 0.10.0
libtpu: 0.0.40
codegen_flags: <defaults>
</compile_context>

<pallas_src>
import math

import jax
import jax.numpy as jnp
from jax.experimental import pallas as pl
from jax.experimental.pallas import tpu as pltpu

# ---- synthetic, lane-dense config (stands in for the HF base-model config) ----
VOCAB = 512
MAX_POS = 128
HIDDEN = 256          # multiple of 128 -> lane-dense
NUM_HEADS = 2
HEAD_DIM = HIDDEN // NUM_HEADS          # 128 -> full MXU tiles per head
INTERMEDIATE = 512    # multiple of 128
NUM_LAYERS = 2
NUM_CLASSES = 2
LOGIT_PAD = 128       # pad logits to full lane width, slice in the wrapper
LN_EPS = 1e-5

BATCH = 2
SEQ = 128             # multiple of 128 -> lane-dense attention scores


# --------------------------- in-kernel helpers (f32) --------------------------

def _layernorm(x, g, b, eps=LN_EPS):
    mu = jnp.mean(x, axis=-1, keepdims=True)
    var = jnp.mean(jnp.square(x - mu), axis=-1, keepdims=True)
    return (x - mu) * jax.lax.rsqrt(var + eps) * g + b


def _softmax_last(s):
    m = jnp.max(s, axis=-1, keepdims=True)
    e = jnp.exp(s - m)
    return e * pl.reciprocal(jnp.sum(e, axis=-1, keepdims=True), approx=True)


# --------------------------- fused forward kernel -----------------------------

def fused_forward_kernel(emb_ref,                       # (1, S, H) f32 block
                         emb_g_ref, emb_b_ref,          # (1, H) f32
                         wqkv_ref, bqkv_ref,            # (L, H, 3H) bf16 / (L, 1, 3H) f32
                         wo_ref, bo_ref, g1_ref, b1_ref,
                         w1_ref, bf1_ref, w2_ref, bf2_ref, g2_ref, b2_ref,
                         wd_ref, bd_ref, wp_ref, bp_ref,
                         out_ref):                      # (1, 1, LOGIT_PAD) f32
    # embeddings LayerNorm (f32)
    x = _layernorm(emb_ref[0].astype(jnp.float32), emb_g_ref[...], emb_b_ref[...])

    # static (unrolled) loop over encoder layers; stacked weights indexed statically
    for l in range(NUM_LAYERS):
        xb = x.astype(jnp.bfloat16)

        # fused QKV projection (single bf16 MXU op, f32 accumulate).
        # 1/sqrt(head_dim) is pre-folded into the Q slice of wqkv/bqkv.
        qkv = (jnp.dot(xb, wqkv_ref[l], preferred_element_type=jnp.float32)
               + bqkv_ref[l])                                            # (S, 3H) f32
        qkvb = qkv.astype(jnp.bfloat16)

        # per-head attention with 128-lane-aligned slices (HEAD_DIM == 128):
        # each dot is a full (S x 128) x (128 x S) / (S x S) x (S x 128) MXU op.
        ctx_heads = []
        for h in range(NUM_HEADS):
            lo = h * HEAD_DIM
            qh = qkvb[:, lo:lo + HEAD_DIM]
            kh = qkvb[:, HIDDEN + lo:HIDDEN + lo + HEAD_DIM]
            vh = qkvb[:, 2 * HIDDEN + lo:2 * HIDDEN + lo + HEAD_DIM]
            s = jax.lax.dot_general(qh, kh, (((1,), (1,)), ((), ())),
                                    preferred_element_type=jnp.float32)  # q @ k^T
            p = _softmax_last(s)                                          # f32
            ctx_heads.append(jnp.dot(p.astype(jnp.bfloat16), vh,
                                     preferred_element_type=jnp.float32))
        ctx = jnp.concatenate(ctx_heads, axis=-1)                         # (S, H)

        # single output projection on concatenated heads
        attn = jnp.dot(ctx.astype(jnp.bfloat16), wo_ref[l],
                       preferred_element_type=jnp.float32) + bo_ref[l]
        h1 = _layernorm(x + attn, g1_ref[l], b1_ref[l])

        # FFN
        ff = jnp.dot(h1.astype(jnp.bfloat16), w1_ref[l],
                     preferred_element_type=jnp.float32) + bf1_ref[l]
        # TODO(synk): HF RoBERTa uses exact (erf) GELU; tanh approximation kept
        # for Mosaic-safe lowering (small systematic drift).
        ff = jax.nn.gelu(ff, approximate=True)
        ff2 = jnp.dot(ff.astype(jnp.bfloat16), w2_ref[l],
                      preferred_element_type=jnp.float32) + bf2_ref[l]
        x = _layernorm(h1 + ff2, g2_ref[l], b2_ref[l])

    # RobertaClassificationHead on token 0 (dropout = identity in eval mode)
    cls = x[0:1, :]                                                       # (1, H)
    hdn = jnp.tanh(jnp.dot(cls.astype(jnp.bfloat16), wd_ref[...],
                           preferred_element_type=jnp.float32) + bd_ref[...])
    logits = (jnp.dot(hdn.astype(jnp.bfloat16), wp_ref[...],
                      preferred_element_type=jnp.float32)
              + bp_ref[...])                                              # (1, 128)
    out_ref[0] = logits.astype(out_ref.dtype)                             # lane-dense store


# --------------------------- wrapper -------------------------------------------

def transformer_model_forward(params, input_ids):
    """Mirrors TransformerModel.forward: base encoder -> last_hidden_state
    -> RobertaClassificationHead -> logits of shape (B, NUM_CLASSES)."""
    b, s = input_ids.shape
    # TODO(synk): no attention/padding mask and no RoBERTa position-id offset
    # (padding_idx + 1) are modeled; embedding gather stays outside the kernel.
    emb = (jnp.take(params['word_emb'], input_ids, axis=0)
           + params['pos_emb'][:s][None, :, :]).astype(jnp.float32)

    L = params['layers']
    H = params['head']
    flat_args = (params['emb_ln_g'], params['emb_ln_b'],
                 L['wqkv'], L['bqkv'],
                 L['wo'], L['bo'], L['g1'], L['b1'],
                 L['w1'], L['bf1'], L['w2'], L['bf2'], L['g2'], L['b2'],
                 H['wd'], H['bd'], H['wp_pad'], H['bp_pad'])

    logits_pad = pl.pallas_call(
        fused_forward_kernel,
        out_shape=jax.ShapeDtypeStruct((b, 1, LOGIT_PAD), jnp.float32),
        grid=(b,),
        in_specs=([pl.BlockSpec((1, SEQ, HIDDEN), lambda i: (i, 0, 0))]
                  + [pl.BlockSpec(memory_space=pltpu.MemorySpace.VMEM)
                     for _ in flat_args]),
        out_specs=pl.BlockSpec((1, 1, LOGIT_PAD), lambda i: (i, 0, 0)),
        compiler_params=pltpu.CompilerParams(
            dimension_semantics=("parallel",)),   # split batch over v7x's 2 TCs
    )(emb, *flat_args)

    return logits_pad[:, 0, :NUM_CLASSES]


# --------------------------- parameters ----------------------------------------

def init_params(key):
    def nrm_f32(k, shape, scale=0.02):
        return scale * jax.random.normal(k, shape, dtype=jnp.float32)

    keys = jax.random.split(key, NUM_LAYERS + 3)
    params = {
        'word_emb': nrm_f32(keys[0], (VOCAB, HIDDEN)),
        'pos_emb': nrm_f32(keys[1], (MAX_POS, HIDDEN)),
        'emb_ln_g': jnp.ones((1, HIDDEN), jnp.float32),
        'emb_ln_b': jnp.zeros((1, HIDDEN), jnp.float32),
    }

    qscale = jnp.float32(1.0 / math.sqrt(HEAD_DIM))

    per_layer = []
    for l in range(NUM_LAYERS):
        lk = jax.random.split(keys[2 + l], 6)
        wq = nrm_f32(lk[0], (HIDDEN, HIDDEN)) * qscale   # fold 1/sqrt(d) into Q
        wk = nrm_f32(lk[1], (HIDDEN, HIDDEN))
        wv = nrm_f32(lk[2], (HIDDEN, HIDDEN))
        bq = jnp.zeros((1, HIDDEN), jnp.float32) * qscale
        bk = jnp.zeros((1, HIDDEN), jnp.float32)
        bv = jnp.zeros((1, HIDDEN), jnp.float32)
        per_layer.append({
            'wqkv': jnp.concatenate([wq, wk, wv], axis=-1).astype(jnp.bfloat16),
            'bqkv': jnp.concatenate([bq, bk, bv], axis=-1),
            'wo': nrm_f32(lk[3], (HIDDEN, HIDDEN)).astype(jnp.bfloat16),
            'bo': jnp.zeros((1, HIDDEN), jnp.float32),
            'g1': jnp.ones((1, HIDDEN), jnp.float32),
            'b1': jnp.zeros((1, HIDDEN), jnp.float32),
            'w1': nrm_f32(lk[4], (HIDDEN, INTERMEDIATE)).astype(jnp.bfloat16),
            'bf1': jnp.zeros((1, INTERMEDIATE), jnp.float32),
            'w2': nrm_f32(lk[5], (INTERMEDIATE, HIDDEN)).astype(jnp.bfloat16),
            'bf2': jnp.zeros((1, HIDDEN), jnp.float32),
            'g2': jnp.ones((1, HIDDEN), jnp.float32),
            'b2': jnp.zeros((1, HIDDEN), jnp.float32),
        })
    # stack per-layer params along a leading layer axis -> fewer kernel args
    params['layers'] = {k: jnp.stack([lp[k] for lp in per_layer], axis=0)
                        for k in per_layer[0]}

    hk = jax.random.split(keys[2 + NUM_LAYERS], 2)
    wp = nrm_f32(hk[1], (HIDDEN, NUM_CLASSES))
    wp_pad = jnp.zeros((HIDDEN, LOGIT_PAD), jnp.float32).at[:, :NUM_CLASSES].set(wp)
    params['head'] = {
        'wd': nrm_f32(hk[0], (HIDDEN, HIDDEN)).astype(jnp.bfloat16),
        'bd': jnp.zeros((1, HIDDEN), jnp.float32),
        'wp_pad': wp_pad.astype(jnp.bfloat16),        # zero-padded to 128 lanes
        'bp_pad': jnp.zeros((1, LOGIT_PAD), jnp.float32),
    }
    return params


# --------------------------- main ------------------------------------------------

if __name__ == "__main__":
    key = jax.random.PRNGKey(0)
    pkey, dkey = jax.random.split(key)
    params = init_params(pkey)
    input_ids = jax.random.randint(dkey, (BATCH, SEQ), 0, VOCAB, dtype=jnp.int32)

    fwd = jax.jit(transformer_model_forward)
    logits = fwd(params, input_ids)
    jax.block_until_ready(logits)

    assert logits.shape == (BATCH, NUM_CLASSES)
    assert jnp.all(jnp.isfinite(logits))
    print("KERNEL_OK")
</pallas_src>

<mosaic_0001>
module attributes {stable_mosaic.version = 11 : i64} {
  func.func @fused_forward_kernel(%arg0: i32, %arg1: memref<1x128x256xf32, #tpu.memory_space<vmem>>, %arg2: memref<1x256xf32, #tpu.memory_space<vmem>>, %arg3: memref<1x256xf32, #tpu.memory_space<vmem>>, %arg4: memref<2x256x768xbf16, #tpu.memory_space<vmem>>, %arg5: memref<2x1x768xf32, #tpu.memory_space<vmem>>, %arg6: memref<2x256x256xbf16, #tpu.memory_space<vmem>>, %arg7: memref<2x1x256xf32, #tpu.memory_space<vmem>>, %arg8: memref<2x1x256xf32, #tpu.memory_space<vmem>>, %arg9: memref<2x1x256xf32, #tpu.memory_space<vmem>>, %arg10: memref<2x256x512xbf16, #tpu.memory_space<vmem>>, %arg11: memref<2x1x512xf32, #tpu.memory_space<vmem>>, %arg12: memref<2x512x256xbf16, #tpu.memory_space<vmem>>, %arg13: memref<2x1x256xf32, #tpu.memory_space<vmem>>, %arg14: memref<2x1x256xf32, #tpu.memory_space<vmem>>, %arg15: memref<2x1x256xf32, #tpu.memory_space<vmem>>, %arg16: memref<256x256xbf16, #tpu.memory_space<vmem>>, %arg17: memref<1x256xf32, #tpu.memory_space<vmem>>, %arg18: memref<256x128xbf16, #tpu.memory_space<vmem>>, %arg19: memref<1x128xf32, #tpu.memory_space<vmem>>, %arg20: memref<1x1x128xf32, #tpu.memory_space<vmem>>) attributes {dimension_semantics = [#tpu.dimension_semantics<parallel>], iteration_bounds = array<i64: 2>, scalar_prefetch = 0 : i64, scratch_operands = 0 : i64, tpu.core_type = #tpu.core_type<tc>, window_params = [{transform_indices = @transform_0, window_bounds = array<i64: 1, 128, 256>}, {pipeline_mode = #tpu.pipeline_mode<synchronous>, transform_indices = @transform_1, window_bounds = array<i64: 1, 256>}, {pipeline_mode = #tpu.pipeline_mode<synchronous>, transform_indices = @transform_2, window_bounds = array<i64: 1, 256>}, {pipeline_mode = #tpu.pipeline_mode<synchronous>, transform_indices = @transform_3, window_bounds = array<i64: 2, 256, 768>}, {pipeline_mode = #tpu.pipeline_mode<synchronous>, transform_indices = @transform_4, window_bounds = array<i64: 2, 1, 768>}, {pipeline_mode = #tpu.pipeline_mode<synchronous>, transform_indices = @transform_5, window_bounds = array<i64: 2, 256, 256>}, {pipeline_mode = #tpu.pipeline_mode<synchronous>, transform_indices = @transform_6, window_bounds = array<i64: 2, 1, 256>}, {pipeline_mode = #tpu.pipeline_mode<synchronous>, transform_indices = @transform_7, window_bounds = array<i64: 2, 1, 256>}, {pipeline_mode = #tpu.pipeline_mode<synchronous>, transform_indices = @transform_8, window_bounds = array<i64: 2, 1, 256>}, {pipeline_mode = #tpu.pipeline_mode<synchronous>, transform_indices = @transform_9, window_bounds = array<i64: 2, 256, 512>}, {pipeline_mode = #tpu.pipeline_mode<synchronous>, transform_indices = @transform_10, window_bounds = array<i64: 2, 1, 512>}, {pipeline_mode = #tpu.pipeline_mode<synchronous>, transform_indices = @transform_11, window_bounds = array<i64: 2, 512, 256>}, {pipeline_mode = #tpu.pipeline_mode<synchronous>, transform_indices = @transform_12, window_bounds = array<i64: 2, 1, 256>}, {pipeline_mode = #tpu.pipeline_mode<synchronous>, transform_indices = @transform_13, window_bounds = array<i64: 2, 1, 256>}, {pipeline_mode = #tpu.pipeline_mode<synchronous>, transform_indices = @transform_14, window_bounds = array<i64: 2, 1, 256>}, {pipeline_mode = #tpu.pipeline_mode<synchronous>, transform_indices = @transform_15, window_bounds = array<i64: 256, 256>}, {pipeline_mode = #tpu.pipeline_mode<synchronous>, transform_indices = @transform_16, window_bounds = array<i64: 1, 256>}, {pipeline_mode = #tpu.pipeline_mode<synchronous>, transform_indices = @transform_17, window_bounds = array<i64: 256, 128>}, {pipeline_mode = #tpu.pipeline_mode<synchronous>, transform_indices = @transform_18, window_bounds = array<i64: 1, 128>}, {transform_indices = @transform_19, window_bounds = array<i64: 1, 1, 128>}]} {
    %c0 = arith.constant 0 : index
    %c0_0 = arith.constant 0 : index
    %c0_1 = arith.constant 0 : index
    %0 = vector.load %arg1[%c0, %c0_0, %c0_1] : memref<1x128x256xf32, #tpu.memory_space<vmem>>, vector<1x128x256xf32>
    %1 = vector.shape_cast %0 : vector<1x128x256xf32> to vector<128x256xf32>
    %c0_2 = arith.constant 0 : index
    %c0_3 = arith.constant 0 : index
    %2 = vector.load %arg2[%c0_2, %c0_3] : memref<1x256xf32, #tpu.memory_space<vmem>>, vector<1x256xf32>
    %c0_4 = arith.constant 0 : index
    %c0_5 = arith.constant 0 : index
    %3 = vector.load %arg3[%c0_4, %c0_5] : memref<1x256xf32, #tpu.memory_space<vmem>>, vector<1x256xf32>
    %cst = arith.constant dense<0.000000e+00> : vector<128xf32>
    %4 = vector.multi_reduction <add>, %1, %cst [1] : vector<128x256xf32> to vector<128xf32>
    %5 = vector.shape_cast %4 : vector<128xf32> to vector<128x1xf32>
    %cst_6 = arith.constant 2.560000e+02 : f32
    %6 = vector.broadcast %cst_6 : f32 to vector<128x1xf32>
    %7 = arith.divf %5, %6 : vector<128x1xf32>
    %8 = vector.broadcast %7 : vector<128x1xf32> to vector<128x256xf32>
    %9 = arith.subf %1, %8 : vector<128x256xf32>
    %10 = arith.mulf %9, %9 : vector<128x256xf32>
    %cst_7 = arith.constant dense<0.000000e+00> : vector<128xf32>
    %11 = vector.multi_reduction <add>, %10, %cst_7 [1] : vector<128x256xf32> to vector<128xf32>
    %12 = vector.shape_cast %11 : vector<128xf32> to vector<128x1xf32>
    %cst_8 = arith.constant 2.560000e+02 : f32
    %13 = vector.broadcast %cst_8 : f32 to vector<128x1xf32>
    %14 = arith.divf %12, %13 : vector<128x1xf32>
    %15 = vector.broadcast %7 : vector<128x1xf32> to vector<128x256xf32>
    %16 = arith.subf %1, %15 : vector<128x256xf32>
    %cst_9 = arith.constant 9.99999974E-6 : f32
    %17 = vector.broadcast %cst_9 : f32 to vector<128x1xf32>
    %18 = arith.addf %14, %17 : vector<128x1xf32>
    %19 = math.rsqrt %18 : vector<128x1xf32>
    %20 = vector.broadcast %19 : vector<128x1xf32> to vector<128x256xf32>
    %21 = arith.mulf %16, %20 : vector<128x256xf32>
    %22 = vector.broadcast %2 : vector<1x256xf32> to vector<128x256xf32>
    %23 = arith.mulf %21, %22 : vector<128x256xf32>
    %24 = vector.broadcast %3 : vector<1x256xf32> to vector<128x256xf32>
    %25 = arith.addf %23, %24 : vector<128x256xf32>
    %26 = arith.truncf %25 : vector<128x256xf32> to vector<128x256xbf16>
    %c0_10 = arith.constant 0 : index
    %c0_11 = arith.constant 0 : index
    %c0_12 = arith.constant 0 : index
    %27 = vector.load %arg4[%c0_10, %c0_11, %c0_12] : memref<2x256x768xbf16, #tpu.memory_space<vmem>>, vector<1x256x768xbf16>
    %28 = vector.shape_cast %27 : vector<1x256x768xbf16> to vector<256x768xbf16>
    %cst_13 = arith.constant dense<0.000000e+00> : vector<128x768xf32>
    %29 = tpu.matmul %26, %28, %cst_13 {dimension_numbers = #tpu.dot_dimension_numbers<[1], [0], [0], [1], [0, 0, 1, 1], [], []>} : vector<128x256xbf16>, vector<256x768xbf16>, vector<128x768xf32> -> vector<128x768xf32>
    %c0_14 = arith.constant 0 : index
    %c0_15 = arith.constant 0 : index
    %c0_16 = arith.constant 0 : index
    %30 = vector.load %arg5[%c0_14, %c0_15, %c0_16] : memref<2x1x768xf32, #tpu.memory_space<vmem>>, vector<1x1x768xf32>
    %31 = vector.shape_cast %30 : vector<1x1x768xf32> to vector<1x768xf32>
    %32 = vector.broadcast %31 : vector<1x768xf32> to vector<128x768xf32>
    %33 = arith.addf %29, %32 : vector<128x768xf32>
    %34 = arith.truncf %33 : vector<128x768xf32> to vector<128x768xbf16>
    %35 = vector.extract_strided_slice %34 {offsets = [0, 0], sizes = [128, 128], strides = [1, 1]} : vector<128x768xbf16> to vector<128x128xbf16>
    %36 = vector.extract_strided_slice %34 {offsets = [0, 256], sizes = [128, 128], strides = [1, 1]} : vector<128x768xbf16> to vector<128x128xbf16>
    %37 = vector.extract_strided_slice %34 {offsets = [0, 512], sizes = [128, 128], strides = [1, 1]} : vector<128x768xbf16> to vector<128x128xbf16>
    %cst_17 = arith.constant dense<0.000000e+00> : vector<128x128xf32>
    %38 = tpu.matmul %35, %36, %cst_17 {dimension_numbers = #tpu.dot_dimension_numbers<[1], [1], [0], [0], [0, 0, 1, 0], [], []>} : vector<128x128xbf16>, vector<128x128xbf16>, vector<128x128xf32> -> vector<128x128xf32>
    %cst_18 = arith.constant dense<0xFF800000> : vector<128xf32>
    %39 = vector.multi_reduction <maximumf>, %38, %cst_18 [1] : vector<128x128xf32> to vector<128xf32>
    %40 = vector.shape_cast %39 : vector<128xf32> to vector<128x1xf32>
    %41 = vector.broadcast %40 : vector<128x1xf32> to vector<128x128xf32>
    %42 = arith.subf %38, %41 : vector<128x128xf32>
    %43 = math.exp %42 : vector<128x128xf32>
    %cst_19 = arith.constant dense<0.000000e+00> : vector<128xf32>
    %44 = vector.multi_reduction <add>, %43, %cst_19 [1] : vector<128x128xf32> to vector<128xf32>
    %45 = vector.shape_cast %44 : vector<128xf32> to vector<128x1xf32>
    %46 = tpu.reciprocal %45 {approx = true} : vector<128x1xf32> -> vector<128x1xf32>
    %47 = vector.broadcast %46 : vector<128x1xf32> to vector<128x128xf32>
    %48 = arith.mulf %43, %47 : vector<128x128xf32>
    %49 = arith.truncf %48 : vector<128x128xf32> to vector<128x128xbf16>
    %cst_20 = arith.constant dense<0.000000e+00> : vector<128x128xf32>
    %50 = tpu.matmul %49, %37, %cst_20 {dimension_numbers = #tpu.dot_dimension_numbers<[1], [0], [0], [1], [0, 0, 1, 1], [], []>} : vector<128x128xbf16>, vector<128x128xbf16>, vector<128x128xf32> -> vector<128x128xf32>
    %51 = vector.extract_strided_slice %34 {offsets = [0, 128], sizes = [128, 128], strides = [1, 1]} : vector<128x768xbf16> to vector<128x128xbf16>
    %52 = vector.extract_strided_slice %34 {offsets = [0, 384], sizes = [128, 128], strides = [1, 1]} : vector<128x768xbf16> to vector<128x128xbf16>
    %53 = vector.extract_strided_slice %34 {offsets = [0, 640], sizes = [128, 128], strides = [1, 1]} : vector<128x768xbf16> to vector<128x128xbf16>
    %cst_21 = arith.constant dense<0.000000e+00> : vector<128x128xf32>
    %54 = tpu.matmul %51, %52, %cst_21 {dimension_numbers = #tpu.dot_dimension_numbers<[1], [1], [0], [0], [0, 0, 1, 0], [], []>} : vector<128x128xbf16>, vector<128x128xbf16>, vector<128x128xf32> -> vector<128x128xf32>
    %cst_22 = arith.constant dense<0xFF800000> : vector<128xf32>
    %55 = vector.multi_reduction <maximumf>, %54, %cst_22 [1] : vector<128x128xf32> to vector<128xf32>
    %56 = vector.shape_cast %55 : vector<128xf32> to vector<128x1xf32>
    %57 = vector.broadcast %56 : vector<128x1xf32> to vector<128x128xf32>
    %58 = arith.subf %54, %57 : vector<128x128xf32>
    %59 = math.exp %58 : vector<128x128xf32>
    %cst_23 = arith.constant dense<0.000000e+00> : vector<128xf32>
    %60 = vector.multi_reduction <add>, %59, %cst_23 [1] : vector<128x128xf32> to vector<128xf32>
    %61 = vector.shape_cast %60 : vector<128xf32> to vector<128x1xf32>
    %62 = tpu.reciprocal %61 {approx = true} : vector<128x1xf32> -> vector<128x1xf32>
    %63 = vector.broadcast %62 : vector<128x1xf32> to vector<128x128xf32>
    %64 = arith.mulf %59, %63 : vector<128x128xf32>
    %65 = arith.truncf %64 : vector<128x128xf32> to vector<128x128xbf16>
    %cst_24 = arith.constant dense<0.000000e+00> : vector<128x128xf32>
    %66 = tpu.matmul %65, %53, %cst_24 {dimension_numbers = #tpu.dot_dimension_numbers<[1], [0], [0], [1], [0, 0, 1, 1], [], []>} : vector<128x128xbf16>, vector<128x128xbf16>, vector<128x128xf32> -> vector<128x128xf32>
    %67 = tpu.concatenate %50, %66 in 1 : vector<128x128xf32>, vector<128x128xf32> -> vector<128x256xf32>
    %68 = arith.truncf %67 : vector<128x256xf32> to vector<128x256xbf16>
    %c0_25 = arith.constant 0 : index
    %c0_26 = arith.constant 0 : index
    %c0_27 = arith.constant 0 : index
    %69 = vector.load %arg6[%c0_25, %c0_26, %c0_27] : memref<2x256x256xbf16, #tpu.memory_space<vmem>>, vector<1x256x256xbf16>
    %70 = vector.shape_cast %69 : vector<1x256x256xbf16> to vector<256x256xbf16>
    %cst_28 = arith.constant dense<0.000000e+00> : vector<128x256xf32>
    %71 = tpu.matmul %68, %70, %cst_28 {dimension_numbers = #tpu.dot_dimension_numbers<[1], [0], [0], [1], [0, 0, 1, 1], [], []>} : vector<128x256xbf16>, vector<256x256xbf16>, vector<128x256xf32> -> vector<128x256xf32>
    %c0_29 = arith.constant 0 : index
    %c0_30 = arith.constant 0 : index
    %c0_31 = arith.constant 0 : index
    %72 = vector.load %arg7[%c0_29, %c0_30, %c0_31] : memref<2x1x256xf32, #tpu.memory_space<vmem>>, vector<1x1x256xf32>
    %73 = vector.shape_cast %72 : vector<1x1x256xf32> to vector<1x256xf32>
    %74 = vector.broadcast %73 : vector<1x256xf32> to vector<128x256xf32>
    %75 = arith.addf %71, %74 : vector<128x256xf32>
    %76 = arith.addf %25, %75 : vector<128x256xf32>
    %c0_32 = arith.constant 0 : index
    %c0_33 = arith.constant 0 : index
    %c0_34 = arith.constant 0 : index
    %77 = vector.load %arg8[%c0_32, %c0_33, %c0_34] : memref<2x1x256xf32, #tpu.memory_space<vmem>>, vector<1x1x256xf32>
    %78 = vector.shape_cast %77 : vector<1x1x256xf32> to vector<1x256xf32>
    %c0_35 = arith.constant 0 : index
    %c0_36 = arith.constant 0 : index
    %c0_37 = arith.constant 0 : index
    %79 = vector.load %arg9[%c0_35, %c0_36, %c0_37] : memref<2x1x256xf32, #tpu.memory_space<vmem>>, vector<1x1x256xf32>
    %80 = vector.shape_cast %79 : vector<1x1x256xf32> to vector<1x256xf32>
    %cst_38 = arith.constant dense<0.000000e+00> : vector<128xf32>
    %81 = vector.multi_reduction <add>, %76, %cst_38 [1] : vector<128x256xf32> to vector<128xf32>
    %82 = vector.shape_cast %81 : vector<128xf32> to vector<128x1xf32>
    %cst_39 = arith.constant 2.560000e+02 : f32
    %83 = vector.broadcast %cst_39 : f32 to vector<128x1xf32>
    %84 = arith.divf %82, %83 : vector<128x1xf32>
    %85 = vector.broadcast %84 : vector<128x1xf32> to vector<128x256xf32>
    %86 = arith.subf %76, %85 : vector<128x256xf32>
    %87 = arith.mulf %86, %86 : vector<128x256xf32>
    %cst_40 = arith.constant dense<0.000000e+00> : vector<128xf32>
    %88 = vector.multi_reduction <add>, %87, %cst_40 [1] : vector<128x256xf32> to vector<128xf32>
    %89 = vector.shape_cast %88 : vector<128xf32> to vector<128x1xf32>
    %cst_41 = arith.constant 2.560000e+02 : f32
    %90 = vector.broadcast %cst_41 : f32 to vector<128x1xf32>
    %91 = arith.divf %89, %90 : vector<128x1xf32>
    %92 = vector.broadcast %84 : vector<128x1xf32> to vector<128x256xf32>
    %93 = arith.subf %76, %92 : vector<128x256xf32>
    %cst_42 = arith.constant 9.99999974E-6 : f32
    %94 = vector.broadcast %cst_42 : f32 to vector<128x1xf32>
    %95 = arith.addf %91, %94 : vector<128x1xf32>
    %96 = math.rsqrt %95 : vector<128x1xf32>
    %97 = vector.broadcast %96 : vector<128x1xf32> to vector<128x256xf32>
    %98 = arith.mulf %93, %97 : vector<128x256xf32>
    %99 = vector.broadcast %78 : vector<1x256xf32> to vector<128x256xf32>
    %100 = arith.mulf %98, %99 : vector<128x256xf32>
    %101 = vector.broadcast %80 : vector<1x256xf32> to vector<128x256xf32>
    %102 = arith.addf %100, %101 : vector<128x256xf32>
    %103 = arith.truncf %102 : vector<128x256xf32> to vector<128x256xbf16>
    %c0_43 = arith.constant 0 : index
    %c0_44 = arith.constant 0 : index
    %c0_45 = arith.constant 0 : index
    %104 = vector.load %arg10[%c0_43, %c0_44, %c0_45] : memref<2x256x512xbf16, #tpu.memory_space<vmem>>, vector<1x256x512xbf16>
    %105 = vector.shape_cast %104 : vector<1x256x512xbf16> to vector<256x512xbf16>
    %cst_46 = arith.constant dense<0.000000e+00> : vector<128x512xf32>
    %106 = tpu.matmul %103, %105, %cst_46 {dimension_numbers = #tpu.dot_dimension_numbers<[1], [0], [0], [1], [0, 0, 1, 1], [], []>} : vector<128x256xbf16>, vector<256x512xbf16>, vector<128x512xf32> -> vector<128x512xf32>
    %c0_47 = arith.constant 0 : index
    %c0_48 = arith.constant 0 : index
    %c0_49 = arith.constant 0 : index
    %107 = vector.load %arg11[%c0_47, %c0_48, %c0_49] : memref<2x1x512xf32, #tpu.memory_space<vmem>>, vector<1x1x512xf32>
    %108 = vector.shape_cast %107 : vector<1x1x512xf32> to vector<1x512xf32>
    %109 = vector.broadcast %108 : vector<1x512xf32> to vector<128x512xf32>
    %110 = arith.addf %106, %109 : vector<128x512xf32>
    %111 = arith.mulf %110, %110 : vector<128x512xf32>
    %112 = arith.mulf %110, %111 : vector<128x512xf32>
    %cst_50 = arith.constant 4.471500e-02 : f32
    %113 = vector.broadcast %cst_50 : f32 to vector<128x512xf32>
    %114 = arith.mulf %113, %112 : vector<128x512xf32>
    %115 = arith.addf %110, %114 : vector<128x512xf32>
    %cst_51 = arith.constant 0.797884583 : f32
    %116 = vector.broadcast %cst_51 : f32 to vector<128x512xf32>
    %117 = arith.mulf %116, %115 : vector<128x512xf32>
    %118 = math.tanh %117 : vector<128x512xf32>
    %cst_52 = arith.constant 1.000000e+00 : f32
    %119 = vector.broadcast %cst_52 : f32 to vector<128x512xf32>
    %120 = arith.addf %119, %118 : vector<128x512xf32>
    %cst_53 = arith.constant 5.000000e-01 : f32
    %121 = vector.broadcast %cst_53 : f32 to vector<128x512xf32>
    %122 = arith.mulf %121, %120 : vector<128x512xf32>
    %123 = arith.mulf %110, %122 : vector<128x512xf32>
    %124 = arith.truncf %123 : vector<128x512xf32> to vector<128x512xbf16>
    %c0_54 = arith.constant 0 : index
    %c0_55 = arith.constant 0 : index
    %c0_56 = arith.constant 0 : index
    %125 = vector.load %arg12[%c0_54, %c0_55, %c0_56] : memref<2x512x256xbf16, #tpu.memory_space<vmem>>, vector<1x512x256xbf16>
    %126 = vector.shape_cast %125 : vector<1x512x256xbf16> to vector<512x256xbf16>
    %cst_57 = arith.constant dense<0.000000e+00> : vector<128x256xf32>
    %127 = tpu.matmul %124, %126, %cst_57 {dimension_numbers = #tpu.dot_dimension_numbers<[1], [0], [0], [1], [0, 0, 1, 1], [], []>} : vector<128x512xbf16>, vector<512x256xbf16>, vector<128x256xf32> -> vector<128x256xf32>
    %c0_58 = arith.constant 0 : index
    %c0_59 = arith.constant 0 : index
    %c0_60 = arith.constant 0 : index
    %128 = vector.load %arg13[%c0_58, %c0_59, %c0_60] : memref<2x1x256xf32, #tpu.memory_space<vmem>>, vector<1x1x256xf32>
    %129 = vector.shape_cast %128 : vector<1x1x256xf32> to vector<1x256xf32>
    %130 = vector.broadcast %129 : vector<1x256xf32> to vector<128x256xf32>
    %131 = arith.addf %127, %130 : vector<128x256xf32>
    %132 = arith.addf %102, %131 : vector<128x256xf32>
    %c0_61 = arith.constant 0 : index
    %c0_62 = arith.constant 0 : index
    %c0_63 = arith.constant 0 : index
    %133 = vector.load %arg14[%c0_61, %c0_62, %c0_63] : memref<2x1x256xf32, #tpu.memory_space<vmem>>, vector<1x1x256xf32>
    %134 = vector.shape_cast %133 : vector<1x1x256xf32> to vector<1x256xf32>
    %c0_64 = arith.constant 0 : index
    %c0_65 = arith.constant 0 : index
    %c0_66 = arith.constant 0 : index
    %135 = vector.load %arg15[%c0_64, %c0_65, %c0_66] : memref<2x1x256xf32, #tpu.memory_space<vmem>>, vector<1x1x256xf32>
    %136 = vector.shape_cast %135 : vector<1x1x256xf32> to vector<1x256xf32>
    %cst_67 = arith.constant dense<0.000000e+00> : vector<128xf32>
    %137 = vector.multi_reduction <add>, %132, %cst_67 [1] : vector<128x256xf32> to vector<128xf32>
    %138 = vector.shape_cast %137 : vector<128xf32> to vector<128x1xf32>
    %cst_68 = arith.constant 2.560000e+02 : f32
    %139 = vector.broadcast %cst_68 : f32 to vector<128x1xf32>
    %140 = arith.divf %138, %139 : vector<128x1xf32>
    %141 = vector.broadcast %140 : vector<128x1xf32> to vector<128x256xf32>
    %142 = arith.subf %132, %141 : vector<128x256xf32>
    %143 = arith.mulf %142, %142 : vector<128x256xf32>
    %cst_69 = arith.constant dense<0.000000e+00> : vector<128xf32>
    %144 = vector.multi_reduction <add>, %143, %cst_69 [1] : vector<128x256xf32> to vector<128xf32>
    %145 = vector.shape_cast %144 : vector<128xf32> to vector<128x1xf32>
    %cst_70 = arith.constant 2.560000e+02 : f32
    %146 = vector.broadcast %cst_70 : f32 to vector<128x1xf32>
    %147 = arith.divf %145, %146 : vector<128x1xf32>
    %148 = vector.broadcast %140 : vector<128x1xf32> to vector<128x256xf32>
    %149 = arith.subf %132, %148 : vector<128x256xf32>
    %cst_71 = arith.constant 9.99999974E-6 : f32
    %150 = vector.broadcast %cst_71 : f32 to vector<128x1xf32>
    %151 = arith.addf %147, %150 : vector<128x1xf32>
    %152 = math.rsqrt %151 : vector<128x1xf32>
    %153 = vector.broadcast %152 : vector<128x1xf32> to vector<128x256xf32>
    %154 = arith.mulf %149, %153 : vector<128x256xf32>
    %155 = vector.broadcast %134 : vector<1x256xf32> to vector<128x256xf32>
    %156 = arith.mulf %154, %155 : vector<128x256xf32>
    %157 = vector.broadcast %136 : vector<1x256xf32> to vector<128x256xf32>
    %158 = arith.addf %156, %157 : vector<128x256xf32>
    %159 = arith.truncf %158 : vector<128x256xf32> to vector<128x256xbf16>
    %c1 = arith.constant 1 : index
    %c0_72 = arith.constant 0 : index
    %c0_73 = arith.constant 0 : index
    %160 = vector.load %arg4[%c1, %c0_72, %c0_73] : memref<2x256x768xbf16, #tpu.memory_space<vmem>>, vector<1x256x768xbf16>
    %161 = vector.shape_cast %160 : vector<1x256x768xbf16> to vector<256x768xbf16>
    %cst_74 = arith.constant dense<0.000000e+00> : vector<128x768xf32>
    %162 = tpu.matmul %159, %161, %cst_74 {dimension_numbers = #tpu.dot_dimension_numbers<[1], [0], [0], [1], [0, 0, 1, 1], [], []>} : vector<128x256xbf16>, vector<256x768xbf16>, vector<128x768xf32> -> vector<128x768xf32>
    %c1_75 = arith.constant 1 : index
    %c0_76 = arith.constant 0 : index
    %c0_77 = arith.constant 0 : index
    %163 = vector.load %arg5[%c1_75, %c0_76, %c0_77] : memref<2x1x768xf32, #tpu.memory_space<vmem>>, vector<1x1x768xf32>
    %164 = vector.shape_cast %163 : vector<1x1x768xf32> to vector<1x768xf32>
    %165 = vector.broadcast %164 : vector<1x768xf32> to vector<128x768xf32>
    %166 = arith.addf %162, %165 : vector<128x768xf32>
    %167 = arith.truncf %166 : vector<128x768xf32> to vector<128x768xbf16>
    %168 = vector.extract_strided_slice %167 {offsets = [0, 0], sizes = [128, 128], strides = [1, 1]} : vector<128x768xbf16> to vector<128x128xbf16>
    %169 = vector.extract_strided_slice %167 {offsets = [0, 256], sizes = [128, 128], strides = [1, 1]} : vector<128x768xbf16> to vector<128x128xbf16>
    %170 = vector.extract_strided_slice %167 {offsets = [0, 512], sizes = [128, 128], strides = [1, 1]} : vector<128x768xbf16> to vector<128x128xbf16>
    %cst_78 = arith.constant dense<0.000000e+00> : vector<128x128xf32>
    %171 = tpu.matmul %168, %169, %cst_78 {dimension_numbers = #tpu.dot_dimension_numbers<[1], [1], [0], [0], [0, 0, 1, 0], [], []>} : vector<128x128xbf16>, vector<128x128xbf16>, vector<128x128xf32> -> vector<128x128xf32>
    %cst_79 = arith.constant dense<0xFF800000> : vector<128xf32>
    %172 = vector.multi_reduction <maximumf>, %171, %cst_79 [1] : vector<128x128xf32> to vector<128xf32>
    %173 = vector.shape_cast %172 : vector<128xf32> to vector<128x1xf32>
    %174 = vector.broadcast %173 : vector<128x1xf32> to vector<128x128xf32>
    %175 = arith.subf %171, %174 : vector<128x128xf32>
    %176 = math.exp %175 : vector<128x128xf32>
    %cst_80 = arith.constant dense<0.000000e+00> : vector<128xf32>
    %177 = vector.multi_reduction <add>, %176, %cst_80 [1] : vector<128x128xf32> to vector<128xf32>
    %178 = vector.shape_cast %177 : vector<128xf32> to vector<128x1xf32>
    %179 = tpu.reciprocal %178 {approx = true} : vector<128x1xf32> -> vector<128x1xf32>
    %180 = vector.broadcast %179 : vector<128x1xf32> to vector<128x128xf32>
    %181 = arith.mulf %176, %180 : vector<128x128xf32>
    %182 = arith.truncf %181 : vector<128x128xf32> to vector<128x128xbf16>
    %cst_81 = arith.constant dense<0.000000e+00> : vector<128x128xf32>
    %183 = tpu.matmul %182, %170, %cst_81 {dimension_numbers = #tpu.dot_dimension_numbers<[1], [0], [0], [1], [0, 0, 1, 1], [], []>} : vector<128x128xbf16>, vector<128x128xbf16>, vector<128x128xf32> -> vector<128x128xf32>
    %184 = vector.extract_strided_slice %167 {offsets = [0, 128], sizes = [128, 128], strides = [1, 1]} : vector<128x768xbf16> to vector<128x128xbf16>
    %185 = vector.extract_strided_slice %167 {offsets = [0, 384], sizes = [128, 128], strides = [1, 1]} : vector<128x768xbf16> to vector<128x128xbf16>
    %186 = vector.extract_strided_slice %167 {offsets = [0, 640], sizes = [128, 128], strides = [1, 1]} : vector<128x768xbf16> to vector<128x128xbf16>
    %cst_82 = arith.constant dense<0.000000e+00> : vector<128x128xf32>
    %187 = tpu.matmul %184, %185, %cst_82 {dimension_numbers = #tpu.dot_dimension_numbers<[1], [1], [0], [0], [0, 0, 1, 0], [], []>} : vector<128x128xbf16>, vector<128x128xbf16>, vector<128x128xf32> -> vector<128x128xf32>
    %cst_83 = arith.constant dense<0xFF800000> : vector<128xf32>
    %188 = vector.multi_reduction <maximumf>, %187, %cst_83 [1] : vector<128x128xf32> to vector<128xf32>
    %189 = vector.shape_cast %188 : vector<128xf32> to vector<128x1xf32>
    %190 = vector.broadcast %189 : vector<128x1xf32> to vector<128x128xf32>
    %191 = arith.subf %187, %190 : vector<128x128xf32>
    %192 = math.exp %191 : vector<128x128xf32>
    %cst_84 = arith.constant dense<0.000000e+00> : vector<128xf32>
    %193 = vector.multi_reduction <add>, %192, %cst_84 [1] : vector<128x128xf32> to vector<128xf32>
    %194 = vector.shape_cast %193 : vector<128xf32> to vector<128x1xf32>
    %195 = tpu.reciprocal %194 {approx = true} : vector<128x1xf32> -> vector<128x1xf32>
    %196 = vector.broadcast %195 : vector<128x1xf32> to vector<128x128xf32>
    %197 = arith.mulf %192, %196 : vector<128x128xf32>
    %198 = arith.truncf %197 : vector<128x128xf32> to vector<128x128xbf16>
    %cst_85 = arith.constant dense<0.000000e+00> : vector<128x128xf32>
    %199 = tpu.matmul %198, %186, %cst_85 {dimension_numbers = #tpu.dot_dimension_numbers<[1], [0], [0], [1], [0, 0, 1, 1], [], []>} : vector<128x128xbf16>, vector<128x128xbf16>, vector<128x128xf32> -> vector<128x128xf32>
    %200 = tpu.concatenate %183, %199 in 1 : vector<128x128xf32>, vector<128x128xf32> -> vector<128x256xf32>
    %201 = arith.truncf %200 : vector<128x256xf32> to vector<128x256xbf16>
    %c1_86 = arith.constant 1 : index
    %c0_87 = arith.constant 0 : index
    %c0_88 = arith.constant 0 : index
    %202 = vector.load %arg6[%c1_86, %c0_87, %c0_88] : memref<2x256x256xbf16, #tpu.memory_space<vmem>>, vector<1x256x256xbf16>
    %203 = vector.shape_cast %202 : vector<1x256x256xbf16> to vector<256x256xbf16>
    %cst_89 = arith.constant dense<0.000000e+00> : vector<128x256xf32>
    %204 = tpu.matmul %201, %203, %cst_89 {dimension_numbers = #tpu.dot_dimension_numbers<[1], [0], [0], [1], [0, 0, 1, 1], [], []>} : vector<128x256xbf16>, vector<256x256xbf16>, vector<128x256xf32> -> vector<128x256xf32>
    %c1_90 = arith.constant 1 : index
    %c0_91 = arith.constant 0 : index
    %c0_92 = arith.constant 0 : index
    %205 = vector.load %arg7[%c1_90, %c0_91, %c0_92] : memref<2x1x256xf32, #tpu.memory_space<vmem>>, vector<1x1x256xf32>
    %206 = vector.shape_cast %205 : vector<1x1x256xf32> to vector<1x256xf32>
    %207 = vector.broadcast %206 : vector<1x256xf32> to vector<128x256xf32>
    %208 = arith.addf %204, %207 : vector<128x256xf32>
    %209 = arith.addf %158, %208 : vector<128x256xf32>
    %c1_93 = arith.constant 1 : index
    %c0_94 = arith.constant 0 : index
    %c0_95 = arith.constant 0 : index
    %210 = vector.load %arg8[%c1_93, %c0_94, %c0_95] : memref<2x1x256xf32, #tpu.memory_space<vmem>>, vector<1x1x256xf32>
    %211 = vector.shape_cast %210 : vector<1x1x256xf32> to vector<1x256xf32>
    %c1_96 = arith.constant 1 : index
    %c0_97 = arith.constant 0 : index
    %c0_98 = arith.constant 0 : index
    %212 = vector.load %arg9[%c1_96, %c0_97, %c0_98] : memref<2x1x256xf32, #tpu.memory_space<vmem>>, vector<1x1x256xf32>
    %213 = vector.shape_cast %212 : vector<1x1x256xf32> to vector<1x256xf32>
    %cst_99 = arith.constant dense<0.000000e+00> : vector<128xf32>
    %214 = vector.multi_reduction <add>, %209, %cst_99 [1] : vector<128x256xf32> to vector<128xf32>
    %215 = vector.shape_cast %214 : vector<128xf32> to vector<128x1xf32>
    %cst_100 = arith.constant 2.560000e+02 : f32
    %216 = vector.broadcast %cst_100 : f32 to vector<128x1xf32>
    %217 = arith.divf %215, %216 : vector<128x1xf32>
    %218 = vector.broadcast %217 : vector<128x1xf32> to vector<128x256xf32>
    %219 = arith.subf %209, %218 : vector<128x256xf32>
    %220 = arith.mulf %219, %219 : vector<128x256xf32>
    %cst_101 = arith.constant dense<0.000000e+00> : vector<128xf32>
    %221 = vector.multi_reduction <add>, %220, %cst_101 [1] : vector<128x256xf32> to vector<128xf32>
    %222 = vector.shape_cast %221 : vector<128xf32> to vector<128x1xf32>
    %cst_102 = arith.constant 2.560000e+02 : f32
    %223 = vector.broadcast %cst_102 : f32 to vector<128x1xf32>
    %224 = arith.divf %222, %223 : vector<128x1xf32>
    %225 = vector.broadcast %217 : vector<128x1xf32> to vector<128x256xf32>
    %226 = arith.subf %209, %225 : vector<128x256xf32>
    %cst_103 = arith.constant 9.99999974E-6 : f32
    %227 = vector.broadcast %cst_103 : f32 to vector<128x1xf32>
    %228 = arith.addf %224, %227 : vector<128x1xf32>
    %229 = math.rsqrt %228 : vector<128x1xf32>
    %230 = vector.broadcast %229 : vector<128x1xf32> to vector<128x256xf32>
    %231 = arith.mulf %226, %230 : vector<128x256xf32>
    %232 = vector.broadcast %211 : vector<1x256xf32> to vector<128x256xf32>
    %233 = arith.mulf %231, %232 : vector<128x256xf32>
    %234 = vector.broadcast %213 : vector<1x256xf32> to vector<128x256xf32>
    %235 = arith.addf %233, %234 : vector<128x256xf32>
    %236 = arith.truncf %235 : vector<128x256xf32> to vector<128x256xbf16>
    %c1_104 = arith.constant 1 : index
    %c0_105 = arith.constant 0 : index
    %c0_106 = arith.constant 0 : index
    %237 = vector.load %arg10[%c1_104, %c0_105, %c0_106] : memref<2x256x512xbf16, #tpu.memory_space<vmem>>, vector<1x256x512xbf16>
    %238 = vector.shape_cast %237 : vector<1x256x512xbf16> to vector<256x512xbf16>
    %cst_107 = arith.constant dense<0.000000e+00> : vector<128x512xf32>
    %239 = tpu.matmul %236, %238, %cst_107 {dimension_numbers = #tpu.dot_dimension_numbers<[1], [0], [0], [1], [0, 0, 1, 1], [], []>} : vector<128x256xbf16>, vector<256x512xbf16>, vector<128x512xf32> -> vector<128x512xf32>
    %c1_108 = arith.constant 1 : index
    %c0_109 = arith.constant 0 : index
    %c0_110 = arith.constant 0 : index
    %240 = vector.load %arg11[%c1_108, %c0_109, %c0_110] : memref<2x1x512xf32, #tpu.memory_space<vmem>>, vector<1x1x512xf32>
    %241 = vector.shape_cast %240 : vector<1x1x512xf32> to vector<1x512xf32>
    %242 = vector.broadcast %241 : vector<1x512xf32> to vector<128x512xf32>
    %243 = arith.addf %239, %242 : vector<128x512xf32>
    %244 = arith.mulf %243, %243 : vector<128x512xf32>
    %245 = arith.mulf %243, %244 : vector<128x512xf32>
    %cst_111 = arith.constant 4.471500e-02 : f32
    %246 = vector.broadcast %cst_111 : f32 to vector<128x512xf32>
    %247 = arith.mulf %246, %245 : vector<128x512xf32>
    %248 = arith.addf %243, %247 : vector<128x512xf32>
    %cst_112 = arith.constant 0.797884583 : f32
    %249 = vector.broadcast %cst_112 : f32 to vector<128x512xf32>
    %250 = arith.mulf %249, %248 : vector<128x512xf32>
    %251 = math.tanh %250 : vector<128x512xf32>
    %cst_113 = arith.constant 1.000000e+00 : f32
    %252 = vector.broadcast %cst_113 : f32 to vector<128x512xf32>
    %253 = arith.addf %252, %251 : vector<128x512xf32>
    %cst_114 = arith.constant 5.000000e-01 : f32
    %254 = vector.broadcast %cst_114 : f32 to vector<128x512xf32>
    %255 = arith.mulf %254, %253 : vector<128x512xf32>
    %256 = arith.mulf %243, %255 : vector<128x512xf32>
    %257 = arith.truncf %256 : vector<128x512xf32> to vector<128x512xbf16>
    %c1_115 = arith.constant 1 : index
    %c0_116 = arith.constant 0 : index
    %c0_117 = arith.constant 0 : index
    %258 = vector.load %arg12[%c1_115, %c0_116, %c0_117] : memref<2x512x256xbf16, #tpu.memory_space<vmem>>, vector<1x512x256xbf16>
    %259 = vector.shape_cast %258 : vector<1x512x256xbf16> to vector<512x256xbf16>
    %cst_118 = arith.constant dense<0.000000e+00> : vector<128x256xf32>
    %260 = tpu.matmul %257, %259, %cst_118 {dimension_numbers = #tpu.dot_dimension_numbers<[1], [0], [0], [1], [0, 0, 1, 1], [], []>} : vector<128x512xbf16>, vector<512x256xbf16>, vector<128x256xf32> -> vector<128x256xf32>
    %c1_119 = arith.constant 1 : index
    %c0_120 = arith.constant 0 : index
    %c0_121 = arith.constant 0 : index
    %261 = vector.load %arg13[%c1_119, %c0_120, %c0_121] : memref<2x1x256xf32, #tpu.memory_space<vmem>>, vector<1x1x256xf32>
    %262 = vector.shape_cast %261 : vector<1x1x256xf32> to vector<1x256xf32>
    %263 = vector.broadcast %262 : vector<1x256xf32> to vector<128x256xf32>
    %264 = arith.addf %260, %263 : vector<128x256xf32>
    %265 = arith.addf %235, %264 : vector<128x256xf32>
    %c1_122 = arith.constant 1 : index
    %c0_123 = arith.constant 0 : index
    %c0_124 = arith.constant 0 : index
    %266 = vector.load %arg14[%c1_122, %c0_123, %c0_124] : memref<2x1x256xf32, #tpu.memory_space<vmem>>, vector<1x1x256xf32>
    %267 = vector.shape_cast %266 : vector<1x1x256xf32> to vector<1x256xf32>
    %c1_125 = arith.constant 1 : index
    %c0_126 = arith.constant 0 : index
    %c0_127 = arith.constant 0 : index
    %268 = vector.load %arg15[%c1_125, %c0_126, %c0_127] : memref<2x1x256xf32, #tpu.memory_space<vmem>>, vector<1x1x256xf32>
    %269 = vector.shape_cast %268 : vector<1x1x256xf32> to vector<1x256xf32>
    %cst_128 = arith.constant dense<0.000000e+00> : vector<128xf32>
    %270 = vector.multi_reduction <add>, %265, %cst_128 [1] : vector<128x256xf32> to vector<128xf32>
    %271 = vector.shape_cast %270 : vector<128xf32> to vector<128x1xf32>
    %cst_129 = arith.constant 2.560000e+02 : f32
    %272 = vector.broadcast %cst_129 : f32 to vector<128x1xf32>
    %273 = arith.divf %271, %272 : vector<128x1xf32>
    %274 = vector.broadcast %273 : vector<128x1xf32> to vector<128x256xf32>
    %275 = arith.subf %265, %274 : vector<128x256xf32>
    %276 = arith.mulf %275, %275 : vector<128x256xf32>
    %cst_130 = arith.constant dense<0.000000e+00> : vector<128xf32>
    %277 = vector.multi_reduction <add>, %276, %cst_130 [1] : vector<128x256xf32> to vector<128xf32>
    %278 = vector.shape_cast %277 : vector<128xf32> to vector<128x1xf32>
    %cst_131 = arith.constant 2.560000e+02 : f32
    %279 = vector.broadcast %cst_131 : f32 to vector<128x1xf32>
    %280 = arith.divf %278, %279 : vector<128x1xf32>
    %281 = vector.broadcast %273 : vector<128x1xf32> to vector<128x256xf32>
    %282 = arith.subf %265, %281 : vector<128x256xf32>
    %cst_132 = arith.constant 9.99999974E-6 : f32
    %283 = vector.broadcast %cst_132 : f32 to vector<128x1xf32>
    %284 = arith.addf %280, %283 : vector<128x1xf32>
    %285 = math.rsqrt %284 : vector<128x1xf32>
    %286 = vector.broadcast %285 : vector<128x1xf32> to vector<128x256xf32>
    %287 = arith.mulf %282, %286 : vector<128x256xf32>
    %288 = vector.broadcast %267 : vector<1x256xf32> to vector<128x256xf32>
    %289 = arith.mulf %287, %288 : vector<128x256xf32>
    %290 = vector.broadcast %269 : vector<1x256xf32> to vector<128x256xf32>
    %291 = arith.addf %289, %290 : vector<128x256xf32>
    %292 = vector.extract_strided_slice %291 {offsets = [0, 0], sizes = [1, 256], strides = [1, 1]} : vector<128x256xf32> to vector<1x256xf32>
    %293 = arith.truncf %292 : vector<1x256xf32> to vector<1x256xbf16>
    %c0_133 = arith.constant 0 : index
    %c0_134 = arith.constant 0 : index
    %294 = vector.load %arg16[%c0_133, %c0_134] : memref<256x256xbf16, #tpu.memory_space<vmem>>, vector<256x256xbf16>
    %cst_135 = arith.constant dense<0.000000e+00> : vector<1x256xf32>
    %295 = tpu.matmul %293, %294, %cst_135 {dimension_numbers = #tpu.dot_dimension_numbers<[1], [0], [0], [1], [0, 0, 1, 1], [], []>} : vector<1x256xbf16>, vector<256x256xbf16>, vector<1x256xf32> -> vector<1x256xf32>
    %c0_136 = arith.constant 0 : index
    %c0_137 = arith.constant 0 : index
    %296 = vector.load %arg17[%c0_136, %c0_137] : memref<1x256xf32, #tpu.memory_space<vmem>>, vector<1x256xf32>
    %297 = arith.addf %295, %296 : vector<1x256xf32>
    %298 = math.tanh %297 : vector<1x256xf32>
    %299 = arith.truncf %298 : vector<1x256xf32> to vector<1x256xbf16>
    %c0_138 = arith.constant 0 : index
    %c0_139 = arith.constant 0 : index
    %300 = vector.load %arg18[%c0_138, %c0_139] : memref<256x128xbf16, #tpu.memory_space<vmem>>, vector<256x128xbf16>
    %cst_140 = arith.constant dense<0.000000e+00> : vector<1x128xf32>
    %301 = tpu.matmul %299, %300, %cst_140 {dimension_numbers = #tpu.dot_dimension_numbers<[1], [0], [0], [1], [0, 0, 1, 1], [], []>} : vector<1x256xbf16>, vector<256x128xbf16>, vector<1x128xf32> -> vector<1x128xf32>
    %c0_141 = arith.constant 0 : index
    %c0_142 = arith.constant 0 : index
    %302 = vector.load %arg19[%c0_141, %c0_142] : memref<1x128xf32, #tpu.memory_space<vmem>>, vector<1x128xf32>
    %303 = arith.addf %301, %302 : vector<1x128xf32>
    %c0_143 = arith.constant 0 : index
    %c0_144 = arith.constant 0 : index
    %c0_145 = arith.constant 0 : index
    %304 = vector.load %arg20[%c0_143, %c0_144, %c0_145] : memref<1x1x128xf32, #tpu.memory_space<vmem>>, vector<1x1x128xf32>
    %305 = vector.shape_cast %304 : vector<1x1x128xf32> to vector<1x128xf32>
    %306 = vector.shape_cast %303 : vector<1x128xf32> to vector<1x1x128xf32>
    tpu.vector_store %arg20[%c0_143, %c0_144, %c0_145], %306 {strides = array<i32>} : memref<1x1x128xf32, #tpu.memory_space<vmem>>, vector<1x1x128xf32>,
    return
  }
  func.func @transform_0(%arg0: i32) -> (i32, i32, i32) {
    %c0_i32 = arith.constant 0 : i32
    %c0_i32_0 = arith.constant 0 : i32
    %c0_i32_1 = arith.constant 0 : i32
    return %arg0, %c0_i32, %c0_i32_0 : i32, i32, i32
  }
  func.func @transform_1(%arg0: i32) -> (i32, i32) {
    %c0_i32 = arith.constant 0 : i32
    %c0_i32_0 = arith.constant 0 : i32
    %c0_i32_1 = arith.constant 0 : i32
    return %c0_i32, %c0_i32_0 : i32, i32
  }
  func.func @transform_2(%arg0: i32) -> (i32, i32) {
    %c0_i32 = arith.constant 0 : i32
    %c0_i32_0 = arith.constant 0 : i32
    %c0_i32_1 = arith.constant 0 : i32
    return %c0_i32, %c0_i32_0 : i32, i32
  }
  func.func @transform_3(%arg0: i32) -> (i32, i32, i32) {
    %c0_i32 = arith.constant 0 : i32
    %c0_i32_0 = arith.constant 0 : i32
    %c0_i32_1 = arith.constant 0 : i32
    %c0_i32_2 = arith.constant 0 : i32
    return %c0_i32, %c0_i32_0, %c0_i32_1 : i32, i32, i32
  }
  func.func @transform_4(%arg0: i32) -> (i32, i32, i32) {
    %c0_i32 = arith.constant 0 : i32
    %c0_i32_0 = arith.constant 0 : i32
    %c0_i32_1 = arith.constant 0 : i32
    %c0_i32_2 = arith.constant 0 : i32
    return %c0_i32, %c0_i32_0, %c0_i32_1 : i32, i32, i32
  }
  func.func @transform_5(%arg0: i32) -> (i32, i32, i32) {
    %c0_i32 = arith.constant 0 : i32
    %c0_i32_0 = arith.constant 0 : i32
    %c0_i32_1 = arith.constant 0 : i32
    %c0_i32_2 = arith.constant 0 : i32
    return %c0_i32, %c0_i32_0, %c0_i32_1 : i32, i32, i32
  }
  func.func @transform_6(%arg0: i32) -> (i32, i32, i32) {
    %c0_i32 = arith.constant 0 : i32
    %c0_i32_0 = arith.constant 0 : i32
    %c0_i32_1 = arith.constant 0 : i32
    %c0_i32_2 = arith.constant 0 : i32
    return %c0_i32, %c0_i32_0, %c0_i32_1 : i32, i32, i32
  }
  func.func @transform_7(%arg0: i32) -> (i32, i32, i32) {
    %c0_i32 = arith.constant 0 : i32
    %c0_i32_0 = arith.constant 0 : i32
    %c0_i32_1 = arith.constant 0 : i32
    %c0_i32_2 = arith.constant 0 : i32
    return %c0_i32, %c0_i32_0, %c0_i32_1 : i32, i32, i32
  }
  func.func @transform_8(%arg0: i32) -> (i32, i32, i32) {
    %c0_i32 = arith.constant 0 : i32
    %c0_i32_0 = arith.constant 0 : i32
    %c0_i32_1 = arith.constant 0 : i32
    %c0_i32_2 = arith.constant 0 : i32
    return %c0_i32, %c0_i32_0, %c0_i32_1 : i32, i32, i32
  }
  func.func @transform_9(%arg0: i32) -> (i32, i32, i32) {
    %c0_i32 = arith.constant 0 : i32
    %c0_i32_0 = arith.constant 0 : i32
    %c0_i32_1 = arith.constant 0 : i32
    %c0_i32_2 = arith.constant 0 : i32
    return %c0_i32, %c0_i32_0, %c0_i32_1 : i32, i32, i32
  }
  func.func @transform_10(%arg0: i32) -> (i32, i32, i32) {
    %c0_i32 = arith.constant 0 : i32
    %c0_i32_0 = arith.constant 0 : i32
    %c0_i32_1 = arith.constant 0 : i32
    %c0_i32_2 = arith.constant 0 : i32
    return %c0_i32, %c0_i32_0, %c0_i32_1 : i32, i32, i32
  }
  func.func @transform_11(%arg0: i32) -> (i32, i32, i32) {
    %c0_i32 = arith.constant 0 : i32
    %c0_i32_0 = arith.constant 0 : i32
    %c0_i32_1 = arith.constant 0 : i32
    %c0_i32_2 = arith.constant 0 : i32
    return %c0_i32, %c0_i32_0, %c0_i32_1 : i32, i32, i32
  }
  func.func @transform_12(%arg0: i32) -> (i32, i32, i32) {
    %c0_i32 = arith.constant 0 : i32
    %c0_i32_0 = arith.constant 0 : i32
    %c0_i32_1 = arith.constant 0 : i32
    %c0_i32_2 = arith.constant 0 : i32
    return %c0_i32, %c0_i32_0, %c0_i32_1 : i32, i32, i32
  }
  func.func @transform_13(%arg0: i32) -> (i32, i32, i32) {
    %c0_i32 = arith.constant 0 : i32
    %c0_i32_0 = arith.constant 0 : i32
    %c0_i32_1 = arith.constant 0 : i32
    %c0_i32_2 = arith.constant 0 : i32
    return %c0_i32, %c0_i32_0, %c0_i32_1 : i32, i32, i32
  }
  func.func @transform_14(%arg0: i32) -> (i32, i32, i32) {
    %c0_i32 = arith.constant 0 : i32
    %c0_i32_0 = arith.constant 0 : i32
    %c0_i32_1 = arith.constant 0 : i32
    %c0_i32_2 = arith.constant 0 : i32
    return %c0_i32, %c0_i32_0, %c0_i32_1 : i32, i32, i32
  }
  func.func @transform_15(%arg0: i32) -> (i32, i32) {
    %c0_i32 = arith.constant 0 : i32
    %c0_i32_0 = arith.constant 0 : i32
    %c0_i32_1 = arith.constant 0 : i32
    return %c0_i32, %c0_i32_0 : i32, i32
  }
  func.func @transform_16(%arg0: i32) -> (i32, i32) {
    %c0_i32 = arith.constant 0 : i32
    %c0_i32_0 = arith.constant 0 : i32
    %c0_i32_1 = arith.constant 0 : i32
    return %c0_i32, %c0_i32_0 : i32, i32
  }
  func.func @transform_17(%arg0: i32) -> (i32, i32) {
    %c0_i32 = arith.constant 0 : i32
    %c0_i32_0 = arith.constant 0 : i32
    %c0_i32_1 = arith.constant 0 : i32
    return %c0_i32, %c0_i32_0 : i32, i32
  }
  func.func @transform_18(%arg0: i32) -> (i32, i32) {
    %c0_i32 = arith.constant 0 : i32
    %c0_i32_0 = arith.constant 0 : i32
    %c0_i32_1 = arith.constant 0 : i32
    return %c0_i32, %c0_i32_0 : i32, i32
  }
  func.func @transform_19(%arg0: i32) -> (i32, i32, i32) {
    %c0_i32 = arith.constant 0 : i32
    %c0_i32_0 = arith.constant 0 : i32
    %c0_i32_1 = arith.constant 0 : i32
    return %arg0, %c0_i32, %c0_i32_0 : i32, i32, i32
  }
}

</mosaic_0001>

<llo_original>
// kernel: transformer_model_forward.1
$region0: #{transformer_model_forward.1}
  #allocation0 [shape = 'u32[]', space=smem, size = 0x4, offset = 0x4, fixed_abs, tag = 'smem constant byte address 0x4 - core index']
  #allocation1 [shape = 'u32[144,128]{1,0:T(1,128)}', space=vmem, size = 0x12000, scoped, tag = 'internal scratch']
  %s0 = inlined_call_operand.vmem [shape: f32[2,128,256], index: 0, kind: input, shape index: {}]
  %s1 = inlined_call_operand.vmem [shape: f32[1,256], index: 1, kind: input, shape index: {}]
  %s2 = inlined_call_operand.vmem [shape: f32[1,256], index: 2, kind: input, shape index: {}]
  %s3 = inlined_call_operand.vmem [shape: bf16[2,256,768], index: 3, kind: input, shape index: {}]
  %s4 = inlined_call_operand.vmem [shape: f32[2,1,768], index: 4, kind: input, shape index: {}]
  %s5 = inlined_call_operand.vmem [shape: bf16[2,256,256], index: 5, kind: input, shape index: {}]
  %s6 = inlined_call_operand.vmem [shape: f32[2,1,256], index: 6, kind: input, shape index: {}]
  %s7 = inlined_call_operand.vmem [shape: f32[2,1,256], index: 7, kind: input, shape index: {}]
  %s8 = inlined_call_operand.vmem [shape: f32[2,1,256], index: 8, kind: input, shape index: {}]
  %s9 = inlined_call_operand.vmem [shape: bf16[2,256,512], index: 9, kind: input, shape index: {}]
  %s10 = inlined_call_operand.vmem [shape: f32[2,1,512], index: 10, kind: input, shape index: {}]
  %s11 = inlined_call_operand.vmem [shape: bf16[2,512,256], index: 11, kind: input, shape index: {}]
  %s12 = inlined_call_operand.vmem [shape: f32[2,1,256], index: 12, kind: input, shape index: {}]
  %s13 = inlined_call_operand.vmem [shape: f32[2,1,256], index: 13, kind: input, shape index: {}]
  %s14 = inlined_call_operand.vmem [shape: f32[2,1,256], index: 14, kind: input, shape index: {}]
  %s15 = inlined_call_operand.vmem [shape: bf16[256,256], index: 15, kind: input, shape index: {}]
  %s16 = inlined_call_operand.vmem [shape: f32[1,256], index: 16, kind: input, shape index: {}]
  %s17 = inlined_call_operand.vmem [shape: bf16[256,128], index: 17, kind: input, shape index: {}]
  %s18 = inlined_call_operand.vmem [shape: f32[1,128], index: 18, kind: input, shape index: {}]
  %s19 = inlined_call_operand.hbm [shape: f32[2,1,128], index: 19, kind: output, shape index: {}]
  %s20 = sld [smem:[#allocation0]]
  $region109: #{transformer_model_forward.1} parent=0
    _
  %s22 = ssub.s32 1, %s20
  %s23 = scalar_select 0, %s22, %s20
  $region1: #{transformer_model_forward.1} parent=0
    #allocation2 [shape = 'u8[1024]{0}', space=vmem, size = 0x400, scoped, tag = 'output window, operand 0']
    #allocation3 [shape = 's32[2]{0}', space=sflag, size = 0x8, scoped, tag = 'scoped memory for transformer_model_forward.1']
    %24 = vsyncpa [#allocation3], 0
    %s25 = scalar_lea.sflag [#allocation3], 1
    %26 = vsyncpa %s25, 0
    loop: start=0, step=1, limit=4
    $region2: #{transformer_model_forward.1} parent=1 // loop_pre_header
      _
    $region3: #{transformer_model_forward.1} parent=1 // loop_header
      %s28 = sphi 0, %s32
      %p29 = scmp.ge.s32.totalorder %s28, 4
      %s38 = sphi 0, %s40
      %s41 = sphi 0, %s38
      %s42 = sphi 0, %s41
      %s58 = sphi 0, %s42
      %s62 = sphi 0, %s62
      %s64 = sphi 0, %s62
      %s65 = sphi 0, %s64
      %s79 = sphi 0, %s65
      %s83 = sphi 0, %s83
      %s85 = sphi 0, %s83
      %s86 = sphi 0, %s85
      %s100 = sphi 0, %s86
      %s104 = sphi 0, %s104
      %s106 = sphi 0, %s104
      %s107 = sphi 0, %s106
      %s121 = sphi 0, %s107
      %s125 = sphi 0, %s125
      %s127 = sphi 0, %s125
      %s128 = sphi 0, %s127
      %s142 = sphi 0, %s128
      %s146 = sphi 0, %s146
      %s148 = sphi 0, %s146
      %s149 = sphi 0, %s148
      %s163 = sphi 0, %s149
      %s167 = sphi 0, %s167
      %s169 = sphi 0, %s167
      %s170 = sphi 0, %s169
      %s184 = sphi 0, %s170
      %s188 = sphi 0, %s188
      %s190 = sphi 0, %s188
      %s191 = sphi 0, %s190
      %s205 = sphi 0, %s191
      %s209 = sphi 0, %s209
      %s211 = sphi 0, %s209
      %s212 = sphi 0, %s211
      %s226 = sphi 0, %s212
      %s230 = sphi 0, %s230
      %s232 = sphi 0, %s230
      %s233 = sphi 0, %s232
      %s247 = sphi 0, %s233
      %s251 = sphi 0, %s251
      %s253 = sphi 0, %s251
      %s254 = sphi 0, %s253
      %s268 = sphi 0, %s254
      %s272 = sphi 0, %s272
      %s274 = sphi 0, %s272
      %s275 = sphi 0, %s274
      %s289 = sphi 0, %s275
      %s293 = sphi 0, %s293
      %s295 = sphi 0, %s293
      %s296 = sphi 0, %s295
      %s310 = sphi 0, %s296
      %s314 = sphi 0, %s314
      %s316 = sphi 0, %s314
      %s317 = sphi 0, %s316
      %s331 = sphi 0, %s317
      %s335 = sphi 0, %s335
      %s337 = sphi 0, %s335
      %s338 = sphi 0, %s337
      %s352 = sphi 0, %s338
      %s356 = sphi 0, %s356
      %s358 = sphi 0, %s356
      %s359 = sphi 0, %s358
      %s373 = sphi 0, %s359
      %s377 = sphi 0, %s377
      %s379 = sphi 0, %s377
      %s380 = sphi 0, %s379
      %s394 = sphi 0, %s380
      %s398 = sphi 0, %s398
      %s400 = sphi 0, %s398
      %s401 = sphi 0, %s400
      %s415 = sphi 0, %s401
      %s419 = sphi 0, %s419
      %s421 = sphi 0, %s419
      %s422 = sphi 0, %s421
      %s436 = sphi 0, %s422
      %s442 = sphi 0, %s444
      %s445 = sphi 0, %s442
      %s446 = sphi 0, %s445
      %s462 = sphi 0, %s446
    $region4: #{transformer_model_forward.1} parent=1 // loop_header_branch
      %31 = sbr.rel (%p29) target = $region8
    $region5: #{transformer_model_forward.1} parent=1 // loop_body
      %s33 = ssub.s32 %s28, 1
      %s34 = ssub.s32 %s28, 2
      %s35 = sadd.s32 %s28, 1
      %s36 = ssub.s32 %s28, %s35
      %p37 = scmp.eq.s32.totalorder %s36, 0
      %s39 = sadd.s32 %s38, 1
      %s40 = scalar_select %p37, %s38, %s39
      %p43 = pneg %p37
      %p44 = scmp.eq.s32.totalorder %s28, 1
      %p45 = por %p43, %p44
      %p46 = scmp.ne.s32.totalorder %s38, %s41
      %p47 = scmp.eq.s32.totalorder %s28, 0
      %p48 = por %p46, %p47
      %p49 = scmp.ne.s32.totalorder %s38, %s41
      %p50 = scmp.eq.s32.totalorder %s33, 1
      %p51 = por %p49, %p50
      %p52 = scmp.ne.s32.totalorder %s41, %s42
      %p53 = scmp.eq.s32.totalorder %s33, 0
      %p54 = por %p52, %p53
      %p55 = scmp.ne.s32.totalorder %s41, %s42
      %p56 = scmp.eq.s32.totalorder %s34, 1
      %p57 = por %p55, %p56
      %p59 = scmp.ne.s32.totalorder %s42, %s58
      %p60 = scmp.eq.s32.totalorder %s34, 0
      %p61 = por %p59, %p60
      %s63 = sadd.s32 %s62, 1
      %p66 = scmp.eq.s32.totalorder %s28, 1
      %p67 = scmp.ne.s32.totalorder %s62, %s64
      %p68 = scmp.eq.s32.totalorder %s28, 0
      %p69 = por %p67, %p68
      %p70 = scmp.ne.s32.totalorder %s62, %s64
      %p71 = scmp.eq.s32.totalorder %s33, 1
      %p72 = por %p70, %p71
      %p73 = scmp.ne.s32.totalorder %s64, %s65
      %p74 = scmp.eq.s32.totalorder %s33, 0
      %p75 = por %p73, %p74
      %p76 = scmp.ne.s32.totalorder %s64, %s65
      %p77 = scmp.eq.s32.totalorder %s34, 1
      %p78 = por %p76, %p77
      %p80 = scmp.ne.s32.totalorder %s65, %s79
      %p81 = scmp.eq.s32.totalorder %s34, 0
      %p82 = por %p80, %p81
      %s84 = sadd.s32 %s83, 1
      %p87 = scmp.eq.s32.totalorder %s28, 1
      %p88 = scmp.ne.s32.totalorder %s83, %s85
      %p89 = scmp.eq.s32.totalorder %s28, 0
      %p90 = por %p88, %p89
      %p91 = scmp.ne.s32.totalorder %s83, %s85
      %p92 = scmp.eq.s32.totalorder %s33, 1
      %p93 = por %p91, %p92
      %p94 = scmp.ne.s32.totalorder %s85, %s86
      %p95 = scmp.eq.s32.totalorder %s33, 0
      %p96 = por %p94, %p95
      %p97 = scmp.ne.s32.totalorder %s85, %s86
      %p98 = scmp.eq.s32.totalorder %s34, 1
      %p99 = por %p97, %p98
      %p101 = scmp.ne.s32.totalorder %s86, %s100
      %p102 = scmp.eq.s32.totalorder %s34, 0
      %p103 = por %p101, %p102
      %s105 = sadd.s32 %s104, 1
      %p108 = scmp.eq.s32.totalorder %s28, 1
      %p109 = scmp.ne.s32.totalorder %s104, %s106
      %p110 = scmp.eq.s32.totalorder %s28, 0
      %p111 = por %p109, %p110
      %p112 = scmp.ne.s32.totalorder %s104, %s106
      %p113 = scmp.eq.s32.totalorder %s33, 1
      %p114 = por %p112, %p113
      %p115 = scmp.ne.s32.totalorder %s106, %s107
      %p116 = scmp.eq.s32.totalorder %s33, 0
      %p117 = por %p115, %p116
      %p118 = scmp.ne.s32.totalorder %s106, %s107
      %p119 = scmp.eq.s32.totalorder %s34, 1
      %p120 = por %p118, %p119
      %p122 = scmp.ne.s32.totalorder %s107, %s121
      %p123 = scmp.eq.s32.totalorder %s34, 0
      %p124 = por %p122, %p123
      %s126 = sadd.s32 %s125, 1
      %p129 = scmp.eq.s32.totalorder %s28, 1
      %p130 = scmp.ne.s32.totalorder %s125, %s127
      %p131 = scmp.eq.s32.totalorder %s28, 0
      %p132 = por %p130, %p131
      %p133 = scmp.ne.s32.totalorder %s125, %s127
      %p134 = scmp.eq.s32.totalorder %s33, 1
      %p135 = por %p133, %p134
      %p136 = scmp.ne.s32.totalorder %s127, %s128
      %p137 = scmp.eq.s32.totalorder %s33, 0
      %p138 = por %p136, %p137
      %p139 = scmp.ne.s32.totalorder %s127, %s128
      %p140 = scmp.eq.s32.totalorder %s34, 1
      %p141 = por %p139, %p140
      %p143 = scmp.ne.s32.totalorder %s128, %s142
      %p144 = scmp.eq.s32.totalorder %s34, 0
      %p145 = por %p143, %p144
      %s147 = sadd.s32 %s146, 1
      %p150 = scmp.eq.s32.totalorder %s28, 1
      %p151 = scmp.ne.s32.totalorder %s146, %s148
      %p152 = scmp.eq.s32.totalorder %s28, 0
      %p153 = por %p151, %p152
      %p154 = scmp.ne.s32.totalorder %s146, %s148
      %p155 = scmp.eq.s32.totalorder %s33, 1
      %p156 = por %p154, %p155
      %p157 = scmp.ne.s32.totalorder %s148, %s149
      %p158 = scmp.eq.s32.totalorder %s33, 0
      %p159 = por %p157, %p158
      %p160 = scmp.ne.s32.totalorder %s148, %s149
      %p161 = scmp.eq.s32.totalorder %s34, 1
      %p162 = por %p160, %p161
      %p164 = scmp.ne.s32.totalorder %s149, %s163
      %p165 = scmp.eq.s32.totalorder %s34, 0
      %p166 = por %p164, %p165
      %s168 = sadd.s32 %s167, 1
      %p171 = scmp.eq.s32.totalorder %s28, 1
      %p172 = scmp.ne.s32.totalorder %s167, %s169
      %p173 = scmp.eq.s32.totalorder %s28, 0
      %p174 = por %p172, %p173
      %p175 = scmp.ne.s32.totalorder %s167, %s169
      %p176 = scmp.eq.s32.totalorder %s33, 1
      %p177 = por %p175, %p176
      %p178 = scmp.ne.s32.totalorder %s169, %s170
      %p179 = scmp.eq.s32.totalorder %s33, 0
      %p180 = por %p178, %p179
      %p181 = scmp.ne.s32.totalorder %s169, %s170
      %p182 = scmp.eq.s32.totalorder %s34, 1
      %p183 = por %p181, %p182
      %p185 = scmp.ne.s32.totalorder %s170, %s184
      %p186 = scmp.eq.s32.totalorder %s34, 0
      %p187 = por %p185, %p186
      %s189 = sadd.s32 %s188, 1
      %p192 = scmp.eq.s32.totalorder %s28, 1
      %p193 = scmp.ne.s32.totalorder %s188, %s190
      %p194 = scmp.eq.s32.totalorder %s28, 0
      %p195 = por %p193, %p194
      %p196 = scmp.ne.s32.totalorder %s188, %s190
      %p197 = scmp.eq.s32.totalorder %s33, 1
      %p198 = por %p196, %p197
      %p199 = scmp.ne.s32.totalorder %s190, %s191
      %p200 = scmp.eq.s32.totalorder %s33, 0
      %p201 = por %p199, %p200
      %p202 = scmp.ne.s32.totalorder %s190, %s191
      %p203 = scmp.eq.s32.totalorder %s34, 1
      %p204 = por %p202, %p203
      %p206 = scmp.ne.s32.totalorder %s191, %s205
      %p207 = scmp.eq.s32.totalorder %s34, 0
      %p208 = por %p206, %p207
      %s210 = sadd.s32 %s209, 1
      %p213 = scmp.eq.s32.totalorder %s28, 1
      %p214 = scmp.ne.s32.totalorder %s209, %s211
      %p215 = scmp.eq.s32.totalorder %s28, 0
      %p216 = por %p214, %p215
      %p217 = scmp.ne.s32.totalorder %s209, %s211
      %p218 = scmp.eq.s32.totalorder %s33, 1
      %p219 = por %p217, %p218
      %p220 = scmp.ne.s32.totalorder %s211, %s212
      %p221 = scmp.eq.s32.totalorder %s33, 0
      %p222 = por %p220, %p221
      %p223 = scmp.ne.s32.totalorder %s211, %s212
      %p224 = scmp.eq.s32.totalorder %s34, 1
      %p225 = por %p223, %p224
      %p227 = scmp.ne.s32.totalorder %s212, %s226
      %p228 = scmp.eq.s32.totalorder %s34, 0
      %p229 = por %p227, %p228
      %s231 = sadd.s32 %s230, 1
      %p234 = scmp.eq.s32.totalorder %s28, 1
      %p235 = scmp.ne.s32.totalorder %s230, %s232
      %p236 = scmp.eq.s32.totalorder %s28, 0
      %p237 = por %p235, %p236
      %p238 = scmp.ne.s32.totalorder %s230, %s232
      %p239 = scmp.eq.s32.totalorder %s33, 1
      %p240 = por %p238, %p239
      %p241 = scmp.ne.s32.totalorder %s232, %s233
      %p242 = scmp.eq.s32.totalorder %s33, 0
      %p243 = por %p241, %p242
      %p244 = scmp.ne.s32.totalorder %s232, %s233
      %p245 = scmp.eq.s32.totalorder %s34, 1
      %p246 = por %p244, %p245
      %p248 = scmp.ne.s32.totalorder %s233, %s247
      %p249 = scmp.eq.s32.totalorder %s34, 0
      %p250 = por %p248, %p249
      %s252 = sadd.s32 %s251, 1
      %p255 = scmp.eq.s32.totalorder %s28, 1
      %p256 = scmp.ne.s32.totalorder %s251, %s253
      %p257 = scmp.eq.s32.totalorder %s28, 0
      %p258 = por %p256, %p257
      %p259 = scmp.ne.s32.totalorder %s251, %s253
      %p260 = scmp.eq.s32.totalorder %s33, 1
      %p261 = por %p259, %p260
      %p262 = scmp.ne.s32.totalorder %s253, %s254
      %p263 = scmp.eq.s32.totalorder %s33, 0
      %p264 = por %p262, %p263
      %p265 = scmp.ne.s32.totalorder %s253, %s254
      %p266 = scmp.eq.s32.totalorder %s34, 1
      %p267 = por %p265, %p266
      %p269 = scmp.ne.s32.totalorder %s254, %s268
      %p270 = scmp.eq.s32.totalorder %s34, 0
      %p271 = por %p269, %p270
      %s273 = sadd.s32 %s272, 1
      %p276 = scmp.eq.s32.totalorder %s28, 1
      %p277 = scmp.ne.s32.totalorder %s272, %s274
      %p278 = scmp.eq.s32.totalorder %s28, 0
      %p279 = por %p277, %p278
      %p280 = scmp.ne.s32.totalorder %s272, %s274
      %p281 = scmp.eq.s32.totalorder %s33, 1
      %p282 = por %p280, %p281
      %p283 = scmp.ne.s32.totalorder %s274, %s275
      %p284 = scmp.eq.s32.totalorder %s33, 0
      %p285 = por %p283, %p284
      %p286 = scmp.ne.s32.totalorder %s274, %s275
      %p287 = scmp.eq.s32.totalorder %s34, 1
      %p288 = por %p286, %p287
      %p290 = scmp.ne.s32.totalorder %s275, %s289
      %p291 = scmp.eq.s32.totalorder %s34, 0
      %p292 = por %p290, %p291
      %s294 = sadd.s32 %s293, 1
      %p297 = scmp.eq.s32.totalorder %s28, 1
      %p298 = scmp.ne.s32.totalorder %s293, %s295
      %p299 = scmp.eq.s32.totalorder %s28, 0
      %p300 = por %p298, %p299
      %p301 = scmp.ne.s32.totalorder %s293, %s295
      %p302 = scmp.eq.s32.totalorder %s33, 1
      %p303 = por %p301, %p302
      %p304 = scmp.ne.s32.totalorder %s295, %s296
      %p305 = scmp.eq.s32.totalorder %s33, 0
      %p306 = por %p304, %p305
      %p307 = scmp.ne.s32.totalorder %s295, %s296
      %p308 = scmp.eq.s32.totalorder %s34, 1
      %p309 = por %p307, %p308
      %p311 = scmp.ne.s32.totalorder %s296, %s310
      %p312 = scmp.eq.s32.totalorder %s34, 0
      %p313 = por %p311, %p312
      %s315 = sadd.s32 %s314, 1
      %p318 = scmp.eq.s32.totalorder %s28, 1
      %p319 = scmp.ne.s32.totalorder %s314, %s316
      %p320 = scmp.eq.s32.totalorder %s28, 0
      %p321 = por %p319, %p320
      %p322 = scmp.ne.s32.totalorder %s314, %s316
      %p323 = scmp.eq.s32.totalorder %s33, 1
      %p324 = por %p322, %p323
      %p325 = scmp.ne.s32.totalorder %s316, %s317
      %p326 = scmp.eq.s32.totalorder %s33, 0
      %p327 = por %p325, %p326
      %p328 = scmp.ne.s32.totalorder %s316, %s317
      %p329 = scmp.eq.s32.totalorder %s34, 1
      %p330 = por %p328, %p329
      %p332 = scmp.ne.s32.totalorder %s317, %s331
      %p333 = scmp.eq.s32.totalorder %s34, 0
      %p334 = por %p332, %p333
      %s336 = sadd.s32 %s335, 1
      %p339 = scmp.eq.s32.totalorder %s28, 1
      %p340 = scmp.ne.s32.totalorder %s335, %s337
      %p341 = scmp.eq.s32.totalorder %s28, 0
      %p342 = por %p340, %p341
      %p343 = scmp.ne.s32.totalorder %s335, %s337
      %p344 = scmp.eq.s32.totalorder %s33, 1
      %p345 = por %p343, %p344
      %p346 = scmp.ne.s32.totalorder %s337, %s338
      %p347 = scmp.eq.s32.totalorder %s33, 0
      %p348 = por %p346, %p347
      %p349 = scmp.ne.s32.totalorder %s337, %s338
      %p350 = scmp.eq.s32.totalorder %s34, 1
      %p351 = por %p349, %p350
      %p353 = scmp.ne.s32.totalorder %s338, %s352
      %p354 = scmp.eq.s32.totalorder %s34, 0
      %p355 = por %p353, %p354
      %s357 = sadd.s32 %s356, 1
      %p360 = scmp.eq.s32.totalorder %s28, 1
      %p361 = scmp.ne.s32.totalorder %s356, %s358
      %p362 = scmp.eq.s32.totalorder %s28, 0
      %p363 = por %p361, %p362
      %p364 = scmp.ne.s32.totalorder %s356, %s358
      %p365 = scmp.eq.s32.totalorder %s33, 1
      %p366 = por %p364, %p365
      %p367 = scmp.ne.s32.totalorder %s358, %s359
      %p368 = scmp.eq.s32.totalorder %s33, 0
      %p369 = por %p367, %p368
      %p370 = scmp.ne.s32.totalorder %s358, %s359
      %p371 = scmp.eq.s32.totalorder %s34, 1
      %p372 = por %p370, %p371
      %p374 = scmp.ne.s32.totalorder %s359, %s373
      %p375 = scmp.eq.s32.totalorder %s34, 0
      %p376 = por %p374, %p375
      %s378 = sadd.s32 %s377, 1
      %p381 = scmp.eq.s32.totalorder %s28, 1
      %p382 = scmp.ne.s32.totalorder %s377, %s379
      %p383 = scmp.eq.s32.totalorder %s28, 0
      %p384 = por %p382, %p383
      %p385 = scmp.ne.s32.totalorder %s377, %s379
      %p386 = scmp.eq.s32.totalorder %s33, 1
      %p387 = por %p385, %p386
      %p388 = scmp.ne.s32.totalorder %s379, %s380
      %p389 = scmp.eq.s32.totalorder %s33, 0
      %p390 = por %p388, %p389
      %p391 = scmp.ne.s32.totalorder %s379, %s380
      %p392 = scmp.eq.s32.totalorder %s34, 1
      %p393 = por %p391, %p392
      %p395 = scmp.ne.s32.totalorder %s380, %s394
      %p396 = scmp.eq.s32.totalorder %s34, 0
      %p397 = por %p395, %p396
      %s399 = sadd.s32 %s398, 1
      %p402 = scmp.eq.s32.totalorder %s28, 1
      %p403 = scmp.ne.s32.totalorder %s398, %s400
      %p404 = scmp.eq.s32.totalorder %s28, 0
      %p405 = por %p403, %p404
      %p406 = scmp.ne.s32.totalorder %s398, %s400
      %p407 = scmp.eq.s32.totalorder %s33, 1
      %p408 = por %p406, %p407
      %p409 = scmp.ne.s32.totalorder %s400, %s401
      %p410 = scmp.eq.s32.totalorder %s33, 0
      %p411 = por %p409, %p410
      %p412 = scmp.ne.s32.totalorder %s400, %s401
      %p413 = scmp.eq.s32.totalorder %s34, 1
      %p414 = por %p412, %p413
      %p416 = scmp.ne.s32.totalorder %s401, %s415
      %p417 = scmp.eq.s32.totalorder %s34, 0
      %p418 = por %p416, %p417
      %s420 = sadd.s32 %s419, 1
      %p423 = scmp.eq.s32.totalorder %s28, 1
      %p424 = scmp.ne.s32.totalorder %s419, %s421
      %p425 = scmp.eq.s32.totalorder %s28, 0
      %p426 = por %p424, %p425
      %p427 = scmp.ne.s32.totalorder %s419, %s421
      %p428 = scmp.eq.s32.totalorder %s33, 1
      %p429 = por %p427, %p428
      %p430 = scmp.ne.s32.totalorder %s421, %s422
      %p431 = scmp.eq.s32.totalorder %s33, 0
      %p432 = por %p430, %p431
      %p433 = scmp.ne.s32.totalorder %s421, %s422
      %p434 = scmp.eq.s32.totalorder %s34, 1
      %p435 = por %p433, %p434
      %p437 = scmp.ne.s32.totalorder %s422, %s436
      %p438 = scmp.eq.s32.totalorder %s34, 0
      %p439 = por %p437, %p438
      %s440 = ssub.s32 %s28, %s35
      %p441 = scmp.eq.s32.totalorder %s440, 0
      %s443 = sadd.s32 %s442, 1
      %s444 = scalar_select %p441, %s442, %s443
      %p447 = pneg %p441
      %p448 = scmp.eq.s32.totalorder %s28, 1
      %p449 = por %p447, %p448
      %p450 = scmp.ne.s32.totalorder %s442, %s445
      %p451 = scmp.eq.s32.totalorder %s28, 0
      %p452 = por %p450, %p451
      %p453 = scmp.ne.s32.totalorder %s442, %s445
      %p454 = scmp.eq.s32.totalorder %s33, 1
      %p455 = por %p453, %p454
      %p456 = scmp.ne.s32.totalorder %s445, %s446
      %p457 = scmp.eq.s32.totalorder %s33, 0
      %p458 = por %p456, %p457
      %p459 = scmp.ne.s32.totalorder %s445, %s446
      %p460 = scmp.eq.s32.totalorder %s34, 1
      %p461 = por %p459, %p460
      %p463 = scmp.ne.s32.totalorder %s446, %s462
      %p464 = scmp.eq.s32.totalorder %s34, 0
      %p465 = por %p463, %p464
      %p466 = scmp.le.s32.totalorder 1, %s28
      %p467 = scmp.lt.s32.totalorder %s28, 3
      %p468 = pnand %p466, %p467
      %p469 = pneg %p468
      // Predicated region
      $region9: #{transformer_model_forward.1} parent=5 // pred_check
        _
      $region10: #{transformer_model_forward.1} parent=5 // pred_check_branch
        %471 = sbr.rel (%p468) target = $region12
      $region11: #{transformer_model_forward.1} parent=5 // pred_region
        %s472 = ssub.s32 %s28, 1
        // Predicated region
        $region13: #{transformer_model_forward.1} parent=11 // pred_check
          %p473 = pneg %p75
        $region14: #{transformer_model_forward.1} parent=11 // pred_check_branch
          %475 = sbr.rel (%p473) target = $region16
        $region15: #{transformer_model_forward.1} parent=11 // pred_region
          _
        $region16: #{transformer_model_forward.1} parent=11 // pred_fallthru
          _
        // Predicated region
        $region17: #{transformer_model_forward.1} parent=11 // pred_check
          %p476 = pneg %p96
        $region18: #{transformer_model_forward.1} parent=11 // pred_check_branch
          %478 = sbr.rel (%p476) target = $region20
        $region19: #{transformer_model_forward.1} parent=11 // pred_region
          _
        $region20: #{transformer_model_forward.1} parent=11 // pred_fallthru
          _
        // Predicated region
        $region21: #{transformer_model_forward.1} parent=11 // pred_check
          %p479 = pneg %p117
        $region22: #{transformer_model_forward.1} parent=11 // pred_check_branch
          %481 = sbr.rel (%p479) target = $region24
        $region23: #{transformer_model_forward.1} parent=11 // pred_region
          _
        $region24: #{transformer_model_forward.1} parent=11 // pred_fallthru
          _
        // Predicated region
        $region25: #{transformer_model_forward.1} parent=11 // pred_check
          %p482 = pneg %p138
        $region26: #{transformer_model_forward.1} parent=11 // pred_check_branch
          %484 = sbr.rel (%p482) target = $region28
        $region27: #{transformer_model_forward.1} parent=11 // pred_region
          _
        $region28: #{transformer_model_forward.1} parent=11 // pred_fallthru
          _
        // Predicated region
        $region29: #{transformer_model_forward.1} parent=11 // pred_check
          %p485 = pneg %p159
        $region30: #{transformer_model_forward.1} parent=11 // pred_check_branch
          %487 = sbr.rel (%p485) target = $region32
        $region31: #{transformer_model_forward.1} parent=11 // pred_region
          _
        $region32: #{transformer_model_forward.1} parent=11 // pred_fallthru
          _
        // Predicated region
        $region33: #{transformer_model_forward.1} parent=11 // pred_check
          %p488 = pneg %p180
        $region34: #{transformer_model_forward.1} parent=11 // pred_check_branch
          %490 = sbr.rel (%p488) target = $region36
        $region35: #{transformer_model_forward.1} parent=11 // pred_region
          _
        $region36: #{transformer_model_forward.1} parent=11 // pred_fallthru
          _
        // Predicated region
        $region37: #{transformer_model_forward.1} parent=11 // pred_check
          %p491 = pneg %p201
        $region38: #{transformer_model_forward.1} parent=11 // pred_check_branch
          %493 = sbr.rel (%p491) target = $region40
        $region39: #{transformer_model_forward.1} parent=11 // pred_region
          _
        $region40: #{transformer_model_forward.1} parent=11 // pred_fallthru
          _
        // Predicated region
        $region41: #{transformer_model_forward.1} parent=11 // pred_check
          %p494 = pneg %p222
        $region42: #{transformer_model_forward.1} parent=11 // pred_check_branch
          %496 = sbr.rel (%p494) target = $region44
        $region43: #{transformer_model_forward.1} parent=11 // pred_region
          _
        $region44: #{transformer_model_forward.1} parent=11 // pred_fallthru
          _
        // Predicated region
        $region45: #{transformer_model_forward.1} parent=11 // pred_check
          %p497 = pneg %p243
        $region46: #{transformer_model_forward.1} parent=11 // pred_check_branch
          %499 = sbr.rel (%p497) target = $region48
        $region47: #{transformer_model_forward.1} parent=11 // pred_region
          _
        $region48: #{transformer_model_forward.1} parent=11 // pred_fallthru
          _
        // Predicated region
        $region49: #{transformer_model_forward.1} parent=11 // pred_check
          %p500 = pneg %p264
        $region50: #{transformer_model_forward.1} parent=11 // pred_check_branch
          %502 = sbr.rel (%p500) target = $region52
        $region51: #{transformer_model_forward.1} parent=11 // pred_region
          _
        $region52: #{transformer_model_forward.1} parent=11 // pred_fallthru
          _
        // Predicated region
        $region53: #{transformer_model_forward.1} parent=11 // pred_check
          %p503 = pneg %p285
        $region54: #{transformer_model_forward.1} parent=11 // pred_check_branch
          %505 = sbr.rel (%p503) target = $region56
        $region55: #{transformer_model_forward.1} parent=11 // pred_region
          _
        $region56: #{transformer_model_forward.1} parent=11 // pred_fallthru
          _
        // Predicated region
        $region57: #{transformer_model_forward.1} parent=11 // pred_check
          %p506 = pneg %p306
        $region58: #{transformer_model_forward.1} parent=11 // pred_check_branch
          %508 = sbr.rel (%p506) target = $region60
        $region59: #{transformer_model_forward.1} parent=11 // pred_region
          _
        $region60: #{transformer_model_forward.1} parent=11 // pred_fallthru
          _
        // Predicated region
        $region61: #{transformer_model_forward.1} parent=11 // pred_check
          %p509 = pneg %p327
        $region62: #{transformer_model_forward.1} parent=11 // pred_check_branch
          %511 = sbr.rel (%p509) target = $region64
        $region63: #{transformer_model_forward.1} parent=11 // pred_region
          _
        $region64: #{transformer_model_forward.1} parent=11 // pred_fallthru
          _
        // Predicated region
        $region65: #{transformer_model_forward.1} parent=11 // pred_check
          %p512 = pneg %p348
        $region66: #{transformer_model_forward.1} parent=11 // pred_check_branch
          %514 = sbr.rel (%p512) target = $region68
        $region67: #{transformer_model_forward.1} parent=11 // pred_region
          _
        $region68: #{transformer_model_forward.1} parent=11 // pred_fallthru
          _
        // Predicated region
        $region69: #{transformer_model_forward.1} parent=11 // pred_check
          %p515 = pneg %p369
        $region70: #{transformer_model_forward.1} parent=11 // pred_check_branch
          %517 = sbr.rel (%p515) target = $region72
        $region71: #{transformer_model_forward.1} parent=11 // pred_region
          _
        $region72: #{transformer_model_forward.1} parent=11 // pred_fallthru
          _
        // Predicated region
        $region73: #{transformer_model_forward.1} parent=11 // pred_check
          %p518 = pneg %p390
        $region74: #{transformer_model_forward.1} parent=11 // pred_check_branch
          %520 = sbr.rel (%p518) target = $region76
        $region75: #{transformer_model_forward.1} parent=11 // pred_region
          _
        $region76: #{transformer_model_forward.1} parent=11 // pred_fallthru
          _
        // Predicated region
        $region77: #{transformer_model_forward.1} parent=11 // pred_check
          %p521 = pneg %p411
        $region78: #{transformer_model_forward.1} parent=11 // pred_check_branch
          %523 = sbr.rel (%p521) target = $region80
        $region79: #{transformer_model_forward.1} parent=11 // pred_region
          _
        $region80: #{transformer_model_forward.1} parent=11 // pred_fallthru
          _
        // Predicated region
        $region81: #{transformer_model_forward.1} parent=11 // pred_check
          %p524 = pneg %p432
        $region82: #{transformer_model_forward.1} parent=11 // pred_check_branch
          %526 = sbr.rel (%p524) target = $region84
        $region83: #{transformer_model_forward.1} parent=11 // pred_region
          _
        $region84: #{transformer_model_forward.1} parent=11 // pred_fallthru
          _
      $region12: #{transformer_model_forward.1} parent=5 // pred_fallthru
        _
      %p527 = scmp.lt.s32.totalorder %s28, 2
      // Predicated region
      $region85: #{transformer_model_forward.1} parent=5 // pred_check
        %p528 = pneg %p527
      $region86: #{transformer_model_forward.1} parent=5 // pred_check_branch
        %530 = sbr.rel (%p528) target = $region88
      $region87: #{transformer_model_forward.1} parent=5 // pred_region
        // Predicated region
        $region89: #{transformer_model_forward.1} parent=87 // pred_check
          %p531 = pneg %p48
        $region90: #{transformer_model_forward.1} parent=87 // pred_check_branch
          %533 = sbr.rel (%p531) target = $region92
        $region91: #{transformer_model_forward.1} parent=87 // pred_region
          %p534 = scmp.lt.s32.totalorder %s28, 1
          %s535 = scalar_select %p534, %s28, 1
          %s536 = smul.addr %s535, 32
          %s537 = smul.addr %s536, 8
          %s538 = scalar_lea.vmem %s0, %s537
        $region92: #{transformer_model_forward.1} parent=87 // pred_fallthru
          _
      $region88: #{transformer_model_forward.1} parent=5 // pred_fallthru
        _
      %p539 = scmp.le.s32.totalorder 1, %s28
      %p540 = scmp.lt.s32.totalorder %s28, 3
      %p541 = pnand %p539, %p540
      %p542 = pneg %p541
      // Predicated region
      $region93: #{transformer_model_forward.1} parent=5 // pred_check
        _
      $region94: #{transformer_model_forward.1} parent=5 // pred_check_branch
        %544 = sbr.rel (%p541) target = $region96
      $region95: #{transformer_model_forward.1} parent=5 // pred_region
        %s545 = ssub.s32 %s28, 1
        %p546 = scmp.lt.s32.totalorder %s33, 1
        %s547 = scalar_select %p546, %s33, 1
        %s548 = smul.addr %s547, 32
        %s549 = smul.addr %s548, 8
        %s550 = scalar_lea.vmem %s0, %s549
        %p551 = pneg %p54
        %p552 = pneg %p51
        %p553 = pneg %p75
        %p554 = pneg %p72
        %p555 = pneg %p96
        %p556 = pneg %p93
        %p557 = pneg %p117
        %p558 = pneg %p114
        %p559 = pneg %p138
        %p560 = pneg %p135
        %p561 = pneg %p159
        %p562 = pneg %p156
        %p563 = pneg %p180
        %p564 = pneg %p177
        %p565 = pneg %p201
        %p566 = pneg %p198
        %p567 = pneg %p222
        %p568 = pneg %p219
        %p569 = pneg %p243
        %p570 = pneg %p240
        %p571 = pneg %p264
        %p572 = pneg %p261
        %p573 = pneg %p285
        %p574 = pneg %p282
        %p575 = pneg %p306
        %p576 = pneg %p303
        %p577 = pneg %p327
        %p578 = pneg %p324
        %p579 = pneg %p348
        %p580 = pneg %p345
        %p581 = pneg %p369
        %p582 = pneg %p366
        %p583 = pneg %p390
        %p584 = pneg %p387
        %p585 = pneg %p411
        %p586 = pneg %p408
        %p587 = pneg %p432
        %p588 = pneg %p429
        %p589 = pneg %p458
        %p590 = pneg %p455
        %s591 = sand.u32 %s445, 1
        %s592 = scalar_lea.sflag [#allocation3], %s591
        %s593 = sand.u32 %s445, 1
        %s594 = scalar_lea.vmem [#allocation2], %s593
        %p595 = scmp.lt.s32.totalorder %s33, 1
        %s596 = scalar_select %p595, %s33, 1
        %s597 = smul.addr %s596, 32
        %s598 = smul.addr %s597, 8
        %s599 = scalar_lea.vmem %s0, %s598
        %v601 = vld [vmem:[%s599] sm:$0xff]
        %v602 = vld [vmem:[%s599 + $0x8] sm:$0xff]
        %v603 = vld [vmem:[%s599 + $0x10] sm:$0xff]
        %v604 = vld [vmem:[%s599 + $0x18] sm:$0xff]
        %v605 = vld [vmem:[%s599 + $0x20] sm:$0xff]
        %v606 = vld [vmem:[%s599 + $0x28] sm:$0xff]
        %v607 = vld [vmem:[%s599 + $0x30] sm:$0xff]
        %v608 = vld [vmem:[%s599 + $0x38] sm:$0xff]
        %v609 = vld [vmem:[%s599 + $0x40] sm:$0xff]
        %v610 = vld [vmem:[%s599 + $0x48] sm:$0xff]
        %v611 = vld [vmem:[%s599 + $0x50] sm:$0xff]
        %v612 = vld [vmem:[%s599 + $0x58] sm:$0xff]
        %v613 = vld [vmem:[%s599 + $0x60] sm:$0xff]
        %v614 = vld [vmem:[%s599 + $0x68] sm:$0xff]
        %v615 = vld [vmem:[%s599 + $0x70] sm:$0xff]
        %v616 = vld [vmem:[%s599 + $0x78] sm:$0xff]
        %v617 = vld [vmem:[%s599 + $0x80] sm:$0xff]
        %v618 = vld [vmem:[%s599 + $0x88] sm:$0xff]
        %v619 = vld [vmem:[%s599 + $0x90] sm:$0xff]
        %v620 = vld [vmem:[%s599 + $0x98] sm:$0xff]
        %v621 = vld [vmem:[%s599 + $0xa0] sm:$0xff]
        %v622 = vld [vmem:[%s599 + $0xa8] sm:$0xff]
        %v623 = vld [vmem:[%s599 + $0xb0] sm:$0xff]
        %v624 = vld [vmem:[%s599 + $0xb8] sm:$0xff]
        %v625 = vld [vmem:[%s599 + $0xc0] sm:$0xff]
        %v626 = vld [vmem:[%s599 + $0xc8] sm:$0xff]
        %v627 = vld [vmem:[%s599 + $0xd0] sm:$0xff]
        %v628 = vld [vmem:[%s599 + $0xd8] sm:$0xff]
        %v629 = vld [vmem:[%s599 + $0xe0] sm:$0xff]
        %v630 = vld [vmem:[%s599 + $0xe8] sm:$0xff]
        %v631 = vld [vmem:[%s599 + $0xf0] sm:$0xff]
        %v632 = vld [vmem:[%s599 + $0xf8] sm:$0xff]
        %v633 = vld [vmem:[%s1] sm:$0x3]
        %v634 = vld [vmem:[%s2] sm:$0x3]
        %v635 = vadd.f32 %v601, %v602
        %636 = vadd.xlane.f32.xlu0 %v635
        %v637 = vpop.xlane.xlu0 %636
        %v638 = vadd.f32 %v603, %v604
        %639 = vadd.xlane.f32.xlu0 %v638
        %v640 = vpop.xlane.xlu0 %639
        %v641 = vadd.f32 %v605, %v606
        %642 = vadd.xlane.f32.xlu0 %v641
        %v643 = vpop.xlane.xlu0 %642
        %v644 = vadd.f32 %v607, %v608
        %645 = vadd.xlane.f32.xlu0 %v644
        %v646 = vpop.xlane.xlu0 %645
        %v647 = vadd.f32 %v609, %v610
        %648 = vadd.xlane.f32.xlu0 %v647
        %v649 = vpop.xlane.xlu0 %648
        %v650 = vadd.f32 %v611, %v612
        %651 = vadd.xlane.f32.xlu0 %v650
        %v652 = vpop.xlane.xlu0 %651
        %v653 = vadd.f32 %v613, %v614
        %654 = vadd.xlane.f32.xlu0 %v653
        %v655 = vpop.xlane.xlu0 %654
        %v656 = vadd.f32 %v615, %v616
        %657 = vadd.xlane.f32.xlu0 %v656
        %v658 = vpop.xlane.xlu0 %657
        %v659 = vadd.f32 %v617, %v618
        %660 = vadd.xlane.f32.xlu0 %v659
        %v661 = vpop.xlane.xlu0 %660
        %v662 = vadd.f32 %v619, %v620
        %663 = vadd.xlane.f32.xlu0 %v662
        %v664 = vpop.xlane.xlu0 %663
        %v665 = vadd.f32 %v621, %v622
        %666 = vadd.xlane.f32.xlu0 %v665
        %v667 = vpop.xlane.xlu0 %666
        %v668 = vadd.f32 %v623, %v624
        %669 = vadd.xlane.f32.xlu0 %v668
        %v670 = vpop.xlane.xlu0 %669
        %v671 = vadd.f32 %v625, %v626
        %672 = vadd.xlane.f32.xlu0 %v671
        %v673 = vpop.xlane.xlu0 %672
        %v674 = vadd.f32 %v627, %v628
        %675 = vadd.xlane.f32.xlu0 %v674
        %v676 = vpop.xlane.xlu0 %675
        %v677 = vadd.f32 %v629, %v630
        %678 = vadd.xlane.f32.xlu0 %v677
        %v679 = vpop.xlane.xlu0 %678
        %v680 = vadd.f32 %v631, %v632
        %681 = vadd.xlane.f32.xlu0 %v680
        %v682 = vpop.xlane.xlu0 %681
        %v683 = vrcp.pop 256.0
        %v684 = vmul.f32 %v637, %v683
        %v685 = vmul.f32 %v640, %v683
        %v686 = vmul.f32 %v643, %v683
        %v687 = vmul.f32 %v646, %v683
        %v688 = vmul.f32 %v649, %v683
        %v689 = vmul.f32 %v652, %v683
        %v690 = vmul.f32 %v655, %v683
        %v691 = vmul.f32 %v658, %v683
        %v692 = vmul.f32 %v661, %v683
        %v693 = vmul.f32 %v664, %v683
        %v694 = vmul.f32 %v667, %v683
        %v695 = vmul.f32 %v670, %v683
        %v696 = vmul.f32 %v673, %v683
        %v697 = vmul.f32 %v676, %v683
        %v698 = vmul.f32 %v679, %v683
        %v699 = vmul.f32 %v682, %v683
        %v700 = vsub.f32 %v601, %v684
        %v701 = vsub.f32 %v602, %v684
        %v702 = vsub.f32 %v603, %v685
        %v703 = vsub.f32 %v604, %v685
        %v704 = vsub.f32 %v605, %v686
        %v705 = vsub.f32 %v606, %v686
        %v706 = vsub.f32 %v607, %v687
        %v707 = vsub.f32 %v608, %v687
        %v708 = vsub.f32 %v609, %v688
        %v709 = vsub.f32 %v610, %v688
        %v710 = vsub.f32 %v611, %v689
        %v711 = vsub.f32 %v612, %v689
        %v712 = vsub.f32 %v613, %v690
        %v713 = vsub.f32 %v614, %v690
        %v714 = vsub.f32 %v615, %v691
        %v715 = vsub.f32 %v616, %v691
        %v716 = vsub.f32 %v617, %v692
        %v717 = vsub.f32 %v618, %v692
        %v718 = vsub.f32 %v619, %v693
        %v719 = vsub.f32 %v620, %v693
        %v720 = vsub.f32 %v621, %v694
        %v721 = vsub.f32 %v622, %v694
        %v722 = vsub.f32 %v623, %v695
        %v723 = vsub.f32 %v624, %v695
        %v724 = vsub.f32 %v625, %v696
        %v725 = vsub.f32 %v626, %v696
        %v726 = vsub.f32 %v627, %v697
        %v727 = vsub.f32 %v628, %v697
        %v728 = vsub.f32 %v629, %v698
        %v729 = vsub.f32 %v630, %v698
        %v730 = vsub.f32 %v631, %v699
        %v731 = vsub.f32 %v632, %v699
        %v732 = vmul.f32 %v700, %v700
        %v733 = vmul.f32 %v701, %v701
        %v734 = vmul.f32 %v702, %v702
        %v735 = vmul.f32 %v703, %v703
        %v736 = vmul.f32 %v704, %v704
        %v737 = vmul.f32 %v705, %v705
        %v738 = vmul.f32 %v706, %v706
        %v739 = vmul.f32 %v707, %v707
        %v740 = vmul.f32 %v708, %v708
        %v741 = vmul.f32 %v709, %v709
        %v742 = vmul.f32 %v710, %v710
        %v743 = vmul.f32 %v711, %v711
        %v744 = vmul.f32 %v712, %v712
        %v745 = vmul.f32 %v713, %v713
        %v746 = vmul.f32 %v714, %v714
        %v747 = vmul.f32 %v715, %v715
        %v748 = vmul.f32 %v716, %v716
        %v749 = vmul.f32 %v717, %v717
        %v750 = vmul.f32 %v718, %v718
        %v751 = vmul.f32 %v719, %v719
        %v752 = vmul.f32 %v720, %v720
        %v753 = vmul.f32 %v721, %v721
        %v754 = vmul.f32 %v722, %v722
        %v755 = vmul.f32 %v723, %v723
        %v756 = vmul.f32 %v724, %v724
        %v757 = vmul.f32 %v725, %v725
        %v758 = vmul.f32 %v726, %v726
        %v759 = vmul.f32 %v727, %v727
        %v760 = vmul.f32 %v728, %v728
        %v761 = vmul.f32 %v729, %v729
        %v762 = vmul.f32 %v730, %v730
        %v763 = vmul.f32 %v731, %v731
        %v764 = vadd.f32 %v732, %v733
        %765 = vadd.xlane.f32.xlu0 %v764
        %v766 = vpop.xlane.xlu0 %765
        %v767 = vadd.f32 %v734, %v735
        %768 = vadd.xlane.f32.xlu0 %v767
        %v769 = vpop.xlane.xlu0 %768
        %v770 = vadd.f32 %v736, %v737
        %771 = vadd.xlane.f32.xlu0 %v770
        %v772 = vpop.xlane.xlu0 %771
        %v773 = vadd.f32 %v738, %v739
        %774 = vadd.xlane.f32.xlu0 %v773
        %v775 = vpop.xlane.xlu0 %774
        %v776 = vadd.f32 %v740, %v741
        %777 = vadd.xlane.f32.xlu0 %v776
        %v778 = vpop.xlane.xlu0 %777
        %v779 = vadd.f32 %v742, %v743
        %780 = vadd.xlane.f32.xlu0 %v779
        %v781 = vpop.xlane.xlu0 %780
        %v782 = vadd.f32 %v744, %v745
        %783 = vadd.xlane.f32.xlu0 %v782
        %v784 = vpop.xlane.xlu0 %783
        %v785 = vadd.f32 %v746, %v747
        %786 = vadd.xlane.f32.xlu0 %v785
        %v787 = vpop.xlane.xlu0 %786
        %v788 = vadd.f32 %v748, %v749
        %789 = vadd.xlane.f32.xlu0 %v788
        %v790 = vpop.xlane.xlu0 %789
        %v791 = vadd.f32 %v750, %v751
        %792 = vadd.xlane.f32.xlu0 %v791
        %v793 = vpop.xlane.xlu0 %792
        %v794 = vadd.f32 %v752, %v753
        %795 = vadd.xlane.f32.xlu0 %v794
        %v796 = vpop.xlane.xlu0 %795
        %v797 = vadd.f32 %v754, %v755
        %798 = vadd.xlane.f32.xlu0 %v797
        %v799 = vpop.xlane.xlu0 %798
        %v800 = vadd.f32 %v756, %v757
        %801 = vadd.xlane.f32.xlu0 %v800
        %v802 = vpop.xlane.xlu0 %801
        %v803 = vadd.f32 %v758, %v759
        %804 = vadd.xlane.f32.xlu0 %v803
        %v805 = vpop.xlane.xlu0 %804
        %v806 = vadd.f32 %v760, %v761
        %807 = vadd.xlane.f32.xlu0 %v806
        %v808 = vpop.xlane.xlu0 %807
        %v809 = vadd.f32 %v762, %v763
        %810 = vadd.xlane.f32.xlu0 %v809
        %v811 = vpop.xlane.xlu0 %810
        %v812 = vmul.f32 %v766, %v683
        %v813 = vmul.f32 %v769, %v683
        %v814 = vmul.f32 %v772, %v683
        %v815 = vmul.f32 %v775, %v683
        %v816 = vmul.f32 %v778, %v683
        %v817 = vmul.f32 %v781, %v683
        %v818 = vmul.f32 %v784, %v683
        %v819 = vmul.f32 %v787, %v683
        %v820 = vmul.f32 %v790, %v683
        %v821 = vmul.f32 %v793, %v683
        %v822 = vmul.f32 %v796, %v683
        %v823 = vmul.f32 %v799, %v683
        %v824 = vmul.f32 %v802, %v683
        %v825 = vmul.f32 %v805, %v683
        %v826 = vmul.f32 %v808, %v683
        %v827 = vmul.f32 %v811, %v683
        %v828 = vadd.f32 %v812, 1e-05
        %v829 = vadd.f32 %v813, 1e-05
        %v830 = vadd.f32 %v814, 1e-05
        %v831 = vadd.f32 %v815, 1e-05
        %v832 = vadd.f32 %v816, 1e-05
        %v833 = vadd.f32 %v817, 1e-05
        %v834 = vadd.f32 %v818, 1e-05
        %v835 = vadd.f32 %v819, 1e-05
        %v836 = vadd.f32 %v820, 1e-05
        %v837 = vadd.f32 %v821, 1e-05
        %v838 = vadd.f32 %v822, 1e-05
        %v839 = vadd.f32 %v823, 1e-05
        %v840 = vadd.f32 %v824, 1e-05
        %v841 = vadd.f32 %v825, 1e-05
        %v842 = vadd.f32 %v826, 1e-05
        %v843 = vadd.f32 %v827, 1e-05
        %v844 = vrsqrt.pop %v828
        %v845 = vrsqrt.pop %v829
        %v846 = vrsqrt.pop %v830
        %v847 = vrsqrt.pop %v831
        %v848 = vrsqrt.pop %v832
        %v849 = vrsqrt.pop %v833
        %v850 = vrsqrt.pop %v834
        %v851 = vrsqrt.pop %v835
        %v852 = vrsqrt.pop %v836
        %v853 = vrsqrt.pop %v837
        %v854 = vrsqrt.pop %v838
        %v855 = vrsqrt.pop %v839
        %v856 = vrsqrt.pop %v840
        %v857 = vrsqrt.pop %v841
        %v858 = vrsqrt.pop %v842
        %v859 = vrsqrt.pop %v843
        %v860 = vmul.f32 %v700, %v844
        %v861 = vmul.f32 %v701, %v844
        %v862 = vmul.f32 %v702, %v845
        %v863 = vmul.f32 %v703, %v845
        %v864 = vmul.f32 %v704, %v846
        %v865 = vmul.f32 %v705, %v846
        %v866 = vmul.f32 %v706, %v847
        %v867 = vmul.f32 %v707, %v847
        %v868 = vmul.f32 %v708, %v848
        %v869 = vmul.f32 %v709, %v848
        %v870 = vmul.f32 %v710, %v849
        %v871 = vmul.f32 %v711, %v849
        %v872 = vmul.f32 %v712, %v850
        %v873 = vmul.f32 %v713, %v850
        %v874 = vmul.f32 %v714, %v851
        %v875 = vmul.f32 %v715, %v851
        %v876 = vmul.f32 %v716, %v852
        %v877 = vmul.f32 %v717, %v852
        %v878 = vmul.f32 %v718, %v853
        %v879 = vmul.f32 %v719, %v853
        %v880 = vmul.f32 %v720, %v854
        %v881 = vmul.f32 %v721, %v854
        %v882 = vmul.f32 %v722, %v855
        %v883 = vmul.f32 %v723, %v855
        %v884 = vmul.f32 %v724, %v856
        %v885 = vmul.f32 %v725, %v856
        %v886 = vmul.f32 %v726, %v857
        %v887 = vmul.f32 %v727, %v857
        %v888 = vmul.f32 %v728, %v858
        %v889 = vmul.f32 %v729, %v858
        %v890 = vmul.f32 %v730, %v859
        %v891 = vmul.f32 %v731, %v859
        %v893 = vlaneseq
        %v894 = vshrl.u32 %v893, 7
        %v895 = vsub.s32 0, %v894
        %v896 = vrot.slane %v633, %v895
        %v897 = vlaneseq
        %v898 = vshrl.u32 %v897, 7
        %v899 = vsub.s32 1, %v898
        %v900 = vrot.slane %v633, %v899
        %v903 = vmul.f32 %v860, %v896
        %v904 = vmul.f32 %v861, %v900
        %v905 = vmul.f32 %v862, %v896
        %v906 = vmul.f32 %v863, %v900
        %v907 = vmul.f32 %v864, %v896
        %v908 = vmul.f32 %v865, %v900
        %v909 = vmul.f32 %v866, %v896
        %v910 = vmul.f32 %v867, %v900
        %v911 = vmul.f32 %v868, %v896
        %v912 = vmul.f32 %v869, %v900
        %v913 = vmul.f32 %v870, %v896
        %v914 = vmul.f32 %v871, %v900
        %v915 = vmul.f32 %v872, %v896
        %v916 = vmul.f32 %v873, %v900
        %v917 = vmul.f32 %v874, %v896
        %v918 = vmul.f32 %v875, %v900
        %v919 = vmul.f32 %v876, %v896
        %v920 = vmul.f32 %v877, %v900
        %v921 = vmul.f32 %v878, %v896
        %v922 = vmul.f32 %v879, %v900
        %v923 = vmul.f32 %v880, %v896
        %v924 = vmul.f32 %v881, %v900
        %v925 = vmul.f32 %v882, %v896
        %v926 = vmul.f32 %v883, %v900
        %v927 = vmul.f32 %v884, %v896
        %v928 = vmul.f32 %v885, %v900
        %v929 = vmul.f32 %v886, %v896
        %v930 = vmul.f32 %v887, %v900
        %v931 = vmul.f32 %v888, %v896
        %v932 = vmul.f32 %v889, %v900
        %v933 = vmul.f32 %v890, %v896
        %v934 = vmul.f32 %v891, %v900
        %v936 = vlaneseq
        %v937 = vshrl.u32 %v936, 7
        %v938 = vsub.s32 0, %v937
        %v939 = vrot.slane %v634, %v938
        %v940 = vlaneseq
        %v941 = vshrl.u32 %v940, 7
        %v942 = vsub.s32 1, %v941
        %v943 = vrot.slane %v634, %v942
        %v946 = vadd.f32 %v903, %v939
        %v947 = vadd.f32 %v904, %v943
        %v948 = vadd.f32 %v905, %v939
        %v949 = vadd.f32 %v906, %v943
        %v950 = vadd.f32 %v907, %v939
        %v951 = vadd.f32 %v908, %v943
        %v952 = vadd.f32 %v909, %v939
        %v953 = vadd.f32 %v910, %v943
        %v954 = vadd.f32 %v911, %v939
        %v955 = vadd.f32 %v912, %v943
        %v956 = vadd.f32 %v913, %v939
        %v957 = vadd.f32 %v914, %v943
        %v958 = vadd.f32 %v915, %v939
        %v959 = vadd.f32 %v916, %v943
        %v960 = vadd.f32 %v917, %v939
        %v961 = vadd.f32 %v918, %v943
        %v962 = vadd.f32 %v919, %v939
        %v963 = vadd.f32 %v920, %v943
        %v964 = vadd.f32 %v921, %v939
        %v965 = vadd.f32 %v922, %v943
        %v966 = vadd.f32 %v923, %v939
        %v967 = vadd.f32 %v924, %v943
        %v968 = vadd.f32 %v925, %v939
        %v969 = vadd.f32 %v926, %v943
        %v970 = vadd.f32 %v927, %v939
        %v971 = vadd.f32 %v928, %v943
        %v972 = vadd.f32 %v929, %v939
        %v973 = vadd.f32 %v930, %v943
        %v974 = vadd.f32 %v931, %v939
        %v975 = vadd.f32 %v932, %v943
        %v976 = vadd.f32 %v933, %v939
        %v977 = vadd.f32 %v934, %v943
        %v978 = vpack.c.bf16 %v948, %v946
        %v979 = vpack.c.bf16 %v949, %v947
        %v980 = vpack.c.bf16 %v952, %v950
        %v981 = vpack.c.bf16 %v953, %v951
        %v982 = vpack.c.bf16 %v956, %v954
        %v983 = vpack.c.bf16 %v957, %v955
        %v984 = vpack.c.bf16 %v960, %v958
        %v985 = vpack.c.bf16 %v961, %v959
        %v986 = vpack.c.bf16 %v964, %v962
        %v987 = vpack.c.bf16 %v965, %v963
        %v988 = vpack.c.bf16 %v968, %v966
        %v989 = vpack.c.bf16 %v969, %v967
        %v990 = vpack.c.bf16 %v972, %v970
        %v991 = vpack.c.bf16 %v973, %v971
        %v992 = vpack.c.bf16 %v976, %v974
        %v993 = vpack.c.bf16 %v977, %v975
        %v994 = vld [vmem:[%s3] sm:$0xff]
        %v995 = vld [vmem:[%s3 + $0x8] sm:$0xff]
        %v996 = vld [vmem:[%s3 + $0x10] sm:$0xff]
        %v997 = vld [vmem:[%s3 + $0x18] sm:$0xff]
        %v998 = vld [vmem:[%s3 + $0x20] sm:$0xff]
        %v999 = vld [vmem:[%s3 + $0x28] sm:$0xff]
        %v1000 = vld [vmem:[%s3 + $0x30] sm:$0xff]
        %v1001 = vld [vmem:[%s3 + $0x38] sm:$0xff]
        %v1002 = vld [vmem:[%s3 + $0x40] sm:$0xff]
        %v1003 = vld [vmem:[%s3 + $0x48] sm:$0xff]
        %v1004 = vld [vmem:[%s3 + $0x50] sm:$0xff]
        %v1005 = vld [vmem:[%s3 + $0x58] sm:$0xff]
        %v1006 = vld [vmem:[%s3 + $0x60] sm:$0xff]
        %v1007 = vld [vmem:[%s3 + $0x68] sm:$0xff]
        %v1008 = vld [vmem:[%s3 + $0x70] sm:$0xff]
        %v1009 = vld [vmem:[%s3 + $0x78] sm:$0xff]
        %v1010 = vld [vmem:[%s3 + $0x80] sm:$0xff]
        %v1011 = vld [vmem:[%s3 + $0x88] sm:$0xff]
        %v1012 = vld [vmem:[%s3 + $0x90] sm:$0xff]
        %v1013 = vld [vmem:[%s3 + $0x98] sm:$0xff]
        %v1014 = vld [vmem:[%s3 + $0xa0] sm:$0xff]
        %v1015 = vld [vmem:[%s3 + $0xa8] sm:$0xff]
        %v1016 = vld [vmem:[%s3 + $0xb0] sm:$0xff]
        %v1017 = vld [vmem:[%s3 + $0xb8] sm:$0xff]
        %v1018 = vld [vmem:[%s3 + $0xc0] sm:$0xff]
        %v1019 = vld [vmem:[%s3 + $0xc8] sm:$0xff]
        %v1020 = vld [vmem:[%s3 + $0xd0] sm:$0xff]
        %v1021 = vld [vmem:[%s3 + $0xd8] sm:$0xff]
        %v1022 = vld [vmem:[%s3 + $0xe0] sm:$0xff]
        %v1023 = vld [vmem:[%s3 + $0xe8] sm:$0xff]
        %v1024 = vld [vmem:[%s3 + $0xf0] sm:$0xff]
        %v1025 = vld [vmem:[%s3 + $0xf8] sm:$0xff]
        %v1026 = vld [vmem:[%s3 + $0x100] sm:$0xff]
        %v1027 = vld [vmem:[%s3 + $0x108] sm:$0xff]
        %v1028 = vld [vmem:[%s3 + $0x110] sm:$0xff]
        %v1029 = vld [vmem:[%s3 + $0x118] sm:$0xff]
        %v1030 = vld [vmem:[%s3 + $0x120] sm:$0xff]
        %v1031 = vld [vmem:[%s3 + $0x128] sm:$0xff]
        %v1032 = vld [vmem:[%s3 + $0x130] sm:$0xff]
        %v1033 = vld [vmem:[%s3 + $0x138] sm:$0xff]
        %v1034 = vld [vmem:[%s3 + $0x140] sm:$0xff]
        %v1035 = vld [vmem:[%s3 + $0x148] sm:$0xff]
        %v1036 = vld [vmem:[%s3 + $0x150] sm:$0xff]
        %v1037 = vld [vmem:[%s3 + $0x158] sm:$0xff]
        %v1038 = vld [vmem:[%s3 + $0x160] sm:$0xff]
        %v1039 = vld [vmem:[%s3 + $0x168] sm:$0xff]
        %v1040 = vld [vmem:[%s3 + $0x170] sm:$0xff]
        %v1041 = vld [vmem:[%s3 + $0x178] sm:$0xff]
        %v1042 = vld [vmem:[%s3 + $0x180] sm:$0xff]
        %v1043 = vld [vmem:[%s3 + $0x188] sm:$0xff]
        %v1044 = vld [vmem:[%s3 + $0x190] sm:$0xff]
        %v1045 = vld [vmem:[%s3 + $0x198] sm:$0xff]
        %v1046 = vld [vmem:[%s3 + $0x1a0] sm:$0xff]
        %v1047 = vld [vmem:[%s3 + $0x1a8] sm:$0xff]
        %v1048 = vld [vmem:[%s3 + $0x1b0] sm:$0xff]
        %v1049 = vld [vmem:[%s3 + $0x1b8] sm:$0xff]
        %v1050 = vld [vmem:[%s3 + $0x1c0] sm:$0xff]
        %v1051 = vld [vmem:[%s3 + $0x1c8] sm:$0xff]
        %v1052 = vld [vmem:[%s3 + $0x1d0] sm:$0xff]
        %v1053 = vld [vmem:[%s3 + $0x1d8] sm:$0xff]
        %v1054 = vld [vmem:[%s3 + $0x1e0] sm:$0xff]
        %v1055 = vld [vmem:[%s3 + $0x1e8] sm:$0xff]
        %v1056 = vld [vmem:[%s3 + $0x1f0] sm:$0xff]
        %v1057 = vld [vmem:[%s3 + $0x1f8] sm:$0xff]
        %v1058 = vld [vmem:[%s3 + $0x200] sm:$0xff]
        %v1059 = vld [vmem:[%s3 + $0x208] sm:$0xff]
        %v1060 = vld [vmem:[%s3 + $0x210] sm:$0xff]
        %v1061 = vld [vmem:[%s3 + $0x218] sm:$0xff]
        %v1062 = vld [vmem:[%s3 + $0x220] sm:$0xff]
        %v1063 = vld [vmem:[%s3 + $0x228] sm:$0xff]
        %v1064 = vld [vmem:[%s3 + $0x230] sm:$0xff]
        %v1065 = vld [vmem:[%s3 + $0x238] sm:$0xff]
        %v1066 = vld [vmem:[%s3 + $0x240] sm:$0xff]
        %v1067 = vld [vmem:[%s3 + $0x248] sm:$0xff]
        %v1068 = vld [vmem:[%s3 + $0x250] sm:$0xff]
        %v1069 = vld [vmem:[%s3 + $0x258] sm:$0xff]
        %v1070 = vld [vmem:[%s3 + $0x260] sm:$0xff]
        %v1071 = vld [vmem:[%s3 + $0x268] sm:$0xff]
        %v1072 = vld [vmem:[%s3 + $0x270] sm:$0xff]
        %v1073 = vld [vmem:[%s3 + $0x278] sm:$0xff]
        %v1074 = vld [vmem:[%s3 + $0x280] sm:$0xff]
        %v1075 = vld [vmem:[%s3 + $0x288] sm:$0xff]
        %v1076 = vld [vmem:[%s3 + $0x290] sm:$0xff]
        %v1077 = vld [vmem:[%s3 + $0x298] sm:$0xff]
        %v1078 = vld [vmem:[%s3 + $0x2a0] sm:$0xff]
        %v1079 = vld [vmem:[%s3 + $0x2a8] sm:$0xff]
        %v1080 = vld [vmem:[%s3 + $0x2b0] sm:$0xff]
        %v1081 = vld [vmem:[%s3 + $0x2b8] sm:$0xff]
        %v1082 = vld [vmem:[%s3 + $0x2c0] sm:$0xff]
        %v1083 = vld [vmem:[%s3 + $0x2c8] sm:$0xff]
        %v1084 = vld [vmem:[%s3 + $0x2d0] sm:$0xff]
        %v1085 = vld [vmem:[%s3 + $0x2d8] sm:$0xff]
        %v1086 = vld [vmem:[%s3 + $0x2e0] sm:$0xff]
        %v1087 = vld [vmem:[%s3 + $0x2e8] sm:$0xff]
        %v1088 = vld [vmem:[%s3 + $0x2f0] sm:$0xff]
        %v1089 = vld [vmem:[%s3 + $0x2f8] sm:$0xff]
        %v1090 = vld [vmem:[%s4] sm:$0x3f]
        %v1092 = vlaneseq
        %v1093 = vshrl.u32 %v1092, 7
        %v1094 = vsub.s32 0, %v1093
        %v1095 = vrot.slane %v1090, %v1094
        %v1096 = vlaneseq
        %v1097 = vshrl.u32 %v1096, 7
        %v1098 = vsub.s32 1, %v1097
        %v1099 = vrot.slane %v1090, %v1098
        %v1100 = vlaneseq
        %v1101 = vshrl.u32 %v1100, 7
        %v1102 = vsub.s32 2, %v1101
        %v1103 = vrot.slane %v1090, %v1102
        %v1104 = vlaneseq
        %v1105 = vshrl.u32 %v1104, 7
        %v1106 = vsub.s32 3, %v1105
        %v1107 = vrot.slane %v1090, %v1106
        %v1108 = vlaneseq
        %v1109 = vshrl.u32 %v1108, 7
        %v1110 = vsub.s32 4, %v1109
        %v1111 = vrot.slane %v1090, %v1110
        %v1112 = vlaneseq
        %v1113 = vshrl.u32 %v1112, 7
        %v1114 = vsub.s32 5, %v1113
        %v1115 = vrot.slane %v1090, %v1114
        %v1218 = vunpack.c.l.b16 %v994
        %v1219 = vunpack.c.h.b16 %v994
        %v1220 = vunpack.c.l.b16 %v995
        %v1221 = vunpack.c.h.b16 %v995
        %v1222 = vunpack.c.l.b16 %v996
        %v1223 = vunpack.c.h.b16 %v996
        %v1224 = vunpack.c.l.b16 %v997
        %v1225 = vunpack.c.h.b16 %v997
        %v1226 = vunpack.c.l.b16 %v998
        %v1227 = vunpack.c.h.b16 %v998
        %v1228 = vunpack.c.l.b16 %v999
        %v1229 = vunpack.c.h.b16 %v999
        %v1230 = vunpack.c.l.b16 %v1000
        %v1231 = vunpack.c.h.b16 %v1000
        %v1232 = vunpack.c.l.b16 %v1001
        %v1233 = vunpack.c.h.b16 %v1001
        %v1234 = vunpack.c.l.b16 %v1002
        %v1235 = vunpack.c.h.b16 %v1002
        %v1236 = vunpack.c.l.b16 %v1003
        %v1237 = vunpack.c.h.b16 %v1003
        %v1238 = vunpack.c.l.b16 %v1004
        %v1239 = vunpack.c.h.b16 %v1004
        %v1240 = vunpack.c.l.b16 %v1005
        %v1241 = vunpack.c.h.b16 %v1005
        %v1242 = vunpack.c.l.b16 %v1006
        %v1243 = vunpack.c.h.b16 %v1006
        %v1244 = vunpack.c.l.b16 %v1007
        %v1245 = vunpack.c.h.b16 %v1007
        %v1246 = vunpack.c.l.b16 %v1008
        %v1247 = vunpack.c.h.b16 %v1008
        %v1248 = vunpack.c.l.b16 %v1009
        %v1249 = vunpack.c.h.b16 %v1009
        %v1250 = vunpack.c.l.b16 %v1010
        %v1251 = vunpack.c.h.b16 %v1010
        %v1252 = vunpack.c.l.b16 %v1011
        %v1253 = vunpack.c.h.b16 %v1011
        %v1254 = vunpack.c.l.b16 %v1012
        %v1255 = vunpack.c.h.b16 %v1012
        %v1256 = vunpack.c.l.b16 %v1013
        %v1257 = vunpack.c.h.b16 %v1013
        %v1258 = vunpack.c.l.b16 %v1014
        %v1259 = vunpack.c.h.b16 %v1014
        %v1260 = vunpack.c.l.b16 %v1015
        %v1261 = vunpack.c.h.b16 %v1015
        %v1262 = vunpack.c.l.b16 %v1016
        %v1263 = vunpack.c.h.b16 %v1016
        %v1264 = vunpack.c.l.b16 %v1017
        %v1265 = vunpack.c.h.b16 %v1017
        %v1266 = vunpack.c.l.b16 %v1018
        %v1267 = vunpack.c.h.b16 %v1018
        %v1268 = vunpack.c.l.b16 %v1019
        %v1269 = vunpack.c.h.b16 %v1019
        %v1270 = vunpack.c.l.b16 %v1020
        %v1271 = vunpack.c.h.b16 %v1020
        %v1272 = vunpack.c.l.b16 %v1021
        %v1273 = vunpack.c.h.b16 %v1021
        %v1274 = vunpack.c.l.b16 %v1022
        %v1275 = vunpack.c.h.b16 %v1022
        %v1276 = vunpack.c.l.b16 %v1023
        %v1277 = vunpack.c.h.b16 %v1023
        %v1278 = vunpack.c.l.b16 %v1024
        %v1279 = vunpack.c.h.b16 %v1024
        %v1280 = vunpack.c.l.b16 %v1025
        %v1281 = vunpack.c.h.b16 %v1025
        %v1282 = vunpack.c.l.b16 %v1026
        %v1283 = vunpack.c.h.b16 %v1026
        %v1284 = vunpack.c.l.b16 %v1027
        %v1285 = vunpack.c.h.b16 %v1027
        %v1286 = vunpack.c.l.b16 %v1028
        %v1287 = vunpack.c.h.b16 %v1028
        %v1288 = vunpack.c.l.b16 %v1029
        %v1289 = vunpack.c.h.b16 %v1029
        %v1290 = vunpack.c.l.b16 %v1030
        %v1291 = vunpack.c.h.b16 %v1030
        %v1292 = vunpack.c.l.b16 %v1031
        %v1293 = vunpack.c.h.b16 %v1031
        %v1294 = vunpack.c.l.b16 %v1032
        %v1295 = vunpack.c.h.b16 %v1032
        %v1296 = vunpack.c.l.b16 %v1033
        %v1297 = vunpack.c.h.b16 %v1033
        %v1298 = vunpack.c.l.b16 %v1034
        %v1299 = vunpack.c.h.b16 %v1034
        %v1300 = vunpack.c.l.b16 %v1035
        %v1301 = vunpack.c.h.b16 %v1035
        %v1302 = vunpack.c.l.b16 %v1036
        %v1303 = vunpack.c.h.b16 %v1036
        %v1304 = vunpack.c.l.b16 %v1037
        %v1305 = vunpack.c.h.b16 %v1037
        %v1306 = vunpack.c.l.b16 %v1038
        %v1307 = vunpack.c.h.b16 %v1038
        %v1308 = vunpack.c.l.b16 %v1039
        %v1309 = vunpack.c.h.b16 %v1039
        %v1310 = vunpack.c.l.b16 %v1040
        %v1311 = vunpack.c.h.b16 %v1040
        %v1312 = vunpack.c.l.b16 %v1041
        %v1313 = vunpack.c.h.b16 %v1041
        %v1314 = vunpack.c.l.b16 %v1042
        %v1315 = vunpack.c.h.b16 %v1042
        %v1316 = vunpack.c.l.b16 %v1043
        %v1317 = vunpack.c.h.b16 %v1043
        %v1318 = vunpack.c.l.b16 %v1044
        %v1319 = vunpack.c.h.b16 %v1044
        %v1320 = vunpack.c.l.b16 %v1045
        %v1321 = vunpack.c.h.b16 %v1045
        %v1322 = vunpack.c.l.b16 %v1046
        %v1323 = vunpack.c.h.b16 %v1046
        %v1324 = vunpack.c.l.b16 %v1047
        %v1325 = vunpack.c.h.b16 %v1047
        %v1326 = vunpack.c.l.b16 %v1048
        %v1327 = vunpack.c.h.b16 %v1048
        %v1328 = vunpack.c.l.b16 %v1049
        %v1329 = vunpack.c.h.b16 %v1049
        %v1330 = vunpack.c.l.b16 %v1050
        %v1331 = vunpack.c.h.b16 %v1050
        %v1332 = vunpack.c.l.b16 %v1051
        %v1333 = vunpack.c.h.b16 %v1051
        %v1334 = vunpack.c.l.b16 %v1052
        %v1335 = vunpack.c.h.b16 %v1052
        %v1336 = vunpack.c.l.b16 %v1053
        %v1337 = vunpack.c.h.b16 %v1053
        %v1338 = vunpack.c.l.b16 %v1054
        %v1339 = vunpack.c.h.b16 %v1054
        %v1340 = vunpack.c.l.b16 %v1055
        %v1341 = vunpack.c.h.b16 %v1055
        %v1342 = vunpack.c.l.b16 %v1056
        %v1343 = vunpack.c.h.b16 %v1056
        %v1344 = vunpack.c.l.b16 %v1057
        %v1345 = vunpack.c.h.b16 %v1057
        %v1346 = vunpack.c.l.b16 %v1058
        %v1347 = vunpack.c.h.b16 %v1058
        %v1348 = vunpack.c.l.b16 %v1059
        %v1349 = vunpack.c.h.b16 %v1059
        %v1350 = vunpack.c.l.b16 %v1060
        %v1351 = vunpack.c.h.b16 %v1060
        %v1352 = vunpack.c.l.b16 %v1061
        %v1353 = vunpack.c.h.b16 %v1061
        %v1354 = vunpack.c.l.b16 %v1062
        %v1355 = vunpack.c.h.b16 %v1062
        %v1356 = vunpack.c.l.b16 %v1063
        %v1357 = vunpack.c.h.b16 %v1063
        %v1358 = vunpack.c.l.b16 %v1064
        %v1359 = vunpack.c.h.b16 %v1064
        %v1360 = vunpack.c.l.b16 %v1065
        %v1361 = vunpack.c.h.b16 %v1065
        %v1362 = vunpack.c.l.b16 %v1066
        %v1363 = vunpack.c.h.b16 %v1066
        %v1364 = vunpack.c.l.b16 %v1067
        %v1365 = vunpack.c.h.b16 %v1067
        %v1366 = vunpack.c.l.b16 %v1068
        %v1367 = vunpack.c.h.b16 %v1068
        %v1368 = vunpack.c.l.b16 %v1069
        %v1369 = vunpack.c.h.b16 %v1069
        %v1370 = vunpack.c.l.b16 %v1070
        %v1371 = vunpack.c.h.b16 %v1070
        %v1372 = vunpack.c.l.b16 %v1071
        %v1373 = vunpack.c.h.b16 %v1071
        %v1374 = vunpack.c.l.b16 %v1072
        %v1375 = vunpack.c.h.b16 %v1072
        %v1376 = vunpack.c.l.b16 %v1073
        %v1377 = vunpack.c.h.b16 %v1073
        %v1378 = vunpack.c.l.b16 %v1074
        %v1379 = vunpack.c.h.b16 %v1074
        %v1380 = vunpack.c.l.b16 %v1075
        %v1381 = vunpack.c.h.b16 %v1075
        %v1382 = vunpack.c.l.b16 %v1076
        %v1383 = vunpack.c.h.b16 %v1076
        %v1384 = vunpack.c.l.b16 %v1077
        %v1385 = vunpack.c.h.b16 %v1077
        %v1386 = vunpack.c.l.b16 %v1078
        %v1387 = vunpack.c.h.b16 %v1078
        %v1388 = vunpack.c.l.b16 %v1079
        %v1389 = vunpack.c.h.b16 %v1079
        %v1390 = vunpack.c.l.b16 %v1080
        %v1391 = vunpack.c.h.b16 %v1080
        %v1392 = vunpack.c.l.b16 %v1081
        %v1393 = vunpack.c.h.b16 %v1081
        %v1394 = vunpack.c.l.b16 %v1082
        %v1395 = vunpack.c.h.b16 %v1082
        %v1396 = vunpack.c.l.b16 %v1083
        %v1397 = vunpack.c.h.b16 %v1083
        %v1398 = vunpack.c.l.b16 %v1084
        %v1399 = vunpack.c.h.b16 %v1084
        %v1400 = vunpack.c.l.b16 %v1085
        %v1401 = vunpack.c.h.b16 %v1085
        %v1402 = vunpack.c.l.b16 %v1086
        %v1403 = vunpack.c.h.b16 %v1086
        %v1404 = vunpack.c.l.b16 %v1087
        %v1405 = vunpack.c.h.b16 %v1087
        %v1406 = vunpack.c.l.b16 %v1088
        %v1407 = vunpack.c.h.b16 %v1088
        %v1408 = vunpack.c.l.b16 %v1089
        %v1409 = vunpack.c.h.b16 %v1089
        %v1410 = vpack.c.b16 %v1224, %v1218
        %v1411 = vpack.c.b16 %v1225, %v1219
        %v1412 = vpack.c.b16 %v1226, %v1220
        %v1413 = vpack.c.b16 %v1227, %v1221
        %v1414 = vpack.c.b16 %v1228, %v1222
        %v1415 = vpack.c.b16 %v1229, %v1223
        %v1416 = vpack.c.b16 %v1236, %v1230
        %v1417 = vpack.c.b16 %v1237, %v1231
        %v1418 = vpack.c.b16 %v1238, %v1232
        %v1419 = vpack.c.b16 %v1239, %v1233
        %v1420 = vpack.c.b16 %v1240, %v1234
        %v1421 = vpack.c.b16 %v1241, %v1235
        %v1422 = vpack.c.b16 %v1248, %v1242
        %v1423 = vpack.c.b16 %v1249, %v1243
        %v1424 = vpack.c.b16 %v1250, %v1244
        %v1425 = vpack.c.b16 %v1251, %v1245
        %v1426 = vpack.c.b16 %v1252, %v1246
        %v1427 = vpack.c.b16 %v1253, %v1247
        %v1428 = vpack.c.b16 %v1260, %v1254
        %v1429 = vpack.c.b16 %v1261, %v1255
        %v1430 = vpack.c.b16 %v1262, %v1256
        %v1431 = vpack.c.b16 %v1263, %v1257
        %v1432 = vpack.c.b16 %v1264, %v1258
        %v1433 = vpack.c.b16 %v1265, %v1259
        %v1434 = vpack.c.b16 %v1272, %v1266
        %v1435 = vpack.c.b16 %v1273, %v1267
        %v1436 = vpack.c.b16 %v1274, %v1268
        %v1437 = vpack.c.b16 %v1275, %v1269
        %v1438 = vpack.c.b16 %v1276, %v1270
        %v1439 = vpack.c.b16 %v1277, %v1271
        %v1440 = vpack.c.b16 %v1284, %v1278
        %v1441 = vpack.c.b16 %v1285, %v1279
        %v1442 = vpack.c.b16 %v1286, %v1280
        %v1443 = vpack.c.b16 %v1287, %v1281
        %v1444 = vpack.c.b16 %v1288, %v1282
        %v1445 = vpack.c.b16 %v1289, %v1283
        %v1446 = vpack.c.b16 %v1296, %v1290
        %v1447 = vpack.c.b16 %v1297, %v1291
        %v1448 = vpack.c.b16 %v1298, %v1292
        %v1449 = vpack.c.b16 %v1299, %v1293
        %v1450 = vpack.c.b16 %v1300, %v1294
        %v1451 = vpack.c.b16 %v1301, %v1295
        %v1452 = vpack.c.b16 %v1308, %v1302
        %v1453 = vpack.c.b16 %v1309, %v1303
        %v1454 = vpack.c.b16 %v1310, %v1304
        %v1455 = vpack.c.b16 %v1311, %v1305
        %v1456 = vpack.c.b16 %v1312, %v1306
        %v1457 = vpack.c.b16 %v1313, %v1307
        %v1458 = vpack.c.b16 %v1320, %v1314
        %v1459 = vpack.c.b16 %v1321, %v1315
        %v1460 = vpack.c.b16 %v1322, %v1316
        %v1461 = vpack.c.b16 %v1323, %v1317
        %v1462 = vpack.c.b16 %v1324, %v1318
        %v1463 = vpack.c.b16 %v1325, %v1319
        %v1464 = vpack.c.b16 %v1332, %v1326
        %v1465 = vpack.c.b16 %v1333, %v1327
        %v1466 = vpack.c.b16 %v1334, %v1328
        %v1467 = vpack.c.b16 %v1335, %v1329
        %v1468 = vpack.c.b16 %v1336, %v1330
        %v1469 = vpack.c.b16 %v1337, %v1331
        %v1470 = vpack.c.b16 %v1344, %v1338
        %v1471 = vpack.c.b16 %v1345, %v1339
        %v1472 = vpack.c.b16 %v1346, %v1340
        %v1473 = vpack.c.b16 %v1347, %v1341
        %v1474 = vpack.c.b16 %v1348, %v1342
        %v1475 = vpack.c.b16 %v1349, %v1343
        %v1476 = vpack.c.b16 %v1356, %v1350
        %v1477 = vpack.c.b16 %v1357, %v1351
        %v1478 = vpack.c.b16 %v1358, %v1352
        %v1479 = vpack.c.b16 %v1359, %v1353
        %v1480 = vpack.c.b16 %v1360, %v1354
        %v1481 = vpack.c.b16 %v1361, %v1355
        %v1482 = vpack.c.b16 %v1368, %v1362
        %v1483 = vpack.c.b16 %v1369, %v1363
        %v1484 = vpack.c.b16 %v1370, %v1364
        %v1485 = vpack.c.b16 %v1371, %v1365
        %v1486 = vpack.c.b16 %v1372, %v1366
        %v1487 = vpack.c.b16 %v1373, %v1367
        %v1488 = vpack.c.b16 %v1380, %v1374
        %v1489 = vpack.c.b16 %v1381, %v1375
        %v1490 = vpack.c.b16 %v1382, %v1376
        %v1491 = vpack.c.b16 %v1383, %v1377
        %v1492 = vpack.c.b16 %v1384, %v1378
        %v1493 = vpack.c.b16 %v1385, %v1379
        %v1494 = vpack.c.b16 %v1392, %v1386
        %v1495 = vpack.c.b16 %v1393, %v1387
        %v1496 = vpack.c.b16 %v1394, %v1388
        %v1497 = vpack.c.b16 %v1395, %v1389
        %v1498 = vpack.c.b16 %v1396, %v1390
        %v1499 = vpack.c.b16 %v1397, %v1391
        %v1500 = vpack.c.b16 %v1404, %v1398
        %v1501 = vpack.c.b16 %v1405, %v1399
        %v1502 = vpack.c.b16 %v1406, %v1400
        %v1503 = vpack.c.b16 %v1407, %v1401
        %v1504 = vpack.c.b16 %v1408, %v1402
        %v1505 = vpack.c.b16 %v1409, %v1403
        %1602 = vmatprep.subr.bf16.mxu0 %v1411
        %1603 = vmatpush1.bf16.msra.mxu0 %v1410
        %1604 = vmatprep.subr.bf16.mxu0 %v1417
        %1605 = vmatpush1.bf16.msra.mxu0 %v1416
        %1606 = vmatprep.subr.bf16.mxu0 %v1423
        %1607 = vmatpush1.bf16.msra.mxu0 %v1422
        %1608 = vmatprep.subr.bf16.mxu0 %v1429
        %1609 = vmatpush1.bf16.msra.mxu0 %v1428
        %1610 = vmatprep.subr.bf16.mxu0 %v1435
        %1611 = vmatpush1.bf16.msra.mxu0 %v1434
        %1612 = vmatprep.subr.bf16.mxu0 %v1441
        %1613 = vmatpush1.bf16.msra.mxu0 %v1440
        %1614 = vmatprep.subr.bf16.mxu0 %v1447
        %1615 = vmatpush1.bf16.msra.mxu0 %v1446
        %1616 = vmatprep.subr.bf16.mxu0 %v1453
        %1617 = vmatpush1.bf16.msra.mxu0 %v1452
        %1618 = vmatprep.subr.bf16.mxu0 %v1459
        %1619 = vmatpush1.bf16.msra.mxu0 %v1458
        %1620 = vmatprep.subr.bf16.mxu0 %v1465
        %1621 = vmatpush1.bf16.msra.mxu0 %v1464
        %1622 = vmatprep.subr.bf16.mxu0 %v1471
        %1623 = vmatpush1.bf16.msra.mxu0 %v1470
        %1624 = vmatprep.subr.bf16.mxu0 %v1477
        %1625 = vmatpush1.bf16.msra.mxu0 %v1476
        %1626 = vmatprep.subr.bf16.mxu0 %v1483
        %1627 = vmatpush1.bf16.msra.mxu0 %v1482
        %1628 = vmatprep.subr.bf16.mxu0 %v1489
        %1629 = vmatpush1.bf16.msra.mxu0 %v1488
        %1630 = vmatprep.subr.bf16.mxu0 %v1495
        %1631 = vmatpush1.bf16.msra.mxu0 %v1494
        %1632 = vmatprep.subr.bf16.mxu0 %v1501
        %1633 = vmatpush1.bf16.msra.mxu0 %v1500
        %1634 = vmatprep.mubr.bf16.mxu0 %v979
        %1635 = vmatmul.mubr.bf16.gmra.mrb[0].mxu0 %v978
        %v1636 = vpop.f32.mrb[0].mxu0
        %v1637 = vadd.f32 %v1095, %v1636
        %v1638 = vpop.f32.mrb[0].mxu0
        %v1639 = vadd.f32 %v1099, %v1638
        %v1640 = vpop.f32.mrb[0].mxu0
        %v1641 = vadd.f32 %v1095, %v1640
        %v1642 = vpop.f32.mrb[0].mxu0
        %v1643 = vadd.f32 %v1099, %v1642
        %1644 = vmatprep.mubr.bf16.mxu0 %v981
        %1645 = vmatmul.mubr.bf16.gmra.mrb[0].mxu0 %v980
        %v1646 = vpop.f32.mrb[0].mxu0
        %v1647 = vadd.f32 %v1095, %v1646
        %v1648 = vpop.f32.mrb[0].mxu0
        %v1649 = vadd.f32 %v1099, %v1648
        %v1650 = vpop.f32.mrb[0].mxu0
        %v1651 = vadd.f32 %v1095, %v1650
        %v1652 = vpop.f32.mrb[0].mxu0
        %v1653 = vadd.f32 %v1099, %v1652
        %1654 = vmatprep.mubr.bf16.mxu0 %v983
        %1655 = vmatmul.mubr.bf16.gmra.mrb[0].mxu0 %v982
        %v1656 = vpop.f32.mrb[0].mxu0
        %v1657 = vadd.f32 %v1095, %v1656
        %v1658 = vpop.f32.mrb[0].mxu0
        %v1659 = vadd.f32 %v1099, %v1658
        %v1660 = vpop.f32.mrb[0].mxu0
        %v1661 = vadd.f32 %v1095, %v1660
        %v1662 = vpop.f32.mrb[0].mxu0
        %v1663 = vadd.f32 %v1099, %v1662
        %1664 = vmatprep.mubr.bf16.mxu0 %v985
        %1665 = vmatmul.mubr.bf16.gmra.mrb[0].mxu0 %v984
        %v1666 = vpop.f32.mrb[0].mxu0
        %v1667 = vadd.f32 %v1095, %v1666
        %v1668 = vpop.f32.mrb[0].mxu0
        %v1669 = vadd.f32 %v1099, %v1668
        %v1670 = vpop.f32.mrb[0].mxu0
        %v1671 = vadd.f32 %v1095, %v1670
        %v1672 = vpop.f32.mrb[0].mxu0
        %v1673 = vadd.f32 %v1099, %v1672
        %1674 = vmatprep.mubr.bf16.mxu0 %v987
        %1675 = vmatmul.mubr.bf16.gmra.mrb[0].mxu0 %v986
        %v1676 = vpop.f32.mrb[0].mxu0
        %v1677 = vadd.f32 %v1095, %v1676
        %v1678 = vpop.f32.mrb[0].mxu0
        %v1679 = vadd.f32 %v1099, %v1678
        %v1680 = vpop.f32.mrb[0].mxu0
        %v1681 = vadd.f32 %v1095, %v1680
        %v1682 = vpop.f32.mrb[0].mxu0
        %v1683 = vadd.f32 %v1099, %v1682
        %1684 = vmatprep.mubr.bf16.mxu0 %v989
        %1685 = vmatmul.mubr.bf16.gmra.mrb[0].mxu0 %v988
        %v1686 = vpop.f32.mrb[0].mxu0
        %v1687 = vadd.f32 %v1095, %v1686
        %v1688 = vpop.f32.mrb[0].mxu0
        %v1689 = vadd.f32 %v1099, %v1688
        %v1690 = vpop.f32.mrb[0].mxu0
        %v1691 = vadd.f32 %v1095, %v1690
        %v1692 = vpop.f32.mrb[0].mxu0
        %v1693 = vadd.f32 %v1099, %v1692
        %1694 = vmatprep.mubr.bf16.mxu0 %v991
        %1695 = vmatmul.mubr.bf16.gmra.mrb[0].mxu0 %v990
        %v1696 = vpop.f32.mrb[0].mxu0
        %v1697 = vadd.f32 %v1095, %v1696
        %v1698 = vpop.f32.mrb[0].mxu0
        %v1699 = vadd.f32 %v1099, %v1698
        %v1700 = vpop.f32.mrb[0].mxu0
        %v1701 = vadd.f32 %v1095, %v1700
        %v1702 = vpop.f32.mrb[0].mxu0
        %v1703 = vadd.f32 %v1099, %v1702
        %1704 = vmatprep.mubr.bf16.mxu0 %v993
        %1705 = vmatmul.mubr.bf16.gmra.mrb[0].mxu0 %v992
        %v1706 = vpop.f32.mrb[0].mxu0
        %v1707 = vadd.f32 %v1095, %v1706
        %v1708 = vpop.f32.mrb[0].mxu0
        %v1709 = vadd.f32 %v1099, %v1708
        %v1710 = vpop.f32.mrb[0].mxu0
        %v1711 = vadd.f32 %v1095, %v1710
        %v1712 = vpop.f32.mrb[0].mxu0
        %v1713 = vadd.f32 %v1099, %v1712
        %1714 = vdwg.mxu0
        %1715 = vmatprep.subr.bf16.mxu0 %v1413
        %1716 = vmatpush1.bf16.msra.mxu0 %v1412
        %1717 = vmatprep.subr.bf16.mxu0 %v1419
        %1718 = vmatpush1.bf16.msra.mxu0 %v1418
        %1719 = vmatprep.subr.bf16.mxu0 %v1425
        %1720 = vmatpush1.bf16.msra.mxu0 %v1424
        %1721 = vmatprep.subr.bf16.mxu0 %v1431
        %1722 = vmatpush1.bf16.msra.mxu0 %v1430
        %1723 = vmatprep.subr.bf16.mxu0 %v1437
        %1724 = vmatpush1.bf16.msra.mxu0 %v1436
        %1725 = vmatprep.subr.bf16.mxu0 %v1443
        %1726 = vmatpush1.bf16.msra.mxu0 %v1442
        %1727 = vmatprep.subr.bf16.mxu0 %v1449
        %1728 = vmatpush1.bf16.msra.mxu0 %v1448
        %1729 = vmatprep.subr.bf16.mxu0 %v1455
        %1730 = vmatpush1.bf16.msra.mxu0 %v1454
        %1731 = vmatprep.subr.bf16.mxu0 %v1461
        %1732 = vmatpush1.bf16.msra.mxu0 %v1460
        %1733 = vmatprep.subr.bf16.mxu0 %v1467
        %1734 = vmatpush1.bf16.msra.mxu0 %v1466
        %1735 = vmatprep.subr.bf16.mxu0 %v1473
        %1736 = vmatpush1.bf16.msra.mxu0 %v1472
        %1737 = vmatprep.subr.bf16.mxu0 %v1479
        %1738 = vmatpush1.bf16.msra.mxu0 %v1478
        %1739 = vmatprep.subr.bf16.mxu0 %v1485
        %1740 = vmatpush1.bf16.msra.mxu0 %v1484
        %1741 = vmatprep.subr.bf16.mxu0 %v1491
        %1742 = vmatpush1.bf16.msra.mxu0 %v1490
        %1743 = vmatprep.subr.bf16.mxu0 %v1497
        %1744 = vmatpush1.bf16.msra.mxu0 %v1496
        %1745 = vmatprep.subr.bf16.mxu0 %v1503
        %1746 = vmatpush1.bf16.msra.mxu0 %v1502
        %1747 = vmatprep.mubr.bf16.mxu0 %v979
        %1748 = vmatmul.mubr.bf16.gmra.mrb[0].mxu0 %v978
        %v1749 = vpop.f32.mrb[0].mxu0
        %v1750 = vadd.f32 %v1103, %v1749
        %v1751 = vpop.f32.mrb[0].mxu0
        %v1752 = vadd.f32 %v1107, %v1751
        %v1753 = vpop.f32.mrb[0].mxu0
        %v1754 = vadd.f32 %v1103, %v1753
        %v1755 = vpop.f32.mrb[0].mxu0
        %v1756 = vadd.f32 %v1107, %v1755
        %1757 = vmatprep.mubr.bf16.mxu0 %v981
        %1758 = vmatmul.mubr.bf16.gmra.mrb[0].mxu0 %v980
        %v1759 = vpop.f32.mrb[0].mxu0
        %v1760 = vadd.f32 %v1103, %v1759
        %v1761 = vpop.f32.mrb[0].mxu0
        %v1762 = vadd.f32 %v1107, %v1761
        %v1763 = vpop.f32.mrb[0].mxu0
        %v1764 = vadd.f32 %v1103, %v1763
        %v1765 = vpop.f32.mrb[0].mxu0
        %v1766 = vadd.f32 %v1107, %v1765
        %1767 = vmatprep.mubr.bf16.mxu0 %v983
        %1768 = vmatmul.mubr.bf16.gmra.mrb[0].mxu0 %v982
        %v1769 = vpop.f32.mrb[0].mxu0
        %v1770 = vadd.f32 %v1103, %v1769
        %v1771 = vpop.f32.mrb[0].mxu0
        %v1772 = vadd.f32 %v1107, %v1771
        %v1773 = vpop.f32.mrb[0].mxu0
        %v1774 = vadd.f32 %v1103, %v1773
        %v1775 = vpop.f32.mrb[0].mxu0
        %v1776 = vadd.f32 %v1107, %v1775
        %1777 = vmatprep.mubr.bf16.mxu0 %v985
        %1778 = vmatmul.mubr.bf16.gmra.mrb[0].mxu0 %v984
        %v1779 = vpop.f32.mrb[0].mxu0
        %v1780 = vadd.f32 %v1103, %v1779
        %v1781 = vpop.f32.mrb[0].mxu0
        %v1782 = vadd.f32 %v1107, %v1781
        %v1783 = vpop.f32.mrb[0].mxu0
        %v1784 = vadd.f32 %v1103, %v1783
        %v1785 = vpop.f32.mrb[0].mxu0
        %v1786 = vadd.f32 %v1107, %v1785
        %1787 = vmatprep.mubr.bf16.mxu0 %v987
        %1788 = vmatmul.mubr.bf16.gmra.mrb[0].mxu0 %v986
        %v1789 = vpop.f32.mrb[0].mxu0
        %v1790 = vadd.f32 %v1103, %v1789
        %v1791 = vpop.f32.mrb[0].mxu0
        %v1792 = vadd.f32 %v1107, %v1791
        %v1793 = vpop.f32.mrb[0].mxu0
        %v1794 = vadd.f32 %v1103, %v1793
        %v1795 = vpop.f32.mrb[0].mxu0
        %v1796 = vadd.f32 %v1107, %v1795
        %1797 = vmatprep.mubr.bf16.mxu0 %v989
        %1798 = vmatmul.mubr.bf16.gmra.mrb[0].mxu0 %v988
        %v1799 = vpop.f32.mrb[0].mxu0
        %v1800 = vadd.f32 %v1103, %v1799
        %v1801 = vpop.f32.mrb[0].mxu0
        %v1802 = vadd.f32 %v1107, %v1801
        %v1803 = vpop.f32.mrb[0].mxu0
        %v1804 = vadd.f32 %v1103, %v1803
        %v1805 = vpop.f32.mrb[0].mxu0
        %v1806 = vadd.f32 %v1107, %v1805
        %1807 = vmatprep.mubr.bf16.mxu0 %v991
        %1808 = vmatmul.mubr.bf16.gmra.mrb[0].mxu0 %v990
        %v1809 = vpop.f32.mrb[0].mxu0
        %v1810 = vadd.f32 %v1103, %v1809
        %v1811 = vpop.f32.mrb[0].mxu0
        %v1812 = vadd.f32 %v1107, %v1811
        %v1813 = vpop.f32.mrb[0].mxu0
        %v1814 = vadd.f32 %v1103, %v1813
        %v1815 = vpop.f32.mrb[0].mxu0
        %v1816 = vadd.f32 %v1107, %v1815
        %1817 = vmatprep.mubr.bf16.mxu0 %v993
        %1818 = vmatmul.mubr.bf16.gmra.mrb[0].mxu0 %v992
        %v1819 = vpop.f32.mrb[0].mxu0
        %v1820 = vadd.f32 %v1103, %v1819
        %v1821 = vpop.f32.mrb[0].mxu0
        %v1822 = vadd.f32 %v1107, %v1821
        %v1823 = vpop.f32.mrb[0].mxu0
        %v1824 = vadd.f32 %v1103, %v1823
        %v1825 = vpop.f32.mrb[0].mxu0
        %v1826 = vadd.f32 %v1107, %v1825
        %1827 = vdwg.mxu0
        %1828 = vmatprep.subr.bf16.mxu0 %v1415
        %1829 = vmatpush1.bf16.msra.mxu0 %v1414
        %1830 = vmatprep.subr.bf16.mxu0 %v1421
        %1831 = vmatpush1.bf16.msra.mxu0 %v1420
        %1832 = vmatprep.subr.bf16.mxu0 %v1427
        %1833 = vmatpush1.bf16.msra.mxu0 %v1426
        %1834 = vmatprep.subr.bf16.mxu0 %v1433
        %1835 = vmatpush1.bf16.msra.mxu0 %v1432
        %1836 = vmatprep.subr.bf16.mxu0 %v1439
        %1837 = vmatpush1.bf16.msra.mxu0 %v1438
        %1838 = vmatprep.subr.bf16.mxu0 %v1445
        %1839 = vmatpush1.bf16.msra.mxu0 %v1444
        %1840 = vmatprep.subr.bf16.mxu0 %v1451
        %1841 = vmatpush1.bf16.msra.mxu0 %v1450
        %1842 = vmatprep.subr.bf16.mxu0 %v1457
        %1843 = vmatpush1.bf16.msra.mxu0 %v1456
        %1844 = vmatprep.subr.bf16.mxu0 %v1463
        %1845 = vmatpush1.bf16.msra.mxu0 %v1462
        %1846 = vmatprep.subr.bf16.mxu0 %v1469
        %1847 = vmatpush1.bf16.msra.mxu0 %v1468
        %1848 = vmatprep.subr.bf16.mxu0 %v1475
        %1849 = vmatpush1.bf16.msra.mxu0 %v1474
        %1850 = vmatprep.subr.bf16.mxu0 %v1481
        %1851 = vmatpush1.bf16.msra.mxu0 %v1480
        %1852 = vmatprep.subr.bf16.mxu0 %v1487
        %1853 = vmatpush1.bf16.msra.mxu0 %v1486
        %1854 = vmatprep.subr.bf16.mxu0 %v1493
        %1855 = vmatpush1.bf16.msra.mxu0 %v1492
        %1856 = vmatprep.subr.bf16.mxu0 %v1499
        %1857 = vmatpush1.bf16.msra.mxu0 %v1498
        %1858 = vmatprep.subr.bf16.mxu0 %v1505
        %1859 = vmatpush1.bf16.msra.mxu0 %v1504
        %1860 = vmatprep.mubr.bf16.mxu0 %v979
        %1861 = vmatmul.mubr.bf16.gmra.mrb[0].mxu0 %v978
        %v1862 = vpop.f32.mrb[0].mxu0
        %v1863 = vadd.f32 %v1111, %v1862
        %v1864 = vpop.f32.mrb[0].mxu0
        %v1865 = vadd.f32 %v1115, %v1864
        %v1866 = vpop.f32.mrb[0].mxu0
        %v1867 = vadd.f32 %v1111, %v1866
        %v1868 = vpop.f32.mrb[0].mxu0
        %v1869 = vadd.f32 %v1115, %v1868
        %1870 = vmatprep.mubr.bf16.mxu0 %v981
        %1871 = vmatmul.mubr.bf16.gmra.mrb[0].mxu0 %v980
        %v1872 = vpop.f32.mrb[0].mxu0
        %v1873 = vadd.f32 %v1111, %v1872
        %v1874 = vpop.f32.mrb[0].mxu0
        %v1875 = vadd.f32 %v1115, %v1874
        %v1876 = vpop.f32.mrb[0].mxu0
        %v1877 = vadd.f32 %v1111, %v1876
        %v1878 = vpop.f32.mrb[0].mxu0
        %v1879 = vadd.f32 %v1115, %v1878
        %1880 = vmatprep.mubr.bf16.mxu0 %v983
        %1881 = vmatmul.mubr.bf16.gmra.mrb[0].mxu0 %v982
        %v1882 = vpop.f32.mrb[0].mxu0
        %v1883 = vadd.f32 %v1111, %v1882
        %v1884 = vpop.f32.mrb[0].mxu0
        %v1885 = vadd.f32 %v1115, %v1884
        %v1886 = vpop.f32.mrb[0].mxu0
        %v1887 = vadd.f32 %v1111, %v1886
        %v1888 = vpop.f32.mrb[0].mxu0
        %v1889 = vadd.f32 %v1115, %v1888
        %1890 = vmatprep.mubr.bf16.mxu0 %v985
        %1891 = vmatmul.mubr.bf16.gmra.mrb[0].mxu0 %v984
        %v1892 = vpop.f32.mrb[0].mxu0
        %v1893 = vadd.f32 %v1111, %v1892
        %v1894 = vpop.f32.mrb[0].mxu0
        %v1895 = vadd.f32 %v1115, %v1894
        %v1896 = vpop.f32.mrb[0].mxu0
        %v1897 = vadd.f32 %v1111, %v1896
        %v1898 = vpop.f32.mrb[0].mxu0
        %v1899 = vadd.f32 %v1115, %v1898
        %1900 = vmatprep.mubr.bf16.mxu0 %v987
        %1901 = vmatmul.mubr.bf16.gmra.mrb[0].mxu0 %v986
        %v1902 = vpop.f32.mrb[0].mxu0
        %v1903 = vadd.f32 %v1111, %v1902
        %v1904 = vpop.f32.mrb[0].mxu0
        %v1905 = vadd.f32 %v1115, %v1904
        %v1906 = vpop.f32.mrb[0].mxu0
        %v1907 = vadd.f32 %v1111, %v1906
        %v1908 = vpop.f32.mrb[0].mxu0
        %v1909 = vadd.f32 %v1115, %v1908
        %1910 = vmatprep.mubr.bf16.mxu0 %v989
        %1911 = vmatmul.mubr.bf16.gmra.mrb[0].mxu0 %v988
        %v1912 = vpop.f32.mrb[0].mxu0
        %v1913 = vadd.f32 %v1111, %v1912
        %v1914 = vpop.f32.mrb[0].mxu0
        %v1915 = vadd.f32 %v1115, %v1914
        %v1916 = vpop.f32.mrb[0].mxu0
        %v1917 = vadd.f32 %v1111, %v1916
        %v1918 = vpop.f32.mrb[0].mxu0
        %v1919 = vadd.f32 %v1115, %v1918
        %1920 = vmatprep.mubr.bf16.mxu0 %v991
        %1921 = vmatmul.mubr.bf16.gmra.mrb[0].mxu0 %v990
        %v1922 = vpop.f32.mrb[0].mxu0
        %v1923 = vadd.f32 %v1111, %v1922
        %v1924 = vpop.f32.mrb[0].mxu0
        %v1925 = vadd.f32 %v1115, %v1924
        %v1926 = vpop.f32.mrb[0].mxu0
        %v1927 = vadd.f32 %v1111, %v1926
        %v1928 = vpop.f32.mrb[0].mxu0
        %v1929 = vadd.f32 %v1115, %v1928
        %1930 = vmatprep.mubr.bf16.mxu0 %v993
        %1931 = vmatmul.mubr.bf16.gmra.mrb[0].mxu0 %v992
        %v1932 = vpop.f32.mrb[0].mxu0
        %v1933 = vadd.f32 %v1111, %v1932
        %v1934 = vpop.f32.mrb[0].mxu0
        %v1935 = vadd.f32 %v1115, %v1934
        %v1936 = vpop.f32.mrb[0].mxu0
        %v1937 = vadd.f32 %v1111, %v1936
        %v1938 = vpop.f32.mrb[0].mxu0
        %v1939 = vadd.f32 %v1115, %v1938
        %1940 = vdwg.mxu0
        %v1941 = vpack.c.bf16 %v1641, %v1637
        %v1942 = vpack.c.bf16 %v1643, %v1639
        %v1943 = vpack.c.bf16 %v1754, %v1750
        %v1944 = vpack.c.bf16 %v1756, %v1752
        %v1945 = vpack.c.bf16 %v1867, %v1863
        %v1946 = vpack.c.bf16 %v1869, %v1865
        %v1947 = vpack.c.bf16 %v1651, %v1647
        %v1948 = vpack.c.bf16 %v1653, %v1649
        %v1949 = vpack.c.bf16 %v1764, %v1760
        %v1950 = vpack.c.bf16 %v1766, %v1762
        %v1951 = vpack.c.bf16 %v1877, %v1873
        %v1952 = vpack.c.bf16 %v1879, %v1875
        %v1953 = vpack.c.bf16 %v1661, %v1657
        %v1954 = vpack.c.bf16 %v1663, %v1659
        %v1955 = vpack.c.bf16 %v1774, %v1770
        %v1956 = vpack.c.bf16 %v1776, %v1772
        %v1957 = vpack.c.bf16 %v1887, %v1883
        %v1958 = vpack.c.bf16 %v1889, %v1885
        %v1959 = vpack.c.bf16 %v1671, %v1667
        %v1960 = vpack.c.bf16 %v1673, %v1669
        %v1961 = vpack.c.bf16 %v1784, %v1780
        %v1962 = vpack.c.bf16 %v1786, %v1782
        %v1963 = vpack.c.bf16 %v1897, %v1893
        %v1964 = vpack.c.bf16 %v1899, %v1895
        %v1965 = vpack.c.bf16 %v1681, %v1677
        %v1966 = vpack.c.bf16 %v1683, %v1679
        %v1967 = vpack.c.bf16 %v1794, %v1790
        %v1968 = vpack.c.bf16 %v1796, %v1792
        %v1969 = vpack.c.bf16 %v1907, %v1903
        %v1970 = vpack.c.bf16 %v1909, %v1905
        %v1971 = vpack.c.bf16 %v1691, %v1687
        %v1972 = vpack.c.bf16 %v1693, %v1689
        %v1973 = vpack.c.bf16 %v1804, %v1800
        %v1974 = vpack.c.bf16 %v1806, %v1802
        %v1975 = vpack.c.bf16 %v1917, %v1913
        %v1976 = vpack.c.bf16 %v1919, %v1915
        %v1977 = vpack.c.bf16 %v1701, %v1697
        %v1978 = vpack.c.bf16 %v1703, %v1699
        %v1979 = vpack.c.bf16 %v1814, %v1810
        %v1980 = vpack.c.bf16 %v1816, %v1812
        %v1981 = vpack.c.bf16 %v1927, %v1923
        %v1982 = vpack.c.bf16 %v1929, %v1925
        %v1983 = vpack.c.bf16 %v1711, %v1707
        %v1984 = vpack.c.bf16 %v1713, %v1709
        %v1985 = vpack.c.bf16 %v1824, %v1820
        %v1986 = vpack.c.bf16 %v1826, %v1822
        %v1987 = vpack.c.bf16 %v1937, %v1933
        %v1988 = vpack.c.bf16 %v1939, %v1935
        %1989 = vmatprep.subr.bf16.mxu0 0
        %1990 = vmatpush1.bf16.xpose.msra.mxu0 %v1943
        %1991 = vmatprep.subr.bf16.mxu0 0
        %1992 = vmatpush1.bf16.xpose.msra.mxu0 %v1949
        %1993 = vmatprep.subr.bf16.mxu0 0
        %1994 = vmatpush1.bf16.xpose.msra.mxu0 %v1955
        %1995 = vmatprep.subr.bf16.mxu0 0
        %1996 = vmatpush1.bf16.xpose.msra.mxu0 %v1961
        %1997 = vmatprep.subr.bf16.mxu0 0
        %1998 = vmatpush1.bf16.xpose.msra.mxu0 %v1967
        %1999 = vmatprep.subr.bf16.mxu0 0
        %2000 = vmatpush1.bf16.xpose.msra.mxu0 %v1973
        %2001 = vmatprep.subr.bf16.mxu0 0
        %2002 = vmatpush1.bf16.xpose.msra.mxu0 %v1979
        %2003 = vmatprep.subr.bf16.mxu0 0
        %2004 = vmatpush1.bf16.xpose.msra.mxu0 %v1985
        %2005 = vmatprep.subr.bf16.mxu0 0
        %2006 = vmatpush1.bf16.xpose.msra.mxu0 0
        %2007 = vmatprep.subr.bf16.mxu0 0
        %2008 = vmatpush1.bf16.xpose.msra.mxu0 0
        %2009 = vmatprep.subr.bf16.mxu0 0
        %2010 = vmatpush1.bf16.xpose.msra.mxu0 0
        %2011 = vmatprep.subr.bf16.mxu0 0
        %2012 = vmatpush1.bf16.xpose.msra.mxu0 0
        %2013 = vmatprep.subr.bf16.mxu0 0
        %2014 = vmatpush1.bf16.xpose.msra.mxu0 0
        %2015 = vmatprep.subr.bf16.mxu0 0
        %2016 = vmatpush1.bf16.xpose.msra.mxu0 0
        %2017 = vmatprep.subr.bf16.mxu0 0
        %2018 = vmatpush1.bf16.xpose.msra.mxu0 0
        %2019 = vmatprep.subr.bf16.mxu0 0
        %2020 = vmatpush1.bf16.xpose.msra.mxu0 0
        %2021 = vmatprep.mubr.bf16.mxu0 0
        %2022 = vmatmul.mubr.bf16.gmra.mrb[0].mxu0 %v1941
        %v2023 = vpop.f32.mrb[0].mxu0
        %v2024 = vadd.f32 0.0, %v2023
        %v2025 = vpop.f32.mrb[0].mxu0
        %v2026 = vpop.f32.mrb[0].mxu0
        %v2027 = vadd.f32 0.0, %v2026
        %v2028 = vpop.f32.mrb[0].mxu0
        %2029 = vmatprep.mubr.bf16.mxu0 0
        %2030 = vmatmul.mubr.bf16.gmra.mrb[0].mxu0 %v1947
        %v2031 = vpop.f32.mrb[0].mxu0
        %v2032 = vadd.f32 0.0, %v2031
        %v2033 = vpop.f32.mrb[0].mxu0
        %v2034 = vpop.f32.mrb[0].mxu0
        %v2035 = vadd.f32 0.0, %v2034
        %v2036 = vpop.f32.mrb[0].mxu0
        %2037 = vmatprep.mubr.bf16.mxu0 0
        %2038 = vmatmul.mubr.bf16.gmra.mrb[0].mxu0 %v1953
        %v2039 = vpop.f32.mrb[0].mxu0
        %v2040 = vadd.f32 0.0, %v2039
        %v2041 = vpop.f32.mrb[0].mxu0
        %v2042 = vpop.f32.mrb[0].mxu0
        %v2043 = vadd.f32 0.0, %v2042
        %v2044 = vpop.f32.mrb[0].mxu0
        %2045 = vmatprep.mubr.bf16.mxu0 0
        %2046 = vmatmul.mubr.bf16.gmra.mrb[0].mxu0 %v1959
        %v2047 = vpop.f32.mrb[0].mxu0
        %v2048 = vadd.f32 0.0, %v2047
        %v2049 = vpop.f32.mrb[0].mxu0
        %v2050 = vpop.f32.mrb[0].mxu0
        %v2051 = vadd.f32 0.0, %v2050
        %v2052 = vpop.f32.mrb[0].mxu0
        %2053 = vmatprep.mubr.bf16.mxu0 0
        %2054 = vmatmul.mubr.bf16.gmra.mrb[0].mxu0 %v1965
        %v2055 = vpop.f32.mrb[0].mxu0
        %v2056 = vadd.f32 0.0, %v2055
        %v2057 = vpop.f32.mrb[0].mxu0
        %v2058 = vpop.f32.mrb[0].mxu0
        %v2059 = vadd.f32 0.0, %v2058
        %v2060 = vpop.f32.mrb[0].mxu0
        %2061 = vmatprep.mubr.bf16.mxu0 0
        %2062 = vmatmul.mubr.bf16.gmra.mrb[0].mxu0 %v1971
        %v2063 = vpop.f32.mrb[0].mxu0
        %v2064 = vadd.f32 0.0, %v2063
        %v2065 = vpop.f32.mrb[0].mxu0
        %v2066 = vpop.f32.mrb[0].mxu0
        %v2067 = vadd.f32 0.0, %v2066
        %v2068 = vpop.f32.mrb[0].mxu0
        %2069 = vmatprep.mubr.bf16.mxu0 0
        %2070 = vmatmul.mubr.bf16.gmra.mrb[0].mxu0 %v1977
        %v2071 = vpop.f32.mrb[0].mxu0
        %v2072 = vadd.f32 0.0, %v2071
        %v2073 = vpop.f32.mrb[0].mxu0
        %v2074 = vpop.f32.mrb[0].mxu0
        %v2075 = vadd.f32 0.0, %v2074
        %v2076 = vpop.f32.mrb[0].mxu0
        %2077 = vmatprep.mubr.bf16.mxu0 0
        %2078 = vmatmul.mubr.bf16.gmra.mrb[0].mxu0 %v1983
        %v2079 = vpop.f32.mrb[0].mxu0
        %v2080 = vadd.f32 0.0, %v2079
        %v2081 = vpop.f32.mrb[0].mxu0
        %v2082 = vpop.f32.mrb[0].mxu0
        %v2083 = vadd.f32 0.0, %v2082
        %v2084 = vpop.f32.mrb[0].mxu0
        %2085 = vdwg.mxu0
        %2086 = vmax.xlane.f32.xlu0 %v2024
        %v2087 = vpop.xlane.xlu0 %2086
        %2088 = vmax.xlane.f32.xlu0 %v2027
        %v2089 = vpop.xlane.xlu0 %2088
        %2090 = vmax.xlane.f32.xlu0 %v2032
        %v2091 = vpop.xlane.xlu0 %2090
        %2092 = vmax.xlane.f32.xlu0 %v2035
        %v2093 = vpop.xlane.xlu0 %2092
        %2094 = vmax.xlane.f32.xlu0 %v2040
        %v2095 = vpop.xlane.xlu0 %2094
        %2096 = vmax.xlane.f32.xlu0 %v2043
        %v2097 = vpop.xlane.xlu0 %2096
        %2098 = vmax.xlane.f32.xlu0 %v2048
        %v2099 = vpop.xlane.xlu0 %2098
        %2100 = vmax.xlane.f32.xlu0 %v2051
        %v2101 = vpop.xlane.xlu0 %2100
        %2102 = vmax.xlane.f32.xlu0 %v2056
        %v2103 = vpop.xlane.xlu0 %2102
        %2104 = vmax.xlane.f32.xlu0 %v2059
        %v2105 = vpop.xlane.xlu0 %2104
        %2106 = vmax.xlane.f32.xlu0 %v2064
        %v2107 = vpop.xlane.xlu0 %2106
        %2108 = vmax.xlane.f32.xlu0 %v2067
        %v2109 = vpop.xlane.xlu0 %2108
        %2110 = vmax.xlane.f32.xlu0 %v2072
        %v2111 = vpop.xlane.xlu0 %2110
        %2112 = vmax.xlane.f32.xlu0 %v2075
        %v2113 = vpop.xlane.xlu0 %2112
        %2114 = vmax.xlane.f32.xlu0 %v2080
        %v2115 = vpop.xlane.xlu0 %2114
        %2116 = vmax.xlane.f32.xlu0 %v2083
        %v2117 = vpop.xlane.xlu0 %2116
        %v2118 = vsub.f32 %v2024, %v2087
        %v2119 = vsub.f32 %v2027, %v2089
        %v2120 = vsub.f32 %v2032, %v2091
        %v2121 = vsub.f32 %v2035, %v2093
        %v2122 = vsub.f32 %v2040, %v2095
        %v2123 = vsub.f32 %v2043, %v2097
        %v2124 = vsub.f32 %v2048, %v2099
        %v2125 = vsub.f32 %v2051, %v2101
        %v2126 = vsub.f32 %v2056, %v2103
        %v2127 = vsub.f32 %v2059, %v2105
        %v2128 = vsub.f32 %v2064, %v2107
        %v2129 = vsub.f32 %v2067, %v2109
        %v2130 = vsub.f32 %v2072, %v2111
        %v2131 = vsub.f32 %v2075, %v2113
        %v2132 = vsub.f32 %v2080, %v2115
        %v2133 = vsub.f32 %v2083, %v2117
        %v2134 = vmul.f32 %v2118, 1.442695
        %v2135 = vpow.pop %v2134
        %v2136 = vmul.f32 %v2119, 1.442695
        %v2137 = vpow.pop %v2136
        %v2138 = vmul.f32 %v2120, 1.442695
        %v2139 = vpow.pop %v2138
        %v2140 = vmul.f32 %v2121, 1.442695
        %v2141 = vpow.pop %v2140
        %v2142 = vmul.f32 %v2122, 1.442695
        %v2143 = vpow.pop %v2142
        %v2144 = vmul.f32 %v2123, 1.442695
        %v2145 = vpow.pop %v2144
        %v2146 = vmul.f32 %v2124, 1.442695
        %v2147 = vpow.pop %v2146
        %v2148 = vmul.f32 %v2125, 1.442695
        %v2149 = vpow.pop %v2148
        %v2150 = vmul.f32 %v2126, 1.442695
        %v2151 = vpow.pop %v2150
        %v2152 = vmul.f32 %v2127, 1.442695
        %v2153 = vpow.pop %v2152
        %v2154 = vmul.f32 %v2128, 1.442695
        %v2155 = vpow.pop %v2154
        %v2156 = vmul.f32 %v2129, 1.442695
        %v2157 = vpow.pop %v2156
        %v2158 = vmul.f32 %v2130, 1.442695
        %v2159 = vpow.pop %v2158
        %v2160 = vmul.f32 %v2131, 1.442695
        %v2161 = vpow.pop %v2160
        %v2162 = vmul.f32 %v2132, 1.442695
        %v2163 = vpow.pop %v2162
        %v2164 = vmul.f32 %v2133, 1.442695
        %v2165 = vpow.pop %v2164
        %2166 = vadd.xlane.f32.xlu0 %v2135
        %v2167 = vpop.xlane.xlu0 %2166
        %2168 = vadd.xlane.f32.xlu0 %v2137
        %v2169 = vpop.xlane.xlu0 %2168
        %2170 = vadd.xlane.f32.xlu0 %v2139
        %v2171 = vpop.xlane.xlu0 %2170
        %2172 = vadd.xlane.f32.xlu0 %v2141
        %v2173 = vpop.xlane.xlu0 %2172
        %2174 = vadd.xlane.f32.xlu0 %v2143
        %v2175 = vpop.xlane.xlu0 %2174
        %2176 = vadd.xlane.f32.xlu0 %v2145
        %v2177 = vpop.xlane.xlu0 %2176
        %2178 = vadd.xlane.f32.xlu0 %v2147
        %v2179 = vpop.xlane.xlu0 %2178
        %2180 = vadd.xlane.f32.xlu0 %v2149
        %v2181 = vpop.xlane.xlu0 %2180
        %2182 = vadd.xlane.f32.xlu0 %v2151
        %v2183 = vpop.xlane.xlu0 %2182
        %2184 = vadd.xlane.f32.xlu0 %v2153
        %v2185 = vpop.xlane.xlu0 %2184
        %2186 = vadd.xlane.f32.xlu0 %v2155
        %v2187 = vpop.xlane.xlu0 %2186
        %2188 = vadd.xlane.f32.xlu0 %v2157
        %v2189 = vpop.xlane.xlu0 %2188
        %2190 = vadd.xlane.f32.xlu0 %v2159
        %v2191 = vpop.xlane.xlu0 %2190
        %2192 = vadd.xlane.f32.xlu0 %v2161
        %v2193 = vpop.xlane.xlu0 %2192
        %2194 = vadd.xlane.f32.xlu0 %v2163
        %v2195 = vpop.xlane.xlu0 %2194
        %2196 = vadd.xlane.f32.xlu0 %v2165
        %v2197 = vpop.xlane.xlu0 %2196
        %v2198 = vrcp.pop %v2167
        %v2199 = vrcp.pop %v2169
        %v2200 = vrcp.pop %v2171
        %v2201 = vrcp.pop %v2173
        %v2202 = vrcp.pop %v2175
        %v2203 = vrcp.pop %v2177
        %v2204 = vrcp.pop %v2179
        %v2205 = vrcp.pop %v2181
        %v2206 = vrcp.pop %v2183
        %v2207 = vrcp.pop %v2185
        %v2208 = vrcp.pop %v2187
        %v2209 = vrcp.pop %v2189
        %v2210 = vrcp.pop %v2191
        %v2211 = vrcp.pop %v2193
        %v2212 = vrcp.pop %v2195
        %v2213 = vrcp.pop %v2197
        %v2214 = vmul.f32 %v2135, %v2198
        %v2215 = vmul.f32 %v2137, %v2199
        %v2216 = vmul.f32 %v2139, %v2200
        %v2217 = vmul.f32 %v2141, %v2201
        %v2218 = vmul.f32 %v2143, %v2202
        %v2219 = vmul.f32 %v2145, %v2203
        %v2220 = vmul.f32 %v2147, %v2204
        %v2221 = vmul.f32 %v2149, %v2205
        %v2222 = vmul.f32 %v2151, %v2206
        %v2223 = vmul.f32 %v2153, %v2207
        %v2224 = vmul.f32 %v2155, %v2208
        %v2225 = vmul.f32 %v2157, %v2209
        %v2226 = vmul.f32 %v2159, %v2210
        %v2227 = vmul.f32 %v2161, %v2211
        %v2228 = vmul.f32 %v2163, %v2212
        %v2229 = vmul.f32 %v2165, %v2213
        %v2230 = vpack.c.bf16 %v2215, %v2214
        %v2231 = vpack.c.bf16 %v2217, %v2216
        %v2232 = vpack.c.bf16 %v2219, %v2218
        %v2233 = vpack.c.bf16 %v2221, %v2220
        %v2234 = vpack.c.bf16 %v2223, %v2222
        %v2235 = vpack.c.bf16 %v2225, %v2224
        %v2236 = vpack.c.bf16 %v2227, %v2226
        %v2237 = vpack.c.bf16 %v2229, %v2228
        %2238 = vmatprep.subr.bf16.mxu0 0
        %2239 = vmatpush1.bf16.msra.mxu0 %v1945
        %2240 = vmatprep.subr.bf16.mxu0 0
        %2241 = vmatpush1.bf16.msra.mxu0 %v1951
        %2242 = vmatprep.subr.bf16.mxu0 0
        %2243 = vmatpush1.bf16.msra.mxu0 %v1957
        %2244 = vmatprep.subr.bf16.mxu0 0
        %2245 = vmatpush1.bf16.msra.mxu0 %v1963
        %2246 = vmatprep.subr.bf16.mxu0 0
        %2247 = vmatpush1.bf16.msra.mxu0 %v1969
        %2248 = vmatprep.subr.bf16.mxu0 0
        %2249 = vmatpush1.bf16.msra.mxu0 %v1975
        %2250 = vmatprep.subr.bf16.mxu0 0
        %2251 = vmatpush1.bf16.msra.mxu0 %v1981
        %2252 = vmatprep.subr.bf16.mxu0 0
        %2253 = vmatpush1.bf16.msra.mxu0 %v1987
        %2254 = vmatprep.subr.bf16.mxu0 0
        %2255 = vmatpush1.bf16.msra.mxu0 0
        %2256 = vmatprep.subr.bf16.mxu0 0
        %2257 = vmatpush1.bf16.msra.mxu0 0
        %2258 = vmatprep.subr.bf16.mxu0 0
        %2259 = vmatpush1.bf16.msra.mxu0 0
        %2260 = vmatprep.subr.bf16.mxu0 0
        %2261 = vmatpush1.bf16.msra.mxu0 0
        %2262 = vmatprep.subr.bf16.mxu0 0
        %2263 = vmatpush1.bf16.msra.mxu0 0
        %2264 = vmatprep.subr.bf16.mxu0 0
        %2265 = vmatpush1.bf16.msra.mxu0 0
        %2266 = vmatprep.subr.bf16.mxu0 0
        %2267 = vmatpush1.bf16.msra.mxu0 0
        %2268 = vmatprep.subr.bf16.mxu0 0
        %2269 = vmatpush1.bf16.msra.mxu0 0
        %2270 = vmatprep.mubr.bf16.mxu0 0
        %2271 = vmatmul.mubr.bf16.gmra.mrb[0].mxu0 %v2230
        %v2272 = vpop.f32.mrb[0].mxu0
        %v2273 = vadd.f32 0.0, %v2272
        %v2274 = vpop.f32.mrb[0].mxu0
        %v2275 = vpop.f32.mrb[0].mxu0
        %v2276 = vadd.f32 0.0, %v2275
        %v2277 = vpop.f32.mrb[0].mxu0
        %2278 = vmatprep.mubr.bf16.mxu0 0
        %2279 = vmatmul.mubr.bf16.gmra.mrb[0].mxu0 %v2231
        %v2280 = vpop.f32.mrb[0].mxu0
        %v2281 = vadd.f32 0.0, %v2280
        %v2282 = vpop.f32.mrb[0].mxu0
        %v2283 = vpop.f32.mrb[0].mxu0
        %v2284 = vadd.f32 0.0, %v2283
        %v2285 = vpop.f32.mrb[0].mxu0
        %2286 = vmatprep.mubr.bf16.mxu0 0
        %2287 = vmatmul.mubr.bf16.gmra.mrb[0].mxu0 %v2232
        %v2288 = vpop.f32.mrb[0].mxu0
        %v2289 = vadd.f32 0.0, %v2288
        %v2290 = vpop.f32.mrb[0].mxu0
        %v2291 = vpop.f32.mrb[0].mxu0
        %v2292 = vadd.f32 0.0, %v2291
        %v2293 = vpop.f32.mrb[0].mxu0
        %2294 = vmatprep.mubr.bf16.mxu0 0
        %2295 = vmatmul.mubr.bf16.gmra.mrb[0].mxu0 %v2233
        %v2296 = vpop.f32.mrb[0].mxu0
        %v2297 = vadd.f32 0.0, %v2296
        %v2298 = vpop.f32.mrb[0].mxu0
        %v2299 = vpop.f32.mrb[0].mxu0
        %v2300 = vadd.f32 0.0, %v2299
        %v2301 = vpop.f32.mrb[0].mxu0
        %2302 = vmatprep.mubr.bf16.mxu0 0
        %2303 = vmatmul.mubr.bf16.gmra.mrb[0].mxu0 %v2234
        %v2304 = vpop.f32.mrb[0].mxu0
        %v2305 = vadd.f32 0.0, %v2304
        %v2306 = vpop.f32.mrb[0].mxu0
        %v2307 = vpop.f32.mrb[0].mxu0
        %v2308 = vadd.f32 0.0, %v2307
        %v2309 = vpop.f32.mrb[0].mxu0
        %2310 = vmatprep.mubr.bf16.mxu0 0
        %2311 = vmatmul.mubr.bf16.gmra.mrb[0].mxu0 %v2235
        %v2312 = vpop.f32.mrb[0].mxu0
        %v2313 = vadd.f32 0.0, %v2312
        %v2314 = vpop.f32.mrb[0].mxu0
        %v2315 = vpop.f32.mrb[0].mxu0
        %v2316 = vadd.f32 0.0, %v2315
        %v2317 = vpop.f32.mrb[0].mxu0
        %2318 = vmatprep.mubr.bf16.mxu0 0
        %2319 = vmatmul.mubr.bf16.gmra.mrb[0].mxu0 %v2236
        %v2320 = vpop.f32.mrb[0].mxu0
        %v2321 = vadd.f32 0.0, %v2320
        %v2322 = vpop.f32.mrb[0].mxu0
        %v2323 = vpop.f32.mrb[0].mxu0
        %v2324 = vadd.f32 0.0, %v2323
        %v2325 = vpop.f32.mrb[0].mxu0
        %2326 = vmatprep.mubr.bf16.mxu0 0
        %2327 = vmatmul.mubr.bf16.gmra.mrb[0].mxu0 %v2237
        %v2328 = vpop.f32.mrb[0].mxu0
        %v2329 = vadd.f32 0.0, %v2328
        %v2330 = vpop.f32.mrb[0].mxu0
        %v2331 = vpop.f32.mrb[0].mxu0
        %v2332 = vadd.f32 0.0, %v2331
        %v2333 = vpop.f32.mrb[0].mxu0
        %2334 = vdwg.mxu0
        %2335 = vmatprep.subr.bf16.mxu0 0
        %2336 = vmatpush1.bf16.xpose.msra.mxu0 %v1944
        %2337 = vmatprep.subr.bf16.mxu0 0
        %2338 = vmatpush1.bf16.xpose.msra.mxu0 %v1950
        %2339 = vmatprep.subr.bf16.mxu0 0
        %2340 = vmatpush1.bf16.xpose.msra.mxu0 %v1956
        %2341 = vmatprep.subr.bf16.mxu0 0
        %2342 = vmatpush1.bf16.xpose.msra.mxu0 %v1962
        %2343 = vmatprep.subr.bf16.mxu0 0
        %2344 = vmatpush1.bf16.xpose.msra.mxu0 %v1968
        %2345 = vmatprep.subr.bf16.mxu0 0
        %2346 = vmatpush1.bf16.xpose.msra.mxu0 %v1974
        %2347 = vmatprep.subr.bf16.mxu0 0
        %2348 = vmatpush1.bf16.xpose.msra.mxu0 %v1980
        %2349 = vmatprep.subr.bf16.mxu0 0
        %2350 = vmatpush1.bf16.xpose.msra.mxu0 %v1986
        %2351 = vmatprep.subr.bf16.mxu0 0
        %2352 = vmatpush1.bf16.xpose.msra.mxu0 0
        %2353 = vmatprep.subr.bf16.mxu0 0
        %2354 = vmatpush1.bf16.xpose.msra.mxu0 0
        %2355 = vmatprep.subr.bf16.mxu0 0
        %2356 = vmatpush1.bf16.xpose.msra.mxu0 0
        %2357 = vmatprep.subr.bf16.mxu0 0
        %2358 = vmatpush1.bf16.xpose.msra.mxu0 0
        %2359 = vmatprep.subr.bf16.mxu0 0
        %2360 = vmatpush1.bf16.xpose.msra.mxu0 0
        %2361 = vmatprep.subr.bf16.mxu0 0
        %2362 = vmatpush1.bf16.xpose.msra.mxu0 0
        %2363 = vmatprep.subr.bf16.mxu0 0
        %2364 = vmatpush1.bf16.xpose.msra.mxu0 0
        %2365 = vmatprep.subr.bf16.mxu0 0
        %2366 = vmatpush1.bf16.xpose.msra.mxu0 0
        %2367 = vmatprep.mubr.bf16.mxu0 0
        %2368 = vmatmul.mubr.bf16.gmra.mrb[0].mxu0 %v1942
        %v2369 = vpop.f32.mrb[0].mxu0
        %v2370 = vadd.f32 0.0, %v2369
        %v2371 = vpop.f32.mrb[0].mxu0
        %v2372 = vpop.f32.mrb[0].mxu0
        %v2373 = vadd.f32 0.0, %v2372
        %v2374 = vpop.f32.mrb[0].mxu0
        %2375 = vmatprep.mubr.bf16.mxu0 0
        %2376 = vmatmul.mubr.bf16.gmra.mrb[0].mxu0 %v1948
        %v2377 = vpop.f32.mrb[0].mxu0
        %v2378 = vadd.f32 0.0, %v2377
        %v2379 = vpop.f32.mrb[0].mxu0
        %v2380 = vpop.f32.mrb[0].mxu0
        %v2381 = vadd.f32 0.0, %v2380
        %v2382 = vpop.f32.mrb[0].mxu0
        %2383 = vmatprep.mubr.bf16.mxu0 0
        %2384 = vmatmul.mubr.bf16.gmra.mrb[0].mxu0 %v1954
        %v2385 = vpop.f32.mrb[0].mxu0
        %v2386 = vadd.f32 0.0, %v2385
        %v2387 = vpop.f32.mrb[0].mxu0
        %v2388 = vpop.f32.mrb[0].mxu0
        %v2389 = vadd.f32 0.0, %v2388
        %v2390 = vpop.f32.mrb[0].mxu0
        %2391 = vmatprep.mubr.bf16.mxu0 0
        %2392 = vmatmul.mubr.bf16.gmra.mrb[0].mxu0 %v1960
        %v2393 = vpop.f32.mrb[0].mxu0
        %v2394 = vadd.f32 0.0, %v2393
        %v2395 = vpop.f32.mrb[0].mxu0
        %v2396 = vpop.f32.mrb[0].mxu0
        %v2397 = vadd.f32 0.0, %v2396
        %v2398 = vpop.f32.mrb[0].mxu0
        %2399 = vmatprep.mubr.bf16.mxu0 0
        %2400 = vmatmul.mubr.bf16.gmra.mrb[0].mxu0 %v1966
        %v2401 = vpop.f32.mrb[0].mxu0
        %v2402 = vadd.f32 0.0, %v2401
        %v2403 = vpop.f32.mrb[0].mxu0
        %v2404 = vpop.f32.mrb[0].mxu0
        %v2405 = vadd.f32 0.0, %v2404
        %v2406 = vpop.f32.mrb[0].mxu0
        %2407 = vmatprep.mubr.bf16.mxu0 0
        %2408 = vmatmul.mubr.bf16.gmra.mrb[0].mxu0 %v1972
        %v2409 = vpop.f32.mrb[0].mxu0
        %v2410 = vadd.f32 0.0, %v2409
        %v2411 = vpop.f32.mrb[0].mxu0
        %v2412 = vpop.f32.mrb[0].mxu0
        %v2413 = vadd.f32 0.0, %v2412
        %v2414 = vpop.f32.mrb[0].mxu0
        %2415 = vmatprep.mubr.bf16.mxu0 0
        %2416 = vmatmul.mubr.bf16.gmra.mrb[0].mxu0 %v1978
        %v2417 = vpop.f32.mrb[0].mxu0
        %v2418 = vadd.f32 0.0, %v2417
        %v2419 = vpop.f32.mrb[0].mxu0
        %v2420 = vpop.f32.mrb[0].mxu0
        %v2421 = vadd.f32 0.0, %v2420
        %v2422 = vpop.f32.mrb[0].mxu0
        %2423 = vmatprep.mubr.bf16.mxu0 0
        %2424 = vmatmul.mubr.bf16.gmra.mrb[0].mxu0 %v1984
        %v2425 = vpop.f32.mrb[0].mxu0
        %v2426 = vadd.f32 0.0, %v2425
        %v2427 = vpop.f32.mrb[0].mxu0
        %v2428 = vpop.f32.mrb[0].mxu0
        %v2429 = vadd.f32 0.0, %v2428
        %v2430 = vpop.f32.mrb[0].mxu0
        %2431 = vdwg.mxu0
        %2432 = vmax.xlane.f32.xlu0 %v2370
        %v2433 = vpop.xlane.xlu0 %2432
        %2434 = vmax.xlane.f32.xlu0 %v2373
        %v2435 = vpop.xlane.xlu0 %2434
        %2436 = vmax.xlane.f32.xlu0 %v2378
        %v2437 = vpop.xlane.xlu0 %2436
        %2438 = vmax.xlane.f32.xlu0 %v2381
        %v2439 = vpop.xlane.xlu0 %2438
        %2440 = vmax.xlane.f32.xlu0 %v2386
        %v2441 = vpop.xlane.xlu0 %2440
        %2442 = vmax.xlane.f32.xlu0 %v2389
        %v2443 = vpop.xlane.xlu0 %2442
        %2444 = vmax.xlane.f32.xlu0 %v2394
        %v2445 = vpop.xlane.xlu0 %2444
        %2446 = vmax.xlane.f32.xlu0 %v2397
        %v2447 = vpop.xlane.xlu0 %2446
        %2448 = vmax.xlane.f32.xlu0 %v2402
        %v2449 = vpop.xlane.xlu0 %2448
        %2450 = vmax.xlane.f32.xlu0 %v2405
        %v2451 = vpop.xlane.xlu0 %2450
        %2452 = vmax.xlane.f32.xlu0 %v2410
        %v2453 = vpop.xlane.xlu0 %2452
        %2454 = vmax.xlane.f32.xlu0 %v2413
        %v2455 = vpop.xlane.xlu0 %2454
        %2456 = vmax.xlane.f32.xlu0 %v2418
        %v2457 = vpop.xlane.xlu0 %2456
        %2458 = vmax.xlane.f32.xlu0 %v2421
        %v2459 = vpop.xlane.xlu0 %2458
        %2460 = vmax.xlane.f32.xlu0 %v2426
        %v2461 = vpop.xlane.xlu0 %2460
        %2462 = vmax.xlane.f32.xlu0 %v2429
        %v2463 = vpop.xlane.xlu0 %2462
        %v2464 = vsub.f32 %v2370, %v2433
        %v2465 = vsub.f32 %v2373, %v2435
        %v2466 = vsub.f32 %v2378, %v2437
        %v2467 = vsub.f32 %v2381, %v2439
        %v2468 = vsub.f32 %v2386, %v2441
        %v2469 = vsub.f32 %v2389, %v2443
        %v2470 = vsub.f32 %v2394, %v2445
        %v2471 = vsub.f32 %v2397, %v2447
        %v2472 = vsub.f32 %v2402, %v2449
        %v2473 = vsub.f32 %v2405, %v2451
        %v2474 = vsub.f32 %v2410, %v2453
        %v2475 = vsub.f32 %v2413, %v2455
        %v2476 = vsub.f32 %v2418, %v2457
        %v2477 = vsub.f32 %v2421, %v2459
        %v2478 = vsub.f32 %v2426, %v2461
        %v2479 = vsub.f32 %v2429, %v2463
        %v2480 = vmul.f32 %v2464, 1.442695
        %v2481 = vpow.pop %v2480
        %v2482 = vmul.f32 %v2465, 1.442695
        %v2483 = vpow.pop %v2482
        %v2484 = vmul.f32 %v2466, 1.442695
        %v2485 = vpow.pop %v2484
        %v2486 = vmul.f32 %v2467, 1.442695
        %v2487 = vpow.pop %v2486
        %v2488 = vmul.f32 %v2468, 1.442695
        %v2489 = vpow.pop %v2488
        %v2490 = vmul.f32 %v2469, 1.442695
        %v2491 = vpow.pop %v2490
        %v2492 = vmul.f32 %v2470, 1.442695
        %v2493 = vpow.pop %v2492
        %v2494 = vmul.f32 %v2471, 1.442695
        %v2495 = vpow.pop %v2494
        %v2496 = vmul.f32 %v2472, 1.442695
        %v2497 = vpow.pop %v2496
        %v2498 = vmul.f32 %v2473, 1.442695
        %v2499 = vpow.pop %v2498
        %v2500 = vmul.f32 %v2474, 1.442695
        %v2501 = vpow.pop %v2500
        %v2502 = vmul.f32 %v2475, 1.442695
        %v2503 = vpow.pop %v2502
        %v2504 = vmul.f32 %v2476, 1.442695
        %v2505 = vpow.pop %v2504
        %v2506 = vmul.f32 %v2477, 1.442695
        %v2507 = vpow.pop %v2506
        %v2508 = vmul.f32 %v2478, 1.442695
        %v2509 = vpow.pop %v2508
        %v2510 = vmul.f32 %v2479, 1.442695
        %v2511 = vpow.pop %v2510
        %2512 = vadd.xlane.f32.xlu0 %v2481
        %v2513 = vpop.xlane.xlu0 %2512
        %2514 = vadd.xlane.f32.xlu0 %v2483
        %v2515 = vpop.xlane.xlu0 %2514
        %2516 = vadd.xlane.f32.xlu0 %v2485
        %v2517 = vpop.xlane.xlu0 %2516
        %2518 = vadd.xlane.f32.xlu0 %v2487
        %v2519 = vpop.xlane.xlu0 %2518
        %2520 = vadd.xlane.f32.xlu0 %v2489
        %v2521 = vpop.xlane.xlu0 %2520
        %2522 = vadd.xlane.f32.xlu0 %v2491
        %v2523 = vpop.xlane.xlu0 %2522
        %2524 = vadd.xlane.f32.xlu0 %v2493
        %v2525 = vpop.xlane.xlu0 %2524
        %2526 = vadd.xlane.f32.xlu0 %v2495
        %v2527 = vpop.xlane.xlu0 %2526
        %2528 = vadd.xlane.f32.xlu0 %v2497
        %v2529 = vpop.xlane.xlu0 %2528
        %2530 = vadd.xlane.f32.xlu0 %v2499
        %v2531 = vpop.xlane.xlu0 %2530
        %2532 = vadd.xlane.f32.xlu0 %v2501
        %v2533 = vpop.xlane.xlu0 %2532
        %2534 = vadd.xlane.f32.xlu0 %v2503
        %v2535 = vpop.xlane.xlu0 %2534
        %2536 = vadd.xlane.f32.xlu0 %v2505
        %v2537 = vpop.xlane.xlu0 %2536
        %2538 = vadd.xlane.f32.xlu0 %v2507
        %v2539 = vpop.xlane.xlu0 %2538
        %2540 = vadd.xlane.f32.xlu0 %v2509
        %v2541 = vpop.xlane.xlu0 %2540
        %2542 = vadd.xlane.f32.xlu0 %v2511
        %v2543 = vpop.xlane.xlu0 %2542
        %v2544 = vrcp.pop %v2513
        %v2545 = vrcp.pop %v2515
        %v2546 = vrcp.pop %v2517
        %v2547 = vrcp.pop %v2519
        %v2548 = vrcp.pop %v2521
        %v2549 = vrcp.pop %v2523
        %v2550 = vrcp.pop %v2525
        %v2551 = vrcp.pop %v2527
        %v2552 = vrcp.pop %v2529
        %v2553 = vrcp.pop %v2531
        %v2554 = vrcp.pop %v2533
        %v2555 = vrcp.pop %v2535
        %v2556 = vrcp.pop %v2537
        %v2557 = vrcp.pop %v2539
        %v2558 = vrcp.pop %v2541
        %v2559 = vrcp.pop %v2543
        %v2560 = vmul.f32 %v2481, %v2544
        %v2561 = vmul.f32 %v2483, %v2545
        %v2562 = vmul.f32 %v2485, %v2546
        %v2563 = vmul.f32 %v2487, %v2547
        %v2564 = vmul.f32 %v2489, %v2548
        %v2565 = vmul.f32 %v2491, %v2549
        %v2566 = vmul.f32 %v2493, %v2550
        %v2567 = vmul.f32 %v2495, %v2551
        %v2568 = vmul.f32 %v2497, %v2552
        %v2569 = vmul.f32 %v2499, %v2553
        %v2570 = vmul.f32 %v2501, %v2554
        %v2571 = vmul.f32 %v2503, %v2555
        %v2572 = vmul.f32 %v2505, %v2556
        %v2573 = vmul.f32 %v2507, %v2557
        %v2574 = vmul.f32 %v2509, %v2558
        %v2575 = vmul.f32 %v2511, %v2559
        %v2576 = vpack.c.bf16 %v2561, %v2560
        %v2577 = vpack.c.bf16 %v2563, %v2562
        %v2578 = vpack.c.bf16 %v2565, %v2564
        %v2579 = vpack.c.bf16 %v2567, %v2566
        %v2580 = vpack.c.bf16 %v2569, %v2568
        %v2581 = vpack.c.bf16 %v2571, %v2570
        %v2582 = vpack.c.bf16 %v2573, %v2572
        %v2583 = vpack.c.bf16 %v2575, %v2574
        %2584 = vmatprep.subr.bf16.mxu0 0
        %2585 = vmatpush1.bf16.msra.mxu0 %v1946
        %2586 = vmatprep.subr.bf16.mxu0 0
        %2587 = vmatpush1.bf16.msra.mxu0 %v1952
        %2588 = vmatprep.subr.bf16.mxu0 0
        %2589 = vmatpush1.bf16.msra.mxu0 %v1958
        %2590 = vmatprep.subr.bf16.mxu0 0
        %2591 = vmatpush1.bf16.msra.mxu0 %v1964
        %2592 = vmatprep.subr.bf16.mxu0 0
        %2593 = vmatpush1.bf16.msra.mxu0 %v1970
        %2594 = vmatprep.subr.bf16.mxu0 0
        %2595 = vmatpush1.bf16.msra.mxu0 %v1976
        %2596 = vmatprep.subr.bf16.mxu0 0
        %2597 = vmatpush1.bf16.msra.mxu0 %v1982
        %2598 = vmatprep.subr.bf16.mxu0 0
        %2599 = vmatpush1.bf16.msra.mxu0 %v1988
        %2600 = vmatprep.subr.bf16.mxu0 0
        %2601 = vmatpush1.bf16.msra.mxu0 0
        %2602 = vmatprep.subr.bf16.mxu0 0
        %2603 = vmatpush1.bf16.msra.mxu0 0
        %2604 = vmatprep.subr.bf16.mxu0 0
        %2605 = vmatpush1.bf16.msra.mxu0 0
        %2606 = vmatprep.subr.bf16.mxu0 0
        %2607 = vmatpush1.bf16.msra.mxu0 0
        %2608 = vmatprep.subr.bf16.mxu0 0
        %2609 = vmatpush1.bf16.msra.mxu0 0
        %2610 = vmatprep.subr.bf16.mxu0 0
        %2611 = vmatpush1.bf16.msra.mxu0 0
        %2612 = vmatprep.subr.bf16.mxu0 0
        %2613 = vmatpush1.bf16.msra.mxu0 0
        %2614 = vmatprep.subr.bf16.mxu0 0
        %2615 = vmatpush1.bf16.msra.mxu0 0
        %2616 = vmatprep.mubr.bf16.mxu0 0
        %2617 = vmatmul.mubr.bf16.gmra.mrb[0].mxu0 %v2576
        %v2618 = vpop.f32.mrb[0].mxu0
        %v2619 = vadd.f32 0.0, %v2618
        %v2620 = vpop.f32.mrb[0].mxu0
        %v2621 = vpop.f32.mrb[0].mxu0
        %v2622 = vadd.f32 0.0, %v2621
        %v2623 = vpop.f32.mrb[0].mxu0
        %2624 = vmatprep.mubr.bf16.mxu0 0
        %2625 = vmatmul.mubr.bf16.gmra.mrb[0].mxu0 %v2577
        %v2626 = vpop.f32.mrb[0].mxu0
        %v2627 = vadd.f32 0.0, %v2626
        %v2628 = vpop.f32.mrb[0].mxu0
        %v2629 = vpop.f32.mrb[0].mxu0
        %v2630 = vadd.f32 0.0, %v2629
        %v2631 = vpop.f32.mrb[0].mxu0
        %2632 = vmatprep.mubr.bf16.mxu0 0
        %2633 = vmatmul.mubr.bf16.gmra.mrb[0].mxu0 %v2578
        %v2634 = vpop.f32.mrb[0].mxu0
        %v2635 = vadd.f32 0.0, %v2634
        %v2636 = vpop.f32.mrb[0].mxu0
        %v2637 = vpop.f32.mrb[0].mxu0
        %v2638 = vadd.f32 0.0, %v2637
        %v2639 = vpop.f32.mrb[0].mxu0
        %2640 = vmatprep.mubr.bf16.mxu0 0
        %2641 = vmatmul.mubr.bf16.gmra.mrb[0].mxu0 %v2579
        %v2642 = vpop.f32.mrb[0].mxu0
        %v2643 = vadd.f32 0.0, %v2642
        %v2644 = vpop.f32.mrb[0].mxu0
        %v2645 = vpop.f32.mrb[0].mxu0
        %v2646 = vadd.f32 0.0, %v2645
        %v2647 = vpop.f32.mrb[0].mxu0
        %2648 = vmatprep.mubr.bf16.mxu0 0
        %2649 = vmatmul.mubr.bf16.gmra.mrb[0].mxu0 %v2580
        %v2650 = vpop.f32.mrb[0].mxu0
        %v2651 = vadd.f32 0.0, %v2650
        %v2652 = vpop.f32.mrb[0].mxu0
        %v2653 = vpop.f32.mrb[0].mxu0
        %v2654 = vadd.f32 0.0, %v2653
        %v2655 = vpop.f32.mrb[0].mxu0
        %2656 = vmatprep.mubr.bf16.mxu0 0
        %2657 = vmatmul.mubr.bf16.gmra.mrb[0].mxu0 %v2581
        %v2658 = vpop.f32.mrb[0].mxu0
        %v2659 = vadd.f32 0.0, %v2658
        %v2660 = vpop.f32.mrb[0].mxu0
        %v2661 = vpop.f32.mrb[0].mxu0
        %v2662 = vadd.f32 0.0, %v2661
        %v2663 = vpop.f32.mrb[0].mxu0
        %2664 = vmatprep.mubr.bf16.mxu0 0
        %2665 = vmatmul.mubr.bf16.gmra.mrb[0].mxu0 %v2582
        %v2666 = vpop.f32.mrb[0].mxu0
        %v2667 = vadd.f32 0.0, %v2666
        %v2668 = vpop.f32.mrb[0].mxu0
        %v2669 = vpop.f32.mrb[0].mxu0
        %v2670 = vadd.f32 0.0, %v2669
        %v2671 = vpop.f32.mrb[0].mxu0
        %2672 = vmatprep.mubr.bf16.mxu0 0
        %2673 = vmatmul.mubr.bf16.gmra.mrb[0].mxu0 %v2583
        %v2674 = vpop.f32.mrb[0].mxu0
        %v2675 = vadd.f32 0.0, %v2674
        %v2676 = vpop.f32.mrb[0].mxu0
        %v2677 = vpop.f32.mrb[0].mxu0
        %v2678 = vadd.f32 0.0, %v2677
        %v2679 = vpop.f32.mrb[0].mxu0
        %2680 = vdwg.mxu0
        %v2681 = vpack.c.bf16 %v2276, %v2273
        %v2682 = vpack.c.bf16 %v2622, %v2619
        %v2683 = vpack.c.bf16 %v2284, %v2281
        %v2684 = vpack.c.bf16 %v2630, %v2627
        %v2685 = vpack.c.bf16 %v2292, %v2289
        %v2686 = vpack.c.bf16 %v2638, %v2635
        %v2687 = vpack.c.bf16 %v2300, %v2297
        %v2688 = vpack.c.bf16 %v2646, %v2643
        %v2689 = vpack.c.bf16 %v2308, %v2305
        %v2690 = vpack.c.bf16 %v2654, %v2651
        %v2691 = vpack.c.bf16 %v2316, %v2313
        %v2692 = vpack.c.bf16 %v2662, %v2659
        %v2693 = vpack.c.bf16 %v2324, %v2321
        %v2694 = vpack.c.bf16 %v2670, %v2667
        %v2695 = vpack.c.bf16 %v2332, %v2329
        %v2696 = vpack.c.bf16 %v2678, %v2675
        %v2697 = vld [vmem:[%s5] sm:$0xff]
        %v2698 = vld [vmem:[%s5 + $0x8] sm:$0xff]
        %v2699 = vld [vmem:[%s5 + $0x10] sm:$0xff]
        %v2700 = vld [vmem:[%s5 + $0x18] sm:$0xff]
        %v2701 = vld [vmem:[%s5 + $0x20] sm:$0xff]
        %v2702 = vld [vmem:[%s5 + $0x28] sm:$0xff]
        %v2703 = vld [vmem:[%s5 + $0x30] sm:$0xff]
        %v2704 = vld [vmem:[%s5 + $0x38] sm:$0xff]
        %v2705 = vld [vmem:[%s5 + $0x40] sm:$0xff]
        %v2706 = vld [vmem:[%s5 + $0x48] sm:$0xff]
        %v2707 = vld [vmem:[%s5 + $0x50] sm:$0xff]
        %v2708 = vld [vmem:[%s5 + $0x58] sm:$0xff]
        %v2709 = vld [vmem:[%s5 + $0x60] sm:$0xff]
        %v2710 = vld [vmem:[%s5 + $0x68] sm:$0xff]
        %v2711 = vld [vmem:[%s5 + $0x70] sm:$0xff]
        %v2712 = vld [vmem:[%s5 + $0x78] sm:$0xff]
        %v2713 = vld [vmem:[%s5 + $0x80] sm:$0xff]
        %v2714 = vld [vmem:[%s5 + $0x88] sm:$0xff]
        %v2715 = vld [vmem:[%s5 + $0x90] sm:$0xff]
        %v2716 = vld [vmem:[%s5 + $0x98] sm:$0xff]
        %v2717 = vld [vmem:[%s5 + $0xa0] sm:$0xff]
        %v2718 = vld [vmem:[%s5 + $0xa8] sm:$0xff]
        %v2719 = vld [vmem:[%s5 + $0xb0] sm:$0xff]
        %v2720 = vld [vmem:[%s5 + $0xb8] sm:$0xff]
        %v2721 = vld [vmem:[%s5 + $0xc0] sm:$0xff]
        %v2722 = vld [vmem:[%s5 + $0xc8] sm:$0xff]
        %v2723 = vld [vmem:[%s5 + $0xd0] sm:$0xff]
        %v2724 = vld [vmem:[%s5 + $0xd8] sm:$0xff]
        %v2725 = vld [vmem:[%s5 + $0xe0] sm:$0xff]
        %v2726 = vld [vmem:[%s5 + $0xe8] sm:$0xff]
        %v2727 = vld [vmem:[%s5 + $0xf0] sm:$0xff]
        %v2728 = vld [vmem:[%s5 + $0xf8] sm:$0xff]
        %v2729 = vld [vmem:[%s6] sm:$0x3]
        %v2731 = vlaneseq
        %v2732 = vshrl.u32 %v2731, 7
        %v2733 = vsub.s32 0, %v2732
        %v2734 = vrot.slane %v2729, %v2733
        %v2735 = vlaneseq
        %v2736 = vshrl.u32 %v2735, 7
        %v2737 = vsub.s32 1, %v2736
        %v2738 = vrot.slane %v2729, %v2737
        %v2773 = vunpack.c.l.b16 %v2697
        %v2774 = vunpack.c.h.b16 %v2697
        %v2775 = vunpack.c.l.b16 %v2698
        %v2776 = vunpack.c.h.b16 %v2698
        %v2777 = vunpack.c.l.b16 %v2699
        %v2778 = vunpack.c.h.b16 %v2699
        %v2779 = vunpack.c.l.b16 %v2700
        %v2780 = vunpack.c.h.b16 %v2700
        %v2781 = vunpack.c.l.b16 %v2701
        %v2782 = vunpack.c.h.b16 %v2701
        %v2783 = vunpack.c.l.b16 %v2702
        %v2784 = vunpack.c.h.b16 %v2702
        %v2785 = vunpack.c.l.b16 %v2703
        %v2786 = vunpack.c.h.b16 %v2703
        %v2787 = vunpack.c.l.b16 %v2704
        %v2788 = vunpack.c.h.b16 %v2704
        %v2789 = vunpack.c.l.b16 %v2705
        %v2790 = vunpack.c.h.b16 %v2705
        %v2791 = vunpack.c.l.b16 %v2706
        %v2792 = vunpack.c.h.b16 %v2706
        %v2793 = vunpack.c.l.b16 %v2707
        %v2794 = vunpack.c.h.b16 %v2707
        %v2795 = vunpack.c.l.b16 %v2708
        %v2796 = vunpack.c.h.b16 %v2708
        %v2797 = vunpack.c.l.b16 %v2709
        %v2798 = vunpack.c.h.b16 %v2709
        %v2799 = vunpack.c.l.b16 %v2710
        %v2800 = vunpack.c.h.b16 %v2710
        %v2801 = vunpack.c.l.b16 %v2711
        %v2802 = vunpack.c.h.b16 %v2711
        %v2803 = vunpack.c.l.b16 %v2712
        %v2804 = vunpack.c.h.b16 %v2712
        %v2805 = vunpack.c.l.b16 %v2713
        %v2806 = vunpack.c.h.b16 %v2713
        %v2807 = vunpack.c.l.b16 %v2714
        %v2808 = vunpack.c.h.b16 %v2714
        %v2809 = vunpack.c.l.b16 %v2715
        %v2810 = vunpack.c.h.b16 %v2715
        %v2811 = vunpack.c.l.b16 %v2716
        %v2812 = vunpack.c.h.b16 %v2716
        %v2813 = vunpack.c.l.b16 %v2717
        %v2814 = vunpack.c.h.b16 %v2717
        %v2815 = vunpack.c.l.b16 %v2718
        %v2816 = vunpack.c.h.b16 %v2718
        %v2817 = vunpack.c.l.b16 %v2719
        %v2818 = vunpack.c.h.b16 %v2719
        %v2819 = vunpack.c.l.b16 %v2720
        %v2820 = vunpack.c.h.b16 %v2720
        %v2821 = vunpack.c.l.b16 %v2721
        %v2822 = vunpack.c.h.b16 %v2721
        %v2823 = vunpack.c.l.b16 %v2722
        %v2824 = vunpack.c.h.b16 %v2722
        %v2825 = vunpack.c.l.b16 %v2723
        %v2826 = vunpack.c.h.b16 %v2723
        %v2827 = vunpack.c.l.b16 %v2724
        %v2828 = vunpack.c.h.b16 %v2724
        %v2829 = vunpack.c.l.b16 %v2725
        %v2830 = vunpack.c.h.b16 %v2725
        %v2831 = vunpack.c.l.b16 %v2726
        %v2832 = vunpack.c.h.b16 %v2726
        %v2833 = vunpack.c.l.b16 %v2727
        %v2834 = vunpack.c.h.b16 %v2727
        %v2835 = vunpack.c.l.b16 %v2728
        %v2836 = vunpack.c.h.b16 %v2728
        %v2837 = vpack.c.b16 %v2775, %v2773
        %v2838 = vpack.c.b16 %v2776, %v2774
        %v2839 = vpack.c.b16 %v2779, %v2777
        %v2840 = vpack.c.b16 %v2780, %v2778
        %v2841 = vpack.c.b16 %v2783, %v2781
        %v2842 = vpack.c.b16 %v2784, %v2782
        %v2843 = vpack.c.b16 %v2787, %v2785
        %v2844 = vpack.c.b16 %v2788, %v2786
        %v2845 = vpack.c.b16 %v2791, %v2789
        %v2846 = vpack.c.b16 %v2792, %v2790
        %v2847 = vpack.c.b16 %v2795, %v2793
        %v2848 = vpack.c.b16 %v2796, %v2794
        %v2849 = vpack.c.b16 %v2799, %v2797
        %v2850 = vpack.c.b16 %v2800, %v2798
        %v2851 = vpack.c.b16 %v2803, %v2801
        %v2852 = vpack.c.b16 %v2804, %v2802
        %v2853 = vpack.c.b16 %v2807, %v2805
        %v2854 = vpack.c.b16 %v2808, %v2806
        %v2855 = vpack.c.b16 %v2811, %v2809
        %v2856 = vpack.c.b16 %v2812, %v2810
        %v2857 = vpack.c.b16 %v2815, %v2813
        %v2858 = vpack.c.b16 %v2816, %v2814
        %v2859 = vpack.c.b16 %v2819, %v2817
        %v2860 = vpack.c.b16 %v2820, %v2818
        %v2861 = vpack.c.b16 %v2823, %v2821
        %v2862 = vpack.c.b16 %v2824, %v2822
        %v2863 = vpack.c.b16 %v2827, %v2825
        %v2864 = vpack.c.b16 %v2828, %v2826
        %v2865 = vpack.c.b16 %v2831, %v2829
        %v2866 = vpack.c.b16 %v2832, %v2830
        %v2867 = vpack.c.b16 %v2835, %v2833
        %v2868 = vpack.c.b16 %v2836, %v2834
        %2901 = vmatprep.subr.bf16.mxu0 %v2838
        %2902 = vmatpush1.bf16.msra.mxu0 %v2837
        %2903 = vmatprep.subr.bf16.mxu0 %v2840
        %2904 = vmatpush1.bf16.msra.mxu0 %v2839
        %2905 = vmatprep.subr.bf16.mxu0 %v2842
        %2906 = vmatpush1.bf16.msra.mxu0 %v2841
        %2907 = vmatprep.subr.bf16.mxu0 %v2844
        %2908 = vmatpush1.bf16.msra.mxu0 %v2843
        %2909 = vmatprep.subr.bf16.mxu0 %v2846
        %2910 = vmatpush1.bf16.msra.mxu0 %v2845
        %2911 = vmatprep.subr.bf16.mxu0 %v2848
        %2912 = vmatpush1.bf16.msra.mxu0 %v2847
        %2913 = vmatprep.subr.bf16.mxu0 %v2850
        %2914 = vmatpush1.bf16.msra.mxu0 %v2849
        %2915 = vmatprep.subr.bf16.mxu0 %v2852
        %2916 = vmatpush1.bf16.msra.mxu0 %v2851
        %2917 = vmatprep.subr.bf16.mxu0 %v2854
        %2918 = vmatpush1.bf16.msra.mxu0 %v2853
        %2919 = vmatprep.subr.bf16.mxu0 %v2856
        %2920 = vmatpush1.bf16.msra.mxu0 %v2855
        %2921 = vmatprep.subr.bf16.mxu0 %v2858
        %2922 = vmatpush1.bf16.msra.mxu0 %v2857
        %2923 = vmatprep.subr.bf16.mxu0 %v2860
        %2924 = vmatpush1.bf16.msra.mxu0 %v2859
        %2925 = vmatprep.subr.bf16.mxu0 %v2862
        %2926 = vmatpush1.bf16.msra.mxu0 %v2861
        %2927 = vmatprep.subr.bf16.mxu0 %v2864
        %2928 = vmatpush1.bf16.msra.mxu0 %v2863
        %2929 = vmatprep.subr.bf16.mxu0 %v2866
        %2930 = vmatpush1.bf16.msra.mxu0 %v2865
        %2931 = vmatprep.subr.bf16.mxu0 %v2868
        %2932 = vmatpush1.bf16.msra.mxu0 %v2867
        %2933 = vmatprep.mubr.bf16.mxu0 %v2682
        %2934 = vmatmul.mubr.bf16.gmra.mrb[0].mxu0 %v2681
        %v2935 = vpop.f32.mrb[0].mxu0
        %v2936 = vadd.f32 %v2734, %v2935
        %v2937 = vpop.f32.mrb[0].mxu0
        %v2938 = vadd.f32 %v2738, %v2937
        %v2939 = vpop.f32.mrb[0].mxu0
        %v2940 = vadd.f32 %v2734, %v2939
        %v2941 = vpop.f32.mrb[0].mxu0
        %v2942 = vadd.f32 %v2738, %v2941
        %2943 = vmatprep.mubr.bf16.mxu0 %v2684
        %2944 = vmatmul.mubr.bf16.gmra.mrb[0].mxu0 %v2683
        %v2945 = vpop.f32.mrb[0].mxu0
        %v2946 = vadd.f32 %v2734, %v2945
        %v2947 = vpop.f32.mrb[0].mxu0
        %v2948 = vadd.f32 %v2738, %v2947
        %v2949 = vpop.f32.mrb[0].mxu0
        %v2950 = vadd.f32 %v2734, %v2949
        %v2951 = vpop.f32.mrb[0].mxu0
        %v2952 = vadd.f32 %v2738, %v2951
        %2953 = vmatprep.mubr.bf16.mxu0 %v2686
        %2954 = vmatmul.mubr.bf16.gmra.mrb[0].mxu0 %v2685
        %v2955 = vpop.f32.mrb[0].mxu0
        %v2956 = vadd.f32 %v2734, %v2955
        %v2957 = vpop.f32.mrb[0].mxu0
        %v2958 = vadd.f32 %v2738, %v2957
        %v2959 = vpop.f32.mrb[0].mxu0
        %v2960 = vadd.f32 %v2734, %v2959
        %v2961 = vpop.f32.mrb[0].mxu0
        %v2962 = vadd.f32 %v2738, %v2961
        %2963 = vmatprep.mubr.bf16.mxu0 %v2688
        %2964 = vmatmul.mubr.bf16.gmra.mrb[0].mxu0 %v2687
        %v2965 = vpop.f32.mrb[0].mxu0
        %v2966 = vadd.f32 %v2734, %v2965
        %v2967 = vpop.f32.mrb[0].mxu0
        %v2968 = vadd.f32 %v2738, %v2967
        %v2969 = vpop.f32.mrb[0].mxu0
        %v2970 = vadd.f32 %v2734, %v2969
        %v2971 = vpop.f32.mrb[0].mxu0
        %v2972 = vadd.f32 %v2738, %v2971
        %2973 = vmatprep.mubr.bf16.mxu0 %v2690
        %2974 = vmatmul.mubr.bf16.gmra.mrb[0].mxu0 %v2689
        %v2975 = vpop.f32.mrb[0].mxu0
        %v2976 = vadd.f32 %v2734, %v2975
        %v2977 = vpop.f32.mrb[0].mxu0
        %v2978 = vadd.f32 %v2738, %v2977
        %v2979 = vpop.f32.mrb[0].mxu0
        %v2980 = vadd.f32 %v2734, %v2979
        %v2981 = vpop.f32.mrb[0].mxu0
        %v2982 = vadd.f32 %v2738, %v2981
        %2983 = vmatprep.mubr.bf16.mxu0 %v2692
        %2984 = vmatmul.mubr.bf16.gmra.mrb[0].mxu0 %v2691
        %v2985 = vpop.f32.mrb[0].mxu0
        %v2986 = vadd.f32 %v2734, %v2985
        %v2987 = vpop.f32.mrb[0].mxu0
        %v2988 = vadd.f32 %v2738, %v2987
        %v2989 = vpop.f32.mrb[0].mxu0
        %v2990 = vadd.f32 %v2734, %v2989
        %v2991 = vpop.f32.mrb[0].mxu0
        %v2992 = vadd.f32 %v2738, %v2991
        %2993 = vmatprep.mubr.bf16.mxu0 %v2694
        %2994 = vmatmul.mubr.bf16.gmra.mrb[0].mxu0 %v2693
        %v2995 = vpop.f32.mrb[0].mxu0
        %v2996 = vadd.f32 %v2734, %v2995
        %v2997 = vpop.f32.mrb[0].mxu0
        %v2998 = vadd.f32 %v2738, %v2997
        %v2999 = vpop.f32.mrb[0].mxu0
        %v3000 = vadd.f32 %v2734, %v2999
        %v3001 = vpop.f32.mrb[0].mxu0
        %v3002 = vadd.f32 %v2738, %v3001
        %3003 = vmatprep.mubr.bf16.mxu0 %v2696
        %3004 = vmatmul.mubr.bf16.gmra.mrb[0].mxu0 %v2695
        %v3005 = vpop.f32.mrb[0].mxu0
        %v3006 = vadd.f32 %v2734, %v3005
        %v3007 = vpop.f32.mrb[0].mxu0
        %v3008 = vadd.f32 %v2738, %v3007
        %v3009 = vpop.f32.mrb[0].mxu0
        %v3010 = vadd.f32 %v2734, %v3009
        %v3011 = vpop.f32.mrb[0].mxu0
        %v3012 = vadd.f32 %v2738, %v3011
        %3013 = vdwg.mxu0
        %v3014 = vadd.f32 %v946, %v2936
        %v3015 = vadd.f32 %v947, %v2938
        %v3016 = vadd.f32 %v948, %v2940
        %v3017 = vadd.f32 %v949, %v2942
        %v3018 = vadd.f32 %v950, %v2946
        %v3019 = vadd.f32 %v951, %v2948
        %v3020 = vadd.f32 %v952, %v2950
        %v3021 = vadd.f32 %v953, %v2952
        %v3022 = vadd.f32 %v954, %v2956
        %v3023 = vadd.f32 %v955, %v2958
        %v3024 = vadd.f32 %v956, %v2960
        %v3025 = vadd.f32 %v957, %v2962
        %v3026 = vadd.f32 %v958, %v2966
        %v3027 = vadd.f32 %v959, %v2968
        %v3028 = vadd.f32 %v960, %v2970
        %v3029 = vadd.f32 %v961, %v2972
        %v3030 = vadd.f32 %v962, %v2976
        %v3031 = vadd.f32 %v963, %v2978
        %v3032 = vadd.f32 %v964, %v2980
        %v3033 = vadd.f32 %v965, %v2982
        %v3034 = vadd.f32 %v966, %v2986
        %v3035 = vadd.f32 %v967, %v2988
        %v3036 = vadd.f32 %v968, %v2990
        %v3037 = vadd.f32 %v969, %v2992
        %v3038 = vadd.f32 %v970, %v2996
        %v3039 = vadd.f32 %v971, %v2998
        %v3040 = vadd.f32 %v972, %v3000
        %v3041 = vadd.f32 %v973, %v3002
        %v3042 = vadd.f32 %v974, %v3006
        %v3043 = vadd.f32 %v975, %v3008
        %v3044 = vadd.f32 %v976, %v3010
        %v3045 = vadd.f32 %v977, %v3012
        %v3046 = vld [vmem:[%s7] sm:$0x3]
        %v3047 = vld [vmem:[%s8] sm:$0x3]
        %v3048 = vadd.f32 %v3014, %v3015
        %3049 = vadd.xlane.f32.xlu0 %v3048
        %v3050 = vpop.xlane.xlu0 %3049
        %v3051 = vadd.f32 %v3016, %v3017
        %3052 = vadd.xlane.f32.xlu0 %v3051
        %v3053 = vpop.xlane.xlu0 %3052
        %v3054 = vadd.f32 %v3018, %v3019
        %3055 = vadd.xlane.f32.xlu0 %v3054
        %v3056 = vpop.xlane.xlu0 %3055
        %v3057 = vadd.f32 %v3020, %v3021
        %3058 = vadd.xlane.f32.xlu0 %v3057
        %v3059 = vpop.xlane.xlu0 %3058
        %v3060 = vadd.f32 %v3022, %v3023
        %3061 = vadd.xlane.f32.xlu0 %v3060
        %v3062 = vpop.xlane.xlu0 %3061
        %v3063 = vadd.f32 %v3024, %v3025
        %3064 = vadd.xlane.f32.xlu0 %v3063
        %v3065 = vpop.xlane.xlu0 %3064
        %v3066 = vadd.f32 %v3026, %v3027
        %3067 = vadd.xlane.f32.xlu0 %v3066
        %v3068 = vpop.xlane.xlu0 %3067
        %v3069 = vadd.f32 %v3028, %v3029
        %3070 = vadd.xlane.f32.xlu0 %v3069
        %v3071 = vpop.xlane.xlu0 %3070
        %v3072 = vadd.f32 %v3030, %v3031
        %3073 = vadd.xlane.f32.xlu0 %v3072
        %v3074 = vpop.xlane.xlu0 %3073
        %v3075 = vadd.f32 %v3032, %v3033
        %3076 = vadd.xlane.f32.xlu0 %v3075
        %v3077 = vpop.xlane.xlu0 %3076
        %v3078 = vadd.f32 %v3034, %v3035
        %3079 = vadd.xlane.f32.xlu0 %v3078
        %v3080 = vpop.xlane.xlu0 %3079
        %v3081 = vadd.f32 %v3036, %v3037
        %3082 = vadd.xlane.f32.xlu0 %v3081
        %v3083 = vpop.xlane.xlu0 %3082
        %v3084 = vadd.f32 %v3038, %v3039
        %3085 = vadd.xlane.f32.xlu0 %v3084
        %v3086 = vpop.xlane.xlu0 %3085
        %v3087 = vadd.f32 %v3040, %v3041
        %3088 = vadd.xlane.f32.xlu0 %v3087
        %v3089 = vpop.xlane.xlu0 %3088
        %v3090 = vadd.f32 %v3042, %v3043
        %3091 = vadd.xlane.f32.xlu0 %v3090
        %v3092 = vpop.xlane.xlu0 %3091
        %v3093 = vadd.f32 %v3044, %v3045
        %3094 = vadd.xlane.f32.xlu0 %v3093
        %v3095 = vpop.xlane.xlu0 %3094
        %v3096 = vmul.f32 %v3050, %v683
        %v3097 = vmul.f32 %v3053, %v683
        %v3098 = vmul.f32 %v3056, %v683
        %v3099 = vmul.f32 %v3059, %v683
        %v3100 = vmul.f32 %v3062, %v683
        %v3101 = vmul.f32 %v3065, %v683
        %v3102 = vmul.f32 %v3068, %v683
        %v3103 = vmul.f32 %v3071, %v683
        %v3104 = vmul.f32 %v3074, %v683
        %v3105 = vmul.f32 %v3077, %v683
        %v3106 = vmul.f32 %v3080, %v683
        %v3107 = vmul.f32 %v3083, %v683
        %v3108 = vmul.f32 %v3086, %v683
        %v3109 = vmul.f32 %v3089, %v683
        %v3110 = vmul.f32 %v3092, %v683
        %v3111 = vmul.f32 %v3095, %v683
        %v3112 = vsub.f32 %v3014, %v3096
        %v3113 = vsub.f32 %v3015, %v3096
        %v3114 = vsub.f32 %v3016, %v3097
        %v3115 = vsub.f32 %v3017, %v3097
        %v3116 = vsub.f32 %v3018, %v3098
        %v3117 = vsub.f32 %v3019, %v3098
        %v3118 = vsub.f32 %v3020, %v3099
        %v3119 = vsub.f32 %v3021, %v3099
        %v3120 = vsub.f32 %v3022, %v3100
        %v3121 = vsub.f32 %v3023, %v3100
        %v3122 = vsub.f32 %v3024, %v3101
        %v3123 = vsub.f32 %v3025, %v3101
        %v3124 = vsub.f32 %v3026, %v3102
        %v3125 = vsub.f32 %v3027, %v3102
        %v3126 = vsub.f32 %v3028, %v3103
        %v3127 = vsub.f32 %v3029, %v3103
        %v3128 = vsub.f32 %v3030, %v3104
        %v3129 = vsub.f32 %v3031, %v3104
        %v3130 = vsub.f32 %v3032, %v3105
        %v3131 = vsub.f32 %v3033, %v3105
        %v3132 = vsub.f32 %v3034, %v3106
        %v3133 = vsub.f32 %v3035, %v3106
        %v3134 = vsub.f32 %v3036, %v3107
        %v3135 = vsub.f32 %v3037, %v3107
        %v3136 = vsub.f32 %v3038, %v3108
        %v3137 = vsub.f32 %v3039, %v3108
        %v3138 = vsub.f32 %v3040, %v3109
        %v3139 = vsub.f32 %v3041, %v3109
        %v3140 = vsub.f32 %v3042, %v3110
        %v3141 = vsub.f32 %v3043, %v3110
        %v3142 = vsub.f32 %v3044, %v3111
        %v3143 = vsub.f32 %v3045, %v3111
        %v3144 = vmul.f32 %v3112, %v3112
        %v3145 = vmul.f32 %v3113, %v3113
        %v3146 = vmul.f32 %v3114, %v3114
        %v3147 = vmul.f32 %v3115, %v3115
        %v3148 = vmul.f32 %v3116, %v3116
        %v3149 = vmul.f32 %v3117, %v3117
        %v3150 = vmul.f32 %v3118, %v3118
        %v3151 = vmul.f32 %v3119, %v3119
        %v3152 = vmul.f32 %v3120, %v3120
        %v3153 = vmul.f32 %v3121, %v3121
        %v3154 = vmul.f32 %v3122, %v3122
        %v3155 = vmul.f32 %v3123, %v3123
        %v3156 = vmul.f32 %v3124, %v3124
        %v3157 = vmul.f32 %v3125, %v3125
        %v3158 = vmul.f32 %v3126, %v3126
        %v3159 = vmul.f32 %v3127, %v3127
        %v3160 = vmul.f32 %v3128, %v3128
        %v3161 = vmul.f32 %v3129, %v3129
        %v3162 = vmul.f32 %v3130, %v3130
        %v3163 = vmul.f32 %v3131, %v3131
        %v3164 = vmul.f32 %v3132, %v3132
        %v3165 = vmul.f32 %v3133, %v3133
        %v3166 = vmul.f32 %v3134, %v3134
        %v3167 = vmul.f32 %v3135, %v3135
        %v3168 = vmul.f32 %v3136, %v3136
        %v3169 = vmul.f32 %v3137, %v3137
        %v3170 = vmul.f32 %v3138, %v3138
        %v3171 = vmul.f32 %v3139, %v3139
        %v3172 = vmul.f32 %v3140, %v3140
        %v3173 = vmul.f32 %v3141, %v3141
        %v3174 = vmul.f32 %v3142, %v3142
        %v3175 = vmul.f32 %v3143, %v3143
        %v3176 = vadd.f32 %v3144, %v3145
        %3177 = vadd.xlane.f32.xlu0 %v3176
        %v3178 = vpop.xlane.xlu0 %3177
        %v3179 = vadd.f32 %v3146, %v3147
        %3180 = vadd.xlane.f32.xlu0 %v3179
        %v3181 = vpop.xlane.xlu0 %3180
        %v3182 = vadd.f32 %v3148, %v3149
        %3183 = vadd.xlane.f32.xlu0 %v3182
        %v3184 = vpop.xlane.xlu0 %3183
        %v3185 = vadd.f32 %v3150, %v3151
        %3186 = vadd.xlane.f32.xlu0 %v3185
        %v3187 = vpop.xlane.xlu0 %3186
        %v3188 = vadd.f32 %v3152, %v3153
        %3189 = vadd.xlane.f32.xlu0 %v3188
        %v3190 = vpop.xlane.xlu0 %3189
        %v3191 = vadd.f32 %v3154, %v3155
        %3192 = vadd.xlane.f32.xlu0 %v3191
        %v3193 = vpop.xlane.xlu0 %3192
        %v3194 = vadd.f32 %v3156, %v3157
        %3195 = vadd.xlane.f32.xlu0 %v3194
        %v3196 = vpop.xlane.xlu0 %3195
        %v3197 = vadd.f32 %v3158, %v3159
        %3198 = vadd.xlane.f32.xlu0 %v3197
        %v3199 = vpop.xlane.xlu0 %3198
        %v3200 = vadd.f32 %v3160, %v3161
        %3201 = vadd.xlane.f32.xlu0 %v3200
        %v3202 = vpop.xlane.xlu0 %3201
        %v3203 = vadd.f32 %v3162, %v3163
        %3204 = vadd.xlane.f32.xlu0 %v3203
        %v3205 = vpop.xlane.xlu0 %3204
        %v3206 = vadd.f32 %v3164, %v3165
        %3207 = vadd.xlane.f32.xlu0 %v3206
        %v3208 = vpop.xlane.xlu0 %3207
        %v3209 = vadd.f32 %v3166, %v3167
        %3210 = vadd.xlane.f32.xlu0 %v3209
        %v3211 = vpop.xlane.xlu0 %3210
        %v3212 = vadd.f32 %v3168, %v3169
        %3213 = vadd.xlane.f32.xlu0 %v3212
        %v3214 = vpop.xlane.xlu0 %3213
        %v3215 = vadd.f32 %v3170, %v3171
        %3216 = vadd.xlane.f32.xlu0 %v3215
        %v3217 = vpop.xlane.xlu0 %3216
        %v3218 = vadd.f32 %v3172, %v3173
        %3219 = vadd.xlane.f32.xlu0 %v3218
        %v3220 = vpop.xlane.xlu0 %3219
        %v3221 = vadd.f32 %v3174, %v3175
        %3222 = vadd.xlane.f32.xlu0 %v3221
        %v3223 = vpop.xlane.xlu0 %3222
        %v3224 = vmul.f32 %v3178, %v683
        %v3225 = vmul.f32 %v3181, %v683
        %v3226 = vmul.f32 %v3184, %v683
        %v3227 = vmul.f32 %v3187, %v683
        %v3228 = vmul.f32 %v3190, %v683
        %v3229 = vmul.f32 %v3193, %v683
        %v3230 = vmul.f32 %v3196, %v683
        %v3231 = vmul.f32 %v3199, %v683
        %v3232 = vmul.f32 %v3202, %v683
        %v3233 = vmul.f32 %v3205, %v683
        %v3234 = vmul.f32 %v3208, %v683
        %v3235 = vmul.f32 %v3211, %v683
        %v3236 = vmul.f32 %v3214, %v683
        %v3237 = vmul.f32 %v3217, %v683
        %v3238 = vmul.f32 %v3220, %v683
        %v3239 = vmul.f32 %v3223, %v683
        %v3240 = vadd.f32 %v3224, 1e-05
        %v3241 = vadd.f32 %v3225, 1e-05
        %v3242 = vadd.f32 %v3226, 1e-05
        %v3243 = vadd.f32 %v3227, 1e-05
        %v3244 = vadd.f32 %v3228, 1e-05
        %v3245 = vadd.f32 %v3229, 1e-05
        %v3246 = vadd.f32 %v3230, 1e-05
        %v3247 = vadd.f32 %v3231, 1e-05
        %v3248 = vadd.f32 %v3232, 1e-05
        %v3249 = vadd.f32 %v3233, 1e-05
        %v3250 = vadd.f32 %v3234, 1e-05
        %v3251 = vadd.f32 %v3235, 1e-05
        %v3252 = vadd.f32 %v3236, 1e-05
        %v3253 = vadd.f32 %v3237, 1e-05
        %v3254 = vadd.f32 %v3238, 1e-05
        %v3255 = vadd.f32 %v3239, 1e-05
        %v3256 = vrsqrt.pop %v3240
        %v3257 = vrsqrt.pop %v3241
        %v3258 = vrsqrt.pop %v3242
        %v3259 = vrsqrt.pop %v3243
        %v3260 = vrsqrt.pop %v3244
        %v3261 = vrsqrt.pop %v3245
        %v3262 = vrsqrt.pop %v3246
        %v3263 = vrsqrt.pop %v3247
        %v3264 = vrsqrt.pop %v3248
        %v3265 = vrsqrt.pop %v3249
        %v3266 = vrsqrt.pop %v3250
        %v3267 = vrsqrt.pop %v3251
        %v3268 = vrsqrt.pop %v3252
        %v3269 = vrsqrt.pop %v3253
        %v3270 = vrsqrt.pop %v3254
        %v3271 = vrsqrt.pop %v3255
        %v3272 = vmul.f32 %v3112, %v3256
        %v3273 = vmul.f32 %v3113, %v3256
        %v3274 = vmul.f32 %v3114, %v3257
        %v3275 = vmul.f32 %v3115, %v3257
        %v3276 = vmul.f32 %v3116, %v3258
        %v3277 = vmul.f32 %v3117, %v3258
        %v3278 = vmul.f32 %v3118, %v3259
        %v3279 = vmul.f32 %v3119, %v3259
        %v3280 = vmul.f32 %v3120, %v3260
        %v3281 = vmul.f32 %v3121, %v3260
        %v3282 = vmul.f32 %v3122, %v3261
        %v3283 = vmul.f32 %v3123, %v3261
        %v3284 = vmul.f32 %v3124, %v3262
        %v3285 = vmul.f32 %v3125, %v3262
        %v3286 = vmul.f32 %v3126, %v3263
        %v3287 = vmul.f32 %v3127, %v3263
        %v3288 = vmul.f32 %v3128, %v3264
        %v3289 = vmul.f32 %v3129, %v3264
        %v3290 = vmul.f32 %v3130, %v3265
        %v3291 = vmul.f32 %v3131, %v3265
        %v3292 = vmul.f32 %v3132, %v3266
        %v3293 = vmul.f32 %v3133, %v3266
        %v3294 = vmul.f32 %v3134, %v3267
        %v3295 = vmul.f32 %v3135, %v3267
        %v3296 = vmul.f32 %v3136, %v3268
        %v3297 = vmul.f32 %v3137, %v3268
        %v3298 = vmul.f32 %v3138, %v3269
        %v3299 = vmul.f32 %v3139, %v3269
        %v3300 = vmul.f32 %v3140, %v3270
        %v3301 = vmul.f32 %v3141, %v3270
        %v3302 = vmul.f32 %v3142, %v3271
        %v3303 = vmul.f32 %v3143, %v3271
        %v3305 = vlaneseq
        %v3306 = vshrl.u32 %v3305, 7
        %v3307 = vsub.s32 0, %v3306
        %v3308 = vrot.slane %v3046, %v3307
        %v3309 = vlaneseq
        %v3310 = vshrl.u32 %v3309, 7
        %v3311 = vsub.s32 1, %v3310
        %v3312 = vrot.slane %v3046, %v3311
        %v3315 = vmul.f32 %v3272, %v3308
        %v3316 = vmul.f32 %v3273, %v3312
        %v3317 = vmul.f32 %v3274, %v3308
        %v3318 = vmul.f32 %v3275, %v3312
        %v3319 = vmul.f32 %v3276, %v3308
        %v3320 = vmul.f32 %v3277, %v3312
        %v3321 = vmul.f32 %v3278, %v3308
        %v3322 = vmul.f32 %v3279, %v3312
        %v3323 = vmul.f32 %v3280, %v3308
        %v3324 = vmul.f32 %v3281, %v3312
        %v3325 = vmul.f32 %v3282, %v3308
        %v3326 = vmul.f32 %v3283, %v3312
        %v3327 = vmul.f32 %v3284, %v3308
        %v3328 = vmul.f32 %v3285, %v3312
        %v3329 = vmul.f32 %v3286, %v3308
        %v3330 = vmul.f32 %v3287, %v3312
        %v3331 = vmul.f32 %v3288, %v3308
        %v3332 = vmul.f32 %v3289, %v3312
        %v3333 = vmul.f32 %v3290, %v3308
        %v3334 = vmul.f32 %v3291, %v3312
        %v3335 = vmul.f32 %v3292, %v3308
        %v3336 = vmul.f32 %v3293, %v3312
        %v3337 = vmul.f32 %v3294, %v3308
        %v3338 = vmul.f32 %v3295, %v3312
        %v3339 = vmul.f32 %v3296, %v3308
        %v3340 = vmul.f32 %v3297, %v3312
        %v3341 = vmul.f32 %v3298, %v3308
        %v3342 = vmul.f32 %v3299, %v3312
        %v3343 = vmul.f32 %v3300, %v3308
        %v3344 = vmul.f32 %v3301, %v3312
        %v3345 = vmul.f32 %v3302, %v3308
        %v3346 = vmul.f32 %v3303, %v3312
        %v3348 = vlaneseq
        %v3349 = vshrl.u32 %v3348, 7
        %v3350 = vsub.s32 0, %v3349
        %v3351 = vrot.slane %v3047, %v3350
        %v3352 = vlaneseq
        %v3353 = vshrl.u32 %v3352, 7
        %v3354 = vsub.s32 1, %v3353
        %v3355 = vrot.slane %v3047, %v3354
        %v3358 = vadd.f32 %v3315, %v3351
        %v3359 = vadd.f32 %v3316, %v3355
        %v3360 = vadd.f32 %v3317, %v3351
        %v3361 = vadd.f32 %v3318, %v3355
        %v3362 = vadd.f32 %v3319, %v3351
        %v3363 = vadd.f32 %v3320, %v3355
        %v3364 = vadd.f32 %v3321, %v3351
        %v3365 = vadd.f32 %v3322, %v3355
        %v3366 = vadd.f32 %v3323, %v3351
        %v3367 = vadd.f32 %v3324, %v3355
        %v3368 = vadd.f32 %v3325, %v3351
        %v3369 = vadd.f32 %v3326, %v3355
        %v3370 = vadd.f32 %v3327, %v3351
        %v3371 = vadd.f32 %v3328, %v3355
        %v3372 = vadd.f32 %v3329, %v3351
        %v3373 = vadd.f32 %v3330, %v3355
        %v3374 = vadd.f32 %v3331, %v3351
        %v3375 = vadd.f32 %v3332, %v3355
        %v3376 = vadd.f32 %v3333, %v3351
        %v3377 = vadd.f32 %v3334, %v3355
        %v3378 = vadd.f32 %v3335, %v3351
        %v3379 = vadd.f32 %v3336, %v3355
        %v3380 = vadd.f32 %v3337, %v3351
        %v3381 = vadd.f32 %v3338, %v3355
        %v3382 = vadd.f32 %v3339, %v3351
        %v3383 = vadd.f32 %v3340, %v3355
        %v3384 = vadd.f32 %v3341, %v3351
        %v3385 = vadd.f32 %v3342, %v3355
        %v3386 = vadd.f32 %v3343, %v3351
        %v3387 = vadd.f32 %v3344, %v3355
        %v3388 = vadd.f32 %v3345, %v3351
        %v3389 = vadd.f32 %v3346, %v3355
        %v3390 = vpack.c.bf16 %v3360, %v3358
        %v3391 = vpack.c.bf16 %v3361, %v3359
        %v3392 = vpack.c.bf16 %v3364, %v3362
        %v3393 = vpack.c.bf16 %v3365, %v3363
        %v3394 = vpack.c.bf16 %v3368, %v3366
        %v3395 = vpack.c.bf16 %v3369, %v3367
        %v3396 = vpack.c.bf16 %v3372, %v3370
        %v3397 = vpack.c.bf16 %v3373, %v3371
        %v3398 = vpack.c.bf16 %v3376, %v3374
        %v3399 = vpack.c.bf16 %v3377, %v3375
        %v3400 = vpack.c.bf16 %v3380, %v3378
        %v3401 = vpack.c.bf16 %v3381, %v3379
        %v3402 = vpack.c.bf16 %v3384, %v3382
        %v3403 = vpack.c.bf16 %v3385, %v3383
        %v3404 = vpack.c.bf16 %v3388, %v3386
        %v3405 = vpack.c.bf16 %v3389, %v3387
        %v3406 = vld [vmem:[%s9] sm:$0xff]
        %v3407 = vld [vmem:[%s9 + $0x8] sm:$0xff]
        %v3408 = vld [vmem:[%s9 + $0x10] sm:$0xff]
        %v3409 = vld [vmem:[%s9 + $0x18] sm:$0xff]
        %v3410 = vld [vmem:[%s9 + $0x20] sm:$0xff]
        %v3411 = vld [vmem:[%s9 + $0x28] sm:$0xff]
        %v3412 = vld [vmem:[%s9 + $0x30] sm:$0xff]
        %v3413 = vld [vmem:[%s9 + $0x38] sm:$0xff]
        %v3414 = vld [vmem:[%s9 + $0x40] sm:$0xff]
        %v3415 = vld [vmem:[%s9 + $0x48] sm:$0xff]
        %v3416 = vld [vmem:[%s9 + $0x50] sm:$0xff]
        %v3417 = vld [vmem:[%s9 + $0x58] sm:$0xff]
        %v3418 = vld [vmem:[%s9 + $0x60] sm:$0xff]
        %v3419 = vld [vmem:[%s9 + $0x68] sm:$0xff]
        %v3420 = vld [vmem:[%s9 + $0x70] sm:$0xff]
        %v3421 = vld [vmem:[%s9 + $0x78] sm:$0xff]
        %v3422 = vld [vmem:[%s9 + $0x80] sm:$0xff]
        %v3423 = vld [vmem:[%s9 + $0x88] sm:$0xff]
        %v3424 = vld [vmem:[%s9 + $0x90] sm:$0xff]
        %v3425 = vld [vmem:[%s9 + $0x98] sm:$0xff]
        %v3426 = vld [vmem:[%s9 + $0xa0] sm:$0xff]
        %v3427 = vld [vmem:[%s9 + $0xa8] sm:$0xff]
        %v3428 = vld [vmem:[%s9 + $0xb0] sm:$0xff]
        %v3429 = vld [vmem:[%s9 + $0xb8] sm:$0xff]
        %v3430 = vld [vmem:[%s9 + $0xc0] sm:$0xff]
        %v3431 = vld [vmem:[%s9 + $0xc8] sm:$0xff]
        %v3432 = vld [vmem:[%s9 + $0xd0] sm:$0xff]
        %v3433 = vld [vmem:[%s9 + $0xd8] sm:$0xff]
        %v3434 = vld [vmem:[%s9 + $0xe0] sm:$0xff]
        %v3435 = vld [vmem:[%s9 + $0xe8] sm:$0xff]
        %v3436 = vld [vmem:[%s9 + $0xf0] sm:$0xff]
        %v3437 = vld [vmem:[%s9 + $0xf8] sm:$0xff]
        %v3438 = vld [vmem:[%s9 + $0x100] sm:$0xff]
        %v3439 = vld [vmem:[%s9 + $0x108] sm:$0xff]
        %v3440 = vld [vmem:[%s9 + $0x110] sm:$0xff]
        %v3441 = vld [vmem:[%s9 + $0x118] sm:$0xff]
        %v3442 = vld [vmem:[%s9 + $0x120] sm:$0xff]
        %v3443 = vld [vmem:[%s9 + $0x128] sm:$0xff]
        %v3444 = vld [vmem:[%s9 + $0x130] sm:$0xff]
        %v3445 = vld [vmem:[%s9 + $0x138] sm:$0xff]
        %v3446 = vld [vmem:[%s9 + $0x140] sm:$0xff]
        %v3447 = vld [vmem:[%s9 + $0x148] sm:$0xff]
        %v3448 = vld [vmem:[%s9 + $0x150] sm:$0xff]
        %v3449 = vld [vmem:[%s9 + $0x158] sm:$0xff]
        %v3450 = vld [vmem:[%s9 + $0x160] sm:$0xff]
        %v3451 = vld [vmem:[%s9 + $0x168] sm:$0xff]
        %v3452 = vld [vmem:[%s9 + $0x170] sm:$0xff]
        %v3453 = vld [vmem:[%s9 + $0x178] sm:$0xff]
        %v3454 = vld [vmem:[%s9 + $0x180] sm:$0xff]
        %v3455 = vld [vmem:[%s9 + $0x188] sm:$0xff]
        %v3456 = vld [vmem:[%s9 + $0x190] sm:$0xff]
        %v3457 = vld [vmem:[%s9 + $0x198] sm:$0xff]
        %v3458 = vld [vmem:[%s9 + $0x1a0] sm:$0xff]
        %v3459 = vld [vmem:[%s9 + $0x1a8] sm:$0xff]
        %v3460 = vld [vmem:[%s9 + $0x1b0] sm:$0xff]
        %v3461 = vld [vmem:[%s9 + $0x1b8] sm:$0xff]
        %v3462 = vld [vmem:[%s9 + $0x1c0] sm:$0xff]
        %v3463 = vld [vmem:[%s9 + $0x1c8] sm:$0xff]
        %v3464 = vld [vmem:[%s9 + $0x1d0] sm:$0xff]
        %v3465 = vld [vmem:[%s9 + $0x1d8] sm:$0xff]
        %v3466 = vld [vmem:[%s9 + $0x1e0] sm:$0xff]
        %v3467 = vld [vmem:[%s9 + $0x1e8] sm:$0xff]
        %v3468 = vld [vmem:[%s9 + $0x1f0] sm:$0xff]
        %v3469 = vld [vmem:[%s9 + $0x1f8] sm:$0xff]
        %v3470 = vld [vmem:[%s10] sm:$0xf]
        %v3472 = vlaneseq
        %v3473 = vshrl.u32 %v3472, 7
        %v3474 = vsub.s32 0, %v3473
        %v3475 = vrot.slane %v3470, %v3474
        %v3476 = vlaneseq
        %v3477 = vshrl.u32 %v3476, 7
        %v3478 = vsub.s32 1, %v3477
        %v3479 = vrot.slane %v3470, %v3478
        %v3480 = vlaneseq
        %v3481 = vshrl.u32 %v3480, 7
        %v3482 = vsub.s32 2, %v3481
        %v3483 = vrot.slane %v3470, %v3482
        %v3484 = vlaneseq
        %v3485 = vshrl.u32 %v3484, 7
        %v3486 = vsub.s32 3, %v3485
        %v3487 = vrot.slane %v3470, %v3486
        %v3556 = vunpack.c.l.b16 %v3406
        %v3557 = vunpack.c.h.b16 %v3406
        %v3558 = vunpack.c.l.b16 %v3407
        %v3559 = vunpack.c.h.b16 %v3407
        %v3560 = vunpack.c.l.b16 %v3408
        %v3561 = vunpack.c.h.b16 %v3408
        %v3562 = vunpack.c.l.b16 %v3409
        %v3563 = vunpack.c.h.b16 %v3409
        %v3564 = vunpack.c.l.b16 %v3410
        %v3565 = vunpack.c.h.b16 %v3410
        %v3566 = vunpack.c.l.b16 %v3411
        %v3567 = vunpack.c.h.b16 %v3411
        %v3568 = vunpack.c.l.b16 %v3412
        %v3569 = vunpack.c.h.b16 %v3412
        %v3570 = vunpack.c.l.b16 %v3413
        %v3571 = vunpack.c.h.b16 %v3413
        %v3572 = vunpack.c.l.b16 %v3414
        %v3573 = vunpack.c.h.b16 %v3414
        %v3574 = vunpack.c.l.b16 %v3415
        %v3575 = vunpack.c.h.b16 %v3415
        %v3576 = vunpack.c.l.b16 %v3416
        %v3577 = vunpack.c.h.b16 %v3416
        %v3578 = vunpack.c.l.b16 %v3417
        %v3579 = vunpack.c.h.b16 %v3417
        %v3580 = vunpack.c.l.b16 %v3418
        %v3581 = vunpack.c.h.b16 %v3418
        %v3582 = vunpack.c.l.b16 %v3419
        %v3583 = vunpack.c.h.b16 %v3419
        %v3584 = vunpack.c.l.b16 %v3420
        %v3585 = vunpack.c.h.b16 %v3420
        %v3586 = vunpack.c.l.b16 %v3421
        %v3587 = vunpack.c.h.b16 %v3421
        %v3588 = vunpack.c.l.b16 %v3422
        %v3589 = vunpack.c.h.b16 %v3422
        %v3590 = vunpack.c.l.b16 %v3423
        %v3591 = vunpack.c.h.b16 %v3423
        %v3592 = vunpack.c.l.b16 %v3424
        %v3593 = vunpack.c.h.b16 %v3424
        %v3594 = vunpack.c.l.b16 %v3425
        %v3595 = vunpack.c.h.b16 %v3425
        %v3596 = vunpack.c.l.b16 %v3426
        %v3597 = vunpack.c.h.b16 %v3426
        %v3598 = vunpack.c.l.b16 %v3427
        %v3599 = vunpack.c.h.b16 %v3427
        %v3600 = vunpack.c.l.b16 %v3428
        %v3601 = vunpack.c.h.b16 %v3428
        %v3602 = vunpack.c.l.b16 %v3429
        %v3603 = vunpack.c.h.b16 %v3429
        %v3604 = vunpack.c.l.b16 %v3430
        %v3605 = vunpack.c.h.b16 %v3430
        %v3606 = vunpack.c.l.b16 %v3431
        %v3607 = vunpack.c.h.b16 %v3431
        %v3608 = vunpack.c.l.b16 %v3432
        %v3609 = vunpack.c.h.b16 %v3432
        %v3610 = vunpack.c.l.b16 %v3433
        %v3611 = vunpack.c.h.b16 %v3433
        %v3612 = vunpack.c.l.b16 %v3434
        %v3613 = vunpack.c.h.b16 %v3434
        %v3614 = vunpack.c.l.b16 %v3435
        %v3615 = vunpack.c.h.b16 %v3435
        %v3616 = vunpack.c.l.b16 %v3436
        %v3617 = vunpack.c.h.b16 %v3436
        %v3618 = vunpack.c.l.b16 %v3437
        %v3619 = vunpack.c.h.b16 %v3437
        %v3620 = vunpack.c.l.b16 %v3438
        %v3621 = vunpack.c.h.b16 %v3438
        %v3622 = vunpack.c.l.b16 %v3439
        %v3623 = vunpack.c.h.b16 %v3439
        %v3624 = vunpack.c.l.b16 %v3440
        %v3625 = vunpack.c.h.b16 %v3440
        %v3626 = vunpack.c.l.b16 %v3441
        %v3627 = vunpack.c.h.b16 %v3441
        %v3628 = vunpack.c.l.b16 %v3442
        %v3629 = vunpack.c.h.b16 %v3442
        %v3630 = vunpack.c.l.b16 %v3443
        %v3631 = vunpack.c.h.b16 %v3443
        %v3632 = vunpack.c.l.b16 %v3444
        %v3633 = vunpack.c.h.b16 %v3444
        %v3634 = vunpack.c.l.b16 %v3445
        %v3635 = vunpack.c.h.b16 %v3445
        %v3636 = vunpack.c.l.b16 %v3446
        %v3637 = vunpack.c.h.b16 %v3446
        %v3638 = vunpack.c.l.b16 %v3447
        %v3639 = vunpack.c.h.b16 %v3447
        %v3640 = vunpack.c.l.b16 %v3448
        %v3641 = vunpack.c.h.b16 %v3448
        %v3642 = vunpack.c.l.b16 %v3449
        %v3643 = vunpack.c.h.b16 %v3449
        %v3644 = vunpack.c.l.b16 %v3450
        %v3645 = vunpack.c.h.b16 %v3450
        %v3646 = vunpack.c.l.b16 %v3451
        %v3647 = vunpack.c.h.b16 %v3451
        %v3648 = vunpack.c.l.b16 %v3452
        %v3649 = vunpack.c.h.b16 %v3452
        %v3650 = vunpack.c.l.b16 %v3453
        %v3651 = vunpack.c.h.b16 %v3453
        %v3652 = vunpack.c.l.b16 %v3454
        %v3653 = vunpack.c.h.b16 %v3454
        %v3654 = vunpack.c.l.b16 %v3455
        %v3655 = vunpack.c.h.b16 %v3455
        %v3656 = vunpack.c.l.b16 %v3456
        %v3657 = vunpack.c.h.b16 %v3456
        %v3658 = vunpack.c.l.b16 %v3457
        %v3659 = vunpack.c.h.b16 %v3457
        %v3660 = vunpack.c.l.b16 %v3458
        %v3661 = vunpack.c.h.b16 %v3458
        %v3662 = vunpack.c.l.b16 %v3459
        %v3663 = vunpack.c.h.b16 %v3459
        %v3664 = vunpack.c.l.b16 %v3460
        %v3665 = vunpack.c.h.b16 %v3460
        %v3666 = vunpack.c.l.b16 %v3461
        %v3667 = vunpack.c.h.b16 %v3461
        %v3668 = vunpack.c.l.b16 %v3462
        %v3669 = vunpack.c.h.b16 %v3462
        %v3670 = vunpack.c.l.b16 %v3463
        %v3671 = vunpack.c.h.b16 %v3463
        %v3672 = vunpack.c.l.b16 %v3464
        %v3673 = vunpack.c.h.b16 %v3464
        %v3674 = vunpack.c.l.b16 %v3465
        %v3675 = vunpack.c.h.b16 %v3465
        %v3676 = vunpack.c.l.b16 %v3466
        %v3677 = vunpack.c.h.b16 %v3466
        %v3678 = vunpack.c.l.b16 %v3467
        %v3679 = vunpack.c.h.b16 %v3467
        %v3680 = vunpack.c.l.b16 %v3468
        %v3681 = vunpack.c.h.b16 %v3468
        %v3682 = vunpack.c.l.b16 %v3469
        %v3683 = vunpack.c.h.b16 %v3469
        %v3684 = vpack.c.b16 %v3560, %v3556
        %v3685 = vpack.c.b16 %v3561, %v3557
        %v3686 = vpack.c.b16 %v3562, %v3558
        %v3687 = vpack.c.b16 %v3563, %v3559
        %v3688 = vpack.c.b16 %v3568, %v3564
        %v3689 = vpack.c.b16 %v3569, %v3565
        %v3690 = vpack.c.b16 %v3570, %v3566
        %v3691 = vpack.c.b16 %v3571, %v3567
        %v3692 = vpack.c.b16 %v3576, %v3572
        %v3693 = vpack.c.b16 %v3577, %v3573
        %v3694 = vpack.c.b16 %v3578, %v3574
        %v3695 = vpack.c.b16 %v3579, %v3575
        %v3696 = vpack.c.b16 %v3584, %v3580
        %v3697 = vpack.c.b16 %v3585, %v3581
        %v3698 = vpack.c.b16 %v3586, %v3582
        %v3699 = vpack.c.b16 %v3587, %v3583
        %v3700 = vpack.c.b16 %v3592, %v3588
        %v3701 = vpack.c.b16 %v3593, %v3589
        %v3702 = vpack.c.b16 %v3594, %v3590
        %v3703 = vpack.c.b16 %v3595, %v3591
        %v3704 = vpack.c.b16 %v3600, %v3596
        %v3705 = vpack.c.b16 %v3601, %v3597
        %v3706 = vpack.c.b16 %v3602, %v3598
        %v3707 = vpack.c.b16 %v3603, %v3599
        %v3708 = vpack.c.b16 %v3608, %v3604
        %v3709 = vpack.c.b16 %v3609, %v3605
        %v3710 = vpack.c.b16 %v3610, %v3606
        %v3711 = vpack.c.b16 %v3611, %v3607
        %v3712 = vpack.c.b16 %v3616, %v3612
        %v3713 = vpack.c.b16 %v3617, %v3613
        %v3714 = vpack.c.b16 %v3618, %v3614
        %v3715 = vpack.c.b16 %v3619, %v3615
        %v3716 = vpack.c.b16 %v3624, %v3620
        %v3717 = vpack.c.b16 %v3625, %v3621
        %v3718 = vpack.c.b16 %v3626, %v3622
        %v3719 = vpack.c.b16 %v3627, %v3623
        %v3720 = vpack.c.b16 %v3632, %v3628
        %v3721 = vpack.c.b16 %v3633, %v3629
        %v3722 = vpack.c.b16 %v3634, %v3630
        %v3723 = vpack.c.b16 %v3635, %v3631
        %v3724 = vpack.c.b16 %v3640, %v3636
        %v3725 = vpack.c.b16 %v3641, %v3637
        %v3726 = vpack.c.b16 %v3642, %v3638
        %v3727 = vpack.c.b16 %v3643, %v3639
        %v3728 = vpack.c.b16 %v3648, %v3644
        %v3729 = vpack.c.b16 %v3649, %v3645
        %v3730 = vpack.c.b16 %v3650, %v3646
        %v3731 = vpack.c.b16 %v3651, %v3647
        %v3732 = vpack.c.b16 %v3656, %v3652
        %v3733 = vpack.c.b16 %v3657, %v3653
        %v3734 = vpack.c.b16 %v3658, %v3654
        %v3735 = vpack.c.b16 %v3659, %v3655
        %v3736 = vpack.c.b16 %v3664, %v3660
        %v3737 = vpack.c.b16 %v3665, %v3661
        %v3738 = vpack.c.b16 %v3666, %v3662
        %v3739 = vpack.c.b16 %v3667, %v3663
        %v3740 = vpack.c.b16 %v3672, %v3668
        %v3741 = vpack.c.b16 %v3673, %v3669
        %v3742 = vpack.c.b16 %v3674, %v3670
        %v3743 = vpack.c.b16 %v3675, %v3671
        %v3744 = vpack.c.b16 %v3680, %v3676
        %v3745 = vpack.c.b16 %v3681, %v3677
        %v3746 = vpack.c.b16 %v3682, %v3678
        %v3747 = vpack.c.b16 %v3683, %v3679
        %3812 = vmatprep.subr.bf16.mxu0 %v3685
        %3813 = vmatpush1.bf16.msra.mxu0 %v3684
        %3814 = vmatprep.subr.bf16.mxu0 %v3689
        %3815 = vmatpush1.bf16.msra.mxu0 %v3688
        %3816 = vmatprep.subr.bf16.mxu0 %v3693
        %3817 = vmatpush1.bf16.msra.mxu0 %v3692
        %3818 = vmatprep.subr.bf16.mxu0 %v3697
        %3819 = vmatpush1.bf16.msra.mxu0 %v3696
        %3820 = vmatprep.subr.bf16.mxu0 %v3701
        %3821 = vmatpush1.bf16.msra.mxu0 %v3700
        %3822 = vmatprep.subr.bf16.mxu0 %v3705
        %3823 = vmatpush1.bf16.msra.mxu0 %v3704
        %3824 = vmatprep.subr.bf16.mxu0 %v3709
        %3825 = vmatpush1.bf16.msra.mxu0 %v3708
        %3826 = vmatprep.subr.bf16.mxu0 %v3713
        %3827 = vmatpush1.bf16.msra.mxu0 %v3712
        %3828 = vmatprep.subr.bf16.mxu0 %v3717
        %3829 = vmatpush1.bf16.msra.mxu0 %v3716
        %3830 = vmatprep.subr.bf16.mxu0 %v3721
        %3831 = vmatpush1.bf16.msra.mxu0 %v3720
        %3832 = vmatprep.subr.bf16.mxu0 %v3725
        %3833 = vmatpush1.bf16.msra.mxu0 %v3724
        %3834 = vmatprep.subr.bf16.mxu0 %v3729
        %3835 = vmatpush1.bf16.msra.mxu0 %v3728
        %3836 = vmatprep.subr.bf16.mxu0 %v3733
        %3837 = vmatpush1.bf16.msra.mxu0 %v3732
        %3838 = vmatprep.subr.bf16.mxu0 %v3737
        %3839 = vmatpush1.bf16.msra.mxu0 %v3736
        %3840 = vmatprep.subr.bf16.mxu0 %v3741
        %3841 = vmatpush1.bf16.msra.mxu0 %v3740
        %3842 = vmatprep.subr.bf16.mxu0 %v3745
        %3843 = vmatpush1.bf16.msra.mxu0 %v3744
        %3844 = vmatprep.mubr.bf16.mxu0 %v3391
        %3845 = vmatmul.mubr.bf16.gmra.mrb[0].mxu0 %v3390
        %v3846 = vpop.f32.mrb[0].mxu0
        %v3847 = vadd.f32 %v3475, %v3846
        %v3848 = vpop.f32.mrb[0].mxu0
        %v3849 = vadd.f32 %v3479, %v3848
        %v3850 = vpop.f32.mrb[0].mxu0
        %v3851 = vadd.f32 %v3475, %v3850
        %v3852 = vpop.f32.mrb[0].mxu0
        %v3853 = vadd.f32 %v3479, %v3852
        %3854 = vmatprep.mubr.bf16.mxu0 %v3393
        %3855 = vmatmul.mubr.bf16.gmra.mrb[0].mxu0 %v3392
        %v3856 = vpop.f32.mrb[0].mxu0
        %v3857 = vadd.f32 %v3475, %v3856
        %v3858 = vpop.f32.mrb[0].mxu0
        %v3859 = vadd.f32 %v3479, %v3858
        %v3860 = vpop.f32.mrb[0].mxu0
        %v3861 = vadd.f32 %v3475, %v3860
        %v3862 = vpop.f32.mrb[0].mxu0
        %v3863 = vadd.f32 %v3479, %v3862
        %3864 = vmatprep.mubr.bf16.mxu0 %v3395
        %3865 = vmatmul.mubr.bf16.gmra.mrb[0].mxu0 %v3394
        %v3866 = vpop.f32.mrb[0].mxu0
        %v3867 = vadd.f32 %v3475, %v3866
        %v3868 = vpop.f32.mrb[0].mxu0
        %v3869 = vadd.f32 %v3479, %v3868
        %v3870 = vpop.f32.mrb[0].mxu0
        %v3871 = vadd.f32 %v3475, %v3870
        %v3872 = vpop.f32.mrb[0].mxu0
        %v3873 = vadd.f32 %v3479, %v3872
        %3874 = vmatprep.mubr.bf16.mxu0 %v3397
        %3875 = vmatmul.mubr.bf16.gmra.mrb[0].mxu0 %v3396
        %v3876 = vpop.f32.mrb[0].mxu0
        %v3877 = vadd.f32 %v3475, %v3876
        %v3878 = vpop.f32.mrb[0].mxu0
        %v3879 = vadd.f32 %v3479, %v3878
        %v3880 = vpop.f32.mrb[0].mxu0
        %v3881 = vadd.f32 %v3475, %v3880
        %v3882 = vpop.f32.mrb[0].mxu0
        %v3883 = vadd.f32 %v3479, %v3882
        %3884 = vmatprep.mubr.bf16.mxu0 %v3399
        %3885 = vmatmul.mubr.bf16.gmra.mrb[0].mxu0 %v3398
        %v3886 = vpop.f32.mrb[0].mxu0
        %v3887 = vadd.f32 %v3475, %v3886
        %v3888 = vpop.f32.mrb[0].mxu0
        %v3889 = vadd.f32 %v3479, %v3888
        %v3890 = vpop.f32.mrb[0].mxu0
        %v3891 = vadd.f32 %v3475, %v3890
        %v3892 = vpop.f32.mrb[0].mxu0
        %v3893 = vadd.f32 %v3479, %v3892
        %3894 = vmatprep.mubr.bf16.mxu0 %v3401
        %3895 = vmatmul.mubr.bf16.gmra.mrb[0].mxu0 %v3400
        %v3896 = vpop.f32.mrb[0].mxu0
        %v3897 = vadd.f32 %v3475, %v3896
        %v3898 = vpop.f32.mrb[0].mxu0
        %v3899 = vadd.f32 %v3479, %v3898
        %v3900 = vpop.f32.mrb[0].mxu0
        %v3901 = vadd.f32 %v3475, %v3900
        %v3902 = vpop.f32.mrb[0].mxu0
        %v3903 = vadd.f32 %v3479, %v3902
        %3904 = vmatprep.mubr.bf16.mxu0 %v3403
        %3905 = vmatmul.mubr.bf16.gmra.mrb[0].mxu0 %v3402
        %v3906 = vpop.f32.mrb[0].mxu0
        %v3907 = vadd.f32 %v3475, %v3906
        %v3908 = vpop.f32.mrb[0].mxu0
        %v3909 = vadd.f32 %v3479, %v3908
        %v3910 = vpop.f32.mrb[0].mxu0
        %v3911 = vadd.f32 %v3475, %v3910
        %v3912 = vpop.f32.mrb[0].mxu0
        %v3913 = vadd.f32 %v3479, %v3912
        %3914 = vmatprep.mubr.bf16.mxu0 %v3405
        %3915 = vmatmul.mubr.bf16.gmra.mrb[0].mxu0 %v3404
        %v3916 = vpop.f32.mrb[0].mxu0
        %v3917 = vadd.f32 %v3475, %v3916
        %v3918 = vpop.f32.mrb[0].mxu0
        %v3919 = vadd.f32 %v3479, %v3918
        %v3920 = vpop.f32.mrb[0].mxu0
        %v3921 = vadd.f32 %v3475, %v3920
        %v3922 = vpop.f32.mrb[0].mxu0
        %v3923 = vadd.f32 %v3479, %v3922
        %3924 = vdwg.mxu0
        %3925 = vmatprep.subr.bf16.mxu0 %v3687
        %3926 = vmatpush1.bf16.msra.mxu0 %v3686
        %3927 = vmatprep.subr.bf16.mxu0 %v3691
        %3928 = vmatpush1.bf16.msra.mxu0 %v3690
        %3929 = vmatprep.subr.bf16.mxu0 %v3695
        %3930 = vmatpush1.bf16.msra.mxu0 %v3694
        %3931 = vmatprep.subr.bf16.mxu0 %v3699
        %3932 = vmatpush1.bf16.msra.mxu0 %v3698
        %3933 = vmatprep.subr.bf16.mxu0 %v3703
        %3934 = vmatpush1.bf16.msra.mxu0 %v3702
        %3935 = vmatprep.subr.bf16.mxu0 %v3707
        %3936 = vmatpush1.bf16.msra.mxu0 %v3706
        %3937 = vmatprep.subr.bf16.mxu0 %v3711
        %3938 = vmatpush1.bf16.msra.mxu0 %v3710
        %3939 = vmatprep.subr.bf16.mxu0 %v3715
        %3940 = vmatpush1.bf16.msra.mxu0 %v3714
        %3941 = vmatprep.subr.bf16.mxu0 %v3719
        %3942 = vmatpush1.bf16.msra.mxu0 %v3718
        %3943 = vmatprep.subr.bf16.mxu0 %v3723
        %3944 = vmatpush1.bf16.msra.mxu0 %v3722
        %3945 = vmatprep.subr.bf16.mxu0 %v3727
        %3946 = vmatpush1.bf16.msra.mxu0 %v3726
        %3947 = vmatprep.subr.bf16.mxu0 %v3731
        %3948 = vmatpush1.bf16.msra.mxu0 %v3730
        %3949 = vmatprep.subr.bf16.mxu0 %v3735
        %3950 = vmatpush1.bf16.msra.mxu0 %v3734
        %3951 = vmatprep.subr.bf16.mxu0 %v3739
        %3952 = vmatpush1.bf16.msra.mxu0 %v3738
        %3953 = vmatprep.subr.bf16.mxu0 %v3743
        %3954 = vmatpush1.bf16.msra.mxu0 %v3742
        %3955 = vmatprep.subr.bf16.mxu0 %v3747
        %3956 = vmatpush1.bf16.msra.mxu0 %v3746
        %3957 = vmatprep.mubr.bf16.mxu0 %v3391
        %3958 = vmatmul.mubr.bf16.gmra.mrb[0].mxu0 %v3390
        %v3959 = vpop.f32.mrb[0].mxu0
        %v3960 = vadd.f32 %v3483, %v3959
        %v3961 = vpop.f32.mrb[0].mxu0
        %v3962 = vadd.f32 %v3487, %v3961
        %v3963 = vpop.f32.mrb[0].mxu0
        %v3964 = vadd.f32 %v3483, %v3963
        %v3965 = vpop.f32.mrb[0].mxu0
        %v3966 = vadd.f32 %v3487, %v3965
        %3967 = vmatprep.mubr.bf16.mxu0 %v3393
        %3968 = vmatmul.mubr.bf16.gmra.mrb[0].mxu0 %v3392
        %v3969 = vpop.f32.mrb[0].mxu0
        %v3970 = vadd.f32 %v3483, %v3969
        %v3971 = vpop.f32.mrb[0].mxu0
        %v3972 = vadd.f32 %v3487, %v3971
        %v3973 = vpop.f32.mrb[0].mxu0
        %v3974 = vadd.f32 %v3483, %v3973
        %v3975 = vpop.f32.mrb[0].mxu0
        %v3976 = vadd.f32 %v3487, %v3975
        %3977 = vmatprep.mubr.bf16.mxu0 %v3395
        %3978 = vmatmul.mubr.bf16.gmra.mrb[0].mxu0 %v3394
        %v3979 = vpop.f32.mrb[0].mxu0
        %v3980 = vadd.f32 %v3483, %v3979
        %v3981 = vpop.f32.mrb[0].mxu0
        %v3982 = vadd.f32 %v3487, %v3981
        %v3983 = vpop.f32.mrb[0].mxu0
        %v3984 = vadd.f32 %v3483, %v3983
        %v3985 = vpop.f32.mrb[0].mxu0
        %v3986 = vadd.f32 %v3487, %v3985
        %3987 = vmatprep.mubr.bf16.mxu0 %v3397
        %3988 = vmatmul.mubr.bf16.gmra.mrb[0].mxu0 %v3396
        %v3989 = vpop.f32.mrb[0].mxu0
        %v3990 = vadd.f32 %v3483, %v3989
        %v3991 = vpop.f32.mrb[0].mxu0
        %v3992 = vadd.f32 %v3487, %v3991
        %v3993 = vpop.f32.mrb[0].mxu0
        %v3994 = vadd.f32 %v3483, %v3993
        %v3995 = vpop.f32.mrb[0].mxu0
        %v3996 = vadd.f32 %v3487, %v3995
        %3997 = vmatprep.mubr.bf16.mxu0 %v3399
        %3998 = vmatmul.mubr.bf16.gmra.mrb[0].mxu0 %v3398
        %v3999 = vpop.f32.mrb[0].mxu0
        %v4000 = vadd.f32 %v3483, %v3999
        %v4001 = vpop.f32.mrb[0].mxu0
        %v4002 = vadd.f32 %v3487, %v4001
        %v4003 = vpop.f32.mrb[0].mxu0
        %v4004 = vadd.f32 %v3483, %v4003
        %v4005 = vpop.f32.mrb[0].mxu0
        %v4006 = vadd.f32 %v3487, %v4005
        %4007 = vmatprep.mubr.bf16.mxu0 %v3401
        %4008 = vmatmul.mubr.bf16.gmra.mrb[0].mxu0 %v3400
        %v4009 = vpop.f32.mrb[0].mxu0
        %v4010 = vadd.f32 %v3483, %v4009
        %v4011 = vpop.f32.mrb[0].mxu0
        %v4012 = vadd.f32 %v3487, %v4011
        %v4013 = vpop.f32.mrb[0].mxu0
        %v4014 = vadd.f32 %v3483, %v4013
        %v4015 = vpop.f32.mrb[0].mxu0
        %v4016 = vadd.f32 %v3487, %v4015
        %4017 = vmatprep.mubr.bf16.mxu0 %v3403
        %4018 = vmatmul.mubr.bf16.gmra.mrb[0].mxu0 %v3402
        %v4019 = vpop.f32.mrb[0].mxu0
        %v4020 = vadd.f32 %v3483, %v4019
        %v4021 = vpop.f32.mrb[0].mxu0
        %v4022 = vadd.f32 %v3487, %v4021
        %v4023 = vpop.f32.mrb[0].mxu0
        %v4024 = vadd.f32 %v3483, %v4023
        %v4025 = vpop.f32.mrb[0].mxu0
        %v4026 = vadd.f32 %v3487, %v4025
        %4027 = vmatprep.mubr.bf16.mxu0 %v3405
        %4028 = vmatmul.mubr.bf16.gmra.mrb[0].mxu0 %v3404
        %v4029 = vpop.f32.mrb[0].mxu0
        %v4030 = vadd.f32 %v3483, %v4029
        %v4031 = vpop.f32.mrb[0].mxu0
        %v4032 = vadd.f32 %v3487, %v4031
        %v4033 = vpop.f32.mrb[0].mxu0
        %v4034 = vadd.f32 %v3483, %v4033
        %v4035 = vpop.f32.mrb[0].mxu0
        %v4036 = vadd.f32 %v3487, %v4035
        %4037 = vdwg.mxu0
        %v4038 = vmul.f32 %v3847, %v3847
        %v4039 = vmul.f32 %v3849, %v3849
        %v4040 = vmul.f32 %v3960, %v3960
        %v4041 = vmul.f32 %v3962, %v3962
        %v4042 = vmul.f32 %v3851, %v3851
        %v4043 = vmul.f32 %v3853, %v3853
        %v4044 = vmul.f32 %v3964, %v3964
        %v4045 = vmul.f32 %v3966, %v3966
        %v4046 = vmul.f32 %v3857, %v3857
        %v4047 = vmul.f32 %v3859, %v3859
        %v4048 = vmul.f32 %v3970, %v3970
        %v4049 = vmul.f32 %v3972, %v3972
        %v4050 = vmul.f32 %v3861, %v3861
        %v4051 = vmul.f32 %v3863, %v3863
        %v4052 = vmul.f32 %v3974, %v3974
        %v4053 = vmul.f32 %v3976, %v3976
        %v4054 = vmul.f32 %v3867, %v3867
        %v4055 = vmul.f32 %v3869, %v3869
        %v4056 = vmul.f32 %v3980, %v3980
        %v4057 = vmul.f32 %v3982, %v3982
        %v4058 = vmul.f32 %v3871, %v3871
        %v4059 = vmul.f32 %v3873, %v3873
        %v4060 = vmul.f32 %v3984, %v3984
        %v4061 = vmul.f32 %v3986, %v3986
        %v4062 = vmul.f32 %v3877, %v3877
        %v4063 = vmul.f32 %v3879, %v3879
        %v4064 = vmul.f32 %v3990, %v3990
        %v4065 = vmul.f32 %v3992, %v3992
        %v4066 = vmul.f32 %v3881, %v3881
        %v4067 = vmul.f32 %v3883, %v3883
        %v4068 = vmul.f32 %v3994, %v3994
        %v4069 = vmul.f32 %v3996, %v3996
        %v4070 = vmul.f32 %v3887, %v3887
        %v4071 = vmul.f32 %v3889, %v3889
        %v4072 = vmul.f32 %v4000, %v4000
        %v4073 = vmul.f32 %v4002, %v4002
        %v4074 = vmul.f32 %v3891, %v3891
        %v4075 = vmul.f32 %v3893, %v3893
        %v4076 = vmul.f32 %v4004, %v4004
        %v4077 = vmul.f32 %v4006, %v4006
        %v4078 = vmul.f32 %v3897, %v3897
        %v4079 = vmul.f32 %v3899, %v3899
        %v4080 = vmul.f32 %v4010, %v4010
        %v4081 = vmul.f32 %v4012, %v4012
        %v4082 = vmul.f32 %v3901, %v3901
        %v4083 = vmul.f32 %v3903, %v3903
        %v4084 = vmul.f32 %v4014, %v4014
        %v4085 = vmul.f32 %v4016, %v4016
        %v4086 = vmul.f32 %v3907, %v3907
        %v4087 = vmul.f32 %v3909, %v3909
        %v4088 = vmul.f32 %v4020, %v4020
        %v4089 = vmul.f32 %v4022, %v4022
        %v4090 = vmul.f32 %v3911, %v3911
        %v4091 = vmul.f32 %v3913, %v3913
        %v4092 = vmul.f32 %v4024, %v4024
        %v4093 = vmul.f32 %v4026, %v4026
        %v4094 = vmul.f32 %v3917, %v3917
        %v4095 = vmul.f32 %v3919, %v3919
        %v4096 = vmul.f32 %v4030, %v4030
        %v4097 = vmul.f32 %v4032, %v4032
        %v4098 = vmul.f32 %v3921, %v3921
        %v4099 = vmul.f32 %v3923, %v3923
        %v4100 = vmul.f32 %v4034, %v4034
        %v4101 = vmul.f32 %v4036, %v4036
        %v4102 = vmul.f32 %v3847, %v4038
        %v4103 = vmul.f32 %v3849, %v4039
        %v4104 = vmul.f32 %v3960, %v4040
        %v4105 = vmul.f32 %v3962, %v4041
        %v4106 = vmul.f32 %v3851, %v4042
        %v4107 = vmul.f32 %v3853, %v4043
        %v4108 = vmul.f32 %v3964, %v4044
        %v4109 = vmul.f32 %v3966, %v4045
        %v4110 = vmul.f32 %v3857, %v4046
        %v4111 = vmul.f32 %v3859, %v4047
        %v4112 = vmul.f32 %v3970, %v4048
        %v4113 = vmul.f32 %v3972, %v4049
        %v4114 = vmul.f32 %v3861, %v4050
        %v4115 = vmul.f32 %v3863, %v4051
        %v4116 = vmul.f32 %v3974, %v4052
        %v4117 = vmul.f32 %v3976, %v4053
        %v4118 = vmul.f32 %v3867, %v4054
        %v4119 = vmul.f32 %v3869, %v4055
        %v4120 = vmul.f32 %v3980, %v4056
        %v4121 = vmul.f32 %v3982, %v4057
        %v4122 = vmul.f32 %v3871, %v4058
        %v4123 = vmul.f32 %v3873, %v4059
        %v4124 = vmul.f32 %v3984, %v4060
        %v4125 = vmul.f32 %v3986, %v4061
        %v4126 = vmul.f32 %v3877, %v4062
        %v4127 = vmul.f32 %v3879, %v4063
        %v4128 = vmul.f32 %v3990, %v4064
        %v4129 = vmul.f32 %v3992, %v4065
        %v4130 = vmul.f32 %v3881, %v4066
        %v4131 = vmul.f32 %v3883, %v4067
        %v4132 = vmul.f32 %v3994, %v4068
        %v4133 = vmul.f32 %v3996, %v4069
        %v4134 = vmul.f32 %v3887, %v4070
        %v4135 = vmul.f32 %v3889, %v4071
        %v4136 = vmul.f32 %v4000, %v4072
        %v4137 = vmul.f32 %v4002, %v4073
        %v4138 = vmul.f32 %v3891, %v4074
        %v4139 = vmul.f32 %v3893, %v4075
        %v4140 = vmul.f32 %v4004, %v4076
        %v4141 = vmul.f32 %v4006, %v4077
        %v4142 = vmul.f32 %v3897, %v4078
        %v4143 = vmul.f32 %v3899, %v4079
        %v4144 = vmul.f32 %v4010, %v4080
        %v4145 = vmul.f32 %v4012, %v4081
        %v4146 = vmul.f32 %v3901, %v4082
        %v4147 = vmul.f32 %v3903, %v4083
        %v4148 = vmul.f32 %v4014, %v4084
        %v4149 = vmul.f32 %v4016, %v4085
        %v4150 = vmul.f32 %v3907, %v4086
        %v4151 = vmul.f32 %v3909, %v4087
        %v4152 = vmul.f32 %v4020, %v4088
        %v4153 = vmul.f32 %v4022, %v4089
        %v4154 = vmul.f32 %v3911, %v4090
        %v4155 = vmul.f32 %v3913, %v4091
        %v4156 = vmul.f32 %v4024, %v4092
        %v4157 = vmul.f32 %v4026, %v4093
        %v4158 = vmul.f32 %v3917, %v4094
        %v4159 = vmul.f32 %v3919, %v4095
        %v4160 = vmul.f32 %v4030, %v4096
        %v4161 = vmul.f32 %v4032, %v4097
        %v4162 = vmul.f32 %v3921, %v4098
        %v4163 = vmul.f32 %v3923, %v4099
        %v4164 = vmul.f32 %v4034, %v4100
        %v4165 = vmul.f32 %v4036, %v4101
        %v4166 = vmul.f32 %v4102, 0.044715
        %v4167 = vmul.f32 %v4103, 0.044715
        %v4168 = vmul.f32 %v4104, 0.044715
        %v4169 = vmul.f32 %v4105, 0.044715
        %v4170 = vmul.f32 %v4106, 0.044715
        %v4171 = vmul.f32 %v4107, 0.044715
        %v4172 = vmul.f32 %v4108, 0.044715
        %v4173 = vmul.f32 %v4109, 0.044715
        %v4174 = vmul.f32 %v4110, 0.044715
        %v4175 = vmul.f32 %v4111, 0.044715
        %v4176 = vmul.f32 %v4112, 0.044715
        %v4177 = vmul.f32 %v4113, 0.044715
        %v4178 = vmul.f32 %v4114, 0.044715
        %v4179 = vmul.f32 %v4115, 0.044715
        %v4180 = vmul.f32 %v4116, 0.044715
        %v4181 = vmul.f32 %v4117, 0.044715
        %v4182 = vmul.f32 %v4118, 0.044715
        %v4183 = vmul.f32 %v4119, 0.044715
        %v4184 = vmul.f32 %v4120, 0.044715
        %v4185 = vmul.f32 %v4121, 0.044715
        %v4186 = vmul.f32 %v4122, 0.044715
        %v4187 = vmul.f32 %v4123, 0.044715
        %v4188 = vmul.f32 %v4124, 0.044715
        %v4189 = vmul.f32 %v4125, 0.044715
        %v4190 = vmul.f32 %v4126, 0.044715
        %v4191 = vmul.f32 %v4127, 0.044715
        %v4192 = vmul.f32 %v4128, 0.044715
        %v4193 = vmul.f32 %v4129, 0.044715
        %v4194 = vmul.f32 %v4130, 0.044715
        %v4195 = vmul.f32 %v4131, 0.044715
        %v4196 = vmul.f32 %v4132, 0.044715
        %v4197 = vmul.f32 %v4133, 0.044715
        %v4198 = vmul.f32 %v4134, 0.044715
        %v4199 = vmul.f32 %v4135, 0.044715
        %v4200 = vmul.f32 %v4136, 0.044715
        %v4201 = vmul.f32 %v4137, 0.044715
        %v4202 = vmul.f32 %v4138, 0.044715
        %v4203 = vmul.f32 %v4139, 0.044715
        %v4204 = vmul.f32 %v4140, 0.044715
        %v4205 = vmul.f32 %v4141, 0.044715
        %v4206 = vmul.f32 %v4142, 0.044715
        %v4207 = vmul.f32 %v4143, 0.044715
        %v4208 = vmul.f32 %v4144, 0.044715
        %v4209 = vmul.f32 %v4145, 0.044715
        %v4210 = vmul.f32 %v4146, 0.044715
        %v4211 = vmul.f32 %v4147, 0.044715
        %v4212 = vmul.f32 %v4148, 0.044715
        %v4213 = vmul.f32 %v4149, 0.044715
        %v4214 = vmul.f32 %v4150, 0.044715
        %v4215 = vmul.f32 %v4151, 0.044715
        %v4216 = vmul.f32 %v4152, 0.044715
        %v4217 = vmul.f32 %v4153, 0.044715
        %v4218 = vmul.f32 %v4154, 0.044715
        %v4219 = vmul.f32 %v4155, 0.044715
        %v4220 = vmul.f32 %v4156, 0.044715
        %v4221 = vmul.f32 %v4157, 0.044715
        %v4222 = vmul.f32 %v4158, 0.044715
        %v4223 = vmul.f32 %v4159, 0.044715
        %v4224 = vmul.f32 %v4160, 0.044715
        %v4225 = vmul.f32 %v4161, 0.044715
        %v4226 = vmul.f32 %v4162, 0.044715
        %v4227 = vmul.f32 %v4163, 0.044715
        %v4228 = vmul.f32 %v4164, 0.044715
        %v4229 = vmul.f32 %v4165, 0.044715
        %v4230 = vadd.f32 %v3847, %v4166
        %v4231 = vadd.f32 %v3849, %v4167
        %v4232 = vadd.f32 %v3960, %v4168
        %v4233 = vadd.f32 %v3962, %v4169
        %v4234 = vadd.f32 %v3851, %v4170
        %v4235 = vadd.f32 %v3853, %v4171
        %v4236 = vadd.f32 %v3964, %v4172
        %v4237 = vadd.f32 %v3966, %v4173
        %v4238 = vadd.f32 %v3857, %v4174
        %v4239 = vadd.f32 %v3859, %v4175
        %v4240 = vadd.f32 %v3970, %v4176
        %v4241 = vadd.f32 %v3972, %v4177
        %v4242 = vadd.f32 %v3861, %v4178
        %v4243 = vadd.f32 %v3863, %v4179
        %v4244 = vadd.f32 %v3974, %v4180
        %v4245 = vadd.f32 %v3976, %v4181
        %v4246 = vadd.f32 %v3867, %v4182
        %v4247 = vadd.f32 %v3869, %v4183
        %v4248 = vadd.f32 %v3980, %v4184
        %v4249 = vadd.f32 %v3982, %v4185
        %v4250 = vadd.f32 %v3871, %v4186
        %v4251 = vadd.f32 %v3873, %v4187
        %v4252 = vadd.f32 %v3984, %v4188
        %v4253 = vadd.f32 %v3986, %v4189
        %v4254 = vadd.f32 %v3877, %v4190
        %v4255 = vadd.f32 %v3879, %v4191
        %v4256 = vadd.f32 %v3990, %v4192
        %v4257 = vadd.f32 %v3992, %v4193
        %v4258 = vadd.f32 %v3881, %v4194
        %v4259 = vadd.f32 %v3883, %v4195
        %v4260 = vadd.f32 %v3994, %v4196
        %v4261 = vadd.f32 %v3996, %v4197
        %v4262 = vadd.f32 %v3887, %v4198
        %v4263 = vadd.f32 %v3889, %v4199
        %v4264 = vadd.f32 %v4000, %v4200
        %v4265 = vadd.f32 %v4002, %v4201
        %v4266 = vadd.f32 %v3891, %v4202
        %v4267 = vadd.f32 %v3893, %v4203
        %v4268 = vadd.f32 %v4004, %v4204
        %v4269 = vadd.f32 %v4006, %v4205
        %v4270 = vadd.f32 %v3897, %v4206
        %v4271 = vadd.f32 %v3899, %v4207
        %v4272 = vadd.f32 %v4010, %v4208
        %v4273 = vadd.f32 %v4012, %v4209
        %v4274 = vadd.f32 %v3901, %v4210
        %v4275 = vadd.f32 %v3903, %v4211
        %v4276 = vadd.f32 %v4014, %v4212
        %v4277 = vadd.f32 %v4016, %v4213
        %v4278 = vadd.f32 %v3907, %v4214
        %v4279 = vadd.f32 %v3909, %v4215
        %v4280 = vadd.f32 %v4020, %v4216
        %v4281 = vadd.f32 %v4022, %v4217
        %v4282 = vadd.f32 %v3911, %v4218
        %v4283 = vadd.f32 %v3913, %v4219
        %v4284 = vadd.f32 %v4024, %v4220
        %v4285 = vadd.f32 %v4026, %v4221
        %v4286 = vadd.f32 %v3917, %v4222
        %v4287 = vadd.f32 %v3919, %v4223
        %v4288 = vadd.f32 %v4030, %v4224
        %v4289 = vadd.f32 %v4032, %v4225
        %v4290 = vadd.f32 %v3921, %v4226
        %v4291 = vadd.f32 %v3923, %v4227
        %v4292 = vadd.f32 %v4034, %v4228
        %v4293 = vadd.f32 %v4036, %v4229
        %v4294 = vmul.f32 %v4230, 0.7978846
        %v4295 = vmul.f32 %v4231, 0.7978846
        %v4296 = vmul.f32 %v4232, 0.7978846
        %v4297 = vmul.f32 %v4233, 0.7978846
        %v4298 = vmul.f32 %v4234, 0.7978846
        %v4299 = vmul.f32 %v4235, 0.7978846
        %v4300 = vmul.f32 %v4236, 0.7978846
        %v4301 = vmul.f32 %v4237, 0.7978846
        %v4302 = vmul.f32 %v4238, 0.7978846
        %v4303 = vmul.f32 %v4239, 0.7978846
        %v4304 = vmul.f32 %v4240, 0.7978846
        %v4305 = vmul.f32 %v4241, 0.7978846
        %v4306 = vmul.f32 %v4242, 0.7978846
        %v4307 = vmul.f32 %v4243, 0.7978846
        %v4308 = vmul.f32 %v4244, 0.7978846
        %v4309 = vmul.f32 %v4245, 0.7978846
        %v4310 = vmul.f32 %v4246, 0.7978846
        %v4311 = vmul.f32 %v4247, 0.7978846
        %v4312 = vmul.f32 %v4248, 0.7978846
        %v4313 = vmul.f32 %v4249, 0.7978846
        %v4314 = vmul.f32 %v4250, 0.7978846
        %v4315 = vmul.f32 %v4251, 0.7978846
        %v4316 = vmul.f32 %v4252, 0.7978846
        %v4317 = vmul.f32 %v4253, 0.7978846
        %v4318 = vmul.f32 %v4254, 0.7978846
        %v4319 = vmul.f32 %v4255, 0.7978846
        %v4320 = vmul.f32 %v4256, 0.7978846
        %v4321 = vmul.f32 %v4257, 0.7978846
        %v4322 = vmul.f32 %v4258, 0.7978846
        %v4323 = vmul.f32 %v4259, 0.7978846
        %v4324 = vmul.f32 %v4260, 0.7978846
        %v4325 = vmul.f32 %v4261, 0.7978846
        %v4326 = vmul.f32 %v4262, 0.7978846
        %v4327 = vmul.f32 %v4263, 0.7978846
        %v4328 = vmul.f32 %v4264, 0.7978846
        %v4329 = vmul.f32 %v4265, 0.7978846
        %v4330 = vmul.f32 %v4266, 0.7978846
        %v4331 = vmul.f32 %v4267, 0.7978846
        %v4332 = vmul.f32 %v4268, 0.7978846
        %v4333 = vmul.f32 %v4269, 0.7978846
        %v4334 = vmul.f32 %v4270, 0.7978846
        %v4335 = vmul.f32 %v4271, 0.7978846
        %v4336 = vmul.f32 %v4272, 0.7978846
        %v4337 = vmul.f32 %v4273, 0.7978846
        %v4338 = vmul.f32 %v4274, 0.7978846
        %v4339 = vmul.f32 %v4275, 0.7978846
        %v4340 = vmul.f32 %v4276, 0.7978846
        %v4341 = vmul.f32 %v4277, 0.7978846
        %v4342 = vmul.f32 %v4278, 0.7978846
        %v4343 = vmul.f32 %v4279, 0.7978846
        %v4344 = vmul.f32 %v4280, 0.7978846
        %v4345 = vmul.f32 %v4281, 0.7978846
        %v4346 = vmul.f32 %v4282, 0.7978846
        %v4347 = vmul.f32 %v4283, 0.7978846
        %v4348 = vmul.f32 %v4284, 0.7978846
        %v4349 = vmul.f32 %v4285, 0.7978846
        %v4350 = vmul.f32 %v4286, 0.7978846
        %v4351 = vmul.f32 %v4287, 0.7978846
        %v4352 = vmul.f32 %v4288, 0.7978846
        %v4353 = vmul.f32 %v4289, 0.7978846
        %v4354 = vmul.f32 %v4290, 0.7978846
        %v4355 = vmul.f32 %v4291, 0.7978846
        %v4356 = vmul.f32 %v4292, 0.7978846
        %v4357 = vmul.f32 %v4293, 0.7978846
        %v4358 = vtanh.pop %v4294
        %v4359 = vtanh.pop %v4295
        %v4360 = vtanh.pop %v4296
        %v4361 = vtanh.pop %v4297
        %v4362 = vtanh.pop %v4298
        %v4363 = vtanh.pop %v4299
        %v4364 = vtanh.pop %v4300
        %v4365 = vtanh.pop %v4301
        %v4366 = vtanh.pop %v4302
        %v4367 = vtanh.pop %v4303
        %v4368 = vtanh.pop %v4304
        %v4369 = vtanh.pop %v4305
        %v4370 = vtanh.pop %v4306
        %v4371 = vtanh.pop %v4307
        %v4372 = vtanh.pop %v4308
        %v4373 = vtanh.pop %v4309
        %v4374 = vtanh.pop %v4310
        %v4375 = vtanh.pop %v4311
        %v4376 = vtanh.pop %v4312
        %v4377 = vtanh.pop %v4313
        %v4378 = vtanh.pop %v4314
        %v4379 = vtanh.pop %v4315
        %v4380 = vtanh.pop %v4316
        %v4381 = vtanh.pop %v4317
        %v4382 = vtanh.pop %v4318
        %v4383 = vtanh.pop %v4319
        %v4384 = vtanh.pop %v4320
        %v4385 = vtanh.pop %v4321
        %v4386 = vtanh.pop %v4322
        %v4387 = vtanh.pop %v4323
        %v4388 = vtanh.pop %v4324
        %v4389 = vtanh.pop %v4325
        %v4390 = vtanh.pop %v4326
        %v4391 = vtanh.pop %v4327
        %v4392 = vtanh.pop %v4328
        %v4393 = vtanh.pop %v4329
        %v4394 = vtanh.pop %v4330
        %v4395 = vtanh.pop %v4331
        %v4396 = vtanh.pop %v4332
        %v4397 = vtanh.pop %v4333
        %v4398 = vtanh.pop %v4334
        %v4399 = vtanh.pop %v4335
        %v4400 = vtanh.pop %v4336
        %v4401 = vtanh.pop %v4337
        %v4402 = vtanh.pop %v4338
        %v4403 = vtanh.pop %v4339
        %v4404 = vtanh.pop %v4340
        %v4405 = vtanh.pop %v4341
        %v4406 = vtanh.pop %v4342
        %v4407 = vtanh.pop %v4343
        %v4408 = vtanh.pop %v4344
        %v4409 = vtanh.pop %v4345
        %v4410 = vtanh.pop %v4346
        %v4411 = vtanh.pop %v4347
        %v4412 = vtanh.pop %v4348
        %v4413 = vtanh.pop %v4349
        %v4414 = vtanh.pop %v4350
        %v4415 = vtanh.pop %v4351
        %v4416 = vtanh.pop %v4352
        %v4417 = vtanh.pop %v4353
        %v4418 = vtanh.pop %v4354
        %v4419 = vtanh.pop %v4355
        %v4420 = vtanh.pop %v4356
        %v4421 = vtanh.pop %v4357
        %v4422 = vadd.f32 %v4358, 1.0
        %v4423 = vadd.f32 %v4359, 1.0
        %v4424 = vadd.f32 %v4360, 1.0
        %v4425 = vadd.f32 %v4361, 1.0
        %v4426 = vadd.f32 %v4362, 1.0
        %v4427 = vadd.f32 %v4363, 1.0
        %v4428 = vadd.f32 %v4364, 1.0
        %v4429 = vadd.f32 %v4365, 1.0
        %v4430 = vadd.f32 %v4366, 1.0
        %v4431 = vadd.f32 %v4367, 1.0
        %v4432 = vadd.f32 %v4368, 1.0
        %v4433 = vadd.f32 %v4369, 1.0
        %v4434 = vadd.f32 %v4370, 1.0
        %v4435 = vadd.f32 %v4371, 1.0
        %v4436 = vadd.f32 %v4372, 1.0
        %v4437 = vadd.f32 %v4373, 1.0
        %v4438 = vadd.f32 %v4374, 1.0
        %v4439 = vadd.f32 %v4375, 1.0
        %v4440 = vadd.f32 %v4376, 1.0
        %v4441 = vadd.f32 %v4377, 1.0
        %v4442 = vadd.f32 %v4378, 1.0
        %v4443 = vadd.f32 %v4379, 1.0
        %v4444 = vadd.f32 %v4380, 1.0
        %v4445 = vadd.f32 %v4381, 1.0
        %v4446 = vadd.f32 %v4382, 1.0
        %v4447 = vadd.f32 %v4383, 1.0
        %v4448 = vadd.f32 %v4384, 1.0
        %v4449 = vadd.f32 %v4385, 1.0
        %v4450 = vadd.f32 %v4386, 1.0
        %v4451 = vadd.f32 %v4387, 1.0
        %v4452 = vadd.f32 %v4388, 1.0
        %v4453 = vadd.f32 %v4389, 1.0
        %v4454 = vadd.f32 %v4390, 1.0
        %v4455 = vadd.f32 %v4391, 1.0
        %v4456 = vadd.f32 %v4392, 1.0
        %v4457 = vadd.f32 %v4393, 1.0
        %v4458 = vadd.f32 %v4394, 1.0
        %v4459 = vadd.f32 %v4395, 1.0
        %v4460 = vadd.f32 %v4396, 1.0
        %v4461 = vadd.f32 %v4397, 1.0
        %v4462 = vadd.f32 %v4398, 1.0
        %v4463 = vadd.f32 %v4399, 1.0
        %v4464 = vadd.f32 %v4400, 1.0
        %v4465 = vadd.f32 %v4401, 1.0
        %v4466 = vadd.f32 %v4402, 1.0
        %v4467 = vadd.f32 %v4403, 1.0
        %v4468 = vadd.f32 %v4404, 1.0
        %v4469 = vadd.f32 %v4405, 1.0
        %v4470 = vadd.f32 %v4406, 1.0
        %v4471 = vadd.f32 %v4407, 1.0
        %v4472 = vadd.f32 %v4408, 1.0
        %v4473 = vadd.f32 %v4409, 1.0
        %v4474 = vadd.f32 %v4410, 1.0
        %v4475 = vadd.f32 %v4411, 1.0
        %v4476 = vadd.f32 %v4412, 1.0
        %v4477 = vadd.f32 %v4413, 1.0
        %v4478 = vadd.f32 %v4414, 1.0
        %v4479 = vadd.f32 %v4415, 1.0
        %v4480 = vadd.f32 %v4416, 1.0
        %v4481 = vadd.f32 %v4417, 1.0
        %v4482 = vadd.f32 %v4418, 1.0
        %v4483 = vadd.f32 %v4419, 1.0
        %v4484 = vadd.f32 %v4420, 1.0
        %v4485 = vadd.f32 %v4421, 1.0
        %v4486 = vmul.f32 %v4422, 0.5
        %v4487 = vmul.f32 %v4423, 0.5
        %v4488 = vmul.f32 %v4424, 0.5
        %v4489 = vmul.f32 %v4425, 0.5
        %v4490 = vmul.f32 %v4426, 0.5
        %v4491 = vmul.f32 %v4427, 0.5
        %v4492 = vmul.f32 %v4428, 0.5
        %v4493 = vmul.f32 %v4429, 0.5
        %v4494 = vmul.f32 %v4430, 0.5
        %v4495 = vmul.f32 %v4431, 0.5
        %v4496 = vmul.f32 %v4432, 0.5
        %v4497 = vmul.f32 %v4433, 0.5
        %v4498 = vmul.f32 %v4434, 0.5
        %v4499 = vmul.f32 %v4435, 0.5
        %v4500 = vmul.f32 %v4436, 0.5
        %v4501 = vmul.f32 %v4437, 0.5
        %v4502 = vmul.f32 %v4438, 0.5
        %v4503 = vmul.f32 %v4439, 0.5
        %v4504 = vmul.f32 %v4440, 0.5
        %v4505 = vmul.f32 %v4441, 0.5
        %v4506 = vmul.f32 %v4442, 0.5
        %v4507 = vmul.f32 %v4443, 0.5
        %v4508 = vmul.f32 %v4444, 0.5
        %v4509 = vmul.f32 %v4445, 0.5
        %v4510 = vmul.f32 %v4446, 0.5
        %v4511 = vmul.f32 %v4447, 0.5
        %v4512 = vmul.f32 %v4448, 0.5
        %v4513 = vmul.f32 %v4449, 0.5
        %v4514 = vmul.f32 %v4450, 0.5
        %v4515 = vmul.f32 %v4451, 0.5
        %v4516 = vmul.f32 %v4452, 0.5
        %v4517 = vmul.f32 %v4453, 0.5
        %v4518 = vmul.f32 %v4454, 0.5
        %v4519 = vmul.f32 %v4455, 0.5
        %v4520 = vmul.f32 %v4456, 0.5
        %v4521 = vmul.f32 %v4457, 0.5
        %v4522 = vmul.f32 %v4458, 0.5
        %v4523 = vmul.f32 %v4459, 0.5
        %v4524 = vmul.f32 %v4460, 0.5
        %v4525 = vmul.f32 %v4461, 0.5
        %v4526 = vmul.f32 %v4462, 0.5
        %v4527 = vmul.f32 %v4463, 0.5
        %v4528 = vmul.f32 %v4464, 0.5
        %v4529 = vmul.f32 %v4465, 0.5
        %v4530 = vmul.f32 %v4466, 0.5
        %v4531 = vmul.f32 %v4467, 0.5
        %v4532 = vmul.f32 %v4468, 0.5
        %v4533 = vmul.f32 %v4469, 0.5
        %v4534 = vmul.f32 %v4470, 0.5
        %v4535 = vmul.f32 %v4471, 0.5
        %v4536 = vmul.f32 %v4472, 0.5
        %v4537 = vmul.f32 %v4473, 0.5
        %v4538 = vmul.f32 %v4474, 0.5
        %v4539 = vmul.f32 %v4475, 0.5
        %v4540 = vmul.f32 %v4476, 0.5
        %v4541 = vmul.f32 %v4477, 0.5
        %v4542 = vmul.f32 %v4478, 0.5
        %v4543 = vmul.f32 %v4479, 0.5
        %v4544 = vmul.f32 %v4480, 0.5
        %v4545 = vmul.f32 %v4481, 0.5
        %v4546 = vmul.f32 %v4482, 0.5
        %v4547 = vmul.f32 %v4483, 0.5
        %v4548 = vmul.f32 %v4484, 0.5
        %v4549 = vmul.f32 %v4485, 0.5
        %v4550 = vmul.f32 %v3847, %v4486
        %v4551 = vmul.f32 %v3849, %v4487
        %v4552 = vmul.f32 %v3960, %v4488
        %v4553 = vmul.f32 %v3962, %v4489
        %v4554 = vmul.f32 %v3851, %v4490
        %v4555 = vmul.f32 %v3853, %v4491
        %v4556 = vmul.f32 %v3964, %v4492
        %v4557 = vmul.f32 %v3966, %v4493
        %v4558 = vmul.f32 %v3857, %v4494
        %v4559 = vmul.f32 %v3859, %v4495
        %v4560 = vmul.f32 %v3970, %v4496
        %v4561 = vmul.f32 %v3972, %v4497
        %v4562 = vmul.f32 %v3861, %v4498
        %v4563 = vmul.f32 %v3863, %v4499
        %v4564 = vmul.f32 %v3974, %v4500
        %v4565 = vmul.f32 %v3976, %v4501
        %v4566 = vmul.f32 %v3867, %v4502
        %v4567 = vmul.f32 %v3869, %v4503
        %v4568 = vmul.f32 %v3980, %v4504
        %v4569 = vmul.f32 %v3982, %v4505
        %v4570 = vmul.f32 %v3871, %v4506
        %v4571 = vmul.f32 %v3873, %v4507
        %v4572 = vmul.f32 %v3984, %v4508
        %v4573 = vmul.f32 %v3986, %v4509
        %v4574 = vmul.f32 %v3877, %v4510
        %v4575 = vmul.f32 %v3879, %v4511
        %v4576 = vmul.f32 %v3990, %v4512
        %v4577 = vmul.f32 %v3992, %v4513
        %v4578 = vmul.f32 %v3881, %v4514
        %v4579 = vmul.f32 %v3883, %v4515
        %v4580 = vmul.f32 %v3994, %v4516
        %v4581 = vmul.f32 %v3996, %v4517
        %v4582 = vmul.f32 %v3887, %v4518
        %v4583 = vmul.f32 %v3889, %v4519
        %v4584 = vmul.f32 %v4000, %v4520
        %v4585 = vmul.f32 %v4002, %v4521
        %v4586 = vmul.f32 %v3891, %v4522
        %v4587 = vmul.f32 %v3893, %v4523
        %v4588 = vmul.f32 %v4004, %v4524
        %v4589 = vmul.f32 %v4006, %v4525
        %v4590 = vmul.f32 %v3897, %v4526
        %v4591 = vmul.f32 %v3899, %v4527
        %v4592 = vmul.f32 %v4010, %v4528
        %v4593 = vmul.f32 %v4012, %v4529
        %v4594 = vmul.f32 %v3901, %v4530
        %v4595 = vmul.f32 %v3903, %v4531
        %v4596 = vmul.f32 %v4014, %v4532
        %v4597 = vmul.f32 %v4016, %v4533
        %v4598 = vmul.f32 %v3907, %v4534
        %v4599 = vmul.f32 %v3909, %v4535
        %v4600 = vmul.f32 %v4020, %v4536
        %v4601 = vmul.f32 %v4022, %v4537
        %v4602 = vmul.f32 %v3911, %v4538
        %v4603 = vmul.f32 %v3913, %v4539
        %v4604 = vmul.f32 %v4024, %v4540
        %v4605 = vmul.f32 %v4026, %v4541
        %v4606 = vmul.f32 %v3917, %v4542
        %v4607 = vmul.f32 %v3919, %v4543
        %v4608 = vmul.f32 %v4030, %v4544
        %v4609 = vmul.f32 %v4032, %v4545
        %v4610 = vmul.f32 %v3921, %v4546
        %v4611 = vmul.f32 %v3923, %v4547
        %v4612 = vmul.f32 %v4034, %v4548
        %v4613 = vmul.f32 %v4036, %v4549
        %v4614 = vpack.c.bf16 %v4554, %v4550
        %v4615 = vpack.c.bf16 %v4555, %v4551
        %v4616 = vpack.c.bf16 %v4556, %v4552
        %v4617 = vpack.c.bf16 %v4557, %v4553
        %v4618 = vpack.c.bf16 %v4562, %v4558
        %v4619 = vpack.c.bf16 %v4563, %v4559
        %v4620 = vpack.c.bf16 %v4564, %v4560
        %v4621 = vpack.c.bf16 %v4565, %v4561
        %v4622 = vpack.c.bf16 %v4570, %v4566
        %v4623 = vpack.c.bf16 %v4571, %v4567
        %v4624 = vpack.c.bf16 %v4572, %v4568
        %v4625 = vpack.c.bf16 %v4573, %v4569
        %v4626 = vpack.c.bf16 %v4578, %v4574
        %v4627 = vpack.c.bf16 %v4579, %v4575
        %v4628 = vpack.c.bf16 %v4580, %v4576
        %v4629 = vpack.c.bf16 %v4581, %v4577
        %v4630 = vpack.c.bf16 %v4586, %v4582
        %v4631 = vpack.c.bf16 %v4587, %v4583
        %v4632 = vpack.c.bf16 %v4588, %v4584
        %v4633 = vpack.c.bf16 %v4589, %v4585
        %v4634 = vpack.c.bf16 %v4594, %v4590
        %v4635 = vpack.c.bf16 %v4595, %v4591
        %v4636 = vpack.c.bf16 %v4596, %v4592
        %v4637 = vpack.c.bf16 %v4597, %v4593
        %v4638 = vpack.c.bf16 %v4602, %v4598
        %v4639 = vpack.c.bf16 %v4603, %v4599
        %v4640 = vpack.c.bf16 %v4604, %v4600
        %v4641 = vpack.c.bf16 %v4605, %v4601
        %v4642 = vpack.c.bf16 %v4610, %v4606
        %v4643 = vpack.c.bf16 %v4611, %v4607
        %v4644 = vpack.c.bf16 %v4612, %v4608
        %v4645 = vpack.c.bf16 %v4613, %v4609
        %v4646 = vld [vmem:[%s11] sm:$0xff]
        %v4647 = vld [vmem:[%s11 + $0x8] sm:$0xff]
        %v4648 = vld [vmem:[%s11 + $0x10] sm:$0xff]
        %v4649 = vld [vmem:[%s11 + $0x18] sm:$0xff]
        %v4650 = vld [vmem:[%s11 + $0x20] sm:$0xff]
        %v4651 = vld [vmem:[%s11 + $0x28] sm:$0xff]
        %v4652 = vld [vmem:[%s11 + $0x30] sm:$0xff]
        %v4653 = vld [vmem:[%s11 + $0x38] sm:$0xff]
        %v4654 = vld [vmem:[%s11 + $0x40] sm:$0xff]
        %v4655 = vld [vmem:[%s11 + $0x48] sm:$0xff]
        %v4656 = vld [vmem:[%s11 + $0x50] sm:$0xff]
        %v4657 = vld [vmem:[%s11 + $0x58] sm:$0xff]
        %v4658 = vld [vmem:[%s11 + $0x60] sm:$0xff]
        %v4659 = vld [vmem:[%s11 + $0x68] sm:$0xff]
        %v4660 = vld [vmem:[%s11 + $0x70] sm:$0xff]
        %v4661 = vld [vmem:[%s11 + $0x78] sm:$0xff]
        %v4662 = vld [vmem:[%s11 + $0x80] sm:$0xff]
        %v4663 = vld [vmem:[%s11 + $0x88] sm:$0xff]
        %v4664 = vld [vmem:[%s11 + $0x90] sm:$0xff]
        %v4665 = vld [vmem:[%s11 + $0x98] sm:$0xff]
        %v4666 = vld [vmem:[%s11 + $0xa0] sm:$0xff]
        %v4667 = vld [vmem:[%s11 + $0xa8] sm:$0xff]
        %v4668 = vld [vmem:[%s11 + $0xb0] sm:$0xff]
        %v4669 = vld [vmem:[%s11 + $0xb8] sm:$0xff]
        %v4670 = vld [vmem:[%s11 + $0xc0] sm:$0xff]
        %v4671 = vld [vmem:[%s11 + $0xc8] sm:$0xff]
        %v4672 = vld [vmem:[%s11 + $0xd0] sm:$0xff]
        %v4673 = vld [vmem:[%s11 + $0xd8] sm:$0xff]
        %v4674 = vld [vmem:[%s11 + $0xe0] sm:$0xff]
        %v4675 = vld [vmem:[%s11 + $0xe8] sm:$0xff]
        %v4676 = vld [vmem:[%s11 + $0xf0] sm:$0xff]
        %v4677 = vld [vmem:[%s11 + $0xf8] sm:$0xff]
        %v4678 = vld [vmem:[%s11 + $0x100] sm:$0xff]
        %v4679 = vld [vmem:[%s11 + $0x108] sm:$0xff]
        %v4680 = vld [vmem:[%s11 + $0x110] sm:$0xff]
        %v4681 = vld [vmem:[%s11 + $0x118] sm:$0xff]
        %v4682 = vld [vmem:[%s11 + $0x120] sm:$0xff]
        %v4683 = vld [vmem:[%s11 + $0x128] sm:$0xff]
        %v4684 = vld [vmem:[%s11 + $0x130] sm:$0xff]
        %v4685 = vld [vmem:[%s11 + $0x138] sm:$0xff]
        %v4686 = vld [vmem:[%s11 + $0x140] sm:$0xff]
        %v4687 = vld [vmem:[%s11 + $0x148] sm:$0xff]
        %v4688 = vld [vmem:[%s11 + $0x150] sm:$0xff]
        %v4689 = vld [vmem:[%s11 + $0x158] sm:$0xff]
        %v4690 = vld [vmem:[%s11 + $0x160] sm:$0xff]
        %v4691 = vld [vmem:[%s11 + $0x168] sm:$0xff]
        %v4692 = vld [vmem:[%s11 + $0x170] sm:$0xff]
        %v4693 = vld [vmem:[%s11 + $0x178] sm:$0xff]
        %v4694 = vld [vmem:[%s11 + $0x180] sm:$0xff]
        %v4695 = vld [vmem:[%s11 + $0x188] sm:$0xff]
        %v4696 = vld [vmem:[%s11 + $0x190] sm:$0xff]
        %v4697 = vld [vmem:[%s11 + $0x198] sm:$0xff]
        %v4698 = vld [vmem:[%s11 + $0x1a0] sm:$0xff]
        %v4699 = vld [vmem:[%s11 + $0x1a8] sm:$0xff]
        %v4700 = vld [vmem:[%s11 + $0x1b0] sm:$0xff]
        %v4701 = vld [vmem:[%s11 + $0x1b8] sm:$0xff]
        %v4702 = vld [vmem:[%s11 + $0x1c0] sm:$0xff]
        %v4703 = vld [vmem:[%s11 + $0x1c8] sm:$0xff]
        %v4704 = vld [vmem:[%s11 + $0x1d0] sm:$0xff]
        %v4705 = vld [vmem:[%s11 + $0x1d8] sm:$0xff]
        %v4706 = vld [vmem:[%s11 + $0x1e0] sm:$0xff]
        %v4707 = vld [vmem:[%s11 + $0x1e8] sm:$0xff]
        %v4708 = vld [vmem:[%s11 + $0x1f0] sm:$0xff]
        %v4709 = vld [vmem:[%s11 + $0x1f8] sm:$0xff]
        %v4710 = vld [vmem:[%s12] sm:$0x3]
        %v4712 = vlaneseq
        %v4713 = vshrl.u32 %v4712, 7
        %v4714 = vsub.s32 0, %v4713
        %v4715 = vrot.slane %v4710, %v4714
        %v4716 = vlaneseq
        %v4717 = vshrl.u32 %v4716, 7
        %v4718 = vsub.s32 1, %v4717
        %v4719 = vrot.slane %v4710, %v4718
        %v4786 = vunpack.c.l.b16 %v4646
        %v4787 = vunpack.c.h.b16 %v4646
        %v4788 = vunpack.c.l.b16 %v4647
        %v4789 = vunpack.c.h.b16 %v4647
        %v4790 = vunpack.c.l.b16 %v4648
        %v4791 = vunpack.c.h.b16 %v4648
        %v4792 = vunpack.c.l.b16 %v4649
        %v4793 = vunpack.c.h.b16 %v4649
        %v4794 = vunpack.c.l.b16 %v4650
        %v4795 = vunpack.c.h.b16 %v4650
        %v4796 = vunpack.c.l.b16 %v4651
        %v4797 = vunpack.c.h.b16 %v4651
        %v4798 = vunpack.c.l.b16 %v4652
        %v4799 = vunpack.c.h.b16 %v4652
        %v4800 = vunpack.c.l.b16 %v4653
        %v4801 = vunpack.c.h.b16 %v4653
        %v4802 = vunpack.c.l.b16 %v4654
        %v4803 = vunpack.c.h.b16 %v4654
        %v4804 = vunpack.c.l.b16 %v4655
        %v4805 = vunpack.c.h.b16 %v4655
        %v4806 = vunpack.c.l.b16 %v4656
        %v4807 = vunpack.c.h.b16 %v4656
        %v4808 = vunpack.c.l.b16 %v4657
        %v4809 = vunpack.c.h.b16 %v4657
        %v4810 = vunpack.c.l.b16 %v4658
        %v4811 = vunpack.c.h.b16 %v4658
        %v4812 = vunpack.c.l.b16 %v4659
        %v4813 = vunpack.c.h.b16 %v4659
        %v4814 = vunpack.c.l.b16 %v4660
        %v4815 = vunpack.c.h.b16 %v4660
        %v4816 = vunpack.c.l.b16 %v4661
        %v4817 = vunpack.c.h.b16 %v4661
        %v4818 = vunpack.c.l.b16 %v4662
        %v4819 = vunpack.c.h.b16 %v4662
        %v4820 = vunpack.c.l.b16 %v4663
        %v4821 = vunpack.c.h.b16 %v4663
        %v4822 = vunpack.c.l.b16 %v4664
        %v4823 = vunpack.c.h.b16 %v4664
        %v4824 = vunpack.c.l.b16 %v4665
        %v4825 = vunpack.c.h.b16 %v4665
        %v4826 = vunpack.c.l.b16 %v4666
        %v4827 = vunpack.c.h.b16 %v4666
        %v4828 = vunpack.c.l.b16 %v4667
        %v4829 = vunpack.c.h.b16 %v4667
        %v4830 = vunpack.c.l.b16 %v4668
        %v4831 = vunpack.c.h.b16 %v4668
        %v4832 = vunpack.c.l.b16 %v4669
        %v4833 = vunpack.c.h.b16 %v4669
        %v4834 = vunpack.c.l.b16 %v4670
        %v4835 = vunpack.c.h.b16 %v4670
        %v4836 = vunpack.c.l.b16 %v4671
        %v4837 = vunpack.c.h.b16 %v4671
        %v4838 = vunpack.c.l.b16 %v4672
        %v4839 = vunpack.c.h.b16 %v4672
        %v4840 = vunpack.c.l.b16 %v4673
        %v4841 = vunpack.c.h.b16 %v4673
        %v4842 = vunpack.c.l.b16 %v4674
        %v4843 = vunpack.c.h.b16 %v4674
        %v4844 = vunpack.c.l.b16 %v4675
        %v4845 = vunpack.c.h.b16 %v4675
        %v4846 = vunpack.c.l.b16 %v4676
        %v4847 = vunpack.c.h.b16 %v4676
        %v4848 = vunpack.c.l.b16 %v4677
        %v4849 = vunpack.c.h.b16 %v4677
        %v4850 = vunpack.c.l.b16 %v4678
        %v4851 = vunpack.c.h.b16 %v4678
        %v4852 = vunpack.c.l.b16 %v4679
        %v4853 = vunpack.c.h.b16 %v4679
        %v4854 = vunpack.c.l.b16 %v4680
        %v4855 = vunpack.c.h.b16 %v4680
        %v4856 = vunpack.c.l.b16 %v4681
        %v4857 = vunpack.c.h.b16 %v4681
        %v4858 = vunpack.c.l.b16 %v4682
        %v4859 = vunpack.c.h.b16 %v4682
        %v4860 = vunpack.c.l.b16 %v4683
        %v4861 = vunpack.c.h.b16 %v4683
        %v4862 = vunpack.c.l.b16 %v4684
        %v4863 = vunpack.c.h.b16 %v4684
        %v4864 = vunpack.c.l.b16 %v4685
        %v4865 = vunpack.c.h.b16 %v4685
        %v4866 = vunpack.c.l.b16 %v4686
        %v4867 = vunpack.c.h.b16 %v4686
        %v4868 = vunpack.c.l.b16 %v4687
        %v4869 = vunpack.c.h.b16 %v4687
        %v4870 = vunpack.c.l.b16 %v4688
        %v4871 = vunpack.c.h.b16 %v4688
        %v4872 = vunpack.c.l.b16 %v4689
        %v4873 = vunpack.c.h.b16 %v4689
        %v4874 = vunpack.c.l.b16 %v4690
        %v4875 = vunpack.c.h.b16 %v4690
        %v4876 = vunpack.c.l.b16 %v4691
        %v4877 = vunpack.c.h.b16 %v4691
        %v4878 = vunpack.c.l.b16 %v4692
        %v4879 = vunpack.c.h.b16 %v4692
        %v4880 = vunpack.c.l.b16 %v4693
        %v4881 = vunpack.c.h.b16 %v4693
        %v4882 = vunpack.c.l.b16 %v4694
        %v4883 = vunpack.c.h.b16 %v4694
        %v4884 = vunpack.c.l.b16 %v4695
        %v4885 = vunpack.c.h.b16 %v4695
        %v4886 = vunpack.c.l.b16 %v4696
        %v4887 = vunpack.c.h.b16 %v4696
        %v4888 = vunpack.c.l.b16 %v4697
        %v4889 = vunpack.c.h.b16 %v4697
        %v4890 = vunpack.c.l.b16 %v4698
        %v4891 = vunpack.c.h.b16 %v4698
        %v4892 = vunpack.c.l.b16 %v4699
        %v4893 = vunpack.c.h.b16 %v4699
        %v4894 = vunpack.c.l.b16 %v4700
        %v4895 = vunpack.c.h.b16 %v4700
        %v4896 = vunpack.c.l.b16 %v4701
        %v4897 = vunpack.c.h.b16 %v4701
        %v4898 = vunpack.c.l.b16 %v4702
        %v4899 = vunpack.c.h.b16 %v4702
        %v4900 = vunpack.c.l.b16 %v4703
        %v4901 = vunpack.c.h.b16 %v4703
        %v4902 = vunpack.c.l.b16 %v4704
        %v4903 = vunpack.c.h.b16 %v4704
        %v4904 = vunpack.c.l.b16 %v4705
        %v4905 = vunpack.c.h.b16 %v4705
        %v4906 = vunpack.c.l.b16 %v4706
        %v4907 = vunpack.c.h.b16 %v4706
        %v4908 = vunpack.c.l.b16 %v4707
        %v4909 = vunpack.c.h.b16 %v4707
        %v4910 = vunpack.c.l.b16 %v4708
        %v4911 = vunpack.c.h.b16 %v4708
        %v4912 = vunpack.c.l.b16 %v4709
        %v4913 = vunpack.c.h.b16 %v4709
        %v4914 = vpack.c.b16 %v4788, %v4786
        %v4915 = vpack.c.b16 %v4789, %v4787
        %v4916 = vpack.c.b16 %v4792, %v4790
        %v4917 = vpack.c.b16 %v4793, %v4791
        %v4918 = vpack.c.b16 %v4796, %v4794
        %v4919 = vpack.c.b16 %v4797, %v4795
        %v4920 = vpack.c.b16 %v4800, %v4798
        %v4921 = vpack.c.b16 %v4801, %v4799
        %v4922 = vpack.c.b16 %v4804, %v4802
        %v4923 = vpack.c.b16 %v4805, %v4803
        %v4924 = vpack.c.b16 %v4808, %v4806
        %v4925 = vpack.c.b16 %v4809, %v4807
        %v4926 = vpack.c.b16 %v4812, %v4810
        %v4927 = vpack.c.b16 %v4813, %v4811
        %v4928 = vpack.c.b16 %v4816, %v4814
        %v4929 = vpack.c.b16 %v4817, %v4815
        %v4930 = vpack.c.b16 %v4820, %v4818
        %v4931 = vpack.c.b16 %v4821, %v4819
        %v4932 = vpack.c.b16 %v4824, %v4822
        %v4933 = vpack.c.b16 %v4825, %v4823
        %v4934 = vpack.c.b16 %v4828, %v4826
        %v4935 = vpack.c.b16 %v4829, %v4827
        %v4936 = vpack.c.b16 %v4832, %v4830
        %v4937 = vpack.c.b16 %v4833, %v4831
        %v4938 = vpack.c.b16 %v4836, %v4834
        %v4939 = vpack.c.b16 %v4837, %v4835
        %v4940 = vpack.c.b16 %v4840, %v4838
        %v4941 = vpack.c.b16 %v4841, %v4839
        %v4942 = vpack.c.b16 %v4844, %v4842
        %v4943 = vpack.c.b16 %v4845, %v4843
        %v4944 = vpack.c.b16 %v4848, %v4846
        %v4945 = vpack.c.b16 %v4849, %v4847
        %v4946 = vpack.c.b16 %v4852, %v4850
        %v4947 = vpack.c.b16 %v4853, %v4851
        %v4948 = vpack.c.b16 %v4856, %v4854
        %v4949 = vpack.c.b16 %v4857, %v4855
        %v4950 = vpack.c.b16 %v4860, %v4858
        %v4951 = vpack.c.b16 %v4861, %v4859
        %v4952 = vpack.c.b16 %v4864, %v4862
        %v4953 = vpack.c.b16 %v4865, %v4863
        %v4954 = vpack.c.b16 %v4868, %v4866
        %v4955 = vpack.c.b16 %v4869, %v4867
        %v4956 = vpack.c.b16 %v4872, %v4870
        %v4957 = vpack.c.b16 %v4873, %v4871
        %v4958 = vpack.c.b16 %v4876, %v4874
        %v4959 = vpack.c.b16 %v4877, %v4875
        %v4960 = vpack.c.b16 %v4880, %v4878
        %v4961 = vpack.c.b16 %v4881, %v4879
        %v4962 = vpack.c.b16 %v4884, %v4882
        %v4963 = vpack.c.b16 %v4885, %v4883
        %v4964 = vpack.c.b16 %v4888, %v4886
        %v4965 = vpack.c.b16 %v4889, %v4887
        %v4966 = vpack.c.b16 %v4892, %v4890
        %v4967 = vpack.c.b16 %v4893, %v4891
        %v4968 = vpack.c.b16 %v4896, %v4894
        %v4969 = vpack.c.b16 %v4897, %v4895
        %v4970 = vpack.c.b16 %v4900, %v4898
        %v4971 = vpack.c.b16 %v4901, %v4899
        %v4972 = vpack.c.b16 %v4904, %v4902
        %v4973 = vpack.c.b16 %v4905, %v4903
        %v4974 = vpack.c.b16 %v4908, %v4906
        %v4975 = vpack.c.b16 %v4909, %v4907
        %v4976 = vpack.c.b16 %v4912, %v4910
        %v4977 = vpack.c.b16 %v4913, %v4911
        %5042 = vmatprep.subr.bf16.mxu0 %v4915
        %5043 = vmatpush1.bf16.msra.mxu0 %v4914
        %5044 = vmatprep.subr.bf16.mxu0 %v4917
        %5045 = vmatpush1.bf16.msra.mxu0 %v4916
        %5046 = vmatprep.subr.bf16.mxu0 %v4919
        %5047 = vmatpush1.bf16.msra.mxu0 %v4918
        %5048 = vmatprep.subr.bf16.mxu0 %v4921
        %5049 = vmatpush1.bf16.msra.mxu0 %v4920
        %5050 = vmatprep.subr.bf16.mxu0 %v4923
        %5051 = vmatpush1.bf16.msra.mxu0 %v4922
        %5052 = vmatprep.subr.bf16.mxu0 %v4925
        %5053 = vmatpush1.bf16.msra.mxu0 %v4924
        %5054 = vmatprep.subr.bf16.mxu0 %v4927
        %5055 = vmatpush1.bf16.msra.mxu0 %v4926
        %5056 = vmatprep.subr.bf16.mxu0 %v4929
        %5057 = vmatpush1.bf16.msra.mxu0 %v4928
        %5058 = vmatprep.subr.bf16.mxu0 %v4931
        %5059 = vmatpush1.bf16.msra.mxu0 %v4930
        %5060 = vmatprep.subr.bf16.mxu0 %v4933
        %5061 = vmatpush1.bf16.msra.mxu0 %v4932
        %5062 = vmatprep.subr.bf16.mxu0 %v4935
        %5063 = vmatpush1.bf16.msra.mxu0 %v4934
        %5064 = vmatprep.subr.bf16.mxu0 %v4937
        %5065 = vmatpush1.bf16.msra.mxu0 %v4936
        %5066 = vmatprep.subr.bf16.mxu0 %v4939
        %5067 = vmatpush1.bf16.msra.mxu0 %v4938
        %5068 = vmatprep.subr.bf16.mxu0 %v4941
        %5069 = vmatpush1.bf16.msra.mxu0 %v4940
        %5070 = vmatprep.subr.bf16.mxu0 %v4943
        %5071 = vmatpush1.bf16.msra.mxu0 %v4942
        %5072 = vmatprep.subr.bf16.mxu0 %v4945
        %5073 = vmatpush1.bf16.msra.mxu0 %v4944
        %5074 = vmatprep.mubr.bf16.mxu0 %v4615
        %5075 = vmatmul.mubr.bf16.gmra.mrb[0].mxu0 %v4614
        %v5076 = vpop.f32.mrb[0].mxu0
        %v5077 = vadd.f32 %v4715, %v5076
        %v5078 = vpop.f32.mrb[0].mxu0
        %v5079 = vadd.f32 %v4719, %v5078
        %v5080 = vpop.f32.mrb[0].mxu0
        %v5081 = vadd.f32 %v4715, %v5080
        %v5082 = vpop.f32.mrb[0].mxu0
        %v5083 = vadd.f32 %v4719, %v5082
        %5084 = vmatprep.mubr.bf16.mxu0 %v4619
        %5085 = vmatmul.mubr.bf16.gmra.mrb[0].mxu0 %v4618
        %v5086 = vpop.f32.mrb[0].mxu0
        %v5087 = vadd.f32 %v4715, %v5086
        %v5088 = vpop.f32.mrb[0].mxu0
        %v5089 = vadd.f32 %v4719, %v5088
        %v5090 = vpop.f32.mrb[0].mxu0
        %v5091 = vadd.f32 %v4715, %v5090
        %v5092 = vpop.f32.mrb[0].mxu0
        %v5093 = vadd.f32 %v4719, %v5092
        %5094 = vmatprep.mubr.bf16.mxu0 %v4623
        %5095 = vmatmul.mubr.bf16.gmra.mrb[0].mxu0 %v4622
        %v5096 = vpop.f32.mrb[0].mxu0
        %v5097 = vadd.f32 %v4715, %v5096
        %v5098 = vpop.f32.mrb[0].mxu0
        %v5099 = vadd.f32 %v4719, %v5098
        %v5100 = vpop.f32.mrb[0].mxu0
        %v5101 = vadd.f32 %v4715, %v5100
        %v5102 = vpop.f32.mrb[0].mxu0
        %v5103 = vadd.f32 %v4719, %v5102
        %5104 = vmatprep.mubr.bf16.mxu0 %v4627
        %5105 = vmatmul.mubr.bf16.gmra.mrb[0].mxu0 %v4626
        %v5106 = vpop.f32.mrb[0].mxu0
        %v5107 = vadd.f32 %v4715, %v5106
        %v5108 = vpop.f32.mrb[0].mxu0
        %v5109 = vadd.f32 %v4719, %v5108
        %v5110 = vpop.f32.mrb[0].mxu0
        %v5111 = vadd.f32 %v4715, %v5110
        %v5112 = vpop.f32.mrb[0].mxu0
        %v5113 = vadd.f32 %v4719, %v5112
        %5114 = vmatprep.mubr.bf16.mxu0 %v4631
        %5115 = vmatmul.mubr.bf16.gmra.mrb[0].mxu0 %v4630
        %v5116 = vpop.f32.mrb[0].mxu0
        %v5117 = vadd.f32 %v4715, %v5116
        %v5118 = vpop.f32.mrb[0].mxu0
        %v5119 = vadd.f32 %v4719, %v5118
        %v5120 = vpop.f32.mrb[0].mxu0
        %v5121 = vadd.f32 %v4715, %v5120
        %v5122 = vpop.f32.mrb[0].mxu0
        %v5123 = vadd.f32 %v4719, %v5122
        %5124 = vmatprep.mubr.bf16.mxu0 %v4635
        %5125 = vmatmul.mubr.bf16.gmra.mrb[0].mxu0 %v4634
        %v5126 = vpop.f32.mrb[0].mxu0
        %v5127 = vadd.f32 %v4715, %v5126
        %v5128 = vpop.f32.mrb[0].mxu0
        %v5129 = vadd.f32 %v4719, %v5128
        %v5130 = vpop.f32.mrb[0].mxu0
        %v5131 = vadd.f32 %v4715, %v5130
        %v5132 = vpop.f32.mrb[0].mxu0
        %v5133 = vadd.f32 %v4719, %v5132
        %5134 = vmatprep.mubr.bf16.mxu0 %v4639
        %5135 = vmatmul.mubr.bf16.gmra.mrb[0].mxu0 %v4638
        %v5136 = vpop.f32.mrb[0].mxu0
        %v5137 = vadd.f32 %v4715, %v5136
        %v5138 = vpop.f32.mrb[0].mxu0
        %v5139 = vadd.f32 %v4719, %v5138
        %v5140 = vpop.f32.mrb[0].mxu0
        %v5141 = vadd.f32 %v4715, %v5140
        %v5142 = vpop.f32.mrb[0].mxu0
        %v5143 = vadd.f32 %v4719, %v5142
        %5144 = vmatprep.mubr.bf16.mxu0 %v4643
        %5145 = vmatmul.mubr.bf16.gmra.mrb[0].mxu0 %v4642
        %v5146 = vpop.f32.mrb[0].mxu0
        %v5147 = vadd.f32 %v4715, %v5146
        %v5148 = vpop.f32.mrb[0].mxu0
        %v5149 = vadd.f32 %v4719, %v5148
        %v5150 = vpop.f32.mrb[0].mxu0
        %v5151 = vadd.f32 %v4715, %v5150
        %v5152 = vpop.f32.mrb[0].mxu0
        %v5153 = vadd.f32 %v4719, %v5152
        %5154 = vdwg.mxu0
        %5155 = vmatprep.subr.bf16.mxu0 %v4947
        %5156 = vmatpush1.bf16.msra.mxu0 %v4946
        %5157 = vmatprep.subr.bf16.mxu0 %v4949
        %5158 = vmatpush1.bf16.msra.mxu0 %v4948
        %5159 = vmatprep.subr.bf16.mxu0 %v4951
        %5160 = vmatpush1.bf16.msra.mxu0 %v4950
        %5161 = vmatprep.subr.bf16.mxu0 %v4953
        %5162 = vmatpush1.bf16.msra.mxu0 %v4952
        %5163 = vmatprep.subr.bf16.mxu0 %v4955
        %5164 = vmatpush1.bf16.msra.mxu0 %v4954
        %5165 = vmatprep.subr.bf16.mxu0 %v4957
        %5166 = vmatpush1.bf16.msra.mxu0 %v4956
        %5167 = vmatprep.subr.bf16.mxu0 %v4959
        %5168 = vmatpush1.bf16.msra.mxu0 %v4958
        %5169 = vmatprep.subr.bf16.mxu0 %v4961
        %5170 = vmatpush1.bf16.msra.mxu0 %v4960
        %5171 = vmatprep.subr.bf16.mxu0 %v4963
        %5172 = vmatpush1.bf16.msra.mxu0 %v4962
        %5173 = vmatprep.subr.bf16.mxu0 %v4965
        %5174 = vmatpush1.bf16.msra.mxu0 %v4964
        %5175 = vmatprep.subr.bf16.mxu0 %v4967
        %5176 = vmatpush1.bf16.msra.mxu0 %v4966
        %5177 = vmatprep.subr.bf16.mxu0 %v4969
        %5178 = vmatpush1.bf16.msra.mxu0 %v4968
        %5179 = vmatprep.subr.bf16.mxu0 %v4971
        %5180 = vmatpush1.bf16.msra.mxu0 %v4970
        %5181 = vmatprep.subr.bf16.mxu0 %v4973
        %5182 = vmatpush1.bf16.msra.mxu0 %v4972
        %5183 = vmatprep.subr.bf16.mxu0 %v4975
        %5184 = vmatpush1.bf16.msra.mxu0 %v4974
        %5185 = vmatprep.subr.bf16.mxu0 %v4977
        %5186 = vmatpush1.bf16.msra.mxu0 %v4976
        %5187 = vmatprep.mubr.bf16.mxu0 %v4617
        %5188 = vmatmul.mubr.bf16.gmra.mrb[0].mxu0 %v4616
        %v5189 = vpop.f32.mrb[0].mxu0
        %v5190 = vadd.f32 %v5077, %v5189
        %v5191 = vpop.f32.mrb[0].mxu0
        %v5192 = vadd.f32 %v5079, %v5191
        %v5193 = vpop.f32.mrb[0].mxu0
        %v5194 = vadd.f32 %v5081, %v5193
        %v5195 = vpop.f32.mrb[0].mxu0
        %v5196 = vadd.f32 %v5083, %v5195
        %5197 = vmatprep.mubr.bf16.mxu0 %v4621
        %5198 = vmatmul.mubr.bf16.gmra.mrb[0].mxu0 %v4620
        %v5199 = vpop.f32.mrb[0].mxu0
        %v5200 = vadd.f32 %v5087, %v5199
        %v5201 = vpop.f32.mrb[0].mxu0
        %v5202 = vadd.f32 %v5089, %v5201
        %v5203 = vpop.f32.mrb[0].mxu0
        %v5204 = vadd.f32 %v5091, %v5203
        %v5205 = vpop.f32.mrb[0].mxu0
        %v5206 = vadd.f32 %v5093, %v5205
        %5207 = vmatprep.mubr.bf16.mxu0 %v4625
        %5208 = vmatmul.mubr.bf16.gmra.mrb[0].mxu0 %v4624
        %v5209 = vpop.f32.mrb[0].mxu0
        %v5210 = vadd.f32 %v5097, %v5209
        %v5211 = vpop.f32.mrb[0].mxu0
        %v5212 = vadd.f32 %v5099, %v5211
        %v5213 = vpop.f32.mrb[0].mxu0
        %v5214 = vadd.f32 %v5101, %v5213
        %v5215 = vpop.f32.mrb[0].mxu0
        %v5216 = vadd.f32 %v5103, %v5215
        %5217 = vmatprep.mubr.bf16.mxu0 %v4629
        %5218 = vmatmul.mubr.bf16.gmra.mrb[0].mxu0 %v4628
        %v5219 = vpop.f32.mrb[0].mxu0
        %v5220 = vadd.f32 %v5107, %v5219
        %v5221 = vpop.f32.mrb[0].mxu0
        %v5222 = vadd.f32 %v5109, %v5221
        %v5223 = vpop.f32.mrb[0].mxu0
        %v5224 = vadd.f32 %v5111, %v5223
        %v5225 = vpop.f32.mrb[0].mxu0
        %v5226 = vadd.f32 %v5113, %v5225
        %5227 = vmatprep.mubr.bf16.mxu0 %v4633
        %5228 = vmatmul.mubr.bf16.gmra.mrb[0].mxu0 %v4632
        %v5229 = vpop.f32.mrb[0].mxu0
        %v5230 = vadd.f32 %v5117, %v5229
        %v5231 = vpop.f32.mrb[0].mxu0
        %v5232 = vadd.f32 %v5119, %v5231
        %v5233 = vpop.f32.mrb[0].mxu0
        %v5234 = vadd.f32 %v5121, %v5233
        %v5235 = vpop.f32.mrb[0].mxu0
        %v5236 = vadd.f32 %v5123, %v5235
        %5237 = vmatprep.mubr.bf16.mxu0 %v4637
        %5238 = vmatmul.mubr.bf16.gmra.mrb[0].mxu0 %v4636
        %v5239 = vpop.f32.mrb[0].mxu0
        %v5240 = vadd.f32 %v5127, %v5239
        %v5241 = vpop.f32.mrb[0].mxu0
        %v5242 = vadd.f32 %v5129, %v5241
        %v5243 = vpop.f32.mrb[0].mxu0
        %v5244 = vadd.f32 %v5131, %v5243
        %v5245 = vpop.f32.mrb[0].mxu0
        %v5246 = vadd.f32 %v5133, %v5245
        %5247 = vmatprep.mubr.bf16.mxu0 %v4641
        %5248 = vmatmul.mubr.bf16.gmra.mrb[0].mxu0 %v4640
        %v5249 = vpop.f32.mrb[0].mxu0
        %v5250 = vadd.f32 %v5137, %v5249
        %v5251 = vpop.f32.mrb[0].mxu0
        %v5252 = vadd.f32 %v5139, %v5251
        %v5253 = vpop.f32.mrb[0].mxu0
        %v5254 = vadd.f32 %v5141, %v5253
        %v5255 = vpop.f32.mrb[0].mxu0
        %v5256 = vadd.f32 %v5143, %v5255
        %5257 = vmatprep.mubr.bf16.mxu0 %v4645
        %5258 = vmatmul.mubr.bf16.gmra.mrb[0].mxu0 %v4644
        %v5259 = vpop.f32.mrb[0].mxu0
        %v5260 = vadd.f32 %v5147, %v5259
        %v5261 = vpop.f32.mrb[0].mxu0
        %v5262 = vadd.f32 %v5149, %v5261
        %v5263 = vpop.f32.mrb[0].mxu0
        %v5264 = vadd.f32 %v5151, %v5263
        %v5265 = vpop.f32.mrb[0].mxu0
        %v5266 = vadd.f32 %v5153, %v5265
        %5267 = vdwg.mxu0
        %v5268 = vadd.f32 %v3358, %v5190
        %v5269 = vadd.f32 %v3359, %v5192
        %v5270 = vadd.f32 %v3360, %v5194
        %v5271 = vadd.f32 %v3361, %v5196
        %v5272 = vadd.f32 %v3362, %v5200
        %v5273 = vadd.f32 %v3363, %v5202
        %v5274 = vadd.f32 %v3364, %v5204
        %v5275 = vadd.f32 %v3365, %v5206
        %v5276 = vadd.f32 %v3366, %v5210
        %v5277 = vadd.f32 %v3367, %v5212
        %v5278 = vadd.f32 %v3368, %v5214
        %v5279 = vadd.f32 %v3369, %v5216
        %v5280 = vadd.f32 %v3370, %v5220
        %v5281 = vadd.f32 %v3371, %v5222
        %v5282 = vadd.f32 %v3372, %v5224
        %v5283 = vadd.f32 %v3373, %v5226
        %v5284 = vadd.f32 %v3374, %v5230
        %v5285 = vadd.f32 %v3375, %v5232
        %v5286 = vadd.f32 %v3376, %v5234
        %v5287 = vadd.f32 %v3377, %v5236
        %v5288 = vadd.f32 %v3378, %v5240
        %v5289 = vadd.f32 %v3379, %v5242
        %v5290 = vadd.f32 %v3380, %v5244
        %v5291 = vadd.f32 %v3381, %v5246
        %v5292 = vadd.f32 %v3382, %v5250
        %v5293 = vadd.f32 %v3383, %v5252
        %v5294 = vadd.f32 %v3384, %v5254
        %v5295 = vadd.f32 %v3385, %v5256
        %v5296 = vadd.f32 %v3386, %v5260
        %v5297 = vadd.f32 %v3387, %v5262
        %v5298 = vadd.f32 %v3388, %v5264
        %v5299 = vadd.f32 %v3389, %v5266
        %v5300 = vld [vmem:[%s13] sm:$0x3]
        %v5301 = vld [vmem:[%s14] sm:$0x3]
        %v5302 = vadd.f32 %v5268, %v5269
        %5303 = vadd.xlane.f32.xlu0 %v5302
        %v5304 = vpop.xlane.xlu0 %5303
        %v5305 = vadd.f32 %v5270, %v5271
        %5306 = vadd.xlane.f32.xlu0 %v5305
        %v5307 = vpop.xlane.xlu0 %5306
        %v5308 = vadd.f32 %v5272, %v5273
        %5309 = vadd.xlane.f32.xlu0 %v5308
        %v5310 = vpop.xlane.xlu0 %5309
        %v5311 = vadd.f32 %v5274, %v5275
        %5312 = vadd.xlane.f32.xlu0 %v5311
        %v5313 = vpop.xlane.xlu0 %5312
        %v5314 = vadd.f32 %v5276, %v5277
        %5315 = vadd.xlane.f32.xlu0 %v5314
        %v5316 = vpop.xlane.xlu0 %5315
        %v5317 = vadd.f32 %v5278, %v5279
        %5318 = vadd.xlane.f32.xlu0 %v5317
        %v5319 = vpop.xlane.xlu0 %5318
        %v5320 = vadd.f32 %v5280, %v5281
        %5321 = vadd.xlane.f32.xlu0 %v5320
        %v5322 = vpop.xlane.xlu0 %5321
        %v5323 = vadd.f32 %v5282, %v5283
        %5324 = vadd.xlane.f32.xlu0 %v5323
        %v5325 = vpop.xlane.xlu0 %5324
        %v5326 = vadd.f32 %v5284, %v5285
        %5327 = vadd.xlane.f32.xlu0 %v5326
        %v5328 = vpop.xlane.xlu0 %5327
        %v5329 = vadd.f32 %v5286, %v5287
        %5330 = vadd.xlane.f32.xlu0 %v5329
        %v5331 = vpop.xlane.xlu0 %5330
        %v5332 = vadd.f32 %v5288, %v5289
        %5333 = vadd.xlane.f32.xlu0 %v5332
        %v5334 = vpop.xlane.xlu0 %5333
        %v5335 = vadd.f32 %v5290, %v5291
        %5336 = vadd.xlane.f32.xlu0 %v5335
        %v5337 = vpop.xlane.xlu0 %5336
        %v5338 = vadd.f32 %v5292, %v5293
        %5339 = vadd.xlane.f32.xlu0 %v5338
        %v5340 = vpop.xlane.xlu0 %5339
        %v5341 = vadd.f32 %v5294, %v5295
        %5342 = vadd.xlane.f32.xlu0 %v5341
        %v5343 = vpop.xlane.xlu0 %5342
        %v5344 = vadd.f32 %v5296, %v5297
        %5345 = vadd.xlane.f32.xlu0 %v5344
        %v5346 = vpop.xlane.xlu0 %5345
        %v5347 = vadd.f32 %v5298, %v5299
        %5348 = vadd.xlane.f32.xlu0 %v5347
        %v5349 = vpop.xlane.xlu0 %5348
        %v5350 = vmul.f32 %v5304, %v683
        %v5351 = vmul.f32 %v5307, %v683
        %v5352 = vmul.f32 %v5310, %v683
        %v5353 = vmul.f32 %v5313, %v683
        %v5354 = vmul.f32 %v5316, %v683
        %v5355 = vmul.f32 %v5319, %v683
        %v5356 = vmul.f32 %v5322, %v683
        %v5357 = vmul.f32 %v5325, %v683
        %v5358 = vmul.f32 %v5328, %v683
        %v5359 = vmul.f32 %v5331, %v683
        %v5360 = vmul.f32 %v5334, %v683
        %v5361 = vmul.f32 %v5337, %v683
        %v5362 = vmul.f32 %v5340, %v683
        %v5363 = vmul.f32 %v5343, %v683
        %v5364 = vmul.f32 %v5346, %v683
        %v5365 = vmul.f32 %v5349, %v683
        %v5366 = vsub.f32 %v5268, %v5350
        %v5367 = vsub.f32 %v5269, %v5350
        %v5368 = vsub.f32 %v5270, %v5351
        %v5369 = vsub.f32 %v5271, %v5351
        %v5370 = vsub.f32 %v5272, %v5352
        %v5371 = vsub.f32 %v5273, %v5352
        %v5372 = vsub.f32 %v5274, %v5353
        %v5373 = vsub.f32 %v5275, %v5353
        %v5374 = vsub.f32 %v5276, %v5354
        %v5375 = vsub.f32 %v5277, %v5354
        %v5376 = vsub.f32 %v5278, %v5355
        %v5377 = vsub.f32 %v5279, %v5355
        %v5378 = vsub.f32 %v5280, %v5356
        %v5379 = vsub.f32 %v5281, %v5356
        %v5380 = vsub.f32 %v5282, %v5357
        %v5381 = vsub.f32 %v5283, %v5357
        %v5382 = vsub.f32 %v5284, %v5358
        %v5383 = vsub.f32 %v5285, %v5358
        %v5384 = vsub.f32 %v5286, %v5359
        %v5385 = vsub.f32 %v5287, %v5359
        %v5386 = vsub.f32 %v5288, %v5360
        %v5387 = vsub.f32 %v5289, %v5360
        %v5388 = vsub.f32 %v5290, %v5361
        %v5389 = vsub.f32 %v5291, %v5361
        %v5390 = vsub.f32 %v5292, %v5362
        %v5391 = vsub.f32 %v5293, %v5362
        %v5392 = vsub.f32 %v5294, %v5363
        %v5393 = vsub.f32 %v5295, %v5363
        %v5394 = vsub.f32 %v5296, %v5364
        %v5395 = vsub.f32 %v5297, %v5364
        %v5396 = vsub.f32 %v5298, %v5365
        %v5397 = vsub.f32 %v5299, %v5365
        %v5398 = vmul.f32 %v5366, %v5366
        %v5399 = vmul.f32 %v5367, %v5367
        %v5400 = vmul.f32 %v5368, %v5368
        %v5401 = vmul.f32 %v5369, %v5369
        %v5402 = vmul.f32 %v5370, %v5370
        %v5403 = vmul.f32 %v5371, %v5371
        %v5404 = vmul.f32 %v5372, %v5372
        %v5405 = vmul.f32 %v5373, %v5373
        %v5406 = vmul.f32 %v5374, %v5374
        %v5407 = vmul.f32 %v5375, %v5375
        %v5408 = vmul.f32 %v5376, %v5376
        %v5409 = vmul.f32 %v5377, %v5377
        %v5410 = vmul.f32 %v5378, %v5378
        %v5411 = vmul.f32 %v5379, %v5379
        %v5412 = vmul.f32 %v5380, %v5380
        %v5413 = vmul.f32 %v5381, %v5381
        %v5414 = vmul.f32 %v5382, %v5382
        %v5415 = vmul.f32 %v5383, %v5383
        %v5416 = vmul.f32 %v5384, %v5384
        %v5417 = vmul.f32 %v5385, %v5385
        %v5418 = vmul.f32 %v5386, %v5386
        %v5419 = vmul.f32 %v5387, %v5387
        %v5420 = vmul.f32 %v5388, %v5388
        %v5421 = vmul.f32 %v5389, %v5389
        %v5422 = vmul.f32 %v5390, %v5390
        %v5423 = vmul.f32 %v5391, %v5391
        %v5424 = vmul.f32 %v5392, %v5392
        %v5425 = vmul.f32 %v5393, %v5393
        %v5426 = vmul.f32 %v5394, %v5394
        %v5427 = vmul.f32 %v5395, %v5395
        %v5428 = vmul.f32 %v5396, %v5396
        %v5429 = vmul.f32 %v5397, %v5397
        %v5430 = vadd.f32 %v5398, %v5399
        %5431 = vadd.xlane.f32.xlu0 %v5430
        %v5432 = vpop.xlane.xlu0 %5431
        %v5433 = vadd.f32 %v5400, %v5401
        %5434 = vadd.xlane.f32.xlu0 %v5433
        %v5435 = vpop.xlane.xlu0 %5434
        %v5436 = vadd.f32 %v5402, %v5403
        %5437 = vadd.xlane.f32.xlu0 %v5436
        %v5438 = vpop.xlane.xlu0 %5437
        %v5439 = vadd.f32 %v5404, %v5405
        %5440 = vadd.xlane.f32.xlu0 %v5439
        %v5441 = vpop.xlane.xlu0 %5440
        %v5442 = vadd.f32 %v5406, %v5407
        %5443 = vadd.xlane.f32.xlu0 %v5442
        %v5444 = vpop.xlane.xlu0 %5443
        %v5445 = vadd.f32 %v5408, %v5409
        %5446 = vadd.xlane.f32.xlu0 %v5445
        %v5447 = vpop.xlane.xlu0 %5446
        %v5448 = vadd.f32 %v5410, %v5411
        %5449 = vadd.xlane.f32.xlu0 %v5448
        %v5450 = vpop.xlane.xlu0 %5449
        %v5451 = vadd.f32 %v5412, %v5413
        %5452 = vadd.xlane.f32.xlu0 %v5451
        %v5453 = vpop.xlane.xlu0 %5452
        %v5454 = vadd.f32 %v5414, %v5415
        %5455 = vadd.xlane.f32.xlu0 %v5454
        %v5456 = vpop.xlane.xlu0 %5455
        %v5457 = vadd.f32 %v5416, %v5417
        %5458 = vadd.xlane.f32.xlu0 %v5457
        %v5459 = vpop.xlane.xlu0 %5458
        %v5460 = vadd.f32 %v5418, %v5419
        %5461 = vadd.xlane.f32.xlu0 %v5460
        %v5462 = vpop.xlane.xlu0 %5461
        %v5463 = vadd.f32 %v5420, %v5421
        %5464 = vadd.xlane.f32.xlu0 %v5463
        %v5465 = vpop.xlane.xlu0 %5464
        %v5466 = vadd.f32 %v5422, %v5423
        %5467 = vadd.xlane.f32.xlu0 %v5466
        %v5468 = vpop.xlane.xlu0 %5467
        %v5469 = vadd.f32 %v5424, %v5425
        %5470 = vadd.xlane.f32.xlu0 %v5469
        %v5471 = vpop.xlane.xlu0 %5470
        %v5472 = vadd.f32 %v5426, %v5427
        %5473 = vadd.xlane.f32.xlu0 %v5472
        %v5474 = vpop.xlane.xlu0 %5473
        %v5475 = vadd.f32 %v5428, %v5429
        %5476 = vadd.xlane.f32.xlu0 %v5475
        %v5477 = vpop.xlane.xlu0 %5476
        %v5478 = vmul.f32 %v5432, %v683
        %v5479 = vmul.f32 %v5435, %v683
        %v5480 = vmul.f32 %v5438, %v683
        %v5481 = vmul.f32 %v5441, %v683
        %v5482 = vmul.f32 %v5444, %v683
        %v5483 = vmul.f32 %v5447, %v683
        %v5484 = vmul.f32 %v5450, %v683
        %v5485 = vmul.f32 %v5453, %v683
        %v5486 = vmul.f32 %v5456, %v683
        %v5487 = vmul.f32 %v5459, %v683
        %v5488 = vmul.f32 %v5462, %v683
        %v5489 = vmul.f32 %v5465, %v683
        %v5490 = vmul.f32 %v5468, %v683
        %v5491 = vmul.f32 %v5471, %v683
        %v5492 = vmul.f32 %v5474, %v683
        %v5493 = vmul.f32 %v5477, %v683
        %v5494 = vadd.f32 %v5478, 1e-05
        %v5495 = vadd.f32 %v5479, 1e-05
        %v5496 = vadd.f32 %v5480, 1e-05
        %v5497 = vadd.f32 %v5481, 1e-05
        %v5498 = vadd.f32 %v5482, 1e-05
        %v5499 = vadd.f32 %v5483, 1e-05
        %v5500 = vadd.f32 %v5484, 1e-05
        %v5501 = vadd.f32 %v5485, 1e-05
        %v5502 = vadd.f32 %v5486, 1e-05
        %v5503 = vadd.f32 %v5487, 1e-05
        %v5504 = vadd.f32 %v5488, 1e-05
        %v5505 = vadd.f32 %v5489, 1e-05
        %v5506 = vadd.f32 %v5490, 1e-05
        %v5507 = vadd.f32 %v5491, 1e-05
        %v5508 = vadd.f32 %v5492, 1e-05
        %v5509 = vadd.f32 %v5493, 1e-05
        %v5510 = vrsqrt.pop %v5494
        %v5511 = vrsqrt.pop %v5495
        %v5512 = vrsqrt.pop %v5496
        %v5513 = vrsqrt.pop %v5497
        %v5514 = vrsqrt.pop %v5498
        %v5515 = vrsqrt.pop %v5499
        %v5516 = vrsqrt.pop %v5500
        %v5517 = vrsqrt.pop %v5501
        %v5518 = vrsqrt.pop %v5502
        %v5519 = vrsqrt.pop %v5503
        %v5520 = vrsqrt.pop %v5504
        %v5521 = vrsqrt.pop %v5505
        %v5522 = vrsqrt.pop %v5506
        %v5523 = vrsqrt.pop %v5507
        %v5524 = vrsqrt.pop %v5508
        %v5525 = vrsqrt.pop %v5509
        %v5526 = vmul.f32 %v5366, %v5510
        %v5527 = vmul.f32 %v5367, %v5510
        %v5528 = vmul.f32 %v5368, %v5511
        %v5529 = vmul.f32 %v5369, %v5511
        %v5530 = vmul.f32 %v5370, %v5512
        %v5531 = vmul.f32 %v5371, %v5512
        %v5532 = vmul.f32 %v5372, %v5513
        %v5533 = vmul.f32 %v5373, %v5513
        %v5534 = vmul.f32 %v5374, %v5514
        %v5535 = vmul.f32 %v5375, %v5514
        %v5536 = vmul.f32 %v5376, %v5515
        %v5537 = vmul.f32 %v5377, %v5515
        %v5538 = vmul.f32 %v5378, %v5516
        %v5539 = vmul.f32 %v5379, %v5516
        %v5540 = vmul.f32 %v5380, %v5517
        %v5541 = vmul.f32 %v5381, %v5517
        %v5542 = vmul.f32 %v5382, %v5518
        %v5543 = vmul.f32 %v5383, %v5518
        %v5544 = vmul.f32 %v5384, %v5519
        %v5545 = vmul.f32 %v5385, %v5519
        %v5546 = vmul.f32 %v5386, %v5520
        %v5547 = vmul.f32 %v5387, %v5520
        %v5548 = vmul.f32 %v5388, %v5521
        %v5549 = vmul.f32 %v5389, %v5521
        %v5550 = vmul.f32 %v5390, %v5522
        %v5551 = vmul.f32 %v5391, %v5522
        %v5552 = vmul.f32 %v5392, %v5523
        %v5553 = vmul.f32 %v5393, %v5523
        %v5554 = vmul.f32 %v5394, %v5524
        %v5555 = vmul.f32 %v5395, %v5524
        %v5556 = vmul.f32 %v5396, %v5525
        %v5557 = vmul.f32 %v5397, %v5525
        %v5559 = vlaneseq
        %v5560 = vshrl.u32 %v5559, 7
        %v5561 = vsub.s32 0, %v5560
        %v5562 = vrot.slane %v5300, %v5561
        %v5563 = vlaneseq
        %v5564 = vshrl.u32 %v5563, 7
        %v5565 = vsub.s32 1, %v5564
        %v5566 = vrot.slane %v5300, %v5565
        %v5569 = vmul.f32 %v5526, %v5562
        %v5570 = vmul.f32 %v5527, %v5566
        %v5571 = vmul.f32 %v5528, %v5562
        %v5572 = vmul.f32 %v5529, %v5566
        %v5573 = vmul.f32 %v5530, %v5562
        %v5574 = vmul.f32 %v5531, %v5566
        %v5575 = vmul.f32 %v5532, %v5562
        %v5576 = vmul.f32 %v5533, %v5566
        %v5577 = vmul.f32 %v5534, %v5562
        %v5578 = vmul.f32 %v5535, %v5566
        %v5579 = vmul.f32 %v5536, %v5562
        %v5580 = vmul.f32 %v5537, %v5566
        %v5581 = vmul.f32 %v5538, %v5562
        %v5582 = vmul.f32 %v5539, %v5566
        %v5583 = vmul.f32 %v5540, %v5562
        %v5584 = vmul.f32 %v5541, %v5566
        %v5585 = vmul.f32 %v5542, %v5562
        %v5586 = vmul.f32 %v5543, %v5566
        %v5587 = vmul.f32 %v5544, %v5562
        %v5588 = vmul.f32 %v5545, %v5566
        %v5589 = vmul.f32 %v5546, %v5562
        %v5590 = vmul.f32 %v5547, %v5566
        %v5591 = vmul.f32 %v5548, %v5562
        %v5592 = vmul.f32 %v5549, %v5566
        %v5593 = vmul.f32 %v5550, %v5562
        %v5594 = vmul.f32 %v5551, %v5566
        %v5595 = vmul.f32 %v5552, %v5562
        %v5596 = vmul.f32 %v5553, %v5566
        %v5597 = vmul.f32 %v5554, %v5562
        %v5598 = vmul.f32 %v5555, %v5566
        %v5599 = vmul.f32 %v5556, %v5562
        %v5600 = vmul.f32 %v5557, %v5566
        %v5602 = vlaneseq
        %v5603 = vshrl.u32 %v5602, 7
        %v5604 = vsub.s32 0, %v5603
        %v5605 = vrot.slane %v5301, %v5604
        %v5606 = vlaneseq
        %v5607 = vshrl.u32 %v5606, 7
        %v5608 = vsub.s32 1, %v5607
        %v5609 = vrot.slane %v5301, %v5608
        %v5612 = vadd.f32 %v5569, %v5605
        %v5613 = vadd.f32 %v5570, %v5609
        %v5614 = vadd.f32 %v5571, %v5605
        %v5615 = vadd.f32 %v5572, %v5609
        %v5616 = vadd.f32 %v5573, %v5605
        %v5617 = vadd.f32 %v5574, %v5609
        %v5618 = vadd.f32 %v5575, %v5605
        %v5619 = vadd.f32 %v5576, %v5609
        %v5620 = vadd.f32 %v5577, %v5605
        %v5621 = vadd.f32 %v5578, %v5609
        %v5622 = vadd.f32 %v5579, %v5605
        %v5623 = vadd.f32 %v5580, %v5609
        %v5624 = vadd.f32 %v5581, %v5605
        %v5625 = vadd.f32 %v5582, %v5609
        %v5626 = vadd.f32 %v5583, %v5605
        %v5627 = vadd.f32 %v5584, %v5609
        %v5628 = vadd.f32 %v5585, %v5605
        %v5629 = vadd.f32 %v5586, %v5609
        %v5630 = vadd.f32 %v5587, %v5605
        %v5631 = vadd.f32 %v5588, %v5609
        %v5632 = vadd.f32 %v5589, %v5605
        %v5633 = vadd.f32 %v5590, %v5609
        %v5634 = vadd.f32 %v5591, %v5605
        %v5635 = vadd.f32 %v5592, %v5609
        %v5636 = vadd.f32 %v5593, %v5605
        %v5637 = vadd.f32 %v5594, %v5609
        %v5638 = vadd.f32 %v5595, %v5605
        %v5639 = vadd.f32 %v5596, %v5609
        %v5640 = vadd.f32 %v5597, %v5605
        %v5641 = vadd.f32 %v5598, %v5609
        %v5642 = vadd.f32 %v5599, %v5605
        %v5643 = vadd.f32 %v5600, %v5609
        %v5644 = vpack.c.bf16 %v5614, %v5612
        %v5645 = vpack.c.bf16 %v5615, %v5613
        %v5646 = vpack.c.bf16 %v5618, %v5616
        %v5647 = vpack.c.bf16 %v5619, %v5617
        %v5648 = vpack.c.bf16 %v5622, %v5620
        %v5649 = vpack.c.bf16 %v5623, %v5621
        %v5650 = vpack.c.bf16 %v5626, %v5624
        %v5651 = vpack.c.bf16 %v5627, %v5625
        %v5652 = vpack.c.bf16 %v5630, %v5628
        %v5653 = vpack.c.bf16 %v5631, %v5629
        %v5654 = vpack.c.bf16 %v5634, %v5632
        %v5655 = vpack.c.bf16 %v5635, %v5633
        %v5656 = vpack.c.bf16 %v5638, %v5636
        %v5657 = vpack.c.bf16 %v5639, %v5637
        %v5658 = vpack.c.bf16 %v5642, %v5640
        %v5659 = vpack.c.bf16 %v5643, %v5641
        %s5660 = scalar_lea.vmem %s3, 768
        %v5661 = vld [vmem:[%s5660] sm:$0xff]
        %v5662 = vld [vmem:[%s5660 + $0x8] sm:$0xff]
        %v5663 = vld [vmem:[%s5660 + $0x10] sm:$0xff]
        %v5664 = vld [vmem:[%s5660 + $0x18] sm:$0xff]
        %v5665 = vld [vmem:[%s5660 + $0x20] sm:$0xff]
        %v5666 = vld [vmem:[%s5660 + $0x28] sm:$0xff]
        %v5667 = vld [vmem:[%s5660 + $0x30] sm:$0xff]
        %v5668 = vld [vmem:[%s5660 + $0x38] sm:$0xff]
        %v5669 = vld [vmem:[%s5660 + $0x40] sm:$0xff]
        %v5670 = vld [vmem:[%s5660 + $0x48] sm:$0xff]
        %v5671 = vld [vmem:[%s5660 + $0x50] sm:$0xff]
        %v5672 = vld [vmem:[%s5660 + $0x58] sm:$0xff]
        %v5673 = vld [vmem:[%s5660 + $0x60] sm:$0xff]
        %v5674 = vld [vmem:[%s5660 + $0x68] sm:$0xff]
        %v5675 = vld [vmem:[%s5660 + $0x70] sm:$0xff]
        %v5676 = vld [vmem:[%s5660 + $0x78] sm:$0xff]
        %v5677 = vld [vmem:[%s5660 + $0x80] sm:$0xff]
        %v5678 = vld [vmem:[%s5660 + $0x88] sm:$0xff]
        %v5679 = vld [vmem:[%s5660 + $0x90] sm:$0xff]
        %v5680 = vld [vmem:[%s5660 + $0x98] sm:$0xff]
        %v5681 = vld [vmem:[%s5660 + $0xa0] sm:$0xff]
        %v5682 = vld [vmem:[%s5660 + $0xa8] sm:$0xff]
        %v5683 = vld [vmem:[%s5660 + $0xb0] sm:$0xff]
        %v5684 = vld [vmem:[%s5660 + $0xb8] sm:$0xff]
        %v5685 = vld [vmem:[%s5660 + $0xc0] sm:$0xff]
        %v5686 = vld [vmem:[%s5660 + $0xc8] sm:$0xff]
        %v5687 = vld [vmem:[%s5660 + $0xd0] sm:$0xff]
        %v5688 = vld [vmem:[%s5660 + $0xd8] sm:$0xff]
        %v5689 = vld [vmem:[%s5660 + $0xe0] sm:$0xff]
        %v5690 = vld [vmem:[%s5660 + $0xe8] sm:$0xff]
        %v5691 = vld [vmem:[%s5660 + $0xf0] sm:$0xff]
        %v5692 = vld [vmem:[%s5660 + $0xf8] sm:$0xff]
        %v5693 = vld [vmem:[%s5660 + $0x100] sm:$0xff]
        %v5694 = vld [vmem:[%s5660 + $0x108] sm:$0xff]
        %v5695 = vld [vmem:[%s5660 + $0x110] sm:$0xff]
        %v5696 = vld [vmem:[%s5660 + $0x118] sm:$0xff]
        %v5697 = vld [vmem:[%s5660 + $0x120] sm:$0xff]
        %v5698 = vld [vmem:[%s5660 + $0x128] sm:$0xff]
        %v5699 = vld [vmem:[%s5660 + $0x130] sm:$0xff]
        %v5700 = vld [vmem:[%s5660 + $0x138] sm:$0xff]
        %v5701 = vld [vmem:[%s5660 + $0x140] sm:$0xff]
        %v5702 = vld [vmem:[%s5660 + $0x148] sm:$0xff]
        %v5703 = vld [vmem:[%s5660 + $0x150] sm:$0xff]
        %v5704 = vld [vmem:[%s5660 + $0x158] sm:$0xff]
        %v5705 = vld [vmem:[%s5660 + $0x160] sm:$0xff]
        %v5706 = vld [vmem:[%s5660 + $0x168] sm:$0xff]
        %v5707 = vld [vmem:[%s5660 + $0x170] sm:$0xff]
        %v5708 = vld [vmem:[%s5660 + $0x178] sm:$0xff]
        %v5709 = vld [vmem:[%s5660 + $0x180] sm:$0xff]
        %v5710 = vld [vmem:[%s5660 + $0x188] sm:$0xff]
        %v5711 = vld [vmem:[%s5660 + $0x190] sm:$0xff]
        %v5712 = vld [vmem:[%s5660 + $0x198] sm:$0xff]
        %v5713 = vld [vmem:[%s5660 + $0x1a0] sm:$0xff]
        %v5714 = vld [vmem:[%s5660 + $0x1a8] sm:$0xff]
        %v5715 = vld [vmem:[%s5660 + $0x1b0] sm:$0xff]
        %v5716 = vld [vmem:[%s5660 + $0x1b8] sm:$0xff]
        %v5717 = vld [vmem:[%s5660 + $0x1c0] sm:$0xff]
        %v5718 = vld [vmem:[%s5660 + $0x1c8] sm:$0xff]
        %v5719 = vld [vmem:[%s5660 + $0x1d0] sm:$0xff]
        %v5720 = vld [vmem:[%s5660 + $0x1d8] sm:$0xff]
        %v5721 = vld [vmem:[%s5660 + $0x1e0] sm:$0xff]
        %v5722 = vld [vmem:[%s5660 + $0x1e8] sm:$0xff]
        %v5723 = vld [vmem:[%s5660 + $0x1f0] sm:$0xff]
        %v5724 = vld [vmem:[%s5660 + $0x1f8] sm:$0xff]
        %v5725 = vld [vmem:[%s5660 + $0x200] sm:$0xff]
        %v5726 = vld [vmem:[%s5660 + $0x208] sm:$0xff]
        %v5727 = vld [vmem:[%s5660 + $0x210] sm:$0xff]
        %v5728 = vld [vmem:[%s5660 + $0x218] sm:$0xff]
        %v5729 = vld [vmem:[%s5660 + $0x220] sm:$0xff]
        %v5730 = vld [vmem:[%s5660 + $0x228] sm:$0xff]
        %v5731 = vld [vmem:[%s5660 + $0x230] sm:$0xff]
        %v5732 = vld [vmem:[%s5660 + $0x238] sm:$0xff]
        %v5733 = vld [vmem:[%s5660 + $0x240] sm:$0xff]
        %v5734 = vld [vmem:[%s5660 + $0x248] sm:$0xff]
        %v5735 = vld [vmem:[%s5660 + $0x250] sm:$0xff]
        %v5736 = vld [vmem:[%s5660 + $0x258] sm:$0xff]
        %v5737 = vld [vmem:[%s5660 + $0x260] sm:$0xff]
        %v5738 = vld [vmem:[%s5660 + $0x268] sm:$0xff]
        %v5739 = vld [vmem:[%s5660 + $0x270] sm:$0xff]
        %v5740 = vld [vmem:[%s5660 + $0x278] sm:$0xff]
        %v5741 = vld [vmem:[%s5660 + $0x280] sm:$0xff]
        %v5742 = vld [vmem:[%s5660 + $0x288] sm:$0xff]
        %v5743 = vld [vmem:[%s5660 + $0x290] sm:$0xff]
        %v5744 = vld [vmem:[%s5660 + $0x298] sm:$0xff]
        %v5745 = vld [vmem:[%s5660 + $0x2a0] sm:$0xff]
        %v5746 = vld [vmem:[%s5660 + $0x2a8] sm:$0xff]
        %v5747 = vld [vmem:[%s5660 + $0x2b0] sm:$0xff]
        %v5748 = vld [vmem:[%s5660 + $0x2b8] sm:$0xff]
        %v5749 = vld [vmem:[%s5660 + $0x2c0] sm:$0xff]
        %v5750 = vld [vmem:[%s5660 + $0x2c8] sm:$0xff]
        %v5751 = vld [vmem:[%s5660 + $0x2d0] sm:$0xff]
        %v5752 = vld [vmem:[%s5660 + $0x2d8] sm:$0xff]
        %v5753 = vld [vmem:[%s5660 + $0x2e0] sm:$0xff]
        %v5754 = vld [vmem:[%s5660 + $0x2e8] sm:$0xff]
        %v5755 = vld [vmem:[%s5660 + $0x2f0] sm:$0xff]
        %v5756 = vld [vmem:[%s5660 + $0x2f8] sm:$0xff]
        %s5757 = scalar_lea.vmem %s4, 6
        %v5758 = vld [vmem:[%s5757] sm:$0x3f]
        %v5760 = vlaneseq
        %v5761 = vshrl.u32 %v5760, 7
        %v5762 = vsub.s32 0, %v5761
        %v5763 = vrot.slane %v5758, %v5762
        %v5764 = vlaneseq
        %v5765 = vshrl.u32 %v5764, 7
        %v5766 = vsub.s32 1, %v5765
        %v5767 = vrot.slane %v5758, %v5766
        %v5768 = vlaneseq
        %v5769 = vshrl.u32 %v5768, 7
        %v5770 = vsub.s32 2, %v5769
        %v5771 = vrot.slane %v5758, %v5770
        %v5772 = vlaneseq
        %v5773 = vshrl.u32 %v5772, 7
        %v5774 = vsub.s32 3, %v5773
        %v5775 = vrot.slane %v5758, %v5774
        %v5776 = vlaneseq
        %v5777 = vshrl.u32 %v5776, 7
        %v5778 = vsub.s32 4, %v5777
        %v5779 = vrot.slane %v5758, %v5778
        %v5780 = vlaneseq
        %v5781 = vshrl.u32 %v5780, 7
        %v5782 = vsub.s32 5, %v5781
        %v5783 = vrot.slane %v5758, %v5782
        %v5886 = vunpack.c.l.b16 %v5661
        %v5887 = vunpack.c.h.b16 %v5661
        %v5888 = vunpack.c.l.b16 %v5662
        %v5889 = vunpack.c.h.b16 %v5662
        %v5890 = vunpack.c.l.b16 %v5663
        %v5891 = vunpack.c.h.b16 %v5663
        %v5892 = vunpack.c.l.b16 %v5664
        %v5893 = vunpack.c.h.b16 %v5664
        %v5894 = vunpack.c.l.b16 %v5665
        %v5895 = vunpack.c.h.b16 %v5665
        %v5896 = vunpack.c.l.b16 %v5666
        %v5897 = vunpack.c.h.b16 %v5666
        %v5898 = vunpack.c.l.b16 %v5667
        %v5899 = vunpack.c.h.b16 %v5667
        %v5900 = vunpack.c.l.b16 %v5668
        %v5901 = vunpack.c.h.b16 %v5668
        %v5902 = vunpack.c.l.b16 %v5669
        %v5903 = vunpack.c.h.b16 %v5669
        %v5904 = vunpack.c.l.b16 %v5670
        %v5905 = vunpack.c.h.b16 %v5670
        %v5906 = vunpack.c.l.b16 %v5671
        %v5907 = vunpack.c.h.b16 %v5671
        %v5908 = vunpack.c.l.b16 %v5672
        %v5909 = vunpack.c.h.b16 %v5672
        %v5910 = vunpack.c.l.b16 %v5673
        %v5911 = vunpack.c.h.b16 %v5673
        %v5912 = vunpack.c.l.b16 %v5674
        %v5913 = vunpack.c.h.b16 %v5674
        %v5914 = vunpack.c.l.b16 %v5675
        %v5915 = vunpack.c.h.b16 %v5675
        %v5916 = vunpack.c.l.b16 %v5676
        %v5917 = vunpack.c.h.b16 %v5676
        %v5918 = vunpack.c.l.b16 %v5677
        %v5919 = vunpack.c.h.b16 %v5677
        %v5920 = vunpack.c.l.b16 %v5678
        %v5921 = vunpack.c.h.b16 %v5678
        %v5922 = vunpack.c.l.b16 %v5679
        %v5923 = vunpack.c.h.b16 %v5679
        %v5924 = vunpack.c.l.b16 %v5680
        %v5925 = vunpack.c.h.b16 %v5680
        %v5926 = vunpack.c.l.b16 %v5681
        %v5927 = vunpack.c.h.b16 %v5681
        %v5928 = vunpack.c.l.b16 %v5682
        %v5929 = vunpack.c.h.b16 %v5682
        %v5930 = vunpack.c.l.b16 %v5683
        %v5931 = vunpack.c.h.b16 %v5683
        %v5932 = vunpack.c.l.b16 %v5684
        %v5933 = vunpack.c.h.b16 %v5684
        %v5934 = vunpack.c.l.b16 %v5685
        %v5935 = vunpack.c.h.b16 %v5685
        %v5936 = vunpack.c.l.b16 %v5686
        %v5937 = vunpack.c.h.b16 %v5686
        %v5938 = vunpack.c.l.b16 %v5687
        %v5939 = vunpack.c.h.b16 %v5687
        %v5940 = vunpack.c.l.b16 %v5688
        %v5941 = vunpack.c.h.b16 %v5688
        %v5942 = vunpack.c.l.b16 %v5689
        %v5943 = vunpack.c.h.b16 %v5689
        %v5944 = vunpack.c.l.b16 %v5690
        %v5945 = vunpack.c.h.b16 %v5690
        %v5946 = vunpack.c.l.b16 %v5691
        %v5947 = vunpack.c.h.b16 %v5691
        %v5948 = vunpack.c.l.b16 %v5692
        %v5949 = vunpack.c.h.b16 %v5692
        %v5950 = vunpack.c.l.b16 %v5693
        %v5951 = vunpack.c.h.b16 %v5693
        %v5952 = vunpack.c.l.b16 %v5694
        %v5953 = vunpack.c.h.b16 %v5694
        %v5954 = vunpack.c.l.b16 %v5695
        %v5955 = vunpack.c.h.b16 %v5695
        %v5956 = vunpack.c.l.b16 %v5696
        %v5957 = vunpack.c.h.b16 %v5696
        %v5958 = vunpack.c.l.b16 %v5697
        %v5959 = vunpack.c.h.b16 %v5697
        %v5960 = vunpack.c.l.b16 %v5698
        %v5961 = vunpack.c.h.b16 %v5698
        %v5962 = vunpack.c.l.b16 %v5699
        %v5963 = vunpack.c.h.b16 %v5699
        %v5964 = vunpack.c.l.b16 %v5700
        %v5965 = vunpack.c.h.b16 %v5700
        %v5966 = vunpack.c.l.b16 %v5701
        %v5967 = vunpack.c.h.b16 %v5701
        %v5968 = vunpack.c.l.b16 %v5702
        %v5969 = vunpack.c.h.b16 %v5702
        %v5970 = vunpack.c.l.b16 %v5703
        %v5971 = vunpack.c.h.b16 %v5703
        %v5972 = vunpack.c.l.b16 %v5704
        %v5973 = vunpack.c.h.b16 %v5704
        %v5974 = vunpack.c.l.b16 %v5705
        %v5975 = vunpack.c.h.b16 %v5705
        %v5976 = vunpack.c.l.b16 %v5706
        %v5977 = vunpack.c.h.b16 %v5706
        %v5978 = vunpack.c.l.b16 %v5707
        %v5979 = vunpack.c.h.b16 %v5707
        %v5980 = vunpack.c.l.b16 %v5708
        %v5981 = vunpack.c.h.b16 %v5708
        %v5982 = vunpack.c.l.b16 %v5709
        %v5983 = vunpack.c.h.b16 %v5709
        %v5984 = vunpack.c.l.b16 %v5710
        %v5985 = vunpack.c.h.b16 %v5710
        %v5986 = vunpack.c.l.b16 %v5711
        %v5987 = vunpack.c.h.b16 %v5711
        %v5988 = vunpack.c.l.b16 %v5712
        %v5989 = vunpack.c.h.b16 %v5712
        %v5990 = vunpack.c.l.b16 %v5713
        %v5991 = vunpack.c.h.b16 %v5713
        %v5992 = vunpack.c.l.b16 %v5714
        %v5993 = vunpack.c.h.b16 %v5714
        %v5994 = vunpack.c.l.b16 %v5715
        %v5995 = vunpack.c.h.b16 %v5715
        %v5996 = vunpack.c.l.b16 %v5716
        %v5997 = vunpack.c.h.b16 %v5716
        %v5998 = vunpack.c.l.b16 %v5717
        %v5999 = vunpack.c.h.b16 %v5717
        %v6000 = vunpack.c.l.b16 %v5718
        %v6001 = vunpack.c.h.b16 %v5718
        %v6002 = vunpack.c.l.b16 %v5719
        %v6003 = vunpack.c.h.b16 %v5719
        %v6004 = vunpack.c.l.b16 %v5720
        %v6005 = vunpack.c.h.b16 %v5720
        %v6006 = vunpack.c.l.b16 %v5721
        %v6007 = vunpack.c.h.b16 %v5721
        %v6008 = vunpack.c.l.b16 %v5722
        %v6009 = vunpack.c.h.b16 %v5722
        %v6010 = vunpack.c.l.b16 %v5723
        %v6011 = vunpack.c.h.b16 %v5723
        %v6012 = vunpack.c.l.b16 %v5724
        %v6013 = vunpack.c.h.b16 %v5724
        %v6014 = vunpack.c.l.b16 %v5725
        %v6015 = vunpack.c.h.b16 %v5725
        %v6016 = vunpack.c.l.b16 %v5726
        %v6017 = vunpack.c.h.b16 %v5726
        %v6018 = vunpack.c.l.b16 %v5727
        %v6019 = vunpack.c.h.b16 %v5727
        %v6020 = vunpack.c.l.b16 %v5728
        %v6021 = vunpack.c.h.b16 %v5728
        %v6022 = vunpack.c.l.b16 %v5729
        %v6023 = vunpack.c.h.b16 %v5729
        %v6024 = vunpack.c.l.b16 %v5730
        %v6025 = vunpack.c.h.b16 %v5730
        %v6026 = vunpack.c.l.b16 %v5731
        %v6027 = vunpack.c.h.b16 %v5731
        %v6028 = vunpack.c.l.b16 %v5732
        %v6029 = vunpack.c.h.b16 %v5732
        %v6030 = vunpack.c.l.b16 %v5733
        %v6031 = vunpack.c.h.b16 %v5733
        %v6032 = vunpack.c.l.b16 %v5734
        %v6033 = vunpack.c.h.b16 %v5734
        %v6034 = vunpack.c.l.b16 %v5735
        %v6035 = vunpack.c.h.b16 %v5735
        %v6036 = vunpack.c.l.b16 %v5736
        %v6037 = vunpack.c.h.b16 %v5736
        %v6038 = vunpack.c.l.b16 %v5737
        %v6039 = vunpack.c.h.b16 %v5737
        %v6040 = vunpack.c.l.b16 %v5738
        %v6041 = vunpack.c.h.b16 %v5738
        %v6042 = vunpack.c.l.b16 %v5739
        %v6043 = vunpack.c.h.b16 %v5739
        %v6044 = vunpack.c.l.b16 %v5740
        %v6045 = vunpack.c.h.b16 %v5740
        %v6046 = vunpack.c.l.b16 %v5741
        %v6047 = vunpack.c.h.b16 %v5741
        %v6048 = vunpack.c.l.b16 %v5742
        %v6049 = vunpack.c.h.b16 %v5742
        %v6050 = vunpack.c.l.b16 %v5743
        %v6051 = vunpack.c.h.b16 %v5743
        %v6052 = vunpack.c.l.b16 %v5744
        %v6053 = vunpack.c.h.b16 %v5744
        %v6054 = vunpack.c.l.b16 %v5745
        %v6055 = vunpack.c.h.b16 %v5745
        %v6056 = vunpack.c.l.b16 %v5746
        %v6057 = vunpack.c.h.b16 %v5746
        %v6058 = vunpack.c.l.b16 %v5747
        %v6059 = vunpack.c.h.b16 %v5747
        %v6060 = vunpack.c.l.b16 %v5748
        %v6061 = vunpack.c.h.b16 %v5748
        %v6062 = vunpack.c.l.b16 %v5749
        %v6063 = vunpack.c.h.b16 %v5749
        %v6064 = vunpack.c.l.b16 %v5750
        %v6065 = vunpack.c.h.b16 %v5750
        %v6066 = vunpack.c.l.b16 %v5751
        %v6067 = vunpack.c.h.b16 %v5751
        %v6068 = vunpack.c.l.b16 %v5752
        %v6069 = vunpack.c.h.b16 %v5752
        %v6070 = vunpack.c.l.b16 %v5753
        %v6071 = vunpack.c.h.b16 %v5753
        %v6072 = vunpack.c.l.b16 %v5754
        %v6073 = vunpack.c.h.b16 %v5754
        %v6074 = vunpack.c.l.b16 %v5755
        %v6075 = vunpack.c.h.b16 %v5755
        %v6076 = vunpack.c.l.b16 %v5756
        %v6077 = vunpack.c.h.b16 %v5756
        %v6078 = vpack.c.b16 %v5892, %v5886
        %v6079 = vpack.c.b16 %v5893, %v5887
        %v6080 = vpack.c.b16 %v5894, %v5888
        %v6081 = vpack.c.b16 %v5895, %v5889
        %v6082 = vpack.c.b16 %v5896, %v5890
        %v6083 = vpack.c.b16 %v5897, %v5891
        %v6084 = vpack.c.b16 %v5904, %v5898
        %v6085 = vpack.c.b16 %v5905, %v5899
        %v6086 = vpack.c.b16 %v5906, %v5900
        %v6087 = vpack.c.b16 %v5907, %v5901
        %v6088 = vpack.c.b16 %v5908, %v5902
        %v6089 = vpack.c.b16 %v5909, %v5903
        %v6090 = vpack.c.b16 %v5916, %v5910
        %v6091 = vpack.c.b16 %v5917, %v5911
        %v6092 = vpack.c.b16 %v5918, %v5912
        %v6093 = vpack.c.b16 %v5919, %v5913
        %v6094 = vpack.c.b16 %v5920, %v5914
        %v6095 = vpack.c.b16 %v5921, %v5915
        %v6096 = vpack.c.b16 %v5928, %v5922
        %v6097 = vpack.c.b16 %v5929, %v5923
        %v6098 = vpack.c.b16 %v5930, %v5924
        %v6099 = vpack.c.b16 %v5931, %v5925
        %v6100 = vpack.c.b16 %v5932, %v5926
        %v6101 = vpack.c.b16 %v5933, %v5927
        %v6102 = vpack.c.b16 %v5940, %v5934
        %v6103 = vpack.c.b16 %v5941, %v5935
        %v6104 = vpack.c.b16 %v5942, %v5936
        %v6105 = vpack.c.b16 %v5943, %v5937
        %v6106 = vpack.c.b16 %v5944, %v5938
        %v6107 = vpack.c.b16 %v5945, %v5939
        %v6108 = vpack.c.b16 %v5952, %v5946
        %v6109 = vpack.c.b16 %v5953, %v5947
        %v6110 = vpack.c.b16 %v5954, %v5948
        %v6111 = vpack.c.b16 %v5955, %v5949
        %v6112 = vpack.c.b16 %v5956, %v5950
        %v6113 = vpack.c.b16 %v5957, %v5951
        %v6114 = vpack.c.b16 %v5964, %v5958
        %v6115 = vpack.c.b16 %v5965, %v5959
        %v6116 = vpack.c.b16 %v5966, %v5960
        %v6117 = vpack.c.b16 %v5967, %v5961
        %v6118 = vpack.c.b16 %v5968, %v5962
        %v6119 = vpack.c.b16 %v5969, %v5963
        %v6120 = vpack.c.b16 %v5976, %v5970
        %v6121 = vpack.c.b16 %v5977, %v5971
        %v6122 = vpack.c.b16 %v5978, %v5972
        %v6123 = vpack.c.b16 %v5979, %v5973
        %v6124 = vpack.c.b16 %v5980, %v5974
        %v6125 = vpack.c.b16 %v5981, %v5975
        %v6126 = vpack.c.b16 %v5988, %v5982
        %v6127 = vpack.c.b16 %v5989, %v5983
        %v6128 = vpack.c.b16 %v5990, %v5984
        %v6129 = vpack.c.b16 %v5991, %v5985
        %v6130 = vpack.c.b16 %v5992, %v5986
        %v6131 = vpack.c.b16 %v5993, %v5987
        %v6132 = vpack.c.b16 %v6000, %v5994
        %v6133 = vpack.c.b16 %v6001, %v5995
        %v6134 = vpack.c.b16 %v6002, %v5996
        %v6135 = vpack.c.b16 %v6003, %v5997
        %v6136 = vpack.c.b16 %v6004, %v5998
        %v6137 = vpack.c.b16 %v6005, %v5999
        %v6138 = vpack.c.b16 %v6012, %v6006
        %v6139 = vpack.c.b16 %v6013, %v6007
        %v6140 = vpack.c.b16 %v6014, %v6008
        %v6141 = vpack.c.b16 %v6015, %v6009
        %v6142 = vpack.c.b16 %v6016, %v6010
        %v6143 = vpack.c.b16 %v6017, %v6011
        %v6144 = vpack.c.b16 %v6024, %v6018
        %v6145 = vpack.c.b16 %v6025, %v6019
        %v6146 = vpack.c.b16 %v6026, %v6020
        %v6147 = vpack.c.b16 %v6027, %v6021
        %v6148 = vpack.c.b16 %v6028, %v6022
        %v6149 = vpack.c.b16 %v6029, %v6023
        %v6150 = vpack.c.b16 %v6036, %v6030
        %v6151 = vpack.c.b16 %v6037, %v6031
        %v6152 = vpack.c.b16 %v6038, %v6032
        %v6153 = vpack.c.b16 %v6039, %v6033
        %v6154 = vpack.c.b16 %v6040, %v6034
        %v6155 = vpack.c.b16 %v6041, %v6035
        %v6156 = vpack.c.b16 %v6048, %v6042
        %v6157 = vpack.c.b16 %v6049, %v6043
        %v6158 = vpack.c.b16 %v6050, %v6044
        %v6159 = vpack.c.b16 %v6051, %v6045
        %v6160 = vpack.c.b16 %v6052, %v6046
        %v6161 = vpack.c.b16 %v6053, %v6047
        %v6162 = vpack.c.b16 %v6060, %v6054
        %v6163 = vpack.c.b16 %v6061, %v6055
        %v6164 = vpack.c.b16 %v6062, %v6056
        %v6165 = vpack.c.b16 %v6063, %v6057
        %v6166 = vpack.c.b16 %v6064, %v6058
        %v6167 = vpack.c.b16 %v6065, %v6059
        %v6168 = vpack.c.b16 %v6072, %v6066
        %v6169 = vpack.c.b16 %v6073, %v6067
        %v6170 = vpack.c.b16 %v6074, %v6068
        %v6171 = vpack.c.b16 %v6075, %v6069
        %v6172 = vpack.c.b16 %v6076, %v6070
        %v6173 = vpack.c.b16 %v6077, %v6071
        %6270 = vmatprep.subr.bf16.mxu0 %v6079
        %6271 = vmatpush1.bf16.msra.mxu0 %v6078
        %6272 = vmatprep.subr.bf16.mxu0 %v6085
        %6273 = vmatpush1.bf16.msra.mxu0 %v6084
        %6274 = vmatprep.subr.bf16.mxu0 %v6091
        %6275 = vmatpush1.bf16.msra.mxu0 %v6090
        %6276 = vmatprep.subr.bf16.mxu0 %v6097
        %6277 = vmatpush1.bf16.msra.mxu0 %v6096
        %6278 = vmatprep.subr.bf16.mxu0 %v6103
        %6279 = vmatpush1.bf16.msra.mxu0 %v6102
        %6280 = vmatprep.subr.bf16.mxu0 %v6109
        %6281 = vmatpush1.bf16.msra.mxu0 %v6108
        %6282 = vmatprep.subr.bf16.mxu0 %v6115
        %6283 = vmatpush1.bf16.msra.mxu0 %v6114
        %6284 = vmatprep.subr.bf16.mxu0 %v6121
        %6285 = vmatpush1.bf16.msra.mxu0 %v6120
        %6286 = vmatprep.subr.bf16.mxu0 %v6127
        %6287 = vmatpush1.bf16.msra.mxu0 %v6126
        %6288 = vmatprep.subr.bf16.mxu0 %v6133
        %6289 = vmatpush1.bf16.msra.mxu0 %v6132
        %6290 = vmatprep.subr.bf16.mxu0 %v6139
        %6291 = vmatpush1.bf16.msra.mxu0 %v6138
        %6292 = vmatprep.subr.bf16.mxu0 %v6145
        %6293 = vmatpush1.bf16.msra.mxu0 %v6144
        %6294 = vmatprep.subr.bf16.mxu0 %v6151
        %6295 = vmatpush1.bf16.msra.mxu0 %v6150
        %6296 = vmatprep.subr.bf16.mxu0 %v6157
        %6297 = vmatpush1.bf16.msra.mxu0 %v6156
        %6298 = vmatprep.subr.bf16.mxu0 %v6163
        %6299 = vmatpush1.bf16.msra.mxu0 %v6162
        %6300 = vmatprep.subr.bf16.mxu0 %v6169
        %6301 = vmatpush1.bf16.msra.mxu0 %v6168
        %6302 = vmatprep.mubr.bf16.mxu0 %v5645
        %6303 = vmatmul.mubr.bf16.gmra.mrb[0].mxu0 %v5644
        %v6304 = vpop.f32.mrb[0].mxu0
        %v6305 = vadd.f32 %v5763, %v6304
        %v6306 = vpop.f32.mrb[0].mxu0
        %v6307 = vadd.f32 %v5767, %v6306
        %v6308 = vpop.f32.mrb[0].mxu0
        %v6309 = vadd.f32 %v5763, %v6308
        %v6310 = vpop.f32.mrb[0].mxu0
        %v6311 = vadd.f32 %v5767, %v6310
        %6312 = vmatprep.mubr.bf16.mxu0 %v5647
        %6313 = vmatmul.mubr.bf16.gmra.mrb[0].mxu0 %v5646
        %v6314 = vpop.f32.mrb[0].mxu0
        %v6315 = vadd.f32 %v5763, %v6314
        %v6316 = vpop.f32.mrb[0].mxu0
        %v6317 = vadd.f32 %v5767, %v6316
        %v6318 = vpop.f32.mrb[0].mxu0
        %v6319 = vadd.f32 %v5763, %v6318
        %v6320 = vpop.f32.mrb[0].mxu0
        %v6321 = vadd.f32 %v5767, %v6320
        %6322 = vmatprep.mubr.bf16.mxu0 %v5649
        %6323 = vmatmul.mubr.bf16.gmra.mrb[0].mxu0 %v5648
        %v6324 = vpop.f32.mrb[0].mxu0
        %v6325 = vadd.f32 %v5763, %v6324
        %v6326 = vpop.f32.mrb[0].mxu0
        %v6327 = vadd.f32 %v5767, %v6326
        %v6328 = vpop.f32.mrb[0].mxu0
        %v6329 = vadd.f32 %v5763, %v6328
        %v6330 = vpop.f32.mrb[0].mxu0
        %v6331 = vadd.f32 %v5767, %v6330
        %6332 = vmatprep.mubr.bf16.mxu0 %v5651
        %6333 = vmatmul.mubr.bf16.gmra.mrb[0].mxu0 %v5650
        %v6334 = vpop.f32.mrb[0].mxu0
        %v6335 = vadd.f32 %v5763, %v6334
        %v6336 = vpop.f32.mrb[0].mxu0
        %v6337 = vadd.f32 %v5767, %v6336
        %v6338 = vpop.f32.mrb[0].mxu0
        %v6339 = vadd.f32 %v5763, %v6338
        %v6340 = vpop.f32.mrb[0].mxu0
        %v6341 = vadd.f32 %v5767, %v6340
        %6342 = vmatprep.mubr.bf16.mxu0 %v5653
        %6343 = vmatmul.mubr.bf16.gmra.mrb[0].mxu0 %v5652
        %v6344 = vpop.f32.mrb[0].mxu0
        %v6345 = vadd.f32 %v5763, %v6344
        %v6346 = vpop.f32.mrb[0].mxu0
        %v6347 = vadd.f32 %v5767, %v6346
        %v6348 = vpop.f32.mrb[0].mxu0
        %v6349 = vadd.f32 %v5763, %v6348
        %v6350 = vpop.f32.mrb[0].mxu0
        %v6351 = vadd.f32 %v5767, %v6350
        %6352 = vmatprep.mubr.bf16.mxu0 %v5655
        %6353 = vmatmul.mubr.bf16.gmra.mrb[0].mxu0 %v5654
        %v6354 = vpop.f32.mrb[0].mxu0
        %v6355 = vadd.f32 %v5763, %v6354
        %v6356 = vpop.f32.mrb[0].mxu0
        %v6357 = vadd.f32 %v5767, %v6356
        %v6358 = vpop.f32.mrb[0].mxu0
        %v6359 = vadd.f32 %v5763, %v6358
        %v6360 = vpop.f32.mrb[0].mxu0
        %v6361 = vadd.f32 %v5767, %v6360
        %6362 = vmatprep.mubr.bf16.mxu0 %v5657
        %6363 = vmatmul.mubr.bf16.gmra.mrb[0].mxu0 %v5656
        %v6364 = vpop.f32.mrb[0].mxu0
        %v6365 = vadd.f32 %v5763, %v6364
        %v6366 = vpop.f32.mrb[0].mxu0
        %v6367 = vadd.f32 %v5767, %v6366
        %v6368 = vpop.f32.mrb[0].mxu0
        %v6369 = vadd.f32 %v5763, %v6368
        %v6370 = vpop.f32.mrb[0].mxu0
        %v6371 = vadd.f32 %v5767, %v6370
        %6372 = vmatprep.mubr.bf16.mxu0 %v5659
        %6373 = vmatmul.mubr.bf16.gmra.mrb[0].mxu0 %v5658
        %v6374 = vpop.f32.mrb[0].mxu0
        %v6375 = vadd.f32 %v5763, %v6374
        %v6376 = vpop.f32.mrb[0].mxu0
        %v6377 = vadd.f32 %v5767, %v6376
        %v6378 = vpop.f32.mrb[0].mxu0
        %v6379 = vadd.f32 %v5763, %v6378
        %v6380 = vpop.f32.mrb[0].mxu0
        %v6381 = vadd.f32 %v5767, %v6380
        %6382 = vdwg.mxu0
        %6383 = vmatprep.subr.bf16.mxu0 %v6081
        %6384 = vmatpush1.bf16.msra.mxu0 %v6080
        %6385 = vmatprep.subr.bf16.mxu0 %v6087
        %6386 = vmatpush1.bf16.msra.mxu0 %v6086
        %6387 = vmatprep.subr.bf16.mxu0 %v6093
        %6388 = vmatpush1.bf16.msra.mxu0 %v6092
        %6389 = vmatprep.subr.bf16.mxu0 %v6099
        %6390 = vmatpush1.bf16.msra.mxu0 %v6098
        %6391 = vmatprep.subr.bf16.mxu0 %v6105
        %6392 = vmatpush1.bf16.msra.mxu0 %v6104
        %6393 = vmatprep.subr.bf16.mxu0 %v6111
        %6394 = vmatpush1.bf16.msra.mxu0 %v6110
        %6395 = vmatprep.subr.bf16.mxu0 %v6117
        %6396 = vmatpush1.bf16.msra.mxu0 %v6116
        %6397 = vmatprep.subr.bf16.mxu0 %v6123
        %6398 = vmatpush1.bf16.msra.mxu0 %v6122
        %6399 = vmatprep.subr.bf16.mxu0 %v6129
        %6400 = vmatpush1.bf16.msra.mxu0 %v6128
        %6401 = vmatprep.subr.bf16.mxu0 %v6135
        %6402 = vmatpush1.bf16.msra.mxu0 %v6134
        %6403 = vmatprep.subr.bf16.mxu0 %v6141
        %6404 = vmatpush1.bf16.msra.mxu0 %v6140
        %6405 = vmatprep.subr.bf16.mxu0 %v6147
        %6406 = vmatpush1.bf16.msra.mxu0 %v6146
        %6407 = vmatprep.subr.bf16.mxu0 %v6153
        %6408 = vmatpush1.bf16.msra.mxu0 %v6152
        %6409 = vmatprep.subr.bf16.mxu0 %v6159
        %6410 = vmatpush1.bf16.msra.mxu0 %v6158
        %6411 = vmatprep.subr.bf16.mxu0 %v6165
        %6412 = vmatpush1.bf16.msra.mxu0 %v6164
        %6413 = vmatprep.subr.bf16.mxu0 %v6171
        %6414 = vmatpush1.bf16.msra.mxu0 %v6170
        %6415 = vmatprep.mubr.bf16.mxu0 %v5645
        %6416 = vmatmul.mubr.bf16.gmra.mrb[0].mxu0 %v5644
        %v6417 = vpop.f32.mrb[0].mxu0
        %v6418 = vadd.f32 %v5771, %v6417
        %v6419 = vpop.f32.mrb[0].mxu0
        %v6420 = vadd.f32 %v5775, %v6419
        %v6421 = vpop.f32.mrb[0].mxu0
        %v6422 = vadd.f32 %v5771, %v6421
        %v6423 = vpop.f32.mrb[0].mxu0
        %v6424 = vadd.f32 %v5775, %v6423
        %6425 = vmatprep.mubr.bf16.mxu0 %v5647
        %6426 = vmatmul.mubr.bf16.gmra.mrb[0].mxu0 %v5646
        %v6427 = vpop.f32.mrb[0].mxu0
        %v6428 = vadd.f32 %v5771, %v6427
        %v6429 = vpop.f32.mrb[0].mxu0
        %v6430 = vadd.f32 %v5775, %v6429
        %v6431 = vpop.f32.mrb[0].mxu0
        %v6432 = vadd.f32 %v5771, %v6431
        %v6433 = vpop.f32.mrb[0].mxu0
        %v6434 = vadd.f32 %v5775, %v6433
        %6435 = vmatprep.mubr.bf16.mxu0 %v5649
        %6436 = vmatmul.mubr.bf16.gmra.mrb[0].mxu0 %v5648
        %v6437 = vpop.f32.mrb[0].mxu0
        %v6438 = vadd.f32 %v5771, %v6437
        %v6439 = vpop.f32.mrb[0].mxu0
        %v6440 = vadd.f32 %v5775, %v6439
        %v6441 = vpop.f32.mrb[0].mxu0
        %v6442 = vadd.f32 %v5771, %v6441
        %v6443 = vpop.f32.mrb[0].mxu0
        %v6444 = vadd.f32 %v5775, %v6443
        %6445 = vmatprep.mubr.bf16.mxu0 %v5651
        %6446 = vmatmul.mubr.bf16.gmra.mrb[0].mxu0 %v5650
        %v6447 = vpop.f32.mrb[0].mxu0
        %v6448 = vadd.f32 %v5771, %v6447
        %v6449 = vpop.f32.mrb[0].mxu0
        %v6450 = vadd.f32 %v5775, %v6449
        %v6451 = vpop.f32.mrb[0].mxu0
        %v6452 = vadd.f32 %v5771, %v6451
        %v6453 = vpop.f32.mrb[0].mxu0
        %v6454 = vadd.f32 %v5775, %v6453
        %6455 = vmatprep.mubr.bf16.mxu0 %v5653
        %6456 = vmatmul.mubr.bf16.gmra.mrb[0].mxu0 %v5652
        %v6457 = vpop.f32.mrb[0].mxu0
        %v6458 = vadd.f32 %v5771, %v6457
        %v6459 = vpop.f32.mrb[0].mxu0
        %v6460 = vadd.f32 %v5775, %v6459
        %v6461 = vpop.f32.mrb[0].mxu0
        %v6462 = vadd.f32 %v5771, %v6461
        %v6463 = vpop.f32.mrb[0].mxu0
        %v6464 = vadd.f32 %v5775, %v6463
        %6465 = vmatprep.mubr.bf16.mxu0 %v5655
        %6466 = vmatmul.mubr.bf16.gmra.mrb[0].mxu0 %v5654
        %v6467 = vpop.f32.mrb[0].mxu0
        %v6468 = vadd.f32 %v5771, %v6467
        %v6469 = vpop.f32.mrb[0].mxu0
        %v6470 = vadd.f32 %v5775, %v6469
        %v6471 = vpop.f32.mrb[0].mxu0
        %v6472 = vadd.f32 %v5771, %v6471
        %v6473 = vpop.f32.mrb[0].mxu0
        %v6474 = vadd.f32 %v5775, %v6473
        %6475 = vmatprep.mubr.bf16.mxu0 %v5657
        %6476 = vmatmul.mubr.bf16.gmra.mrb[0].mxu0 %v5656
        %v6477 = vpop.f32.mrb[0].mxu0
        %v6478 = vadd.f32 %v5771, %v6477
        %v6479 = vpop.f32.mrb[0].mxu0
        %v6480 = vadd.f32 %v5775, %v6479
        %v6481 = vpop.f32.mrb[0].mxu0
        %v6482 = vadd.f32 %v5771, %v6481
        %v6483 = vpop.f32.mrb[0].mxu0
        %v6484 = vadd.f32 %v5775, %v6483
        %6485 = vmatprep.mubr.bf16.mxu0 %v5659
        %6486 = vmatmul.mubr.bf16.gmra.mrb[0].mxu0 %v5658
        %v6487 = vpop.f32.mrb[0].mxu0
        %v6488 = vadd.f32 %v5771, %v6487
        %v6489 = vpop.f32.mrb[0].mxu0
        %v6490 = vadd.f32 %v5775, %v6489
        %v6491 = vpop.f32.mrb[0].mxu0
        %v6492 = vadd.f32 %v5771, %v6491
        %v6493 = vpop.f32.mrb[0].mxu0
        %v6494 = vadd.f32 %v5775, %v6493
        %6495 = vdwg.mxu0
        %6496 = vmatprep.subr.bf16.mxu0 %v6083
        %6497 = vmatpush1.bf16.msra.mxu0 %v6082
        %6498 = vmatprep.subr.bf16.mxu0 %v6089
        %6499 = vmatpush1.bf16.msra.mxu0 %v6088
        %6500 = vmatprep.subr.bf16.mxu0 %v6095
        %6501 = vmatpush1.bf16.msra.mxu0 %v6094
        %6502 = vmatprep.subr.bf16.mxu0 %v6101
        %6503 = vmatpush1.bf16.msra.mxu0 %v6100
        %6504 = vmatprep.subr.bf16.mxu0 %v6107
        %6505 = vmatpush1.bf16.msra.mxu0 %v6106
        %6506 = vmatprep.subr.bf16.mxu0 %v6113
        %6507 = vmatpush1.bf16.msra.mxu0 %v6112
        %6508 = vmatprep.subr.bf16.mxu0 %v6119
        %6509 = vmatpush1.bf16.msra.mxu0 %v6118
        %6510 = vmatprep.subr.bf16.mxu0 %v6125
        %6511 = vmatpush1.bf16.msra.mxu0 %v6124
        %6512 = vmatprep.subr.bf16.mxu0 %v6131
        %6513 = vmatpush1.bf16.msra.mxu0 %v6130
        %6514 = vmatprep.subr.bf16.mxu0 %v6137
        %6515 = vmatpush1.bf16.msra.mxu0 %v6136
        %6516 = vmatprep.subr.bf16.mxu0 %v6143
        %6517 = vmatpush1.bf16.msra.mxu0 %v6142
        %6518 = vmatprep.subr.bf16.mxu0 %v6149
        %6519 = vmatpush1.bf16.msra.mxu0 %v6148
        %6520 = vmatprep.subr.bf16.mxu0 %v6155
        %6521 = vmatpush1.bf16.msra.mxu0 %v6154
        %6522 = vmatprep.subr.bf16.mxu0 %v6161
        %6523 = vmatpush1.bf16.msra.mxu0 %v6160
        %6524 = vmatprep.subr.bf16.mxu0 %v6167
        %6525 = vmatpush1.bf16.msra.mxu0 %v6166
        %6526 = vmatprep.subr.bf16.mxu0 %v6173
        %6527 = vmatpush1.bf16.msra.mxu0 %v6172
        %6528 = vmatprep.mubr.bf16.mxu0 %v5645
        %6529 = vmatmul.mubr.bf16.gmra.mrb[0].mxu0 %v5644
        %v6530 = vpop.f32.mrb[0].mxu0
        %v6531 = vadd.f32 %v5779, %v6530
        %v6532 = vpop.f32.mrb[0].mxu0
        %v6533 = vadd.f32 %v5783, %v6532
        %v6534 = vpop.f32.mrb[0].mxu0
        %v6535 = vadd.f32 %v5779, %v6534
        %v6536 = vpop.f32.mrb[0].mxu0
        %v6537 = vadd.f32 %v5783, %v6536
        %6538 = vmatprep.mubr.bf16.mxu0 %v5647
        %6539 = vmatmul.mubr.bf16.gmra.mrb[0].mxu0 %v5646
        %v6540 = vpop.f32.mrb[0].mxu0
        %v6541 = vadd.f32 %v5779, %v6540
        %v6542 = vpop.f32.mrb[0].mxu0
        %v6543 = vadd.f32 %v5783, %v6542
        %v6544 = vpop.f32.mrb[0].mxu0
        %v6545 = vadd.f32 %v5779, %v6544
        %v6546 = vpop.f32.mrb[0].mxu0
        %v6547 = vadd.f32 %v5783, %v6546
        %6548 = vmatprep.mubr.bf16.mxu0 %v5649
        %6549 = vmatmul.mubr.bf16.gmra.mrb[0].mxu0 %v5648
        %v6550 = vpop.f32.mrb[0].mxu0
        %v6551 = vadd.f32 %v5779, %v6550
        %v6552 = vpop.f32.mrb[0].mxu0
        %v6553 = vadd.f32 %v5783, %v6552
        %v6554 = vpop.f32.mrb[0].mxu0
        %v6555 = vadd.f32 %v5779, %v6554
        %v6556 = vpop.f32.mrb[0].mxu0
        %v6557 = vadd.f32 %v5783, %v6556
        %6558 = vmatprep.mubr.bf16.mxu0 %v5651
        %6559 = vmatmul.mubr.bf16.gmra.mrb[0].mxu0 %v5650
        %v6560 = vpop.f32.mrb[0].mxu0
        %v6561 = vadd.f32 %v5779, %v6560
        %v6562 = vpop.f32.mrb[0].mxu0
        %v6563 = vadd.f32 %v5783, %v6562
        %v6564 = vpop.f32.mrb[0].mxu0
        %v6565 = vadd.f32 %v5779, %v6564
        %v6566 = vpop.f32.mrb[0].mxu0
        %v6567 = vadd.f32 %v5783, %v6566
        %6568 = vmatprep.mubr.bf16.mxu0 %v5653
        %6569 = vmatmul.mubr.bf16.gmra.mrb[0].mxu0 %v5652
        %v6570 = vpop.f32.mrb[0].mxu0
        %v6571 = vadd.f32 %v5779, %v6570
        %v6572 = vpop.f32.mrb[0].mxu0
        %v6573 = vadd.f32 %v5783, %v6572
        %v6574 = vpop.f32.mrb[0].mxu0
        %v6575 = vadd.f32 %v5779, %v6574
        %v6576 = vpop.f32.mrb[0].mxu0
        %v6577 = vadd.f32 %v5783, %v6576
        %6578 = vmatprep.mubr.bf16.mxu0 %v5655
        %6579 = vmatmul.mubr.bf16.gmra.mrb[0].mxu0 %v5654
        %v6580 = vpop.f32.mrb[0].mxu0
        %v6581 = vadd.f32 %v5779, %v6580
        %v6582 = vpop.f32.mrb[0].mxu0
        %v6583 = vadd.f32 %v5783, %v6582
        %v6584 = vpop.f32.mrb[0].mxu0
        %v6585 = vadd.f32 %v5779, %v6584
        %v6586 = vpop.f32.mrb[0].mxu0
        %v6587 = vadd.f32 %v5783, %v6586
        %6588 = vmatprep.mubr.bf16.mxu0 %v5657
        %6589 = vmatmul.mubr.bf16.gmra.mrb[0].mxu0 %v5656
        %v6590 = vpop.f32.mrb[0].mxu0
        %v6591 = vadd.f32 %v5779, %v6590
        %v6592 = vpop.f32.mrb[0].mxu0
        %v6593 = vadd.f32 %v5783, %v6592
        %v6594 = vpop.f32.mrb[0].mxu0
        %v6595 = vadd.f32 %v5779, %v6594
        %v6596 = vpop.f32.mrb[0].mxu0
        %v6597 = vadd.f32 %v5783, %v6596
        %6598 = vmatprep.mubr.bf16.mxu0 %v5659
        %6599 = vmatmul.mubr.bf16.gmra.mrb[0].mxu0 %v5658
        %v6600 = vpop.f32.mrb[0].mxu0
        %v6601 = vadd.f32 %v5779, %v6600
        %v6602 = vpop.f32.mrb[0].mxu0
        %v6603 = vadd.f32 %v5783, %v6602
        %v6604 = vpop.f32.mrb[0].mxu0
        %v6605 = vadd.f32 %v5779, %v6604
        %v6606 = vpop.f32.mrb[0].mxu0
        %v6607 = vadd.f32 %v5783, %v6606
        %6608 = vdwg.mxu0
        %v6609 = vpack.c.bf16 %v6309, %v6305
        %v6610 = vpack.c.bf16 %v6311, %v6307
        %v6611 = vpack.c.bf16 %v6422, %v6418
        %v6612 = vpack.c.bf16 %v6424, %v6420
        %v6613 = vpack.c.bf16 %v6535, %v6531
        %v6614 = vpack.c.bf16 %v6537, %v6533
        %v6615 = vpack.c.bf16 %v6319, %v6315
        %v6616 = vpack.c.bf16 %v6321, %v6317
        %v6617 = vpack.c.bf16 %v6432, %v6428
        %v6618 = vpack.c.bf16 %v6434, %v6430
        %v6619 = vpack.c.bf16 %v6545, %v6541
        %v6620 = vpack.c.bf16 %v6547, %v6543
        %v6621 = vpack.c.bf16 %v6329, %v6325
        %v6622 = vpack.c.bf16 %v6331, %v6327
        %v6623 = vpack.c.bf16 %v6442, %v6438
        %v6624 = vpack.c.bf16 %v6444, %v6440
        %v6625 = vpack.c.bf16 %v6555, %v6551
        %v6626 = vpack.c.bf16 %v6557, %v6553
        %v6627 = vpack.c.bf16 %v6339, %v6335
        %v6628 = vpack.c.bf16 %v6341, %v6337
        %v6629 = vpack.c.bf16 %v6452, %v6448
        %v6630 = vpack.c.bf16 %v6454, %v6450
        %v6631 = vpack.c.bf16 %v6565, %v6561
        %v6632 = vpack.c.bf16 %v6567, %v6563
        %v6633 = vpack.c.bf16 %v6349, %v6345
        %v6634 = vpack.c.bf16 %v6351, %v6347
        %v6635 = vpack.c.bf16 %v6462, %v6458
        %v6636 = vpack.c.bf16 %v6464, %v6460
        %v6637 = vpack.c.bf16 %v6575, %v6571
        %v6638 = vpack.c.bf16 %v6577, %v6573
        %v6639 = vpack.c.bf16 %v6359, %v6355
        %v6640 = vpack.c.bf16 %v6361, %v6357
        %v6641 = vpack.c.bf16 %v6472, %v6468
        %v6642 = vpack.c.bf16 %v6474, %v6470
        %v6643 = vpack.c.bf16 %v6585, %v6581
        %v6644 = vpack.c.bf16 %v6587, %v6583
        %v6645 = vpack.c.bf16 %v6369, %v6365
        %v6646 = vpack.c.bf16 %v6371, %v6367
        %v6647 = vpack.c.bf16 %v6482, %v6478
        %v6648 = vpack.c.bf16 %v6484, %v6480
        %v6649 = vpack.c.bf16 %v6595, %v6591
        %v6650 = vpack.c.bf16 %v6597, %v6593
        %v6651 = vpack.c.bf16 %v6379, %v6375
        %v6652 = vpack.c.bf16 %v6381, %v6377
        %v6653 = vpack.c.bf16 %v6492, %v6488
        %v6654 = vpack.c.bf16 %v6494, %v6490
        %v6655 = vpack.c.bf16 %v6605, %v6601
        %v6656 = vpack.c.bf16 %v6607, %v6603
        %6657 = vmatprep.subr.bf16.mxu0 0
        %6658 = vmatpush1.bf16.xpose.msra.mxu0 %v6611
        %6659 = vmatprep.subr.bf16.mxu0 0
        %6660 = vmatpush1.bf16.xpose.msra.mxu0 %v6617
        %6661 = vmatprep.subr.bf16.mxu0 0
        %6662 = vmatpush1.bf16.xpose.msra.mxu0 %v6623
        %6663 = vmatprep.subr.bf16.mxu0 0
        %6664 = vmatpush1.bf16.xpose.msra.mxu0 %v6629
        %6665 = vmatprep.subr.bf16.mxu0 0
        %6666 = vmatpush1.bf16.xpose.msra.mxu0 %v6635
        %6667 = vmatprep.subr.bf16.mxu0 0
        %6668 = vmatpush1.bf16.xpose.msra.mxu0 %v6641
        %6669 = vmatprep.subr.bf16.mxu0 0
        %6670 = vmatpush1.bf16.xpose.msra.mxu0 %v6647
        %6671 = vmatprep.subr.bf16.mxu0 0
        %6672 = vmatpush1.bf16.xpose.msra.mxu0 %v6653
        %6673 = vmatprep.subr.bf16.mxu0 0
        %6674 = vmatpush1.bf16.xpose.msra.mxu0 0
        %6675 = vmatprep.subr.bf16.mxu0 0
        %6676 = vmatpush1.bf16.xpose.msra.mxu0 0
        %6677 = vmatprep.subr.bf16.mxu0 0
        %6678 = vmatpush1.bf16.xpose.msra.mxu0 0
        %6679 = vmatprep.subr.bf16.mxu0 0
        %6680 = vmatpush1.bf16.xpose.msra.mxu0 0
        %6681 = vmatprep.subr.bf16.mxu0 0
        %6682 = vmatpush1.bf16.xpose.msra.mxu0 0
        %6683 = vmatprep.subr.bf16.mxu0 0
        %6684 = vmatpush1.bf16.xpose.msra.mxu0 0
        %6685 = vmatprep.subr.bf16.mxu0 0
        %6686 = vmatpush1.bf16.xpose.msra.mxu0 0
        %6687 = vmatprep.subr.bf16.mxu0 0
        %6688 = vmatpush1.bf16.xpose.msra.mxu0 0
        %6689 = vmatprep.mubr.bf16.mxu0 0
        %6690 = vmatmul.mubr.bf16.gmra.mrb[0].mxu0 %v6609
        %v6691 = vpop.f32.mrb[0].mxu0
        %v6692 = vadd.f32 0.0, %v6691
        %v6693 = vpop.f32.mrb[0].mxu0
        %v6694 = vpop.f32.mrb[0].mxu0
        %v6695 = vadd.f32 0.0, %v6694
        %v6696 = vpop.f32.mrb[0].mxu0
        %6697 = vmatprep.mubr.bf16.mxu0 0
        %6698 = vmatmul.mubr.bf16.gmra.mrb[0].mxu0 %v6615
        %v6699 = vpop.f32.mrb[0].mxu0
        %v6700 = vadd.f32 0.0, %v6699
        %v6701 = vpop.f32.mrb[0].mxu0
        %v6702 = vpop.f32.mrb[0].mxu0
        %v6703 = vadd.f32 0.0, %v6702
        %v6704 = vpop.f32.mrb[0].mxu0
        %6705 = vmatprep.mubr.bf16.mxu0 0
        %6706 = vmatmul.mubr.bf16.gmra.mrb[0].mxu0 %v6621
        %v6707 = vpop.f32.mrb[0].mxu0
        %v6708 = vadd.f32 0.0, %v6707
        %v6709 = vpop.f32.mrb[0].mxu0
        %v6710 = vpop.f32.mrb[0].mxu0
        %v6711 = vadd.f32 0.0, %v6710
        %v6712 = vpop.f32.mrb[0].mxu0
        %6713 = vmatprep.mubr.bf16.mxu0 0
        %6714 = vmatmul.mubr.bf16.gmra.mrb[0].mxu0 %v6627
        %v6715 = vpop.f32.mrb[0].mxu0
        %v6716 = vadd.f32 0.0, %v6715
        %v6717 = vpop.f32.mrb[0].mxu0
        %v6718 = vpop.f32.mrb[0].mxu0
        %v6719 = vadd.f32 0.0, %v6718
        %v6720 = vpop.f32.mrb[0].mxu0
        %6721 = vmatprep.mubr.bf16.mxu0 0
        %6722 = vmatmul.mubr.bf16.gmra.mrb[0].mxu0 %v6633
        %v6723 = vpop.f32.mrb[0].mxu0
        %v6724 = vadd.f32 0.0, %v6723
        %v6725 = vpop.f32.mrb[0].mxu0
        %v6726 = vpop.f32.mrb[0].mxu0
        %v6727 = vadd.f32 0.0, %v6726
        %v6728 = vpop.f32.mrb[0].mxu0
        %6729 = vmatprep.mubr.bf16.mxu0 0
        %6730 = vmatmul.mubr.bf16.gmra.mrb[0].mxu0 %v6639
        %v6731 = vpop.f32.mrb[0].mxu0
        %v6732 = vadd.f32 0.0, %v6731
        %v6733 = vpop.f32.mrb[0].mxu0
        %v6734 = vpop.f32.mrb[0].mxu0
        %v6735 = vadd.f32 0.0, %v6734
        %v6736 = vpop.f32.mrb[0].mxu0
        %6737 = vmatprep.mubr.bf16.mxu0 0
        %6738 = vmatmul.mubr.bf16.gmra.mrb[0].mxu0 %v6645
        %v6739 = vpop.f32.mrb[0].mxu0
        %v6740 = vadd.f32 0.0, %v6739
        %v6741 = vpop.f32.mrb[0].mxu0
        %v6742 = vpop.f32.mrb[0].mxu0
        %v6743 = vadd.f32 0.0, %v6742
        %v6744 = vpop.f32.mrb[0].mxu0
        %6745 = vmatprep.mubr.bf16.mxu0 0
        %6746 = vmatmul.mubr.bf16.gmra.mrb[0].mxu0 %v6651
        %v6747 = vpop.f32.mrb[0].mxu0
        %v6748 = vadd.f32 0.0, %v6747
        %v6749 = vpop.f32.mrb[0].mxu0
        %v6750 = vpop.f32.mrb[0].mxu0
        %v6751 = vadd.f32 0.0, %v6750
        %v6752 = vpop.f32.mrb[0].mxu0
        %6753 = vdwg.mxu0
        %6754 = vmax.xlane.f32.xlu0 %v6692
        %v6755 = vpop.xlane.xlu0 %6754
        %6756 = vmax.xlane.f32.xlu0 %v6695
        %v6757 = vpop.xlane.xlu0 %6756
        %6758 = vmax.xlane.f32.xlu0 %v6700
        %v6759 = vpop.xlane.xlu0 %6758
        %6760 = vmax.xlane.f32.xlu0 %v6703
        %v6761 = vpop.xlane.xlu0 %6760
        %6762 = vmax.xlane.f32.xlu0 %v6708
        %v6763 = vpop.xlane.xlu0 %6762
        %6764 = vmax.xlane.f32.xlu0 %v6711
        %v6765 = vpop.xlane.xlu0 %6764
        %6766 = vmax.xlane.f32.xlu0 %v6716
        %v6767 = vpop.xlane.xlu0 %6766
        %6768 = vmax.xlane.f32.xlu0 %v6719
        %v6769 = vpop.xlane.xlu0 %6768
        %6770 = vmax.xlane.f32.xlu0 %v6724
        %v6771 = vpop.xlane.xlu0 %6770
        %6772 = vmax.xlane.f32.xlu0 %v6727
        %v6773 = vpop.xlane.xlu0 %6772
        %6774 = vmax.xlane.f32.xlu0 %v6732
        %v6775 = vpop.xlane.xlu0 %6774
        %6776 = vmax.xlane.f32.xlu0 %v6735
        %v6777 = vpop.xlane.xlu0 %6776
        %6778 = vmax.xlane.f32.xlu0 %v6740
        %v6779 = vpop.xlane.xlu0 %6778
        %6780 = vmax.xlane.f32.xlu0 %v6743
        %v6781 = vpop.xlane.xlu0 %6780
        %6782 = vmax.xlane.f32.xlu0 %v6748
        %v6783 = vpop.xlane.xlu0 %6782
        %6784 = vmax.xlane.f32.xlu0 %v6751
        %v6785 = vpop.xlane.xlu0 %6784
        %v6786 = vsub.f32 %v6692, %v6755
        %v6787 = vsub.f32 %v6695, %v6757
        %v6788 = vsub.f32 %v6700, %v6759
        %v6789 = vsub.f32 %v6703, %v6761
        %v6790 = vsub.f32 %v6708, %v6763
        %v6791 = vsub.f32 %v6711, %v6765
        %v6792 = vsub.f32 %v6716, %v6767
        %v6793 = vsub.f32 %v6719, %v6769
        %v6794 = vsub.f32 %v6724, %v6771
        %v6795 = vsub.f32 %v6727, %v6773
        %v6796 = vsub.f32 %v6732, %v6775
        %v6797 = vsub.f32 %v6735, %v6777
        %v6798 = vsub.f32 %v6740, %v6779
        %v6799 = vsub.f32 %v6743, %v6781
        %v6800 = vsub.f32 %v6748, %v6783
        %v6801 = vsub.f32 %v6751, %v6785
        %v6802 = vmul.f32 %v6786, 1.442695
        %v6803 = vpow.pop %v6802
        %v6804 = vmul.f32 %v6787, 1.442695
        %v6805 = vpow.pop %v6804
        %v6806 = vmul.f32 %v6788, 1.442695
        %v6807 = vpow.pop %v6806
        %v6808 = vmul.f32 %v6789, 1.442695
        %v6809 = vpow.pop %v6808
        %v6810 = vmul.f32 %v6790, 1.442695
        %v6811 = vpow.pop %v6810
        %v6812 = vmul.f32 %v6791, 1.442695
        %v6813 = vpow.pop %v6812
        %v6814 = vmul.f32 %v6792, 1.442695
        %v6815 = vpow.pop %v6814
        %v6816 = vmul.f32 %v6793, 1.442695
        %v6817 = vpow.pop %v6816
        %v6818 = vmul.f32 %v6794, 1.442695
        %v6819 = vpow.pop %v6818
        %v6820 = vmul.f32 %v6795, 1.442695
        %v6821 = vpow.pop %v6820
        %v6822 = vmul.f32 %v6796, 1.442695
        %v6823 = vpow.pop %v6822
        %v6824 = vmul.f32 %v6797, 1.442695
        %v6825 = vpow.pop %v6824
        %v6826 = vmul.f32 %v6798, 1.442695
        %v6827 = vpow.pop %v6826
        %v6828 = vmul.f32 %v6799, 1.442695
        %v6829 = vpow.pop %v6828
        %v6830 = vmul.f32 %v6800, 1.442695
        %v6831 = vpow.pop %v6830
        %v6832 = vmul.f32 %v6801, 1.442695
        %v6833 = vpow.pop %v6832
        %6834 = vadd.xlane.f32.xlu0 %v6803
        %v6835 = vpop.xlane.xlu0 %6834
        %6836 = vadd.xlane.f32.xlu0 %v6805
        %v6837 = vpop.xlane.xlu0 %6836
        %6838 = vadd.xlane.f32.xlu0 %v6807
        %v6839 = vpop.xlane.xlu0 %6838
        %6840 = vadd.xlane.f32.xlu0 %v6809
        %v6841 = vpop.xlane.xlu0 %6840
        %6842 = vadd.xlane.f32.xlu0 %v6811
        %v6843 = vpop.xlane.xlu0 %6842
        %6844 = vadd.xlane.f32.xlu0 %v6813
        %v6845 = vpop.xlane.xlu0 %6844
        %6846 = vadd.xlane.f32.xlu0 %v6815
        %v6847 = vpop.xlane.xlu0 %6846
        %6848 = vadd.xlane.f32.xlu0 %v6817
        %v6849 = vpop.xlane.xlu0 %6848
        %6850 = vadd.xlane.f32.xlu0 %v6819
        %v6851 = vpop.xlane.xlu0 %6850
        %6852 = vadd.xlane.f32.xlu0 %v6821
        %v6853 = vpop.xlane.xlu0 %6852
        %6854 = vadd.xlane.f32.xlu0 %v6823
        %v6855 = vpop.xlane.xlu0 %6854
        %6856 = vadd.xlane.f32.xlu0 %v6825
        %v6857 = vpop.xlane.xlu0 %6856
        %6858 = vadd.xlane.f32.xlu0 %v6827
        %v6859 = vpop.xlane.xlu0 %6858
        %6860 = vadd.xlane.f32.xlu0 %v6829
        %v6861 = vpop.xlane.xlu0 %6860
        %6862 = vadd.xlane.f32.xlu0 %v6831
        %v6863 = vpop.xlane.xlu0 %6862
        %6864 = vadd.xlane.f32.xlu0 %v6833
        %v6865 = vpop.xlane.xlu0 %6864
        %v6866 = vrcp.pop %v6835
        %v6867 = vrcp.pop %v6837
        %v6868 = vrcp.pop %v6839
        %v6869 = vrcp.pop %v6841
        %v6870 = vrcp.pop %v6843
        %v6871 = vrcp.pop %v6845
        %v6872 = vrcp.pop %v6847
        %v6873 = vrcp.pop %v6849
        %v6874 = vrcp.pop %v6851
        %v6875 = vrcp.pop %v6853
        %v6876 = vrcp.pop %v6855
        %v6877 = vrcp.pop %v6857
        %v6878 = vrcp.pop %v6859
        %v6879 = vrcp.pop %v6861
        %v6880 = vrcp.pop %v6863
        %v6881 = vrcp.pop %v6865
        %v6882 = vmul.f32 %v6803, %v6866
        %v6883 = vmul.f32 %v6805, %v6867
        %v6884 = vmul.f32 %v6807, %v6868
        %v6885 = vmul.f32 %v6809, %v6869
        %v6886 = vmul.f32 %v6811, %v6870
        %v6887 = vmul.f32 %v6813, %v6871
        %v6888 = vmul.f32 %v6815, %v6872
        %v6889 = vmul.f32 %v6817, %v6873
        %v6890 = vmul.f32 %v6819, %v6874
        %v6891 = vmul.f32 %v6821, %v6875
        %v6892 = vmul.f32 %v6823, %v6876
        %v6893 = vmul.f32 %v6825, %v6877
        %v6894 = vmul.f32 %v6827, %v6878
        %v6895 = vmul.f32 %v6829, %v6879
        %v6896 = vmul.f32 %v6831, %v6880
        %v6897 = vmul.f32 %v6833, %v6881
        %v6898 = vpack.c.bf16 %v6883, %v6882
        %v6899 = vpack.c.bf16 %v6885, %v6884
        %v6900 = vpack.c.bf16 %v6887, %v6886
        %v6901 = vpack.c.bf16 %v6889, %v6888
        %v6902 = vpack.c.bf16 %v6891, %v6890
        %v6903 = vpack.c.bf16 %v6893, %v6892
        %v6904 = vpack.c.bf16 %v6895, %v6894
        %v6905 = vpack.c.bf16 %v6897, %v6896
        %6906 = vmatprep.subr.bf16.mxu0 0
        %6907 = vmatpush1.bf16.msra.mxu0 %v6613
        %6908 = vmatprep.subr.bf16.mxu0 0
        %6909 = vmatpush1.bf16.msra.mxu0 %v6619
        %6910 = vmatprep.subr.bf16.mxu0 0
        %6911 = vmatpush1.bf16.msra.mxu0 %v6625
        %6912 = vmatprep.subr.bf16.mxu0 0
        %6913 = vmatpush1.bf16.msra.mxu0 %v6631
        %6914 = vmatprep.subr.bf16.mxu0 0
        %6915 = vmatpush1.bf16.msra.mxu0 %v6637
        %6916 = vmatprep.subr.bf16.mxu0 0
        %6917 = vmatpush1.bf16.msra.mxu0 %v6643
        %6918 = vmatprep.subr.bf16.mxu0 0
        %6919 = vmatpush1.bf16.msra.mxu0 %v6649
        %6920 = vmatprep.subr.bf16.mxu0 0
        %6921 = vmatpush1.bf16.msra.mxu0 %v6655
        %6922 = vmatprep.subr.bf16.mxu0 0
        %6923 = vmatpush1.bf16.msra.mxu0 0
        %6924 = vmatprep.subr.bf16.mxu0 0
        %6925 = vmatpush1.bf16.msra.mxu0 0
        %6926 = vmatprep.subr.bf16.mxu0 0
        %6927 = vmatpush1.bf16.msra.mxu0 0
        %6928 = vmatprep.subr.bf16.mxu0 0
        %6929 = vmatpush1.bf16.msra.mxu0 0
        %6930 = vmatprep.subr.bf16.mxu0 0
        %6931 = vmatpush1.bf16.msra.mxu0 0
        %6932 = vmatprep.subr.bf16.mxu0 0
        %6933 = vmatpush1.bf16.msra.mxu0 0
        %6934 = vmatprep.subr.bf16.mxu0 0
        %6935 = vmatpush1.bf16.msra.mxu0 0
        %6936 = vmatprep.subr.bf16.mxu0 0
        %6937 = vmatpush1.bf16.msra.mxu0 0
        %6938 = vmatprep.mubr.bf16.mxu0 0
        %6939 = vmatmul.mubr.bf16.gmra.mrb[0].mxu0 %v6898
        %v6940 = vpop.f32.mrb[0].mxu0
        %v6941 = vadd.f32 0.0, %v6940
        %v6942 = vpop.f32.mrb[0].mxu0
        %v6943 = vpop.f32.mrb[0].mxu0
        %v6944 = vadd.f32 0.0, %v6943
        %v6945 = vpop.f32.mrb[0].mxu0
        %6946 = vmatprep.mubr.bf16.mxu0 0
        %6947 = vmatmul.mubr.bf16.gmra.mrb[0].mxu0 %v6899
        %v6948 = vpop.f32.mrb[0].mxu0
        %v6949 = vadd.f32 0.0, %v6948
        %v6950 = vpop.f32.mrb[0].mxu0
        %v6951 = vpop.f32.mrb[0].mxu0
        %v6952 = vadd.f32 0.0, %v6951
        %v6953 = vpop.f32.mrb[0].mxu0
        %6954 = vmatprep.mubr.bf16.mxu0 0
        %6955 = vmatmul.mubr.bf16.gmra.mrb[0].mxu0 %v6900
        %v6956 = vpop.f32.mrb[0].mxu0
        %v6957 = vadd.f32 0.0, %v6956
        %v6958 = vpop.f32.mrb[0].mxu0
        %v6959 = vpop.f32.mrb[0].mxu0
        %v6960 = vadd.f32 0.0, %v6959
        %v6961 = vpop.f32.mrb[0].mxu0
        %6962 = vmatprep.mubr.bf16.mxu0 0
        %6963 = vmatmul.mubr.bf16.gmra.mrb[0].mxu0 %v6901
        %v6964 = vpop.f32.mrb[0].mxu0
        %v6965 = vadd.f32 0.0, %v6964
        %v6966 = vpop.f32.mrb[0].mxu0
        %v6967 = vpop.f32.mrb[0].mxu0
        %v6968 = vadd.f32 0.0, %v6967
        %v6969 = vpop.f32.mrb[0].mxu0
        %6970 = vmatprep.mubr.bf16.mxu0 0
        %6971 = vmatmul.mubr.bf16.gmra.mrb[0].mxu0 %v6902
        %v6972 = vpop.f32.mrb[0].mxu0
        %v6973 = vadd.f32 0.0, %v6972
        %v6974 = vpop.f32.mrb[0].mxu0
        %v6975 = vpop.f32.mrb[0].mxu0
        %v6976 = vadd.f32 0.0, %v6975
        %v6977 = vpop.f32.mrb[0].mxu0
        %6978 = vmatprep.mubr.bf16.mxu0 0
        %6979 = vmatmul.mubr.bf16.gmra.mrb[0].mxu0 %v6903
        %v6980 = vpop.f32.mrb[0].mxu0
        %v6981 = vadd.f32 0.0, %v6980
        %v6982 = vpop.f32.mrb[0].mxu0
        %v6983 = vpop.f32.mrb[0].mxu0
        %v6984 = vadd.f32 0.0, %v6983
        %v6985 = vpop.f32.mrb[0].mxu0
        %6986 = vmatprep.mubr.bf16.mxu0 0
        %6987 = vmatmul.mubr.bf16.gmra.mrb[0].mxu0 %v6904
        %v6988 = vpop.f32.mrb[0].mxu0
        %v6989 = vadd.f32 0.0, %v6988
        %v6990 = vpop.f32.mrb[0].mxu0
        %v6991 = vpop.f32.mrb[0].mxu0
        %v6992 = vadd.f32 0.0, %v6991
        %v6993 = vpop.f32.mrb[0].mxu0
        %6994 = vmatprep.mubr.bf16.mxu0 0
        %6995 = vmatmul.mubr.bf16.gmra.mrb[0].mxu0 %v6905
        %v6996 = vpop.f32.mrb[0].mxu0
        %v6997 = vadd.f32 0.0, %v6996
        %v6998 = vpop.f32.mrb[0].mxu0
        %v6999 = vpop.f32.mrb[0].mxu0
        %v7000 = vadd.f32 0.0, %v6999
        %v7001 = vpop.f32.mrb[0].mxu0
        %7002 = vdwg.mxu0
        %7003 = vmatprep.subr.bf16.mxu0 0
        %7004 = vmatpush1.bf16.xpose.msra.mxu0 %v6612
        %7005 = vmatprep.subr.bf16.mxu0 0
        %7006 = vmatpush1.bf16.xpose.msra.mxu0 %v6618
        %7007 = vmatprep.subr.bf16.mxu0 0
        %7008 = vmatpush1.bf16.xpose.msra.mxu0 %v6624
        %7009 = vmatprep.subr.bf16.mxu0 0
        %7010 = vmatpush1.bf16.xpose.msra.mxu0 %v6630
        %7011 = vmatprep.subr.bf16.mxu0 0
        %7012 = vmatpush1.bf16.xpose.msra.mxu0 %v6636
        %7013 = vmatprep.subr.bf16.mxu0 0
        %7014 = vmatpush1.bf16.xpose.msra.mxu0 %v6642
        %7015 = vmatprep.subr.bf16.mxu0 0
        %7016 = vmatpush1.bf16.xpose.msra.mxu0 %v6648
        %7017 = vmatprep.subr.bf16.mxu0 0
        %7018 = vmatpush1.bf16.xpose.msra.mxu0 %v6654
        %7019 = vmatprep.subr.bf16.mxu0 0
        %7020 = vmatpush1.bf16.xpose.msra.mxu0 0
        %7021 = vmatprep.subr.bf16.mxu0 0
        %7022 = vmatpush1.bf16.xpose.msra.mxu0 0
        %7023 = vmatprep.subr.bf16.mxu0 0
        %7024 = vmatpush1.bf16.xpose.msra.mxu0 0
        %7025 = vmatprep.subr.bf16.mxu0 0
        %7026 = vmatpush1.bf16.xpose.msra.mxu0 0
        %7027 = vmatprep.subr.bf16.mxu0 0
        %7028 = vmatpush1.bf16.xpose.msra.mxu0 0
        %7029 = vmatprep.subr.bf16.mxu0 0
        %7030 = vmatpush1.bf16.xpose.msra.mxu0 0
        %7031 = vmatprep.subr.bf16.mxu0 0
        %7032 = vmatpush1.bf16.xpose.msra.mxu0 0
        %7033 = vmatprep.subr.bf16.mxu0 0
        %7034 = vmatpush1.bf16.xpose.msra.mxu0 0
        %7035 = vmatprep.mubr.bf16.mxu0 0
        %7036 = vmatmul.mubr.bf16.gmra.mrb[0].mxu0 %v6610
        %v7037 = vpop.f32.mrb[0].mxu0
        %v7038 = vadd.f32 0.0, %v7037
        %v7039 = vpop.f32.mrb[0].mxu0
        %v7040 = vpop.f32.mrb[0].mxu0
        %v7041 = vadd.f32 0.0, %v7040
        %v7042 = vpop.f32.mrb[0].mxu0
        %7043 = vmatprep.mubr.bf16.mxu0 0
        %7044 = vmatmul.mubr.bf16.gmra.mrb[0].mxu0 %v6616
        %v7045 = vpop.f32.mrb[0].mxu0
        %v7046 = vadd.f32 0.0, %v7045
        %v7047 = vpop.f32.mrb[0].mxu0
        %v7048 = vpop.f32.mrb[0].mxu0
        %v7049 = vadd.f32 0.0, %v7048
        %v7050 = vpop.f32.mrb[0].mxu0
        %7051 = vmatprep.mubr.bf16.mxu0 0
        %7052 = vmatmul.mubr.bf16.gmra.mrb[0].mxu0 %v6622
        %v7053 = vpop.f32.mrb[0].mxu0
        %v7054 = vadd.f32 0.0, %v7053
        %v7055 = vpop.f32.mrb[0].mxu0
        %v7056 = vpop.f32.mrb[0].mxu0
        %v7057 = vadd.f32 0.0, %v7056
        %v7058 = vpop.f32.mrb[0].mxu0
        %7059 = vmatprep.mubr.bf16.mxu0 0
        %7060 = vmatmul.mubr.bf16.gmra.mrb[0].mxu0 %v6628
        %v7061 = vpop.f32.mrb[0].mxu0
        %v7062 = vadd.f32 0.0, %v7061
        %v7063 = vpop.f32.mrb[0].mxu0
        %v7064 = vpop.f32.mrb[0].mxu0
        %v7065 = vadd.f32 0.0, %v7064
        %v7066 = vpop.f32.mrb[0].mxu0
        %7067 = vmatprep.mubr.bf16.mxu0 0
        %7068 = vmatmul.mubr.bf16.gmra.mrb[0].mxu0 %v6634
        %v7069 = vpop.f32.mrb[0].mxu0
        %v7070 = vadd.f32 0.0, %v7069
        %v7071 = vpop.f32.mrb[0].mxu0
        %v7072 = vpop.f32.mrb[0].mxu0
        %v7073 = vadd.f32 0.0, %v7072
        %v7074 = vpop.f32.mrb[0].mxu0
        %7075 = vmatprep.mubr.bf16.mxu0 0
        %7076 = vmatmul.mubr.bf16.gmra.mrb[0].mxu0 %v6640
        %v7077 = vpop.f32.mrb[0].mxu0
        %v7078 = vadd.f32 0.0, %v7077
        %v7079 = vpop.f32.mrb[0].mxu0
        %v7080 = vpop.f32.mrb[0].mxu0
        %v7081 = vadd.f32 0.0, %v7080
        %v7082 = vpop.f32.mrb[0].mxu0
        %7083 = vmatprep.mubr.bf16.mxu0 0
        %7084 = vmatmul.mubr.bf16.gmra.mrb[0].mxu0 %v6646
        %v7085 = vpop.f32.mrb[0].mxu0
        %v7086 = vadd.f32 0.0, %v7085
        %v7087 = vpop.f32.mrb[0].mxu0
        %v7088 = vpop.f32.mrb[0].mxu0
        %v7089 = vadd.f32 0.0, %v7088
        %v7090 = vpop.f32.mrb[0].mxu0
        %7091 = vmatprep.mubr.bf16.mxu0 0
        %7092 = vmatmul.mubr.bf16.gmra.mrb[0].mxu0 %v6652
        %v7093 = vpop.f32.mrb[0].mxu0
        %v7094 = vadd.f32 0.0, %v7093
        %v7095 = vpop.f32.mrb[0].mxu0
        %v7096 = vpop.f32.mrb[0].mxu0
        %v7097 = vadd.f32 0.0, %v7096
        %v7098 = vpop.f32.mrb[0].mxu0
        %7099 = vdwg.mxu0
        %7100 = vmax.xlane.f32.xlu0 %v7038
        %v7101 = vpop.xlane.xlu0 %7100
        %7102 = vmax.xlane.f32.xlu0 %v7041
        %v7103 = vpop.xlane.xlu0 %7102
        %7104 = vmax.xlane.f32.xlu0 %v7046
        %v7105 = vpop.xlane.xlu0 %7104
        %7106 = vmax.xlane.f32.xlu0 %v7049
        %v7107 = vpop.xlane.xlu0 %7106
        %7108 = vmax.xlane.f32.xlu0 %v7054
        %v7109 = vpop.xlane.xlu0 %7108
        %7110 = vmax.xlane.f32.xlu0 %v7057
        %v7111 = vpop.xlane.xlu0 %7110
        %7112 = vmax.xlane.f32.xlu0 %v7062
        %v7113 = vpop.xlane.xlu0 %7112
        %7114 = vmax.xlane.f32.xlu0 %v7065
        %v7115 = vpop.xlane.xlu0 %7114
        %7116 = vmax.xlane.f32.xlu0 %v7070
        %v7117 = vpop.xlane.xlu0 %7116
        %7118 = vmax.xlane.f32.xlu0 %v7073
        %v7119 = vpop.xlane.xlu0 %7118
        %7120 = vmax.xlane.f32.xlu0 %v7078
        %v7121 = vpop.xlane.xlu0 %7120
        %7122 = vmax.xlane.f32.xlu0 %v7081
        %v7123 = vpop.xlane.xlu0 %7122
        %7124 = vmax.xlane.f32.xlu0 %v7086
        %v7125 = vpop.xlane.xlu0 %7124
        %7126 = vmax.xlane.f32.xlu0 %v7089
        %v7127 = vpop.xlane.xlu0 %7126
        %7128 = vmax.xlane.f32.xlu0 %v7094
        %v7129 = vpop.xlane.xlu0 %7128
        %7130 = vmax.xlane.f32.xlu0 %v7097
        %v7131 = vpop.xlane.xlu0 %7130
        %v7132 = vsub.f32 %v7038, %v7101
        %v7133 = vsub.f32 %v7041, %v7103
        %v7134 = vsub.f32 %v7046, %v7105
        %v7135 = vsub.f32 %v7049, %v7107
        %v7136 = vsub.f32 %v7054, %v7109
        %v7137 = vsub.f32 %v7057, %v7111
        %v7138 = vsub.f32 %v7062, %v7113
        %v7139 = vsub.f32 %v7065, %v7115
        %v7140 = vsub.f32 %v7070, %v7117
        %v7141 = vsub.f32 %v7073, %v7119
        %v7142 = vsub.f32 %v7078, %v7121
        %v7143 = vsub.f32 %v7081, %v7123
        %v7144 = vsub.f32 %v7086, %v7125
        %v7145 = vsub.f32 %v7089, %v7127
        %v7146 = vsub.f32 %v7094, %v7129
        %v7147 = vsub.f32 %v7097, %v7131
        %v7148 = vmul.f32 %v7132, 1.442695
        %v7149 = vpow.pop %v7148
        %v7150 = vmul.f32 %v7133, 1.442695
        %v7151 = vpow.pop %v7150
        %v7152 = vmul.f32 %v7134, 1.442695
        %v7153 = vpow.pop %v7152
        %v7154 = vmul.f32 %v7135, 1.442695
        %v7155 = vpow.pop %v7154
        %v7156 = vmul.f32 %v7136, 1.442695
        %v7157 = vpow.pop %v7156
        %v7158 = vmul.f32 %v7137, 1.442695
        %v7159 = vpow.pop %v7158
        %v7160 = vmul.f32 %v7138, 1.442695
        %v7161 = vpow.pop %v7160
        %v7162 = vmul.f32 %v7139, 1.442695
        %v7163 = vpow.pop %v7162
        %v7164 = vmul.f32 %v7140, 1.442695
        %v7165 = vpow.pop %v7164
        %v7166 = vmul.f32 %v7141, 1.442695
        %v7167 = vpow.pop %v7166
        %v7168 = vmul.f32 %v7142, 1.442695
        %v7169 = vpow.pop %v7168
        %v7170 = vmul.f32 %v7143, 1.442695
        %v7171 = vpow.pop %v7170
        %v7172 = vmul.f32 %v7144, 1.442695
        %v7173 = vpow.pop %v7172
        %v7174 = vmul.f32 %v7145, 1.442695
        %v7175 = vpow.pop %v7174
        %v7176 = vmul.f32 %v7146, 1.442695
        %v7177 = vpow.pop %v7176
        %v7178 = vmul.f32 %v7147, 1.442695
        %v7179 = vpow.pop %v7178
        %7180 = vadd.xlane.f32.xlu0 %v7149
        %v7181 = vpop.xlane.xlu0 %7180
        %7182 = vadd.xlane.f32.xlu0 %v7151
        %v7183 = vpop.xlane.xlu0 %7182
        %7184 = vadd.xlane.f32.xlu0 %v7153
        %v7185 = vpop.xlane.xlu0 %7184
        %7186 = vadd.xlane.f32.xlu0 %v7155
        %v7187 = vpop.xlane.xlu0 %7186
        %7188 = vadd.xlane.f32.xlu0 %v7157
        %v7189 = vpop.xlane.xlu0 %7188
        %7190 = vadd.xlane.f32.xlu0 %v7159
        %v7191 = vpop.xlane.xlu0 %7190
        %7192 = vadd.xlane.f32.xlu0 %v7161
        %v7193 = vpop.xlane.xlu0 %7192
        %7194 = vadd.xlane.f32.xlu0 %v7163
        %v7195 = vpop.xlane.xlu0 %7194
        %7196 = vadd.xlane.f32.xlu0 %v7165
        %v7197 = vpop.xlane.xlu0 %7196
        %7198 = vadd.xlane.f32.xlu0 %v7167
        %v7199 = vpop.xlane.xlu0 %7198
        %7200 = vadd.xlane.f32.xlu0 %v7169
        %v7201 = vpop.xlane.xlu0 %7200
        %7202 = vadd.xlane.f32.xlu0 %v7171
        %v7203 = vpop.xlane.xlu0 %7202
        %7204 = vadd.xlane.f32.xlu0 %v7173
        %v7205 = vpop.xlane.xlu0 %7204
        %7206 = vadd.xlane.f32.xlu0 %v7175
        %v7207 = vpop.xlane.xlu0 %7206
        %7208 = vadd.xlane.f32.xlu0 %v7177
        %v7209 = vpop.xlane.xlu0 %7208
        %7210 = vadd.xlane.f32.xlu0 %v7179
        %v7211 = vpop.xlane.xlu0 %7210
        %v7212 = vrcp.pop %v7181
        %v7213 = vrcp.pop %v7183
        %v7214 = vrcp.pop %v7185
        %v7215 = vrcp.pop %v7187
        %v7216 = vrcp.pop %v7189
        %v7217 = vrcp.pop %v7191
        %v7218 = vrcp.pop %v7193
        %v7219 = vrcp.pop %v7195
        %v7220 = vrcp.pop %v7197
        %v7221 = vrcp.pop %v7199
        %v7222 = vrcp.pop %v7201
        %v7223 = vrcp.pop %v7203
        %v7224 = vrcp.pop %v7205
        %v7225 = vrcp.pop %v7207
        %v7226 = vrcp.pop %v7209
        %v7227 = vrcp.pop %v7211
        %v7228 = vmul.f32 %v7149, %v7212
        %v7229 = vmul.f32 %v7151, %v7213
        %v7230 = vmul.f32 %v7153, %v7214
        %v7231 = vmul.f32 %v7155, %v7215
        %v7232 = vmul.f32 %v7157, %v7216
        %v7233 = vmul.f32 %v7159, %v7217
        %v7234 = vmul.f32 %v7161, %v7218
        %v7235 = vmul.f32 %v7163, %v7219
        %v7236 = vmul.f32 %v7165, %v7220
        %v7237 = vmul.f32 %v7167, %v7221
        %v7238 = vmul.f32 %v7169, %v7222
        %v7239 = vmul.f32 %v7171, %v7223
        %v7240 = vmul.f32 %v7173, %v7224
        %v7241 = vmul.f32 %v7175, %v7225
        %v7242 = vmul.f32 %v7177, %v7226
        %v7243 = vmul.f32 %v7179, %v7227
        %v7244 = vpack.c.bf16 %v7229, %v7228
        %v7245 = vpack.c.bf16 %v7231, %v7230
        %v7246 = vpack.c.bf16 %v7233, %v7232
        %v7247 = vpack.c.bf16 %v7235, %v7234
        %v7248 = vpack.c.bf16 %v7237, %v7236
        %v7249 = vpack.c.bf16 %v7239, %v7238
        %v7250 = vpack.c.bf16 %v7241, %v7240
        %v7251 = vpack.c.bf16 %v7243, %v7242
        %7252 = vmatprep.subr.bf16.mxu0 0
        %7253 = vmatpush1.bf16.msra.mxu0 %v6614
        %7254 = vmatprep.subr.bf16.mxu0 0
        %7255 = vmatpush1.bf16.msra.mxu0 %v6620
        %7256 = vmatprep.subr.bf16.mxu0 0
        %7257 = vmatpush1.bf16.msra.mxu0 %v6626
        %7258 = vmatprep.subr.bf16.mxu0 0
        %7259 = vmatpush1.bf16.msra.mxu0 %v6632
        %7260 = vmatprep.subr.bf16.mxu0 0
        %7261 = vmatpush1.bf16.msra.mxu0 %v6638
        %7262 = vmatprep.subr.bf16.mxu0 0
        %7263 = vmatpush1.bf16.msra.mxu0 %v6644
        %7264 = vmatprep.subr.bf16.mxu0 0
        %7265 = vmatpush1.bf16.msra.mxu0 %v6650
        %7266 = vmatprep.subr.bf16.mxu0 0
        %7267 = vmatpush1.bf16.msra.mxu0 %v6656
        %7268 = vmatprep.subr.bf16.mxu0 0
        %7269 = vmatpush1.bf16.msra.mxu0 0
        %7270 = vmatprep.subr.bf16.mxu0 0
        %7271 = vmatpush1.bf16.msra.mxu0 0
        %7272 = vmatprep.subr.bf16.mxu0 0
        %7273 = vmatpush1.bf16.msra.mxu0 0
        %7274 = vmatprep.subr.bf16.mxu0 0
        %7275 = vmatpush1.bf16.msra.mxu0 0
        %7276 = vmatprep.subr.bf16.mxu0 0
        %7277 = vmatpush1.bf16.msra.mxu0 0
        %7278 = vmatprep.subr.bf16.mxu0 0
        %7279 = vmatpush1.bf16.msra.mxu0 0
        %7280 = vmatprep.subr.bf16.mxu0 0
        %7281 = vmatpush1.bf16.msra.mxu0 0
        %7282 = vmatprep.subr.bf16.mxu0 0
        %7283 = vmatpush1.bf16.msra.mxu0 0
        %7284 = vmatprep.mubr.bf16.mxu0 0
        %7285 = vmatmul.mubr.bf16.gmra.mrb[0].mxu0 %v7244
        %v7286 = vpop.f32.mrb[0].mxu0
        %v7287 = vadd.f32 0.0, %v7286
        %v7288 = vpop.f32.mrb[0].mxu0
        %v7289 = vpop.f32.mrb[0].mxu0
        %v7290 = vadd.f32 0.0, %v7289
        %v7291 = vpop.f32.mrb[0].mxu0
        %7292 = vmatprep.mubr.bf16.mxu0 0
        %7293 = vmatmul.mubr.bf16.gmra.mrb[0].mxu0 %v7245
        %v7294 = vpop.f32.mrb[0].mxu0
        %v7295 = vadd.f32 0.0, %v7294
        %v7296 = vpop.f32.mrb[0].mxu0
        %v7297 = vpop.f32.mrb[0].mxu0
        %v7298 = vadd.f32 0.0, %v7297
        %v7299 = vpop.f32.mrb[0].mxu0
        %7300 = vmatprep.mubr.bf16.mxu0 0
        %7301 = vmatmul.mubr.bf16.gmra.mrb[0].mxu0 %v7246
        %v7302 = vpop.f32.mrb[0].mxu0
        %v7303 = vadd.f32 0.0, %v7302
        %v7304 = vpop.f32.mrb[0].mxu0
        %v7305 = vpop.f32.mrb[0].mxu0
        %v7306 = vadd.f32 0.0, %v7305
        %v7307 = vpop.f32.mrb[0].mxu0
        %7308 = vmatprep.mubr.bf16.mxu0 0
        %7309 = vmatmul.mubr.bf16.gmra.mrb[0].mxu0 %v7247
        %v7310 = vpop.f32.mrb[0].mxu0
        %v7311 = vadd.f32 0.0, %v7310
        %v7312 = vpop.f32.mrb[0].mxu0
        %v7313 = vpop.f32.mrb[0].mxu0
        %v7314 = vadd.f32 0.0, %v7313
        %v7315 = vpop.f32.mrb[0].mxu0
        %7316 = vmatprep.mubr.bf16.mxu0 0
        %7317 = vmatmul.mubr.bf16.gmra.mrb[0].mxu0 %v7248
        %v7318 = vpop.f32.mrb[0].mxu0
        %v7319 = vadd.f32 0.0, %v7318
        %v7320 = vpop.f32.mrb[0].mxu0
        %v7321 = vpop.f32.mrb[0].mxu0
        %v7322 = vadd.f32 0.0, %v7321
        %v7323 = vpop.f32.mrb[0].mxu0
        %7324 = vmatprep.mubr.bf16.mxu0 0
        %7325 = vmatmul.mubr.bf16.gmra.mrb[0].mxu0 %v7249
        %v7326 = vpop.f32.mrb[0].mxu0
        %v7327 = vadd.f32 0.0, %v7326
        %v7328 = vpop.f32.mrb[0].mxu0
        %v7329 = vpop.f32.mrb[0].mxu0
        %v7330 = vadd.f32 0.0, %v7329
        %v7331 = vpop.f32.mrb[0].mxu0
        %7332 = vmatprep.mubr.bf16.mxu0 0
        %7333 = vmatmul.mubr.bf16.gmra.mrb[0].mxu0 %v7250
        %v7334 = vpop.f32.mrb[0].mxu0
        %v7335 = vadd.f32 0.0, %v7334
        %v7336 = vpop.f32.mrb[0].mxu0
        %v7337 = vpop.f32.mrb[0].mxu0
        %v7338 = vadd.f32 0.0, %v7337
        %v7339 = vpop.f32.mrb[0].mxu0
        %7340 = vmatprep.mubr.bf16.mxu0 0
        %7341 = vmatmul.mubr.bf16.gmra.mrb[0].mxu0 %v7251
        %v7342 = vpop.f32.mrb[0].mxu0
        %v7343 = vadd.f32 0.0, %v7342
        %v7344 = vpop.f32.mrb[0].mxu0
        %v7345 = vpop.f32.mrb[0].mxu0
        %v7346 = vadd.f32 0.0, %v7345
        %v7347 = vpop.f32.mrb[0].mxu0
        %7348 = vdwg.mxu0
        %v7349 = vpack.c.bf16 %v6944, %v6941
        %v7350 = vpack.c.bf16 %v7290, %v7287
        %v7351 = vpack.c.bf16 %v6952, %v6949
        %v7352 = vpack.c.bf16 %v7298, %v7295
        %v7353 = vpack.c.bf16 %v6960, %v6957
        %v7354 = vpack.c.bf16 %v7306, %v7303
        %v7355 = vpack.c.bf16 %v6968, %v6965
        %v7356 = vpack.c.bf16 %v7314, %v7311
        %v7357 = vpack.c.bf16 %v6976, %v6973
        %v7358 = vpack.c.bf16 %v7322, %v7319
        %v7359 = vpack.c.bf16 %v6984, %v6981
        %v7360 = vpack.c.bf16 %v7330, %v7327
        %v7361 = vpack.c.bf16 %v6992, %v6989
        %v7362 = vpack.c.bf16 %v7338, %v7335
        %v7363 = vpack.c.bf16 %v7000, %v6997
        %v7364 = vpack.c.bf16 %v7346, %v7343
        %s7365 = scalar_lea.vmem %s5, 256
        %v7366 = vld [vmem:[%s7365] sm:$0xff]
        %v7367 = vld [vmem:[%s7365 + $0x8] sm:$0xff]
        %v7368 = vld [vmem:[%s7365 + $0x10] sm:$0xff]
        %v7369 = vld [vmem:[%s7365 + $0x18] sm:$0xff]
        %v7370 = vld [vmem:[%s7365 + $0x20] sm:$0xff]
        %v7371 = vld [vmem:[%s7365 + $0x28] sm:$0xff]
        %v7372 = vld [vmem:[%s7365 + $0x30] sm:$0xff]
        %v7373 = vld [vmem:[%s7365 + $0x38] sm:$0xff]
        %v7374 = vld [vmem:[%s7365 + $0x40] sm:$0xff]
        %v7375 = vld [vmem:[%s7365 + $0x48] sm:$0xff]
        %v7376 = vld [vmem:[%s7365 + $0x50] sm:$0xff]
        %v7377 = vld [vmem:[%s7365 + $0x58] sm:$0xff]
        %v7378 = vld [vmem:[%s7365 + $0x60] sm:$0xff]
        %v7379 = vld [vmem:[%s7365 + $0x68] sm:$0xff]
        %v7380 = vld [vmem:[%s7365 + $0x70] sm:$0xff]
        %v7381 = vld [vmem:[%s7365 + $0x78] sm:$0xff]
        %v7382 = vld [vmem:[%s7365 + $0x80] sm:$0xff]
        %v7383 = vld [vmem:[%s7365 + $0x88] sm:$0xff]
        %v7384 = vld [vmem:[%s7365 + $0x90] sm:$0xff]
        %v7385 = vld [vmem:[%s7365 + $0x98] sm:$0xff]
        %v7386 = vld [vmem:[%s7365 + $0xa0] sm:$0xff]
        %v7387 = vld [vmem:[%s7365 + $0xa8] sm:$0xff]
        %v7388 = vld [vmem:[%s7365 + $0xb0] sm:$0xff]
        %v7389 = vld [vmem:[%s7365 + $0xb8] sm:$0xff]
        %v7390 = vld [vmem:[%s7365 + $0xc0] sm:$0xff]
        %v7391 = vld [vmem:[%s7365 + $0xc8] sm:$0xff]
        %v7392 = vld [vmem:[%s7365 + $0xd0] sm:$0xff]
        %v7393 = vld [vmem:[%s7365 + $0xd8] sm:$0xff]
        %v7394 = vld [vmem:[%s7365 + $0xe0] sm:$0xff]
        %v7395 = vld [vmem:[%s7365 + $0xe8] sm:$0xff]
        %v7396 = vld [vmem:[%s7365 + $0xf0] sm:$0xff]
        %v7397 = vld [vmem:[%s7365 + $0xf8] sm:$0xff]
        %s7398 = scalar_lea.vmem %s6, 2
        %v7399 = vld [vmem:[%s7398] sm:$0x3]
        %v7401 = vlaneseq
        %v7402 = vshrl.u32 %v7401, 7
        %v7403 = vsub.s32 0, %v7402
        %v7404 = vrot.slane %v7399, %v7403
        %v7405 = vlaneseq
        %v7406 = vshrl.u32 %v7405, 7
        %v7407 = vsub.s32 1, %v7406
        %v7408 = vrot.slane %v7399, %v7407
        %v7443 = vunpack.c.l.b16 %v7366
        %v7444 = vunpack.c.h.b16 %v7366
        %v7445 = vunpack.c.l.b16 %v7367
        %v7446 = vunpack.c.h.b16 %v7367
        %v7447 = vunpack.c.l.b16 %v7368
        %v7448 = vunpack.c.h.b16 %v7368
        %v7449 = vunpack.c.l.b16 %v7369
        %v7450 = vunpack.c.h.b16 %v7369
        %v7451 = vunpack.c.l.b16 %v7370
        %v7452 = vunpack.c.h.b16 %v7370
        %v7453 = vunpack.c.l.b16 %v7371
        %v7454 = vunpack.c.h.b16 %v7371
        %v7455 = vunpack.c.l.b16 %v7372
        %v7456 = vunpack.c.h.b16 %v7372
        %v7457 = vunpack.c.l.b16 %v7373
        %v7458 = vunpack.c.h.b16 %v7373
        %v7459 = vunpack.c.l.b16 %v7374
        %v7460 = vunpack.c.h.b16 %v7374
        %v7461 = vunpack.c.l.b16 %v7375
        %v7462 = vunpack.c.h.b16 %v7375
        %v7463 = vunpack.c.l.b16 %v7376
        %v7464 = vunpack.c.h.b16 %v7376
        %v7465 = vunpack.c.l.b16 %v7377
        %v7466 = vunpack.c.h.b16 %v7377
        %v7467 = vunpack.c.l.b16 %v7378
        %v7468 = vunpack.c.h.b16 %v7378
        %v7469 = vunpack.c.l.b16 %v7379
        %v7470 = vunpack.c.h.b16 %v7379
        %v7471 = vunpack.c.l.b16 %v7380
        %v7472 = vunpack.c.h.b16 %v7380
        %v7473 = vunpack.c.l.b16 %v7381
        %v7474 = vunpack.c.h.b16 %v7381
        %v7475 = vunpack.c.l.b16 %v7382
        %v7476 = vunpack.c.h.b16 %v7382
        %v7477 = vunpack.c.l.b16 %v7383
        %v7478 = vunpack.c.h.b16 %v7383
        %v7479 = vunpack.c.l.b16 %v7384
        %v7480 = vunpack.c.h.b16 %v7384
        %v7481 = vunpack.c.l.b16 %v7385
        %v7482 = vunpack.c.h.b16 %v7385
        %v7483 = vunpack.c.l.b16 %v7386
        %v7484 = vunpack.c.h.b16 %v7386
        %v7485 = vunpack.c.l.b16 %v7387
        %v7486 = vunpack.c.h.b16 %v7387
        %v7487 = vunpack.c.l.b16 %v7388
        %v7488 = vunpack.c.h.b16 %v7388
        %v7489 = vunpack.c.l.b16 %v7389
        %v7490 = vunpack.c.h.b16 %v7389
        %v7491 = vunpack.c.l.b16 %v7390
        %v7492 = vunpack.c.h.b16 %v7390
        %v7493 = vunpack.c.l.b16 %v7391
        %v7494 = vunpack.c.h.b16 %v7391
        %v7495 = vunpack.c.l.b16 %v7392
        %v7496 = vunpack.c.h.b16 %v7392
        %v7497 = vunpack.c.l.b16 %v7393
        %v7498 = vunpack.c.h.b16 %v7393
        %v7499 = vunpack.c.l.b16 %v7394
        %v7500 = vunpack.c.h.b16 %v7394
        %v7501 = vunpack.c.l.b16 %v7395
        %v7502 = vunpack.c.h.b16 %v7395
        %v7503 = vunpack.c.l.b16 %v7396
        %v7504 = vunpack.c.h.b16 %v7396
        %v7505 = vunpack.c.l.b16 %v7397
        %v7506 = vunpack.c.h.b16 %v7397
        %v7507 = vpack.c.b16 %v7445, %v7443
        %v7508 = vpack.c.b16 %v7446, %v7444
        %v7509 = vpack.c.b16 %v7449, %v7447
        %v7510 = vpack.c.b16 %v7450, %v7448
        %v7511 = vpack.c.b16 %v7453, %v7451
        %v7512 = vpack.c.b16 %v7454, %v7452
        %v7513 = vpack.c.b16 %v7457, %v7455
        %v7514 = vpack.c.b16 %v7458, %v7456
        %v7515 = vpack.c.b16 %v7461, %v7459
        %v7516 = vpack.c.b16 %v7462, %v7460
        %v7517 = vpack.c.b16 %v7465, %v7463
        %v7518 = vpack.c.b16 %v7466, %v7464
        %v7519 = vpack.c.b16 %v7469, %v7467
        %v7520 = vpack.c.b16 %v7470, %v7468
        %v7521 = vpack.c.b16 %v7473, %v7471
        %v7522 = vpack.c.b16 %v7474, %v7472
        %v7523 = vpack.c.b16 %v7477, %v7475
        %v7524 = vpack.c.b16 %v7478, %v7476
        %v7525 = vpack.c.b16 %v7481, %v7479
        %v7526 = vpack.c.b16 %v7482, %v7480
        %v7527 = vpack.c.b16 %v7485, %v7483
        %v7528 = vpack.c.b16 %v7486, %v7484
        %v7529 = vpack.c.b16 %v7489, %v7487
        %v7530 = vpack.c.b16 %v7490, %v7488
        %v7531 = vpack.c.b16 %v7493, %v7491
        %v7532 = vpack.c.b16 %v7494, %v7492
        %v7533 = vpack.c.b16 %v7497, %v7495
        %v7534 = vpack.c.b16 %v7498, %v7496
        %v7535 = vpack.c.b16 %v7501, %v7499
        %v7536 = vpack.c.b16 %v7502, %v7500
        %v7537 = vpack.c.b16 %v7505, %v7503
        %v7538 = vpack.c.b16 %v7506, %v7504
        %7571 = vmatprep.subr.bf16.mxu0 %v7508
        %7572 = vmatpush1.bf16.msra.mxu0 %v7507
        %7573 = vmatprep.subr.bf16.mxu0 %v7510
        %7574 = vmatpush1.bf16.msra.mxu0 %v7509
        %7575 = vmatprep.subr.bf16.mxu0 %v7512
        %7576 = vmatpush1.bf16.msra.mxu0 %v7511
        %7577 = vmatprep.subr.bf16.mxu0 %v7514
        %7578 = vmatpush1.bf16.msra.mxu0 %v7513
        %7579 = vmatprep.subr.bf16.mxu0 %v7516
        %7580 = vmatpush1.bf16.msra.mxu0 %v7515
        %7581 = vmatprep.subr.bf16.mxu0 %v7518
        %7582 = vmatpush1.bf16.msra.mxu0 %v7517
        %7583 = vmatprep.subr.bf16.mxu0 %v7520
        %7584 = vmatpush1.bf16.msra.mxu0 %v7519
        %7585 = vmatprep.subr.bf16.mxu0 %v7522
        %7586 = vmatpush1.bf16.msra.mxu0 %v7521
        %7587 = vmatprep.subr.bf16.mxu0 %v7524
        %7588 = vmatpush1.bf16.msra.mxu0 %v7523
        %7589 = vmatprep.subr.bf16.mxu0 %v7526
        %7590 = vmatpush1.bf16.msra.mxu0 %v7525
        %7591 = vmatprep.subr.bf16.mxu0 %v7528
        %7592 = vmatpush1.bf16.msra.mxu0 %v7527
        %7593 = vmatprep.subr.bf16.mxu0 %v7530
        %7594 = vmatpush1.bf16.msra.mxu0 %v7529
        %7595 = vmatprep.subr.bf16.mxu0 %v7532
        %7596 = vmatpush1.bf16.msra.mxu0 %v7531
        %7597 = vmatprep.subr.bf16.mxu0 %v7534
        %7598 = vmatpush1.bf16.msra.mxu0 %v7533
        %7599 = vmatprep.subr.bf16.mxu0 %v7536
        %7600 = vmatpush1.bf16.msra.mxu0 %v7535
        %7601 = vmatprep.subr.bf16.mxu0 %v7538
        %7602 = vmatpush1.bf16.msra.mxu0 %v7537
        %7603 = vmatprep.mubr.bf16.mxu0 %v7350
        %7604 = vmatmul.mubr.bf16.gmra.mrb[0].mxu0 %v7349
        %v7605 = vpop.f32.mrb[0].mxu0
        %v7606 = vadd.f32 %v7404, %v7605
        %v7607 = vpop.f32.mrb[0].mxu0
        %v7608 = vadd.f32 %v7408, %v7607
        %v7609 = vpop.f32.mrb[0].mxu0
        %v7610 = vadd.f32 %v7404, %v7609
        %v7611 = vpop.f32.mrb[0].mxu0
        %v7612 = vadd.f32 %v7408, %v7611
        %7613 = vmatprep.mubr.bf16.mxu0 %v7352
        %7614 = vmatmul.mubr.bf16.gmra.mrb[0].mxu0 %v7351
        %v7615 = vpop.f32.mrb[0].mxu0
        %v7616 = vadd.f32 %v7404, %v7615
        %v7617 = vpop.f32.mrb[0].mxu0
        %v7618 = vadd.f32 %v7408, %v7617
        %v7619 = vpop.f32.mrb[0].mxu0
        %v7620 = vadd.f32 %v7404, %v7619
        %v7621 = vpop.f32.mrb[0].mxu0
        %v7622 = vadd.f32 %v7408, %v7621
        %7623 = vmatprep.mubr.bf16.mxu0 %v7354
        %7624 = vmatmul.mubr.bf16.gmra.mrb[0].mxu0 %v7353
        %v7625 = vpop.f32.mrb[0].mxu0
        %v7626 = vadd.f32 %v7404, %v7625
        %v7627 = vpop.f32.mrb[0].mxu0
        %v7628 = vadd.f32 %v7408, %v7627
        %v7629 = vpop.f32.mrb[0].mxu0
        %v7630 = vadd.f32 %v7404, %v7629
        %v7631 = vpop.f32.mrb[0].mxu0
        %v7632 = vadd.f32 %v7408, %v7631
        %7633 = vmatprep.mubr.bf16.mxu0 %v7356
        %7634 = vmatmul.mubr.bf16.gmra.mrb[0].mxu0 %v7355
        %v7635 = vpop.f32.mrb[0].mxu0
        %v7636 = vadd.f32 %v7404, %v7635
        %v7637 = vpop.f32.mrb[0].mxu0
        %v7638 = vadd.f32 %v7408, %v7637
        %v7639 = vpop.f32.mrb[0].mxu0
        %v7640 = vadd.f32 %v7404, %v7639
        %v7641 = vpop.f32.mrb[0].mxu0
        %v7642 = vadd.f32 %v7408, %v7641
        %7643 = vmatprep.mubr.bf16.mxu0 %v7358
        %7644 = vmatmul.mubr.bf16.gmra.mrb[0].mxu0 %v7357
        %v7645 = vpop.f32.mrb[0].mxu0
        %v7646 = vadd.f32 %v7404, %v7645
        %v7647 = vpop.f32.mrb[0].mxu0
        %v7648 = vadd.f32 %v7408, %v7647
        %v7649 = vpop.f32.mrb[0].mxu0
        %v7650 = vadd.f32 %v7404, %v7649
        %v7651 = vpop.f32.mrb[0].mxu0
        %v7652 = vadd.f32 %v7408, %v7651
        %7653 = vmatprep.mubr.bf16.mxu0 %v7360
        %7654 = vmatmul.mubr.bf16.gmra.mrb[0].mxu0 %v7359
        %v7655 = vpop.f32.mrb[0].mxu0
        %v7656 = vadd.f32 %v7404, %v7655
        %v7657 = vpop.f32.mrb[0].mxu0
        %v7658 = vadd.f32 %v7408, %v7657
        %v7659 = vpop.f32.mrb[0].mxu0
        %v7660 = vadd.f32 %v7404, %v7659
        %v7661 = vpop.f32.mrb[0].mxu0
        %v7662 = vadd.f32 %v7408, %v7661
        %7663 = vmatprep.mubr.bf16.mxu0 %v7362
        %7664 = vmatmul.mubr.bf16.gmra.mrb[0].mxu0 %v7361
        %v7665 = vpop.f32.mrb[0].mxu0
        %v7666 = vadd.f32 %v7404, %v7665
        %v7667 = vpop.f32.mrb[0].mxu0
        %v7668 = vadd.f32 %v7408, %v7667
        %v7669 = vpop.f32.mrb[0].mxu0
        %v7670 = vadd.f32 %v7404, %v7669
        %v7671 = vpop.f32.mrb[0].mxu0
        %v7672 = vadd.f32 %v7408, %v7671
        %7673 = vmatprep.mubr.bf16.mxu0 %v7364
        %7674 = vmatmul.mubr.bf16.gmra.mrb[0].mxu0 %v7363
        %v7675 = vpop.f32.mrb[0].mxu0
        %v7676 = vadd.f32 %v7404, %v7675
        %v7677 = vpop.f32.mrb[0].mxu0
        %v7678 = vadd.f32 %v7408, %v7677
        %v7679 = vpop.f32.mrb[0].mxu0
        %v7680 = vadd.f32 %v7404, %v7679
        %v7681 = vpop.f32.mrb[0].mxu0
        %v7682 = vadd.f32 %v7408, %v7681
        %7683 = vdwg.mxu0
        %v7684 = vadd.f32 %v5612, %v7606
        %v7685 = vadd.f32 %v5613, %v7608
        %v7686 = vadd.f32 %v5614, %v7610
        %v7687 = vadd.f32 %v5615, %v7612
        %v7688 = vadd.f32 %v5616, %v7616
        %v7689 = vadd.f32 %v5617, %v7618
        %v7690 = vadd.f32 %v5618, %v7620
        %v7691 = vadd.f32 %v5619, %v7622
        %v7692 = vadd.f32 %v5620, %v7626
        %v7693 = vadd.f32 %v5621, %v7628
        %v7694 = vadd.f32 %v5622, %v7630
        %v7695 = vadd.f32 %v5623, %v7632
        %v7696 = vadd.f32 %v5624, %v7636
        %v7697 = vadd.f32 %v5625, %v7638
        %v7698 = vadd.f32 %v5626, %v7640
        %v7699 = vadd.f32 %v5627, %v7642
        %v7700 = vadd.f32 %v5628, %v7646
        %v7701 = vadd.f32 %v5629, %v7648
        %v7702 = vadd.f32 %v5630, %v7650
        %v7703 = vadd.f32 %v5631, %v7652
        %v7704 = vadd.f32 %v5632, %v7656
        %v7705 = vadd.f32 %v5633, %v7658
        %v7706 = vadd.f32 %v5634, %v7660
        %v7707 = vadd.f32 %v5635, %v7662
        %v7708 = vadd.f32 %v5636, %v7666
        %v7709 = vadd.f32 %v5637, %v7668
        %v7710 = vadd.f32 %v5638, %v7670
        %v7711 = vadd.f32 %v5639, %v7672
        %v7712 = vadd.f32 %v5640, %v7676
        %v7713 = vadd.f32 %v5641, %v7678
        %v7714 = vadd.f32 %v5642, %v7680
        %v7715 = vadd.f32 %v5643, %v7682
        %s7716 = scalar_lea.vmem %s7, 2
        %v7717 = vld [vmem:[%s7716] sm:$0x3]
        %s7718 = scalar_lea.vmem %s8, 2
        %v7719 = vld [vmem:[%s7718] sm:$0x3]
        %v7720 = vadd.f32 %v7684, %v7685
        %7721 = vadd.xlane.f32.xlu0 %v7720
        %v7722 = vpop.xlane.xlu0 %7721
        %v7723 = vadd.f32 %v7686, %v7687
        %7724 = vadd.xlane.f32.xlu0 %v7723
        %v7725 = vpop.xlane.xlu0 %7724
        %v7726 = vadd.f32 %v7688, %v7689
        %7727 = vadd.xlane.f32.xlu0 %v7726
        %v7728 = vpop.xlane.xlu0 %7727
        %v7729 = vadd.f32 %v7690, %v7691
        %7730 = vadd.xlane.f32.xlu0 %v7729
        %v7731 = vpop.xlane.xlu0 %7730
        %v7732 = vadd.f32 %v7692, %v7693
        %7733 = vadd.xlane.f32.xlu0 %v7732
        %v7734 = vpop.xlane.xlu0 %7733
        %v7735 = vadd.f32 %v7694, %v7695
        %7736 = vadd.xlane.f32.xlu0 %v7735
        %v7737 = vpop.xlane.xlu0 %7736
        %v7738 = vadd.f32 %v7696, %v7697
        %7739 = vadd.xlane.f32.xlu0 %v7738
        %v7740 = vpop.xlane.xlu0 %7739
        %v7741 = vadd.f32 %v7698, %v7699
        %7742 = vadd.xlane.f32.xlu0 %v7741
        %v7743 = vpop.xlane.xlu0 %7742
        %v7744 = vadd.f32 %v7700, %v7701
        %7745 = vadd.xlane.f32.xlu0 %v7744
        %v7746 = vpop.xlane.xlu0 %7745
        %v7747 = vadd.f32 %v7702, %v7703
        %7748 = vadd.xlane.f32.xlu0 %v7747
        %v7749 = vpop.xlane.xlu0 %7748
        %v7750 = vadd.f32 %v7704, %v7705
        %7751 = vadd.xlane.f32.xlu0 %v7750
        %v7752 = vpop.xlane.xlu0 %7751
        %v7753 = vadd.f32 %v7706, %v7707
        %7754 = vadd.xlane.f32.xlu0 %v7753
        %v7755 = vpop.xlane.xlu0 %7754
        %v7756 = vadd.f32 %v7708, %v7709
        %7757 = vadd.xlane.f32.xlu0 %v7756
        %v7758 = vpop.xlane.xlu0 %7757
        %v7759 = vadd.f32 %v7710, %v7711
        %7760 = vadd.xlane.f32.xlu0 %v7759
        %v7761 = vpop.xlane.xlu0 %7760
        %v7762 = vadd.f32 %v7712, %v7713
        %7763 = vadd.xlane.f32.xlu0 %v7762
        %v7764 = vpop.xlane.xlu0 %7763
        %v7765 = vadd.f32 %v7714, %v7715
        %7766 = vadd.xlane.f32.xlu0 %v7765
        %v7767 = vpop.xlane.xlu0 %7766
        %v7768 = vmul.f32 %v7722, %v683
        %v7769 = vmul.f32 %v7725, %v683
        %v7770 = vmul.f32 %v7728, %v683
        %v7771 = vmul.f32 %v7731, %v683
        %v7772 = vmul.f32 %v7734, %v683
        %v7773 = vmul.f32 %v7737, %v683
        %v7774 = vmul.f32 %v7740, %v683
        %v7775 = vmul.f32 %v7743, %v683
        %v7776 = vmul.f32 %v7746, %v683
        %v7777 = vmul.f32 %v7749, %v683
        %v7778 = vmul.f32 %v7752, %v683
        %v7779 = vmul.f32 %v7755, %v683
        %v7780 = vmul.f32 %v7758, %v683
        %v7781 = vmul.f32 %v7761, %v683
        %v7782 = vmul.f32 %v7764, %v683
        %v7783 = vmul.f32 %v7767, %v683
        %v7784 = vsub.f32 %v7684, %v7768
        %v7785 = vsub.f32 %v7685, %v7768
        %v7786 = vsub.f32 %v7686, %v7769
        %v7787 = vsub.f32 %v7687, %v7769
        %v7788 = vsub.f32 %v7688, %v7770
        %v7789 = vsub.f32 %v7689, %v7770
        %v7790 = vsub.f32 %v7690, %v7771
        %v7791 = vsub.f32 %v7691, %v7771
        %v7792 = vsub.f32 %v7692, %v7772
        %v7793 = vsub.f32 %v7693, %v7772
        %v7794 = vsub.f32 %v7694, %v7773
        %v7795 = vsub.f32 %v7695, %v7773
        %v7796 = vsub.f32 %v7696, %v7774
        %v7797 = vsub.f32 %v7697, %v7774
        %v7798 = vsub.f32 %v7698, %v7775
        %v7799 = vsub.f32 %v7699, %v7775
        %v7800 = vsub.f32 %v7700, %v7776
        %v7801 = vsub.f32 %v7701, %v7776
        %v7802 = vsub.f32 %v7702, %v7777
        %v7803 = vsub.f32 %v7703, %v7777
        %v7804 = vsub.f32 %v7704, %v7778
        %v7805 = vsub.f32 %v7705, %v7778
        %v7806 = vsub.f32 %v7706, %v7779
        %v7807 = vsub.f32 %v7707, %v7779
        %v7808 = vsub.f32 %v7708, %v7780
        %v7809 = vsub.f32 %v7709, %v7780
        %v7810 = vsub.f32 %v7710, %v7781
        %v7811 = vsub.f32 %v7711, %v7781
        %v7812 = vsub.f32 %v7712, %v7782
        %v7813 = vsub.f32 %v7713, %v7782
        %v7814 = vsub.f32 %v7714, %v7783
        %v7815 = vsub.f32 %v7715, %v7783
        %v7816 = vmul.f32 %v7784, %v7784
        %v7817 = vmul.f32 %v7785, %v7785
        %v7818 = vmul.f32 %v7786, %v7786
        %v7819 = vmul.f32 %v7787, %v7787
        %v7820 = vmul.f32 %v7788, %v7788
        %v7821 = vmul.f32 %v7789, %v7789
        %v7822 = vmul.f32 %v7790, %v7790
        %v7823 = vmul.f32 %v7791, %v7791
        %v7824 = vmul.f32 %v7792, %v7792
        %v7825 = vmul.f32 %v7793, %v7793
        %v7826 = vmul.f32 %v7794, %v7794
        %v7827 = vmul.f32 %v7795, %v7795
        %v7828 = vmul.f32 %v7796, %v7796
        %v7829 = vmul.f32 %v7797, %v7797
        %v7830 = vmul.f32 %v7798, %v7798
        %v7831 = vmul.f32 %v7799, %v7799
        %v7832 = vmul.f32 %v7800, %v7800
        %v7833 = vmul.f32 %v7801, %v7801
        %v7834 = vmul.f32 %v7802, %v7802
        %v7835 = vmul.f32 %v7803, %v7803
        %v7836 = vmul.f32 %v7804, %v7804
        %v7837 = vmul.f32 %v7805, %v7805
        %v7838 = vmul.f32 %v7806, %v7806
        %v7839 = vmul.f32 %v7807, %v7807
        %v7840 = vmul.f32 %v7808, %v7808
        %v7841 = vmul.f32 %v7809, %v7809
        %v7842 = vmul.f32 %v7810, %v7810
        %v7843 = vmul.f32 %v7811, %v7811
        %v7844 = vmul.f32 %v7812, %v7812
        %v7845 = vmul.f32 %v7813, %v7813
        %v7846 = vmul.f32 %v7814, %v7814
        %v7847 = vmul.f32 %v7815, %v7815
        %v7848 = vadd.f32 %v7816, %v7817
        %7849 = vadd.xlane.f32.xlu0 %v7848
        %v7850 = vpop.xlane.xlu0 %7849
        %v7851 = vadd.f32 %v7818, %v7819
        %7852 = vadd.xlane.f32.xlu0 %v7851
        %v7853 = vpop.xlane.xlu0 %7852
        %v7854 = vadd.f32 %v7820, %v7821
        %7855 = vadd.xlane.f32.xlu0 %v7854
        %v7856 = vpop.xlane.xlu0 %7855
        %v7857 = vadd.f32 %v7822, %v7823
        %7858 = vadd.xlane.f32.xlu0 %v7857
        %v7859 = vpop.xlane.xlu0 %7858
        %v7860 = vadd.f32 %v7824, %v7825
        %7861 = vadd.xlane.f32.xlu0 %v7860
        %v7862 = vpop.xlane.xlu0 %7861
        %v7863 = vadd.f32 %v7826, %v7827
        %7864 = vadd.xlane.f32.xlu0 %v7863
        %v7865 = vpop.xlane.xlu0 %7864
        %v7866 = vadd.f32 %v7828, %v7829
        %7867 = vadd.xlane.f32.xlu0 %v7866
        %v7868 = vpop.xlane.xlu0 %7867
        %v7869 = vadd.f32 %v7830, %v7831
        %7870 = vadd.xlane.f32.xlu0 %v7869
        %v7871 = vpop.xlane.xlu0 %7870
        %v7872 = vadd.f32 %v7832, %v7833
        %7873 = vadd.xlane.f32.xlu0 %v7872
        %v7874 = vpop.xlane.xlu0 %7873
        %v7875 = vadd.f32 %v7834, %v7835
        %7876 = vadd.xlane.f32.xlu0 %v7875
        %v7877 = vpop.xlane.xlu0 %7876
        %v7878 = vadd.f32 %v7836, %v7837
        %7879 = vadd.xlane.f32.xlu0 %v7878
        %v7880 = vpop.xlane.xlu0 %7879
        %v7881 = vadd.f32 %v7838, %v7839
        %7882 = vadd.xlane.f32.xlu0 %v7881
        %v7883 = vpop.xlane.xlu0 %7882
        %v7884 = vadd.f32 %v7840, %v7841
        %7885 = vadd.xlane.f32.xlu0 %v7884
        %v7886 = vpop.xlane.xlu0 %7885
        %v7887 = vadd.f32 %v7842, %v7843
        %7888 = vadd.xlane.f32.xlu0 %v7887
        %v7889 = vpop.xlane.xlu0 %7888
        %v7890 = vadd.f32 %v7844, %v7845
        %7891 = vadd.xlane.f32.xlu0 %v7890
        %v7892 = vpop.xlane.xlu0 %7891
        %v7893 = vadd.f32 %v7846, %v7847
        %7894 = vadd.xlane.f32.xlu0 %v7893
        %v7895 = vpop.xlane.xlu0 %7894
        %v7896 = vmul.f32 %v7850, %v683
        %v7897 = vmul.f32 %v7853, %v683
        %v7898 = vmul.f32 %v7856, %v683
        %v7899 = vmul.f32 %v7859, %v683
        %v7900 = vmul.f32 %v7862, %v683
        %v7901 = vmul.f32 %v7865, %v683
        %v7902 = vmul.f32 %v7868, %v683
        %v7903 = vmul.f32 %v7871, %v683
        %v7904 = vmul.f32 %v7874, %v683
        %v7905 = vmul.f32 %v7877, %v683
        %v7906 = vmul.f32 %v7880, %v683
        %v7907 = vmul.f32 %v7883, %v683
        %v7908 = vmul.f32 %v7886, %v683
        %v7909 = vmul.f32 %v7889, %v683
        %v7910 = vmul.f32 %v7892, %v683
        %v7911 = vmul.f32 %v7895, %v683
        %v7912 = vadd.f32 %v7896, 1e-05
        %v7913 = vadd.f32 %v7897, 1e-05
        %v7914 = vadd.f32 %v7898, 1e-05
        %v7915 = vadd.f32 %v7899, 1e-05
        %v7916 = vadd.f32 %v7900, 1e-05
        %v7917 = vadd.f32 %v7901, 1e-05
        %v7918 = vadd.f32 %v7902, 1e-05
        %v7919 = vadd.f32 %v7903, 1e-05
        %v7920 = vadd.f32 %v7904, 1e-05
        %v7921 = vadd.f32 %v7905, 1e-05
        %v7922 = vadd.f32 %v7906, 1e-05
        %v7923 = vadd.f32 %v7907, 1e-05
        %v7924 = vadd.f32 %v7908, 1e-05
        %v7925 = vadd.f32 %v7909, 1e-05
        %v7926 = vadd.f32 %v7910, 1e-05
        %v7927 = vadd.f32 %v7911, 1e-05
        %v7928 = vrsqrt.pop %v7912
        %v7929 = vrsqrt.pop %v7913
        %v7930 = vrsqrt.pop %v7914
        %v7931 = vrsqrt.pop %v7915
        %v7932 = vrsqrt.pop %v7916
        %v7933 = vrsqrt.pop %v7917
        %v7934 = vrsqrt.pop %v7918
        %v7935 = vrsqrt.pop %v7919
        %v7936 = vrsqrt.pop %v7920
        %v7937 = vrsqrt.pop %v7921
        %v7938 = vrsqrt.pop %v7922
        %v7939 = vrsqrt.pop %v7923
        %v7940 = vrsqrt.pop %v7924
        %v7941 = vrsqrt.pop %v7925
        %v7942 = vrsqrt.pop %v7926
        %v7943 = vrsqrt.pop %v7927
        %v7944 = vmul.f32 %v7784, %v7928
        %v7945 = vmul.f32 %v7785, %v7928
        %v7946 = vmul.f32 %v7786, %v7929
        %v7947 = vmul.f32 %v7787, %v7929
        %v7948 = vmul.f32 %v7788, %v7930
        %v7949 = vmul.f32 %v7789, %v7930
        %v7950 = vmul.f32 %v7790, %v7931
        %v7951 = vmul.f32 %v7791, %v7931
        %v7952 = vmul.f32 %v7792, %v7932
        %v7953 = vmul.f32 %v7793, %v7932
        %v7954 = vmul.f32 %v7794, %v7933
        %v7955 = vmul.f32 %v7795, %v7933
        %v7956 = vmul.f32 %v7796, %v7934
        %v7957 = vmul.f32 %v7797, %v7934
        %v7958 = vmul.f32 %v7798, %v7935
        %v7959 = vmul.f32 %v7799, %v7935
        %v7960 = vmul.f32 %v7800, %v7936
        %v7961 = vmul.f32 %v7801, %v7936
        %v7962 = vmul.f32 %v7802, %v7937
        %v7963 = vmul.f32 %v7803, %v7937
        %v7964 = vmul.f32 %v7804, %v7938
        %v7965 = vmul.f32 %v7805, %v7938
        %v7966 = vmul.f32 %v7806, %v7939
        %v7967 = vmul.f32 %v7807, %v7939
        %v7968 = vmul.f32 %v7808, %v7940
        %v7969 = vmul.f32 %v7809, %v7940
        %v7970 = vmul.f32 %v7810, %v7941
        %v7971 = vmul.f32 %v7811, %v7941
        %v7972 = vmul.f32 %v7812, %v7942
        %v7973 = vmul.f32 %v7813, %v7942
        %v7974 = vmul.f32 %v7814, %v7943
        %v7975 = vmul.f32 %v7815, %v7943
        %v7977 = vlaneseq
        %v7978 = vshrl.u32 %v7977, 7
        %v7979 = vsub.s32 0, %v7978
        %v7980 = vrot.slane %v7717, %v7979
        %v7981 = vlaneseq
        %v7982 = vshrl.u32 %v7981, 7
        %v7983 = vsub.s32 1, %v7982
        %v7984 = vrot.slane %v7717, %v7983
        %v7987 = vmul.f32 %v7944, %v7980
        %v7988 = vmul.f32 %v7945, %v7984
        %v7989 = vmul.f32 %v7946, %v7980
        %v7990 = vmul.f32 %v7947, %v7984
        %v7991 = vmul.f32 %v7948, %v7980
        %v7992 = vmul.f32 %v7949, %v7984
        %v7993 = vmul.f32 %v7950, %v7980
        %v7994 = vmul.f32 %v7951, %v7984
        %v7995 = vmul.f32 %v7952, %v7980
        %v7996 = vmul.f32 %v7953, %v7984
        %v7997 = vmul.f32 %v7954, %v7980
        %v7998 = vmul.f32 %v7955, %v7984
        %v7999 = vmul.f32 %v7956, %v7980
        %v8000 = vmul.f32 %v7957, %v7984
        %v8001 = vmul.f32 %v7958, %v7980
        %v8002 = vmul.f32 %v7959, %v7984
        %v8003 = vmul.f32 %v7960, %v7980
        %v8004 = vmul.f32 %v7961, %v7984
        %v8005 = vmul.f32 %v7962, %v7980
        %v8006 = vmul.f32 %v7963, %v7984
        %v8007 = vmul.f32 %v7964, %v7980
        %v8008 = vmul.f32 %v7965, %v7984
        %v8009 = vmul.f32 %v7966, %v7980
        %v8010 = vmul.f32 %v7967, %v7984
        %v8011 = vmul.f32 %v7968, %v7980
        %v8012 = vmul.f32 %v7969, %v7984
        %v8013 = vmul.f32 %v7970, %v7980
        %v8014 = vmul.f32 %v7971, %v7984
        %v8015 = vmul.f32 %v7972, %v7980
        %v8016 = vmul.f32 %v7973, %v7984
        %v8017 = vmul.f32 %v7974, %v7980
        %v8018 = vmul.f32 %v7975, %v7984
        %v8020 = vlaneseq
        %v8021 = vshrl.u32 %v8020, 7
        %v8022 = vsub.s32 0, %v8021
        %v8023 = vrot.slane %v7719, %v8022
        %v8024 = vlaneseq
        %v8025 = vshrl.u32 %v8024, 7
        %v8026 = vsub.s32 1, %v8025
        %v8027 = vrot.slane %v7719, %v8026
        %v8030 = vadd.f32 %v7987, %v8023
        %v8031 = vadd.f32 %v7988, %v8027
        %v8032 = vadd.f32 %v7989, %v8023
        %v8033 = vadd.f32 %v7990, %v8027
        %v8034 = vadd.f32 %v7991, %v8023
        %v8035 = vadd.f32 %v7992, %v8027
        %v8036 = vadd.f32 %v7993, %v8023
        %v8037 = vadd.f32 %v7994, %v8027
        %v8038 = vadd.f32 %v7995, %v8023
        %v8039 = vadd.f32 %v7996, %v8027
        %v8040 = vadd.f32 %v7997, %v8023
        %v8041 = vadd.f32 %v7998, %v8027
        %v8042 = vadd.f32 %v7999, %v8023
        %v8043 = vadd.f32 %v8000, %v8027
        %v8044 = vadd.f32 %v8001, %v8023
        %v8045 = vadd.f32 %v8002, %v8027
        %v8046 = vadd.f32 %v8003, %v8023
        %v8047 = vadd.f32 %v8004, %v8027
        %v8048 = vadd.f32 %v8005, %v8023
        %v8049 = vadd.f32 %v8006, %v8027
        %v8050 = vadd.f32 %v8007, %v8023
        %v8051 = vadd.f32 %v8008, %v8027
        %v8052 = vadd.f32 %v8009, %v8023
        %v8053 = vadd.f32 %v8010, %v8027
        %v8054 = vadd.f32 %v8011, %v8023
        %v8055 = vadd.f32 %v8012, %v8027
        %v8056 = vadd.f32 %v8013, %v8023
        %v8057 = vadd.f32 %v8014, %v8027
        %v8058 = vadd.f32 %v8015, %v8023
        %v8059 = vadd.f32 %v8016, %v8027
        %v8060 = vadd.f32 %v8017, %v8023
        %v8061 = vadd.f32 %v8018, %v8027
        %v8062 = vpack.c.bf16 %v8032, %v8030
        %v8063 = vpack.c.bf16 %v8033, %v8031
        %v8064 = vpack.c.bf16 %v8036, %v8034
        %v8065 = vpack.c.bf16 %v8037, %v8035
        %v8066 = vpack.c.bf16 %v8040, %v8038
        %v8067 = vpack.c.bf16 %v8041, %v8039
        %v8068 = vpack.c.bf16 %v8044, %v8042
        %v8069 = vpack.c.bf16 %v8045, %v8043
        %v8070 = vpack.c.bf16 %v8048, %v8046
        %v8071 = vpack.c.bf16 %v8049, %v8047
        %v8072 = vpack.c.bf16 %v8052, %v8050
        %v8073 = vpack.c.bf16 %v8053, %v8051
        %v8074 = vpack.c.bf16 %v8056, %v8054
        %v8075 = vpack.c.bf16 %v8057, %v8055
        %v8076 = vpack.c.bf16 %v8060, %v8058
        %v8077 = vpack.c.bf16 %v8061, %v8059
        %s8078 = scalar_lea.vmem %s9, 512
        %v8079 = vld [vmem:[%s8078] sm:$0xff]
        %v8080 = vld [vmem:[%s8078 + $0x8] sm:$0xff]
        %v8081 = vld [vmem:[%s8078 + $0x10] sm:$0xff]
        %v8082 = vld [vmem:[%s8078 + $0x18] sm:$0xff]
        %v8083 = vld [vmem:[%s8078 + $0x20] sm:$0xff]
        %v8084 = vld [vmem:[%s8078 + $0x28] sm:$0xff]
        %v8085 = vld [vmem:[%s8078 + $0x30] sm:$0xff]
        %v8086 = vld [vmem:[%s8078 + $0x38] sm:$0xff]
        %v8087 = vld [vmem:[%s8078 + $0x40] sm:$0xff]
        %v8088 = vld [vmem:[%s8078 + $0x48] sm:$0xff]
        %v8089 = vld [vmem:[%s8078 + $0x50] sm:$0xff]
        %v8090 = vld [vmem:[%s8078 + $0x58] sm:$0xff]
        %v8091 = vld [vmem:[%s8078 + $0x60] sm:$0xff]
        %v8092 = vld [vmem:[%s8078 + $0x68] sm:$0xff]
        %v8093 = vld [vmem:[%s8078 + $0x70] sm:$0xff]
        %v8094 = vld [vmem:[%s8078 + $0x78] sm:$0xff]
        %v8095 = vld [vmem:[%s8078 + $0x80] sm:$0xff]
        %v8096 = vld [vmem:[%s8078 + $0x88] sm:$0xff]
        %v8097 = vld [vmem:[%s8078 + $0x90] sm:$0xff]
        %v8098 = vld [vmem:[%s8078 + $0x98] sm:$0xff]
        %v8099 = vld [vmem:[%s8078 + $0xa0] sm:$0xff]
        %v8100 = vld [vmem:[%s8078 + $0xa8] sm:$0xff]
        %v8101 = vld [vmem:[%s8078 + $0xb0] sm:$0xff]
        %v8102 = vld [vmem:[%s8078 + $0xb8] sm:$0xff]
        %v8103 = vld [vmem:[%s8078 + $0xc0] sm:$0xff]
        %v8104 = vld [vmem:[%s8078 + $0xc8] sm:$0xff]
        %v8105 = vld [vmem:[%s8078 + $0xd0] sm:$0xff]
        %v8106 = vld [vmem:[%s8078 + $0xd8] sm:$0xff]
        %v8107 = vld [vmem:[%s8078 + $0xe0] sm:$0xff]
        %v8108 = vld [vmem:[%s8078 + $0xe8] sm:$0xff]
        %v8109 = vld [vmem:[%s8078 + $0xf0] sm:$0xff]
        %v8110 = vld [vmem:[%s8078 + $0xf8] sm:$0xff]
        %v8111 = vld [vmem:[%s8078 + $0x100] sm:$0xff]
        %v8112 = vld [vmem:[%s8078 + $0x108] sm:$0xff]
        %v8113 = vld [vmem:[%s8078 + $0x110] sm:$0xff]
        %v8114 = vld [vmem:[%s8078 + $0x118] sm:$0xff]
        %v8115 = vld [vmem:[%s8078 + $0x120] sm:$0xff]
        %v8116 = vld [vmem:[%s8078 + $0x128] sm:$0xff]
        %v8117 = vld [vmem:[%s8078 + $0x130] sm:$0xff]
        %v8118 = vld [vmem:[%s8078 + $0x138] sm:$0xff]
        %v8119 = vld [vmem:[%s8078 + $0x140] sm:$0xff]
        %v8120 = vld [vmem:[%s8078 + $0x148] sm:$0xff]
        %v8121 = vld [vmem:[%s8078 + $0x150] sm:$0xff]
        %v8122 = vld [vmem:[%s8078 + $0x158] sm:$0xff]
        %v8123 = vld [vmem:[%s8078 + $0x160] sm:$0xff]
        %v8124 = vld [vmem:[%s8078 + $0x168] sm:$0xff]
        %v8125 = vld [vmem:[%s8078 + $0x170] sm:$0xff]
        %v8126 = vld [vmem:[%s8078 + $0x178] sm:$0xff]
        %v8127 = vld [vmem:[%s8078 + $0x180] sm:$0xff]
        %v8128 = vld [vmem:[%s8078 + $0x188] sm:$0xff]
        %v8129 = vld [vmem:[%s8078 + $0x190] sm:$0xff]
        %v8130 = vld [vmem:[%s8078 + $0x198] sm:$0xff]
        %v8131 = vld [vmem:[%s8078 + $0x1a0] sm:$0xff]
        %v8132 = vld [vmem:[%s8078 + $0x1a8] sm:$0xff]
        %v8133 = vld [vmem:[%s8078 + $0x1b0] sm:$0xff]
        %v8134 = vld [vmem:[%s8078 + $0x1b8] sm:$0xff]
        %v8135 = vld [vmem:[%s8078 + $0x1c0] sm:$0xff]
        %v8136 = vld [vmem:[%s8078 + $0x1c8] sm:$0xff]
        %v8137 = vld [vmem:[%s8078 + $0x1d0] sm:$0xff]
        %v8138 = vld [vmem:[%s8078 + $0x1d8] sm:$0xff]
        %v8139 = vld [vmem:[%s8078 + $0x1e0] sm:$0xff]
        %v8140 = vld [vmem:[%s8078 + $0x1e8] sm:$0xff]
        %v8141 = vld [vmem:[%s8078 + $0x1f0] sm:$0xff]
        %v8142 = vld [vmem:[%s8078 + $0x1f8] sm:$0xff]
        %s8143 = scalar_lea.vmem %s10, 4
        %v8144 = vld [vmem:[%s8143] sm:$0xf]
        %v8146 = vlaneseq
        %v8147 = vshrl.u32 %v8146, 7
        %v8148 = vsub.s32 0, %v8147
        %v8149 = vrot.slane %v8144, %v8148
        %v8150 = vlaneseq
        %v8151 = vshrl.u32 %v8150, 7
        %v8152 = vsub.s32 1, %v8151
        %v8153 = vrot.slane %v8144, %v8152
        %v8154 = vlaneseq
        %v8155 = vshrl.u32 %v8154, 7
        %v8156 = vsub.s32 2, %v8155
        %v8157 = vrot.slane %v8144, %v8156
        %v8158 = vlaneseq
        %v8159 = vshrl.u32 %v8158, 7
        %v8160 = vsub.s32 3, %v8159
        %v8161 = vrot.slane %v8144, %v8160
        %v8230 = vunpack.c.l.b16 %v8079
        %v8231 = vunpack.c.h.b16 %v8079
        %v8232 = vunpack.c.l.b16 %v8080
        %v8233 = vunpack.c.h.b16 %v8080
        %v8234 = vunpack.c.l.b16 %v8081
        %v8235 = vunpack.c.h.b16 %v8081
        %v8236 = vunpack.c.l.b16 %v8082
        %v8237 = vunpack.c.h.b16 %v8082
        %v8238 = vunpack.c.l.b16 %v8083
        %v8239 = vunpack.c.h.b16 %v8083
        %v8240 = vunpack.c.l.b16 %v8084
        %v8241 = vunpack.c.h.b16 %v8084
        %v8242 = vunpack.c.l.b16 %v8085
        %v8243 = vunpack.c.h.b16 %v8085
        %v8244 = vunpack.c.l.b16 %v8086
        %v8245 = vunpack.c.h.b16 %v8086
        %v8246 = vunpack.c.l.b16 %v8087
        %v8247 = vunpack.c.h.b16 %v8087
        %v8248 = vunpack.c.l.b16 %v8088
        %v8249 = vunpack.c.h.b16 %v8088
        %v8250 = vunpack.c.l.b16 %v8089
        %v8251 = vunpack.c.h.b16 %v8089
        %v8252 = vunpack.c.l.b16 %v8090
        %v8253 = vunpack.c.h.b16 %v8090
        %v8254 = vunpack.c.l.b16 %v8091
        %v8255 = vunpack.c.h.b16 %v8091
        %v8256 = vunpack.c.l.b16 %v8092
        %v8257 = vunpack.c.h.b16 %v8092
        %v8258 = vunpack.c.l.b16 %v8093
        %v8259 = vunpack.c.h.b16 %v8093
        %v8260 = vunpack.c.l.b16 %v8094
        %v8261 = vunpack.c.h.b16 %v8094
        %v8262 = vunpack.c.l.b16 %v8095
        %v8263 = vunpack.c.h.b16 %v8095
        %v8264 = vunpack.c.l.b16 %v8096
        %v8265 = vunpack.c.h.b16 %v8096
        %v8266 = vunpack.c.l.b16 %v8097
        %v8267 = vunpack.c.h.b16 %v8097
        %v8268 = vunpack.c.l.b16 %v8098
        %v8269 = vunpack.c.h.b16 %v8098
        %v8270 = vunpack.c.l.b16 %v8099
        %v8271 = vunpack.c.h.b16 %v8099
        %v8272 = vunpack.c.l.b16 %v8100
        %v8273 = vunpack.c.h.b16 %v8100
        %v8274 = vunpack.c.l.b16 %v8101
        %v8275 = vunpack.c.h.b16 %v8101
        %v8276 = vunpack.c.l.b16 %v8102
        %v8277 = vunpack.c.h.b16 %v8102
        %v8278 = vunpack.c.l.b16 %v8103
        %v8279 = vunpack.c.h.b16 %v8103
        %v8280 = vunpack.c.l.b16 %v8104
        %v8281 = vunpack.c.h.b16 %v8104
        %v8282 = vunpack.c.l.b16 %v8105
        %v8283 = vunpack.c.h.b16 %v8105
        %v8284 = vunpack.c.l.b16 %v8106
        %v8285 = vunpack.c.h.b16 %v8106
        %v8286 = vunpack.c.l.b16 %v8107
        %v8287 = vunpack.c.h.b16 %v8107
        %v8288 = vunpack.c.l.b16 %v8108
        %v8289 = vunpack.c.h.b16 %v8108
        %v8290 = vunpack.c.l.b16 %v8109
        %v8291 = vunpack.c.h.b16 %v8109
        %v8292 = vunpack.c.l.b16 %v8110
        %v8293 = vunpack.c.h.b16 %v8110
        %v8294 = vunpack.c.l.b16 %v8111
        %v8295 = vunpack.c.h.b16 %v8111
        %v8296 = vunpack.c.l.b16 %v8112
        %v8297 = vunpack.c.h.b16 %v8112
        %v8298 = vunpack.c.l.b16 %v8113
        %v8299 = vunpack.c.h.b16 %v8113
        %v8300 = vunpack.c.l.b16 %v8114
        %v8301 = vunpack.c.h.b16 %v8114
        %v8302 = vunpack.c.l.b16 %v8115
        %v8303 = vunpack.c.h.b16 %v8115
        %v8304 = vunpack.c.l.b16 %v8116
        %v8305 = vunpack.c.h.b16 %v8116
        %v8306 = vunpack.c.l.b16 %v8117
        %v8307 = vunpack.c.h.b16 %v8117
        %v8308 = vunpack.c.l.b16 %v8118
        %v8309 = vunpack.c.h.b16 %v8118
        %v8310 = vunpack.c.l.b16 %v8119
        %v8311 = vunpack.c.h.b16 %v8119
        %v8312 = vunpack.c.l.b16 %v8120
        %v8313 = vunpack.c.h.b16 %v8120
        %v8314 = vunpack.c.l.b16 %v8121
        %v8315 = vunpack.c.h.b16 %v8121
        %v8316 = vunpack.c.l.b16 %v8122
        %v8317 = vunpack.c.h.b16 %v8122
        %v8318 = vunpack.c.l.b16 %v8123
        %v8319 = vunpack.c.h.b16 %v8123
        %v8320 = vunpack.c.l.b16 %v8124
        %v8321 = vunpack.c.h.b16 %v8124
        %v8322 = vunpack.c.l.b16 %v8125
        %v8323 = vunpack.c.h.b16 %v8125
        %v8324 = vunpack.c.l.b16 %v8126
        %v8325 = vunpack.c.h.b16 %v8126
        %v8326 = vunpack.c.l.b16 %v8127
        %v8327 = vunpack.c.h.b16 %v8127
        %v8328 = vunpack.c.l.b16 %v8128
        %v8329 = vunpack.c.h.b16 %v8128
        %v8330 = vunpack.c.l.b16 %v8129
        %v8331 = vunpack.c.h.b16 %v8129
        %v8332 = vunpack.c.l.b16 %v8130
        %v8333 = vunpack.c.h.b16 %v8130
        %v8334 = vunpack.c.l.b16 %v8131
        %v8335 = vunpack.c.h.b16 %v8131
        %v8336 = vunpack.c.l.b16 %v8132
        %v8337 = vunpack.c.h.b16 %v8132
        %v8338 = vunpack.c.l.b16 %v8133
        %v8339 = vunpack.c.h.b16 %v8133
        %v8340 = vunpack.c.l.b16 %v8134
        %v8341 = vunpack.c.h.b16 %v8134
        %v8342 = vunpack.c.l.b16 %v8135
        %v8343 = vunpack.c.h.b16 %v8135
        %v8344 = vunpack.c.l.b16 %v8136
        %v8345 = vunpack.c.h.b16 %v8136
        %v8346 = vunpack.c.l.b16 %v8137
        %v8347 = vunpack.c.h.b16 %v8137
        %v8348 = vunpack.c.l.b16 %v8138
        %v8349 = vunpack.c.h.b16 %v8138
        %v8350 = vunpack.c.l.b16 %v8139
        %v8351 = vunpack.c.h.b16 %v8139
        %v8352 = vunpack.c.l.b16 %v8140
        %v8353 = vunpack.c.h.b16 %v8140
        %v8354 = vunpack.c.l.b16 %v8141
        %v8355 = vunpack.c.h.b16 %v8141
        %v8356 = vunpack.c.l.b16 %v8142
        %v8357 = vunpack.c.h.b16 %v8142
        %v8358 = vpack.c.b16 %v8234, %v8230
        %v8359 = vpack.c.b16 %v8235, %v8231
        %v8360 = vpack.c.b16 %v8236, %v8232
        %v8361 = vpack.c.b16 %v8237, %v8233
        %v8362 = vpack.c.b16 %v8242, %v8238
        %v8363 = vpack.c.b16 %v8243, %v8239
        %v8364 = vpack.c.b16 %v8244, %v8240
        %v8365 = vpack.c.b16 %v8245, %v8241
        %v8366 = vpack.c.b16 %v8250, %v8246
        %v8367 = vpack.c.b16 %v8251, %v8247
        %v8368 = vpack.c.b16 %v8252, %v8248
        %v8369 = vpack.c.b16 %v8253, %v8249
        %v8370 = vpack.c.b16 %v8258, %v8254
        %v8371 = vpack.c.b16 %v8259, %v8255
        %v8372 = vpack.c.b16 %v8260, %v8256
        %v8373 = vpack.c.b16 %v8261, %v8257
        %v8374 = vpack.c.b16 %v8266, %v8262
        %v8375 = vpack.c.b16 %v8267, %v8263
        %v8376 = vpack.c.b16 %v8268, %v8264
        %v8377 = vpack.c.b16 %v8269, %v8265
        %v8378 = vpack.c.b16 %v8274, %v8270
        %v8379 = vpack.c.b16 %v8275, %v8271
        %v8380 = vpack.c.b16 %v8276, %v8272
        %v8381 = vpack.c.b16 %v8277, %v8273
        %v8382 = vpack.c.b16 %v8282, %v8278
        %v8383 = vpack.c.b16 %v8283, %v8279
        %v8384 = vpack.c.b16 %v8284, %v8280
        %v8385 = vpack.c.b16 %v8285, %v8281
        %v8386 = vpack.c.b16 %v8290, %v8286
        %v8387 = vpack.c.b16 %v8291, %v8287
        %v8388 = vpack.c.b16 %v8292, %v8288
        %v8389 = vpack.c.b16 %v8293, %v8289
        %v8390 = vpack.c.b16 %v8298, %v8294
        %v8391 = vpack.c.b16 %v8299, %v8295
        %v8392 = vpack.c.b16 %v8300, %v8296
        %v8393 = vpack.c.b16 %v8301, %v8297
        %v8394 = vpack.c.b16 %v8306, %v8302
        %v8395 = vpack.c.b16 %v8307, %v8303
        %v8396 = vpack.c.b16 %v8308, %v8304
        %v8397 = vpack.c.b16 %v8309, %v8305
        %v8398 = vpack.c.b16 %v8314, %v8310
        %v8399 = vpack.c.b16 %v8315, %v8311
        %v8400 = vpack.c.b16 %v8316, %v8312
        %v8401 = vpack.c.b16 %v8317, %v8313
        %v8402 = vpack.c.b16 %v8322, %v8318
        %v8403 = vpack.c.b16 %v8323, %v8319
        %v8404 = vpack.c.b16 %v8324, %v8320
        %v8405 = vpack.c.b16 %v8325, %v8321
        %v8406 = vpack.c.b16 %v8330, %v8326
        %v8407 = vpack.c.b16 %v8331, %v8327
        %v8408 = vpack.c.b16 %v8332, %v8328
        %v8409 = vpack.c.b16 %v8333, %v8329
        %v8410 = vpack.c.b16 %v8338, %v8334
        %v8411 = vpack.c.b16 %v8339, %v8335
        %v8412 = vpack.c.b16 %v8340, %v8336
        %v8413 = vpack.c.b16 %v8341, %v8337
        %v8414 = vpack.c.b16 %v8346, %v8342
        %v8415 = vpack.c.b16 %v8347, %v8343
        %v8416 = vpack.c.b16 %v8348, %v8344
        %v8417 = vpack.c.b16 %v8349, %v8345
        %v8418 = vpack.c.b16 %v8354, %v8350
        %v8419 = vpack.c.b16 %v8355, %v8351
        %v8420 = vpack.c.b16 %v8356, %v8352
        %v8421 = vpack.c.b16 %v8357, %v8353
        %8486 = vmatprep.subr.bf16.mxu0 %v8359
        %8487 = vmatpush1.bf16.msra.mxu0 %v8358
        %8488 = vmatprep.subr.bf16.mxu0 %v8363
        %8489 = vmatpush1.bf16.msra.mxu0 %v8362
        %8490 = vmatprep.subr.bf16.mxu0 %v8367
        %8491 = vmatpush1.bf16.msra.mxu0 %v8366
        %8492 = vmatprep.subr.bf16.mxu0 %v8371
        %8493 = vmatpush1.bf16.msra.mxu0 %v8370
        %8494 = vmatprep.subr.bf16.mxu0 %v8375
        %8495 = vmatpush1.bf16.msra.mxu0 %v8374
        %8496 = vmatprep.subr.bf16.mxu0 %v8379
        %8497 = vmatpush1.bf16.msra.mxu0 %v8378
        %8498 = vmatprep.subr.bf16.mxu0 %v8383
        %8499 = vmatpush1.bf16.msra.mxu0 %v8382
        %8500 = vmatprep.subr.bf16.mxu0 %v8387
        %8501 = vmatpush1.bf16.msra.mxu0 %v8386
        %8502 = vmatprep.subr.bf16.mxu0 %v8391
        %8503 = vmatpush1.bf16.msra.mxu0 %v8390
        %8504 = vmatprep.subr.bf16.mxu0 %v8395
        %8505 = vmatpush1.bf16.msra.mxu0 %v8394
        %8506 = vmatprep.subr.bf16.mxu0 %v8399
        %8507 = vmatpush1.bf16.msra.mxu0 %v8398
        %8508 = vmatprep.subr.bf16.mxu0 %v8403
        %8509 = vmatpush1.bf16.msra.mxu0 %v8402
        %8510 = vmatprep.subr.bf16.mxu0 %v8407
        %8511 = vmatpush1.bf16.msra.mxu0 %v8406
        %8512 = vmatprep.subr.bf16.mxu0 %v8411
        %8513 = vmatpush1.bf16.msra.mxu0 %v8410
        %8514 = vmatprep.subr.bf16.mxu0 %v8415
        %8515 = vmatpush1.bf16.msra.mxu0 %v8414
        %8516 = vmatprep.subr.bf16.mxu0 %v8419
        %8517 = vmatpush1.bf16.msra.mxu0 %v8418
        %8518 = vmatprep.mubr.bf16.mxu0 %v8063
        %8519 = vmatmul.mubr.bf16.gmra.mrb[0].mxu0 %v8062
        %v8520 = vpop.f32.mrb[0].mxu0
        %v8521 = vadd.f32 %v8149, %v8520
        %v8522 = vpop.f32.mrb[0].mxu0
        %v8523 = vadd.f32 %v8153, %v8522
        %v8524 = vpop.f32.mrb[0].mxu0
        %v8525 = vadd.f32 %v8149, %v8524
        %v8526 = vpop.f32.mrb[0].mxu0
        %v8527 = vadd.f32 %v8153, %v8526
        %8528 = vmatprep.mubr.bf16.mxu0 %v8065
        %8529 = vmatmul.mubr.bf16.gmra.mrb[0].mxu0 %v8064
        %v8530 = vpop.f32.mrb[0].mxu0
        %v8531 = vadd.f32 %v8149, %v8530
        %v8532 = vpop.f32.mrb[0].mxu0
        %v8533 = vadd.f32 %v8153, %v8532
        %v8534 = vpop.f32.mrb[0].mxu0
        %v8535 = vadd.f32 %v8149, %v8534
        %v8536 = vpop.f32.mrb[0].mxu0
        %v8537 = vadd.f32 %v8153, %v8536
        %8538 = vmatprep.mubr.bf16.mxu0 %v8067
        %8539 = vmatmul.mubr.bf16.gmra.mrb[0].mxu0 %v8066
        %v8540 = vpop.f32.mrb[0].mxu0
        %v8541 = vadd.f32 %v8149, %v8540
        %v8542 = vpop.f32.mrb[0].mxu0
        %v8543 = vadd.f32 %v8153, %v8542
        %v8544 = vpop.f32.mrb[0].mxu0
        %v8545 = vadd.f32 %v8149, %v8544
        %v8546 = vpop.f32.mrb[0].mxu0
        %v8547 = vadd.f32 %v8153, %v8546
        %8548 = vmatprep.mubr.bf16.mxu0 %v8069
        %8549 = vmatmul.mubr.bf16.gmra.mrb[0].mxu0 %v8068
        %v8550 = vpop.f32.mrb[0].mxu0
        %v8551 = vadd.f32 %v8149, %v8550
        %v8552 = vpop.f32.mrb[0].mxu0
        %v8553 = vadd.f32 %v8153, %v8552
        %v8554 = vpop.f32.mrb[0].mxu0
        %v8555 = vadd.f32 %v8149, %v8554
        %v8556 = vpop.f32.mrb[0].mxu0
        %v8557 = vadd.f32 %v8153, %v8556
        %8558 = vmatprep.mubr.bf16.mxu0 %v8071
        %8559 = vmatmul.mubr.bf16.gmra.mrb[0].mxu0 %v8070
        %v8560 = vpop.f32.mrb[0].mxu0
        %v8561 = vadd.f32 %v8149, %v8560
        %v8562 = vpop.f32.mrb[0].mxu0
        %v8563 = vadd.f32 %v8153, %v8562
        %v8564 = vpop.f32.mrb[0].mxu0
        %v8565 = vadd.f32 %v8149, %v8564
        %v8566 = vpop.f32.mrb[0].mxu0
        %v8567 = vadd.f32 %v8153, %v8566
        %8568 = vmatprep.mubr.bf16.mxu0 %v8073
        %8569 = vmatmul.mubr.bf16.gmra.mrb[0].mxu0 %v8072
        %v8570 = vpop.f32.mrb[0].mxu0
        %v8571 = vadd.f32 %v8149, %v8570
        %v8572 = vpop.f32.mrb[0].mxu0
        %v8573 = vadd.f32 %v8153, %v8572
        %v8574 = vpop.f32.mrb[0].mxu0
        %v8575 = vadd.f32 %v8149, %v8574
        %v8576 = vpop.f32.mrb[0].mxu0
        %v8577 = vadd.f32 %v8153, %v8576
        %8578 = vmatprep.mubr.bf16.mxu0 %v8075
        %8579 = vmatmul.mubr.bf16.gmra.mrb[0].mxu0 %v8074
        %v8580 = vpop.f32.mrb[0].mxu0
        %v8581 = vadd.f32 %v8149, %v8580
        %v8582 = vpop.f32.mrb[0].mxu0
        %v8583 = vadd.f32 %v8153, %v8582
        %v8584 = vpop.f32.mrb[0].mxu0
        %v8585 = vadd.f32 %v8149, %v8584
        %v8586 = vpop.f32.mrb[0].mxu0
        %v8587 = vadd.f32 %v8153, %v8586
        %8588 = vmatprep.mubr.bf16.mxu0 %v8077
        %8589 = vmatmul.mubr.bf16.gmra.mrb[0].mxu0 %v8076
        %v8590 = vpop.f32.mrb[0].mxu0
        %v8591 = vadd.f32 %v8149, %v8590
        %v8592 = vpop.f32.mrb[0].mxu0
        %v8593 = vadd.f32 %v8153, %v8592
        %v8594 = vpop.f32.mrb[0].mxu0
        %v8595 = vadd.f32 %v8149, %v8594
        %v8596 = vpop.f32.mrb[0].mxu0
        %v8597 = vadd.f32 %v8153, %v8596
        %8598 = vdwg.mxu0
        %8599 = vmatprep.subr.bf16.mxu0 %v8361
        %8600 = vmatpush1.bf16.msra.mxu0 %v8360
        %8601 = vmatprep.subr.bf16.mxu0 %v8365
        %8602 = vmatpush1.bf16.msra.mxu0 %v8364
        %8603 = vmatprep.subr.bf16.mxu0 %v8369
        %8604 = vmatpush1.bf16.msra.mxu0 %v8368
        %8605 = vmatprep.subr.bf16.mxu0 %v8373
        %8606 = vmatpush1.bf16.msra.mxu0 %v8372
        %8607 = vmatprep.subr.bf16.mxu0 %v8377
        %8608 = vmatpush1.bf16.msra.mxu0 %v8376
        %8609 = vmatprep.subr.bf16.mxu0 %v8381
        %8610 = vmatpush1.bf16.msra.mxu0 %v8380
        %8611 = vmatprep.subr.bf16.mxu0 %v8385
        %8612 = vmatpush1.bf16.msra.mxu0 %v8384
        %8613 = vmatprep.subr.bf16.mxu0 %v8389
        %8614 = vmatpush1.bf16.msra.mxu0 %v8388
        %8615 = vmatprep.subr.bf16.mxu0 %v8393
        %8616 = vmatpush1.bf16.msra.mxu0 %v8392
        %8617 = vmatprep.subr.bf16.mxu0 %v8397
        %8618 = vmatpush1.bf16.msra.mxu0 %v8396
        %8619 = vmatprep.subr.bf16.mxu0 %v8401
        %8620 = vmatpush1.bf16.msra.mxu0 %v8400
        %8621 = vmatprep.subr.bf16.mxu0 %v8405
        %8622 = vmatpush1.bf16.msra.mxu0 %v8404
        %8623 = vmatprep.subr.bf16.mxu0 %v8409
        %8624 = vmatpush1.bf16.msra.mxu0 %v8408
        %8625 = vmatprep.subr.bf16.mxu0 %v8413
        %8626 = vmatpush1.bf16.msra.mxu0 %v8412
        %8627 = vmatprep.subr.bf16.mxu0 %v8417
        %8628 = vmatpush1.bf16.msra.mxu0 %v8416
        %8629 = vmatprep.subr.bf16.mxu0 %v8421
        %8630 = vmatpush1.bf16.msra.mxu0 %v8420
        %8631 = vmatprep.mubr.bf16.mxu0 %v8063
        %8632 = vmatmul.mubr.bf16.gmra.mrb[0].mxu0 %v8062
        %v8633 = vpop.f32.mrb[0].mxu0
        %v8634 = vadd.f32 %v8157, %v8633
        %v8635 = vpop.f32.mrb[0].mxu0
        %v8636 = vadd.f32 %v8161, %v8635
        %v8637 = vpop.f32.mrb[0].mxu0
        %v8638 = vadd.f32 %v8157, %v8637
        %v8639 = vpop.f32.mrb[0].mxu0
        %v8640 = vadd.f32 %v8161, %v8639
        %8641 = vmatprep.mubr.bf16.mxu0 %v8065
        %8642 = vmatmul.mubr.bf16.gmra.mrb[0].mxu0 %v8064
        %v8643 = vpop.f32.mrb[0].mxu0
        %v8644 = vadd.f32 %v8157, %v8643
        %v8645 = vpop.f32.mrb[0].mxu0
        %v8646 = vadd.f32 %v8161, %v8645
        %v8647 = vpop.f32.mrb[0].mxu0
        %v8648 = vadd.f32 %v8157, %v8647
        %v8649 = vpop.f32.mrb[0].mxu0
        %v8650 = vadd.f32 %v8161, %v8649
        %8651 = vmatprep.mubr.bf16.mxu0 %v8067
        %8652 = vmatmul.mubr.bf16.gmra.mrb[0].mxu0 %v8066
        %v8653 = vpop.f32.mrb[0].mxu0
        %v8654 = vadd.f32 %v8157, %v8653
        %v8655 = vpop.f32.mrb[0].mxu0
        %v8656 = vadd.f32 %v8161, %v8655
        %v8657 = vpop.f32.mrb[0].mxu0
        %v8658 = vadd.f32 %v8157, %v8657
        %v8659 = vpop.f32.mrb[0].mxu0
        %v8660 = vadd.f32 %v8161, %v8659
        %8661 = vmatprep.mubr.bf16.mxu0 %v8069
        %8662 = vmatmul.mubr.bf16.gmra.mrb[0].mxu0 %v8068
        %v8663 = vpop.f32.mrb[0].mxu0
        %v8664 = vadd.f32 %v8157, %v8663
        %v8665 = vpop.f32.mrb[0].mxu0
        %v8666 = vadd.f32 %v8161, %v8665
        %v8667 = vpop.f32.mrb[0].mxu0
        %v8668 = vadd.f32 %v8157, %v8667
        %v8669 = vpop.f32.mrb[0].mxu0
        %v8670 = vadd.f32 %v8161, %v8669
        %8671 = vmatprep.mubr.bf16.mxu0 %v8071
        %8672 = vmatmul.mubr.bf16.gmra.mrb[0].mxu0 %v8070
        %v8673 = vpop.f32.mrb[0].mxu0
        %v8674 = vadd.f32 %v8157, %v8673
        %v8675 = vpop.f32.mrb[0].mxu0
        %v8676 = vadd.f32 %v8161, %v8675
        %v8677 = vpop.f32.mrb[0].mxu0
        %v8678 = vadd.f32 %v8157, %v8677
        %v8679 = vpop.f32.mrb[0].mxu0
        %v8680 = vadd.f32 %v8161, %v8679
        %8681 = vmatprep.mubr.bf16.mxu0 %v8073
        %8682 = vmatmul.mubr.bf16.gmra.mrb[0].mxu0 %v8072
        %v8683 = vpop.f32.mrb[0].mxu0
        %v8684 = vadd.f32 %v8157, %v8683
        %v8685 = vpop.f32.mrb[0].mxu0
        %v8686 = vadd.f32 %v8161, %v8685
        %v8687 = vpop.f32.mrb[0].mxu0
        %v8688 = vadd.f32 %v8157, %v8687
        %v8689 = vpop.f32.mrb[0].mxu0
        %v8690 = vadd.f32 %v8161, %v8689
        %8691 = vmatprep.mubr.bf16.mxu0 %v8075
        %8692 = vmatmul.mubr.bf16.gmra.mrb[0].mxu0 %v8074
        %v8693 = vpop.f32.mrb[0].mxu0
        %v8694 = vadd.f32 %v8157, %v8693
        %v8695 = vpop.f32.mrb[0].mxu0
        %v8696 = vadd.f32 %v8161, %v8695
        %v8697 = vpop.f32.mrb[0].mxu0
        %v8698 = vadd.f32 %v8157, %v8697
        %v8699 = vpop.f32.mrb[0].mxu0
        %v8700 = vadd.f32 %v8161, %v8699
        %8701 = vmatprep.mubr.bf16.mxu0 %v8077
        %8702 = vmatmul.mubr.bf16.gmra.mrb[0].mxu0 %v8076
        %v8703 = vpop.f32.mrb[0].mxu0
        %v8704 = vadd.f32 %v8157, %v8703
        %v8705 = vpop.f32.mrb[0].mxu0
        %v8706 = vadd.f32 %v8161, %v8705
        %v8707 = vpop.f32.mrb[0].mxu0
        %v8708 = vadd.f32 %v8157, %v8707
        %v8709 = vpop.f32.mrb[0].mxu0
        %v8710 = vadd.f32 %v8161, %v8709
        %8711 = vdwg.mxu0
        %v8712 = vmul.f32 %v8521, %v8521
        %v8713 = vmul.f32 %v8523, %v8523
        %v8714 = vmul.f32 %v8634, %v8634
        %v8715 = vmul.f32 %v8636, %v8636
        %v8716 = vmul.f32 %v8525, %v8525
        %v8717 = vmul.f32 %v8527, %v8527
        %v8718 = vmul.f32 %v8638, %v8638
        %v8719 = vmul.f32 %v8640, %v8640
        %v8720 = vmul.f32 %v8531, %v8531
        %v8721 = vmul.f32 %v8533, %v8533
        %v8722 = vmul.f32 %v8644, %v8644
        %v8723 = vmul.f32 %v8646, %v8646
        %v8724 = vmul.f32 %v8535, %v8535
        %v8725 = vmul.f32 %v8537, %v8537
        %v8726 = vmul.f32 %v8648, %v8648
        %v8727 = vmul.f32 %v8650, %v8650
        %v8728 = vmul.f32 %v8541, %v8541
        %v8729 = vmul.f32 %v8543, %v8543
        %v8730 = vmul.f32 %v8654, %v8654
        %v8731 = vmul.f32 %v8656, %v8656
        %v8732 = vmul.f32 %v8545, %v8545
        %v8733 = vmul.f32 %v8547, %v8547
        %v8734 = vmul.f32 %v8658, %v8658
        %v8735 = vmul.f32 %v8660, %v8660
        %v8736 = vmul.f32 %v8551, %v8551
        %v8737 = vmul.f32 %v8553, %v8553
        %v8738 = vmul.f32 %v8664, %v8664
        %v8739 = vmul.f32 %v8666, %v8666
        %v8740 = vmul.f32 %v8555, %v8555
        %v8741 = vmul.f32 %v8557, %v8557
        %v8742 = vmul.f32 %v8668, %v8668
        %v8743 = vmul.f32 %v8670, %v8670
        %v8744 = vmul.f32 %v8561, %v8561
        %v8745 = vmul.f32 %v8563, %v8563
        %v8746 = vmul.f32 %v8674, %v8674
        %v8747 = vmul.f32 %v8676, %v8676
        %v8748 = vmul.f32 %v8565, %v8565
        %v8749 = vmul.f32 %v8567, %v8567
        %v8750 = vmul.f32 %v8678, %v8678
        %v8751 = vmul.f32 %v8680, %v8680
        %v8752 = vmul.f32 %v8571, %v8571
        %v8753 = vmul.f32 %v8573, %v8573
        %v8754 = vmul.f32 %v8684, %v8684
        %v8755 = vmul.f32 %v8686, %v8686
        %v8756 = vmul.f32 %v8575, %v8575
        %v8757 = vmul.f32 %v8577, %v8577
        %v8758 = vmul.f32 %v8688, %v8688
        %v8759 = vmul.f32 %v8690, %v8690
        %v8760 = vmul.f32 %v8581, %v8581
        %v8761 = vmul.f32 %v8583, %v8583
        %v8762 = vmul.f32 %v8694, %v8694
        %v8763 = vmul.f32 %v8696, %v8696
        %v8764 = vmul.f32 %v8585, %v8585
        %v8765 = vmul.f32 %v8587, %v8587
        %v8766 = vmul.f32 %v8698, %v8698
        %v8767 = vmul.f32 %v8700, %v8700
        %v8768 = vmul.f32 %v8591, %v8591
        %v8769 = vmul.f32 %v8593, %v8593
        %v8770 = vmul.f32 %v8704, %v8704
        %v8771 = vmul.f32 %v8706, %v8706
        %v8772 = vmul.f32 %v8595, %v8595
        %v8773 = vmul.f32 %v8597, %v8597
        %v8774 = vmul.f32 %v8708, %v8708
        %v8775 = vmul.f32 %v8710, %v8710
        %v8776 = vmul.f32 %v8521, %v8712
        %v8777 = vmul.f32 %v8523, %v8713
        %v8778 = vmul.f32 %v8634, %v8714
        %v8779 = vmul.f32 %v8636, %v8715
        %v8780 = vmul.f32 %v8525, %v8716
        %v8781 = vmul.f32 %v8527, %v8717
        %v8782 = vmul.f32 %v8638, %v8718
        %v8783 = vmul.f32 %v8640, %v8719
        %v8784 = vmul.f32 %v8531, %v8720
        %v8785 = vmul.f32 %v8533, %v8721
        %v8786 = vmul.f32 %v8644, %v8722
        %v8787 = vmul.f32 %v8646, %v8723
        %v8788 = vmul.f32 %v8535, %v8724
        %v8789 = vmul.f32 %v8537, %v8725
        %v8790 = vmul.f32 %v8648, %v8726
        %v8791 = vmul.f32 %v8650, %v8727
        %v8792 = vmul.f32 %v8541, %v8728
        %v8793 = vmul.f32 %v8543, %v8729
        %v8794 = vmul.f32 %v8654, %v8730
        %v8795 = vmul.f32 %v8656, %v8731
        %v8796 = vmul.f32 %v8545, %v8732
        %v8797 = vmul.f32 %v8547, %v8733
        %v8798 = vmul.f32 %v8658, %v8734
        %v8799 = vmul.f32 %v8660, %v8735
        %v8800 = vmul.f32 %v8551, %v8736
        %v8801 = vmul.f32 %v8553, %v8737
        %v8802 = vmul.f32 %v8664, %v8738
        %v8803 = vmul.f32 %v8666, %v8739
        %v8804 = vmul.f32 %v8555, %v8740
        %v8805 = vmul.f32 %v8557, %v8741
        %v8806 = vmul.f32 %v8668, %v8742
        %v8807 = vmul.f32 %v8670, %v8743
        %v8808 = vmul.f32 %v8561, %v8744
        %v8809 = vmul.f32 %v8563, %v8745
        %v8810 = vmul.f32 %v8674, %v8746
        %v8811 = vmul.f32 %v8676, %v8747
        %v8812 = vmul.f32 %v8565, %v8748
        %v8813 = vmul.f32 %v8567, %v8749
        %v8814 = vmul.f32 %v8678, %v8750
        %v8815 = vmul.f32 %v8680, %v8751
        %v8816 = vmul.f32 %v8571, %v8752
        %v8817 = vmul.f32 %v8573, %v8753
        %v8818 = vmul.f32 %v8684, %v8754
        %v8819 = vmul.f32 %v8686, %v8755
        %v8820 = vmul.f32 %v8575, %v8756
        %v8821 = vmul.f32 %v8577, %v8757
        %v8822 = vmul.f32 %v8688, %v8758
        %v8823 = vmul.f32 %v8690, %v8759
        %v8824 = vmul.f32 %v8581, %v8760
        %v8825 = vmul.f32 %v8583, %v8761
        %v8826 = vmul.f32 %v8694, %v8762
        %v8827 = vmul.f32 %v8696, %v8763
        %v8828 = vmul.f32 %v8585, %v8764
        %v8829 = vmul.f32 %v8587, %v8765
        %v8830 = vmul.f32 %v8698, %v8766
        %v8831 = vmul.f32 %v8700, %v8767
        %v8832 = vmul.f32 %v8591, %v8768
        %v8833 = vmul.f32 %v8593, %v8769
        %v8834 = vmul.f32 %v8704, %v8770
        %v8835 = vmul.f32 %v8706, %v8771
        %v8836 = vmul.f32 %v8595, %v8772
        %v8837 = vmul.f32 %v8597, %v8773
        %v8838 = vmul.f32 %v8708, %v8774
        %v8839 = vmul.f32 %v8710, %v8775
        %v8840 = vmul.f32 %v8776, 0.044715
        %v8841 = vmul.f32 %v8777, 0.044715
        %v8842 = vmul.f32 %v8778, 0.044715
        %v8843 = vmul.f32 %v8779, 0.044715
        %v8844 = vmul.f32 %v8780, 0.044715
        %v8845 = vmul.f32 %v8781, 0.044715
        %v8846 = vmul.f32 %v8782, 0.044715
        %v8847 = vmul.f32 %v8783, 0.044715
        %v8848 = vmul.f32 %v8784, 0.044715
        %v8849 = vmul.f32 %v8785, 0.044715
        %v8850 = vmul.f32 %v8786, 0.044715
        %v8851 = vmul.f32 %v8787, 0.044715
        %v8852 = vmul.f32 %v8788, 0.044715
        %v8853 = vmul.f32 %v8789, 0.044715
        %v8854 = vmul.f32 %v8790, 0.044715
        %v8855 = vmul.f32 %v8791, 0.044715
        %v8856 = vmul.f32 %v8792, 0.044715
        %v8857 = vmul.f32 %v8793, 0.044715
        %v8858 = vmul.f32 %v8794, 0.044715
        %v8859 = vmul.f32 %v8795, 0.044715
        %v8860 = vmul.f32 %v8796, 0.044715
        %v8861 = vmul.f32 %v8797, 0.044715
        %v8862 = vmul.f32 %v8798, 0.044715
        %v8863 = vmul.f32 %v8799, 0.044715
        %v8864 = vmul.f32 %v8800, 0.044715
        %v8865 = vmul.f32 %v8801, 0.044715
        %v8866 = vmul.f32 %v8802, 0.044715
        %v8867 = vmul.f32 %v8803, 0.044715
        %v8868 = vmul.f32 %v8804, 0.044715
        %v8869 = vmul.f32 %v8805, 0.044715
        %v8870 = vmul.f32 %v8806, 0.044715
        %v8871 = vmul.f32 %v8807, 0.044715
        %v8872 = vmul.f32 %v8808, 0.044715
        %v8873 = vmul.f32 %v8809, 0.044715
        %v8874 = vmul.f32 %v8810, 0.044715
        %v8875 = vmul.f32 %v8811, 0.044715
        %v8876 = vmul.f32 %v8812, 0.044715
        %v8877 = vmul.f32 %v8813, 0.044715
        %v8878 = vmul.f32 %v8814, 0.044715
        %v8879 = vmul.f32 %v8815, 0.044715
        %v8880 = vmul.f32 %v8816, 0.044715
        %v8881 = vmul.f32 %v8817, 0.044715
        %v8882 = vmul.f32 %v8818, 0.044715
        %v8883 = vmul.f32 %v8819, 0.044715
        %v8884 = vmul.f32 %v8820, 0.044715
        %v8885 = vmul.f32 %v8821, 0.044715
        %v8886 = vmul.f32 %v8822, 0.044715
        %v8887 = vmul.f32 %v8823, 0.044715
        %v8888 = vmul.f32 %v8824, 0.044715
        %v8889 = vmul.f32 %v8825, 0.044715
        %v8890 = vmul.f32 %v8826, 0.044715
        %v8891 = vmul.f32 %v8827, 0.044715
        %v8892 = vmul.f32 %v8828, 0.044715
        %v8893 = vmul.f32 %v8829, 0.044715
        %v8894 = vmul.f32 %v8830, 0.044715
        %v8895 = vmul.f32 %v8831, 0.044715
        %v8896 = vmul.f32 %v8832, 0.044715
        %v8897 = vmul.f32 %v8833, 0.044715
        %v8898 = vmul.f32 %v8834, 0.044715
        %v8899 = vmul.f32 %v8835, 0.044715
        %v8900 = vmul.f32 %v8836, 0.044715
        %v8901 = vmul.f32 %v8837, 0.044715
        %v8902 = vmul.f32 %v8838, 0.044715
        %v8903 = vmul.f32 %v8839, 0.044715
        %v8904 = vadd.f32 %v8521, %v8840
        %v8905 = vadd.f32 %v8523, %v8841
        %v8906 = vadd.f32 %v8634, %v8842
        %v8907 = vadd.f32 %v8636, %v8843
        %v8908 = vadd.f32 %v8525, %v8844
        %v8909 = vadd.f32 %v8527, %v8845
        %v8910 = vadd.f32 %v8638, %v8846
        %v8911 = vadd.f32 %v8640, %v8847
        %v8912 = vadd.f32 %v8531, %v8848
        %v8913 = vadd.f32 %v8533, %v8849
        %v8914 = vadd.f32 %v8644, %v8850
        %v8915 = vadd.f32 %v8646, %v8851
        %v8916 = vadd.f32 %v8535, %v8852
        %v8917 = vadd.f32 %v8537, %v8853
        %v8918 = vadd.f32 %v8648, %v8854
        %v8919 = vadd.f32 %v8650, %v8855
        %v8920 = vadd.f32 %v8541, %v8856
        %v8921 = vadd.f32 %v8543, %v8857
        %v8922 = vadd.f32 %v8654, %v8858
        %v8923 = vadd.f32 %v8656, %v8859
        %v8924 = vadd.f32 %v8545, %v8860
        %v8925 = vadd.f32 %v8547, %v8861
        %v8926 = vadd.f32 %v8658, %v8862
        %v8927 = vadd.f32 %v8660, %v8863
        %v8928 = vadd.f32 %v8551, %v8864
        %v8929 = vadd.f32 %v8553, %v8865
        %v8930 = vadd.f32 %v8664, %v8866
        %v8931 = vadd.f32 %v8666, %v8867
        %v8932 = vadd.f32 %v8555, %v8868
        %v8933 = vadd.f32 %v8557, %v8869
        %v8934 = vadd.f32 %v8668, %v8870
        %v8935 = vadd.f32 %v8670, %v8871
        %v8936 = vadd.f32 %v8561, %v8872
        %v8937 = vadd.f32 %v8563, %v8873
        %v8938 = vadd.f32 %v8674, %v8874
        %v8939 = vadd.f32 %v8676, %v8875
        %v8940 = vadd.f32 %v8565, %v8876
        %v8941 = vadd.f32 %v8567, %v8877
        %v8942 = vadd.f32 %v8678, %v8878
        %v8943 = vadd.f32 %v8680, %v8879
        %v8944 = vadd.f32 %v8571, %v8880
        %v8945 = vadd.f32 %v8573, %v8881
        %v8946 = vadd.f32 %v8684, %v8882
        %v8947 = vadd.f32 %v8686, %v8883
        %v8948 = vadd.f32 %v8575, %v8884
        %v8949 = vadd.f32 %v8577, %v8885
        %v8950 = vadd.f32 %v8688, %v8886
        %v8951 = vadd.f32 %v8690, %v8887
        %v8952 = vadd.f32 %v8581, %v8888
        %v8953 = vadd.f32 %v8583, %v8889
        %v8954 = vadd.f32 %v8694, %v8890
        %v8955 = vadd.f32 %v8696, %v8891
        %v8956 = vadd.f32 %v8585, %v8892
        %v8957 = vadd.f32 %v8587, %v8893
        %v8958 = vadd.f32 %v8698, %v8894
        %v8959 = vadd.f32 %v8700, %v8895
        %v8960 = vadd.f32 %v8591, %v8896
        %v8961 = vadd.f32 %v8593, %v8897
        %v8962 = vadd.f32 %v8704, %v8898
        %v8963 = vadd.f32 %v8706, %v8899
        %v8964 = vadd.f32 %v8595, %v8900
        %v8965 = vadd.f32 %v8597, %v8901
        %v8966 = vadd.f32 %v8708, %v8902
        %v8967 = vadd.f32 %v8710, %v8903
        %v8968 = vmul.f32 %v8904, 0.7978846
        %v8969 = vmul.f32 %v8905, 0.7978846
        %v8970 = vmul.f32 %v8906, 0.7978846
        %v8971 = vmul.f32 %v8907, 0.7978846
        %v8972 = vmul.f32 %v8908, 0.7978846
        %v8973 = vmul.f32 %v8909, 0.7978846
        %v8974 = vmul.f32 %v8910, 0.7978846
        %v8975 = vmul.f32 %v8911, 0.7978846
        %v8976 = vmul.f32 %v8912, 0.7978846
        %v8977 = vmul.f32 %v8913, 0.7978846
        %v8978 = vmul.f32 %v8914, 0.7978846
        %v8979 = vmul.f32 %v8915, 0.7978846
        %v8980 = vmul.f32 %v8916, 0.7978846
        %v8981 = vmul.f32 %v8917, 0.7978846
        %v8982 = vmul.f32 %v8918, 0.7978846
        %v8983 = vmul.f32 %v8919, 0.7978846
        %v8984 = vmul.f32 %v8920, 0.7978846
        %v8985 = vmul.f32 %v8921, 0.7978846
        %v8986 = vmul.f32 %v8922, 0.7978846
        %v8987 = vmul.f32 %v8923, 0.7978846
        %v8988 = vmul.f32 %v8924, 0.7978846
        %v8989 = vmul.f32 %v8925, 0.7978846
        %v8990 = vmul.f32 %v8926, 0.7978846
        %v8991 = vmul.f32 %v8927, 0.7978846
        %v8992 = vmul.f32 %v8928, 0.7978846
        %v8993 = vmul.f32 %v8929, 0.7978846
        %v8994 = vmul.f32 %v8930, 0.7978846
        %v8995 = vmul.f32 %v8931, 0.7978846
        %v8996 = vmul.f32 %v8932, 0.7978846
        %v8997 = vmul.f32 %v8933, 0.7978846
        %v8998 = vmul.f32 %v8934, 0.7978846
        %v8999 = vmul.f32 %v8935, 0.7978846
        %v9000 = vmul.f32 %v8936, 0.7978846
        %v9001 = vmul.f32 %v8937, 0.7978846
        %v9002 = vmul.f32 %v8938, 0.7978846
        %v9003 = vmul.f32 %v8939, 0.7978846
        %v9004 = vmul.f32 %v8940, 0.7978846
        %v9005 = vmul.f32 %v8941, 0.7978846
        %v9006 = vmul.f32 %v8942, 0.7978846
        %v9007 = vmul.f32 %v8943, 0.7978846
        %v9008 = vmul.f32 %v8944, 0.7978846
        %v9009 = vmul.f32 %v8945, 0.7978846
        %v9010 = vmul.f32 %v8946, 0.7978846
        %v9011 = vmul.f32 %v8947, 0.7978846
        %v9012 = vmul.f32 %v8948, 0.7978846
        %v9013 = vmul.f32 %v8949, 0.7978846
        %v9014 = vmul.f32 %v8950, 0.7978846
        %v9015 = vmul.f32 %v8951, 0.7978846
        %v9016 = vmul.f32 %v8952, 0.7978846
        %v9017 = vmul.f32 %v8953, 0.7978846
        %v9018 = vmul.f32 %v8954, 0.7978846
        %v9019 = vmul.f32 %v8955, 0.7978846
        %v9020 = vmul.f32 %v8956, 0.7978846
        %v9021 = vmul.f32 %v8957, 0.7978846
        %v9022 = vmul.f32 %v8958, 0.7978846
        %v9023 = vmul.f32 %v8959, 0.7978846
        %v9024 = vmul.f32 %v8960, 0.7978846
        %v9025 = vmul.f32 %v8961, 0.7978846
        %v9026 = vmul.f32 %v8962, 0.7978846
        %v9027 = vmul.f32 %v8963, 0.7978846
        %v9028 = vmul.f32 %v8964, 0.7978846
        %v9029 = vmul.f32 %v8965, 0.7978846
        %v9030 = vmul.f32 %v8966, 0.7978846
        %v9031 = vmul.f32 %v8967, 0.7978846
        %v9032 = vtanh.pop %v8968
        %v9033 = vtanh.pop %v8969
        %v9034 = vtanh.pop %v8970
        %v9035 = vtanh.pop %v8971
        %v9036 = vtanh.pop %v8972
        %v9037 = vtanh.pop %v8973
        %v9038 = vtanh.pop %v8974
        %v9039 = vtanh.pop %v8975
        %v9040 = vtanh.pop %v8976
        %v9041 = vtanh.pop %v8977
        %v9042 = vtanh.pop %v8978
        %v9043 = vtanh.pop %v8979
        %v9044 = vtanh.pop %v8980
        %v9045 = vtanh.pop %v8981
        %v9046 = vtanh.pop %v8982
        %v9047 = vtanh.pop %v8983
        %v9048 = vtanh.pop %v8984
        %v9049 = vtanh.pop %v8985
        %v9050 = vtanh.pop %v8986
        %v9051 = vtanh.pop %v8987
        %v9052 = vtanh.pop %v8988
        %v9053 = vtanh.pop %v8989
        %v9054 = vtanh.pop %v8990
        %v9055 = vtanh.pop %v8991
        %v9056 = vtanh.pop %v8992
        %v9057 = vtanh.pop %v8993
        %v9058 = vtanh.pop %v8994
        %v9059 = vtanh.pop %v8995
        %v9060 = vtanh.pop %v8996
        %v9061 = vtanh.pop %v8997
        %v9062 = vtanh.pop %v8998
        %v9063 = vtanh.pop %v8999
        %v9064 = vtanh.pop %v9000
        %v9065 = vtanh.pop %v9001
        %v9066 = vtanh.pop %v9002
        %v9067 = vtanh.pop %v9003
        %v9068 = vtanh.pop %v9004
        %v9069 = vtanh.pop %v9005
        %v9070 = vtanh.pop %v9006
        %v9071 = vtanh.pop %v9007
        %v9072 = vtanh.pop %v9008
        %v9073 = vtanh.pop %v9009
        %v9074 = vtanh.pop %v9010
        %v9075 = vtanh.pop %v9011
        %v9076 = vtanh.pop %v9012
        %v9077 = vtanh.pop %v9013
        %v9078 = vtanh.pop %v9014
        %v9079 = vtanh.pop %v9015
        %v9080 = vtanh.pop %v9016
        %v9081 = vtanh.pop %v9017
        %v9082 = vtanh.pop %v9018
        %v9083 = vtanh.pop %v9019
        %v9084 = vtanh.pop %v9020
        %v9085 = vtanh.pop %v9021
        %v9086 = vtanh.pop %v9022
        %v9087 = vtanh.pop %v9023
        %v9088 = vtanh.pop %v9024
        %v9089 = vtanh.pop %v9025
        %v9090 = vtanh.pop %v9026
        %v9091 = vtanh.pop %v9027
        %v9092 = vtanh.pop %v9028
        %v9093 = vtanh.pop %v9029
        %v9094 = vtanh.pop %v9030
        %v9095 = vtanh.pop %v9031
        %v9096 = vadd.f32 %v9032, 1.0
        %v9097 = vadd.f32 %v9033, 1.0
        %v9098 = vadd.f32 %v9034, 1.0
        %v9099 = vadd.f32 %v9035, 1.0
        %v9100 = vadd.f32 %v9036, 1.0
        %v9101 = vadd.f32 %v9037, 1.0
        %v9102 = vadd.f32 %v9038, 1.0
        %v9103 = vadd.f32 %v9039, 1.0
        %v9104 = vadd.f32 %v9040, 1.0
        %v9105 = vadd.f32 %v9041, 1.0
        %v9106 = vadd.f32 %v9042, 1.0
        %v9107 = vadd.f32 %v9043, 1.0
        %v9108 = vadd.f32 %v9044, 1.0
        %v9109 = vadd.f32 %v9045, 1.0
        %v9110 = vadd.f32 %v9046, 1.0
        %v9111 = vadd.f32 %v9047, 1.0
        %v9112 = vadd.f32 %v9048, 1.0
        %v9113 = vadd.f32 %v9049, 1.0
        %v9114 = vadd.f32 %v9050, 1.0
        %v9115 = vadd.f32 %v9051, 1.0
        %v9116 = vadd.f32 %v9052, 1.0
        %v9117 = vadd.f32 %v9053, 1.0
        %v9118 = vadd.f32 %v9054, 1.0
        %v9119 = vadd.f32 %v9055, 1.0
        %v9120 = vadd.f32 %v9056, 1.0
        %v9121 = vadd.f32 %v9057, 1.0
        %v9122 = vadd.f32 %v9058, 1.0
        %v9123 = vadd.f32 %v9059, 1.0
        %v9124 = vadd.f32 %v9060, 1.0
        %v9125 = vadd.f32 %v9061, 1.0
        %v9126 = vadd.f32 %v9062, 1.0
        %v9127 = vadd.f32 %v9063, 1.0
        %v9128 = vadd.f32 %v9064, 1.0
        %v9129 = vadd.f32 %v9065, 1.0
        %v9130 = vadd.f32 %v9066, 1.0
        %v9131 = vadd.f32 %v9067, 1.0
        %v9132 = vadd.f32 %v9068, 1.0
        %v9133 = vadd.f32 %v9069, 1.0
        %v9134 = vadd.f32 %v9070, 1.0
        %v9135 = vadd.f32 %v9071, 1.0
        %v9136 = vadd.f32 %v9072, 1.0
        %v9137 = vadd.f32 %v9073, 1.0
        %v9138 = vadd.f32 %v9074, 1.0
        %v9139 = vadd.f32 %v9075, 1.0
        %v9140 = vadd.f32 %v9076, 1.0
        %v9141 = vadd.f32 %v9077, 1.0
        %v9142 = vadd.f32 %v9078, 1.0
        %v9143 = vadd.f32 %v9079, 1.0
        %v9144 = vadd.f32 %v9080, 1.0
        %v9145 = vadd.f32 %v9081, 1.0
        %v9146 = vadd.f32 %v9082, 1.0
        %v9147 = vadd.f32 %v9083, 1.0
        %v9148 = vadd.f32 %v9084, 1.0
        %v9149 = vadd.f32 %v9085, 1.0
        %v9150 = vadd.f32 %v9086, 1.0
        %v9151 = vadd.f32 %v9087, 1.0
        %v9152 = vadd.f32 %v9088, 1.0
        %v9153 = vadd.f32 %v9089, 1.0
        %v9154 = vadd.f32 %v9090, 1.0
        %v9155 = vadd.f32 %v9091, 1.0
        %v9156 = vadd.f32 %v9092, 1.0
        %v9157 = vadd.f32 %v9093, 1.0
        %v9158 = vadd.f32 %v9094, 1.0
        %v9159 = vadd.f32 %v9095, 1.0
        %v9160 = vmul.f32 %v9096, 0.5
        %v9161 = vmul.f32 %v9097, 0.5
        %v9162 = vmul.f32 %v9098, 0.5
        %v9163 = vmul.f32 %v9099, 0.5
        %v9164 = vmul.f32 %v9100, 0.5
        %v9165 = vmul.f32 %v9101, 0.5
        %v9166 = vmul.f32 %v9102, 0.5
        %v9167 = vmul.f32 %v9103, 0.5
        %v9168 = vmul.f32 %v9104, 0.5
        %v9169 = vmul.f32 %v9105, 0.5
        %v9170 = vmul.f32 %v9106, 0.5
        %v9171 = vmul.f32 %v9107, 0.5
        %v9172 = vmul.f32 %v9108, 0.5
        %v9173 = vmul.f32 %v9109, 0.5
        %v9174 = vmul.f32 %v9110, 0.5
        %v9175 = vmul.f32 %v9111, 0.5
        %v9176 = vmul.f32 %v9112, 0.5
        %v9177 = vmul.f32 %v9113, 0.5
        %v9178 = vmul.f32 %v9114, 0.5
        %v9179 = vmul.f32 %v9115, 0.5
        %v9180 = vmul.f32 %v9116, 0.5
        %v9181 = vmul.f32 %v9117, 0.5
        %v9182 = vmul.f32 %v9118, 0.5
        %v9183 = vmul.f32 %v9119, 0.5
        %v9184 = vmul.f32 %v9120, 0.5
        %v9185 = vmul.f32 %v9121, 0.5
        %v9186 = vmul.f32 %v9122, 0.5
        %v9187 = vmul.f32 %v9123, 0.5
        %v9188 = vmul.f32 %v9124, 0.5
        %v9189 = vmul.f32 %v9125, 0.5
        %v9190 = vmul.f32 %v9126, 0.5
        %v9191 = vmul.f32 %v9127, 0.5
        %v9192 = vmul.f32 %v9128, 0.5
        %v9193 = vmul.f32 %v9129, 0.5
        %v9194 = vmul.f32 %v9130, 0.5
        %v9195 = vmul.f32 %v9131, 0.5
        %v9196 = vmul.f32 %v9132, 0.5
        %v9197 = vmul.f32 %v9133, 0.5
        %v9198 = vmul.f32 %v9134, 0.5
        %v9199 = vmul.f32 %v9135, 0.5
        %v9200 = vmul.f32 %v9136, 0.5
        %v9201 = vmul.f32 %v9137, 0.5
        %v9202 = vmul.f32 %v9138, 0.5
        %v9203 = vmul.f32 %v9139, 0.5
        %v9204 = vmul.f32 %v9140, 0.5
        %v9205 = vmul.f32 %v9141, 0.5
        %v9206 = vmul.f32 %v9142, 0.5
        %v9207 = vmul.f32 %v9143, 0.5
        %v9208 = vmul.f32 %v9144, 0.5
        %v9209 = vmul.f32 %v9145, 0.5
        %v9210 = vmul.f32 %v9146, 0.5
        %v9211 = vmul.f32 %v9147, 0.5
        %v9212 = vmul.f32 %v9148, 0.5
        %v9213 = vmul.f32 %v9149, 0.5
        %v9214 = vmul.f32 %v9150, 0.5
        %v9215 = vmul.f32 %v9151, 0.5
        %v9216 = vmul.f32 %v9152, 0.5
        %v9217 = vmul.f32 %v9153, 0.5
        %v9218 = vmul.f32 %v9154, 0.5
        %v9219 = vmul.f32 %v9155, 0.5
        %v9220 = vmul.f32 %v9156, 0.5
        %v9221 = vmul.f32 %v9157, 0.5
        %v9222 = vmul.f32 %v9158, 0.5
        %v9223 = vmul.f32 %v9159, 0.5
        %v9224 = vmul.f32 %v8521, %v9160
        %v9225 = vmul.f32 %v8523, %v9161
        %v9226 = vmul.f32 %v8634, %v9162
        %v9227 = vmul.f32 %v8636, %v9163
        %v9228 = vmul.f32 %v8525, %v9164
        %v9229 = vmul.f32 %v8527, %v9165
        %v9230 = vmul.f32 %v8638, %v9166
        %v9231 = vmul.f32 %v8640, %v9167
        %v9232 = vmul.f32 %v8531, %v9168
        %v9233 = vmul.f32 %v8533, %v9169
        %v9234 = vmul.f32 %v8644, %v9170
        %v9235 = vmul.f32 %v8646, %v9171
        %v9236 = vmul.f32 %v8535, %v9172
        %v9237 = vmul.f32 %v8537, %v9173
        %v9238 = vmul.f32 %v8648, %v9174
        %v9239 = vmul.f32 %v8650, %v9175
        %v9240 = vmul.f32 %v8541, %v9176
        %v9241 = vmul.f32 %v8543, %v9177
        %v9242 = vmul.f32 %v8654, %v9178
        %v9243 = vmul.f32 %v8656, %v9179
        %v9244 = vmul.f32 %v8545, %v9180
        %v9245 = vmul.f32 %v8547, %v9181
        %v9246 = vmul.f32 %v8658, %v9182
        %v9247 = vmul.f32 %v8660, %v9183
        %v9248 = vmul.f32 %v8551, %v9184
        %v9249 = vmul.f32 %v8553, %v9185
        %v9250 = vmul.f32 %v8664, %v9186
        %v9251 = vmul.f32 %v8666, %v9187
        %v9252 = vmul.f32 %v8555, %v9188
        %v9253 = vmul.f32 %v8557, %v9189
        %v9254 = vmul.f32 %v8668, %v9190
        %v9255 = vmul.f32 %v8670, %v9191
        %v9256 = vmul.f32 %v8561, %v9192
        %v9257 = vmul.f32 %v8563, %v9193
        %v9258 = vmul.f32 %v8674, %v9194
        %v9259 = vmul.f32 %v8676, %v9195
        %v9260 = vmul.f32 %v8565, %v9196
        %v9261 = vmul.f32 %v8567, %v9197
        %v9262 = vmul.f32 %v8678, %v9198
        %v9263 = vmul.f32 %v8680, %v9199
        %v9264 = vmul.f32 %v8571, %v9200
        %v9265 = vmul.f32 %v8573, %v9201
        %v9266 = vmul.f32 %v8684, %v9202
        %v9267 = vmul.f32 %v8686, %v9203
        %v9268 = vmul.f32 %v8575, %v9204
        %v9269 = vmul.f32 %v8577, %v9205
        %v9270 = vmul.f32 %v8688, %v9206
        %v9271 = vmul.f32 %v8690, %v9207
        %v9272 = vmul.f32 %v8581, %v9208
        %v9273 = vmul.f32 %v8583, %v9209
        %v9274 = vmul.f32 %v8694, %v9210
        %v9275 = vmul.f32 %v8696, %v9211
        %v9276 = vmul.f32 %v8585, %v9212
        %v9277 = vmul.f32 %v8587, %v9213
        %v9278 = vmul.f32 %v8698, %v9214
        %v9279 = vmul.f32 %v8700, %v9215
        %v9280 = vmul.f32 %v8591, %v9216
        %v9281 = vmul.f32 %v8593, %v9217
        %v9282 = vmul.f32 %v8704, %v9218
        %v9283 = vmul.f32 %v8706, %v9219
        %v9284 = vmul.f32 %v8595, %v9220
        %v9285 = vmul.f32 %v8597, %v9221
        %v9286 = vmul.f32 %v8708, %v9222
        %v9287 = vmul.f32 %v8710, %v9223
        %v9288 = vpack.c.bf16 %v9228, %v9224
        %v9289 = vpack.c.bf16 %v9229, %v9225
        %v9290 = vpack.c.bf16 %v9230, %v9226
        %v9291 = vpack.c.bf16 %v9231, %v9227
        %v9292 = vpack.c.bf16 %v9236, %v9232
        %v9293 = vpack.c.bf16 %v9237, %v9233
        %v9294 = vpack.c.bf16 %v9238, %v9234
        %v9295 = vpack.c.bf16 %v9239, %v9235
        %v9296 = vpack.c.bf16 %v9244, %v9240
        %v9297 = vpack.c.bf16 %v9245, %v9241
        %v9298 = vpack.c.bf16 %v9246, %v9242
        %v9299 = vpack.c.bf16 %v9247, %v9243
        %v9300 = vpack.c.bf16 %v9252, %v9248
        %v9301 = vpack.c.bf16 %v9253, %v9249
        %v9302 = vpack.c.bf16 %v9254, %v9250
        %v9303 = vpack.c.bf16 %v9255, %v9251
        %v9304 = vpack.c.bf16 %v9260, %v9256
        %v9305 = vpack.c.bf16 %v9261, %v9257
        %v9306 = vpack.c.bf16 %v9262, %v9258
        %v9307 = vpack.c.bf16 %v9263, %v9259
        %v9308 = vpack.c.bf16 %v9268, %v9264
        %v9309 = vpack.c.bf16 %v9269, %v9265
        %v9310 = vpack.c.bf16 %v9270, %v9266
        %v9311 = vpack.c.bf16 %v9271, %v9267
        %v9312 = vpack.c.bf16 %v9276, %v9272
        %v9313 = vpack.c.bf16 %v9277, %v9273
        %v9314 = vpack.c.bf16 %v9278, %v9274
        %v9315 = vpack.c.bf16 %v9279, %v9275
        %v9316 = vpack.c.bf16 %v9284, %v9280
        %v9317 = vpack.c.bf16 %v9285, %v9281
        %v9318 = vpack.c.bf16 %v9286, %v9282
        %v9319 = vpack.c.bf16 %v9287, %v9283
        %s9320 = scalar_lea.vmem %s11, 512
        %v9321 = vld [vmem:[%s9320] sm:$0xff]
        %v9322 = vld [vmem:[%s9320 + $0x8] sm:$0xff]
        %v9323 = vld [vmem:[%s9320 + $0x10] sm:$0xff]
        %v9324 = vld [vmem:[%s9320 + $0x18] sm:$0xff]
        %v9325 = vld [vmem:[%s9320 + $0x20] sm:$0xff]
        %v9326 = vld [vmem:[%s9320 + $0x28] sm:$0xff]
        %v9327 = vld [vmem:[%s9320 + $0x30] sm:$0xff]
        %v9328 = vld [vmem:[%s9320 + $0x38] sm:$0xff]
        %v9329 = vld [vmem:[%s9320 + $0x40] sm:$0xff]
        %v9330 = vld [vmem:[%s9320 + $0x48] sm:$0xff]
        %v9331 = vld [vmem:[%s9320 + $0x50] sm:$0xff]
        %v9332 = vld [vmem:[%s9320 + $0x58] sm:$0xff]
        %v9333 = vld [vmem:[%s9320 + $0x60] sm:$0xff]
        %v9334 = vld [vmem:[%s9320 + $0x68] sm:$0xff]
        %v9335 = vld [vmem:[%s9320 + $0x70] sm:$0xff]
        %v9336 = vld [vmem:[%s9320 + $0x78] sm:$0xff]
        %v9337 = vld [vmem:[%s9320 + $0x80] sm:$0xff]
        %v9338 = vld [vmem:[%s9320 + $0x88] sm:$0xff]
        %v9339 = vld [vmem:[%s9320 + $0x90] sm:$0xff]
        %v9340 = vld [vmem:[%s9320 + $0x98] sm:$0xff]
        %v9341 = vld [vmem:[%s9320 + $0xa0] sm:$0xff]
        %v9342 = vld [vmem:[%s9320 + $0xa8] sm:$0xff]
        %v9343 = vld [vmem:[%s9320 + $0xb0] sm:$0xff]
        %v9344 = vld [vmem:[%s9320 + $0xb8] sm:$0xff]
        %v9345 = vld [vmem:[%s9320 + $0xc0] sm:$0xff]
        %v9346 = vld [vmem:[%s9320 + $0xc8] sm:$0xff]
        %v9347 = vld [vmem:[%s9320 + $0xd0] sm:$0xff]
        %v9348 = vld [vmem:[%s9320 + $0xd8] sm:$0xff]
        %v9349 = vld [vmem:[%s9320 + $0xe0] sm:$0xff]
        %v9350 = vld [vmem:[%s9320 + $0xe8] sm:$0xff]
        %v9351 = vld [vmem:[%s9320 + $0xf0] sm:$0xff]
        %v9352 = vld [vmem:[%s9320 + $0xf8] sm:$0xff]
        %v9353 = vld [vmem:[%s9320 + $0x100] sm:$0xff]
        %v9354 = vld [vmem:[%s9320 + $0x108] sm:$0xff]
        %v9355 = vld [vmem:[%s9320 + $0x110] sm:$0xff]
        %v9356 = vld [vmem:[%s9320 + $0x118] sm:$0xff]
        %v9357 = vld [vmem:[%s9320 + $0x120] sm:$0xff]
        %v9358 = vld [vmem:[%s9320 + $0x128] sm:$0xff]
        %v9359 = vld [vmem:[%s9320 + $0x130] sm:$0xff]
        %v9360 = vld [vmem:[%s9320 + $0x138] sm:$0xff]
        %v9361 = vld [vmem:[%s9320 + $0x140] sm:$0xff]
        %v9362 = vld [vmem:[%s9320 + $0x148] sm:$0xff]
        %v9363 = vld [vmem:[%s9320 + $0x150] sm:$0xff]
        %v9364 = vld [vmem:[%s9320 + $0x158] sm:$0xff]
        %v9365 = vld [vmem:[%s9320 + $0x160] sm:$0xff]
        %v9366 = vld [vmem:[%s9320 + $0x168] sm:$0xff]
        %v9367 = vld [vmem:[%s9320 + $0x170] sm:$0xff]
        %v9368 = vld [vmem:[%s9320 + $0x178] sm:$0xff]
        %v9369 = vld [vmem:[%s9320 + $0x180] sm:$0xff]
        %v9370 = vld [vmem:[%s9320 + $0x188] sm:$0xff]
        %v9371 = vld [vmem:[%s9320 + $0x190] sm:$0xff]
        %v9372 = vld [vmem:[%s9320 + $0x198] sm:$0xff]
        %v9373 = vld [vmem:[%s9320 + $0x1a0] sm:$0xff]
        %v9374 = vld [vmem:[%s9320 + $0x1a8] sm:$0xff]
        %v9375 = vld [vmem:[%s9320 + $0x1b0] sm:$0xff]
        %v9376 = vld [vmem:[%s9320 + $0x1b8] sm:$0xff]
        %v9377 = vld [vmem:[%s9320 + $0x1c0] sm:$0xff]
        %v9378 = vld [vmem:[%s9320 + $0x1c8] sm:$0xff]
        %v9379 = vld [vmem:[%s9320 + $0x1d0] sm:$0xff]
        %v9380 = vld [vmem:[%s9320 + $0x1d8] sm:$0xff]
        %v9381 = vld [vmem:[%s9320 + $0x1e0] sm:$0xff]
        %v9382 = vld [vmem:[%s9320 + $0x1e8] sm:$0xff]
        %v9383 = vld [vmem:[%s9320 + $0x1f0] sm:$0xff]
        %v9384 = vld [vmem:[%s9320 + $0x1f8] sm:$0xff]
        %s9385 = scalar_lea.vmem %s12, 2
        %v9386 = vld [vmem:[%s9385] sm:$0x3]
        %v9388 = vlaneseq
        %v9389 = vshrl.u32 %v9388, 7
        %v9390 = vsub.s32 0, %v9389
        %v9391 = vrot.slane %v9386, %v9390
        %v9392 = vlaneseq
        %v9393 = vshrl.u32 %v9392, 7
        %v9394 = vsub.s32 1, %v9393
        %v9395 = vrot.slane %v9386, %v9394
        %v9462 = vunpack.c.l.b16 %v9321
        %v9463 = vunpack.c.h.b16 %v9321
        %v9464 = vunpack.c.l.b16 %v9322
        %v9465 = vunpack.c.h.b16 %v9322
        %v9466 = vunpack.c.l.b16 %v9323
        %v9467 = vunpack.c.h.b16 %v9323
        %v9468 = vunpack.c.l.b16 %v9324
        %v9469 = vunpack.c.h.b16 %v9324
        %v9470 = vunpack.c.l.b16 %v9325
        %v9471 = vunpack.c.h.b16 %v9325
        %v9472 = vunpack.c.l.b16 %v9326
        %v9473 = vunpack.c.h.b16 %v9326
        %v9474 = vunpack.c.l.b16 %v9327
        %v9475 = vunpack.c.h.b16 %v9327
        %v9476 = vunpack.c.l.b16 %v9328
        %v9477 = vunpack.c.h.b16 %v9328
        %v9478 = vunpack.c.l.b16 %v9329
        %v9479 = vunpack.c.h.b16 %v9329
        %v9480 = vunpack.c.l.b16 %v9330
        %v9481 = vunpack.c.h.b16 %v9330
        %v9482 = vunpack.c.l.b16 %v9331
        %v9483 = vunpack.c.h.b16 %v9331
        %v9484 = vunpack.c.l.b16 %v9332
        %v9485 = vunpack.c.h.b16 %v9332
        %v9486 = vunpack.c.l.b16 %v9333
        %v9487 = vunpack.c.h.b16 %v9333
        %v9488 = vunpack.c.l.b16 %v9334
        %v9489 = vunpack.c.h.b16 %v9334
        %v9490 = vunpack.c.l.b16 %v9335
        %v9491 = vunpack.c.h.b16 %v9335
        %v9492 = vunpack.c.l.b16 %v9336
        %v9493 = vunpack.c.h.b16 %v9336
        %v9494 = vunpack.c.l.b16 %v9337
        %v9495 = vunpack.c.h.b16 %v9337
        %v9496 = vunpack.c.l.b16 %v9338
        %v9497 = vunpack.c.h.b16 %v9338
        %v9498 = vunpack.c.l.b16 %v9339
        %v9499 = vunpack.c.h.b16 %v9339
        %v9500 = vunpack.c.l.b16 %v9340
        %v9501 = vunpack.c.h.b16 %v9340
        %v9502 = vunpack.c.l.b16 %v9341
        %v9503 = vunpack.c.h.b16 %v9341
        %v9504 = vunpack.c.l.b16 %v9342
        %v9505 = vunpack.c.h.b16 %v9342
        %v9506 = vunpack.c.l.b16 %v9343
        %v9507 = vunpack.c.h.b16 %v9343
        %v9508 = vunpack.c.l.b16 %v9344
        %v9509 = vunpack.c.h.b16 %v9344
        %v9510 = vunpack.c.l.b16 %v9345
        %v9511 = vunpack.c.h.b16 %v9345
        %v9512 = vunpack.c.l.b16 %v9346
        %v9513 = vunpack.c.h.b16 %v9346
        %v9514 = vunpack.c.l.b16 %v9347
        %v9515 = vunpack.c.h.b16 %v9347
        %v9516 = vunpack.c.l.b16 %v9348
        %v9517 = vunpack.c.h.b16 %v9348
        %v9518 = vunpack.c.l.b16 %v9349
        %v9519 = vunpack.c.h.b16 %v9349
        %v9520 = vunpack.c.l.b16 %v9350
        %v9521 = vunpack.c.h.b16 %v9350
        %v9522 = vunpack.c.l.b16 %v9351
        %v9523 = vunpack.c.h.b16 %v9351
        %v9524 = vunpack.c.l.b16 %v9352
        %v9525 = vunpack.c.h.b16 %v9352
        %v9526 = vunpack.c.l.b16 %v9353
        %v9527 = vunpack.c.h.b16 %v9353
        %v9528 = vunpack.c.l.b16 %v9354
        %v9529 = vunpack.c.h.b16 %v9354
        %v9530 = vunpack.c.l.b16 %v9355
        %v9531 = vunpack.c.h.b16 %v9355
        %v9532 = vunpack.c.l.b16 %v9356
        %v9533 = vunpack.c.h.b16 %v9356
        %v9534 = vunpack.c.l.b16 %v9357
        %v9535 = vunpack.c.h.b16 %v9357
        %v9536 = vunpack.c.l.b16 %v9358
        %v9537 = vunpack.c.h.b16 %v9358
        %v9538 = vunpack.c.l.b16 %v9359
        %v9539 = vunpack.c.h.b16 %v9359
        %v9540 = vunpack.c.l.b16 %v9360
        %v9541 = vunpack.c.h.b16 %v9360
        %v9542 = vunpack.c.l.b16 %v9361
        %v9543 = vunpack.c.h.b16 %v9361
        %v9544 = vunpack.c.l.b16 %v9362
        %v9545 = vunpack.c.h.b16 %v9362
        %v9546 = vunpack.c.l.b16 %v9363
        %v9547 = vunpack.c.h.b16 %v9363
        %v9548 = vunpack.c.l.b16 %v9364
        %v9549 = vunpack.c.h.b16 %v9364
        %v9550 = vunpack.c.l.b16 %v9365
        %v9551 = vunpack.c.h.b16 %v9365
        %v9552 = vunpack.c.l.b16 %v9366
        %v9553 = vunpack.c.h.b16 %v9366
        %v9554 = vunpack.c.l.b16 %v9367
        %v9555 = vunpack.c.h.b16 %v9367
        %v9556 = vunpack.c.l.b16 %v9368
        %v9557 = vunpack.c.h.b16 %v9368
        %v9558 = vunpack.c.l.b16 %v9369
        %v9559 = vunpack.c.h.b16 %v9369
        %v9560 = vunpack.c.l.b16 %v9370
        %v9561 = vunpack.c.h.b16 %v9370
        %v9562 = vunpack.c.l.b16 %v9371
        %v9563 = vunpack.c.h.b16 %v9371
        %v9564 = vunpack.c.l.b16 %v9372
        %v9565 = vunpack.c.h.b16 %v9372
        %v9566 = vunpack.c.l.b16 %v9373
        %v9567 = vunpack.c.h.b16 %v9373
        %v9568 = vunpack.c.l.b16 %v9374
        %v9569 = vunpack.c.h.b16 %v9374
        %v9570 = vunpack.c.l.b16 %v9375
        %v9571 = vunpack.c.h.b16 %v9375
        %v9572 = vunpack.c.l.b16 %v9376
        %v9573 = vunpack.c.h.b16 %v9376
        %v9574 = vunpack.c.l.b16 %v9377
        %v9575 = vunpack.c.h.b16 %v9377
        %v9576 = vunpack.c.l.b16 %v9378
        %v9577 = vunpack.c.h.b16 %v9378
        %v9578 = vunpack.c.l.b16 %v9379
        %v9579 = vunpack.c.h.b16 %v9379
        %v9580 = vunpack.c.l.b16 %v9380
        %v9581 = vunpack.c.h.b16 %v9380
        %v9582 = vunpack.c.l.b16 %v9381
        %v9583 = vunpack.c.h.b16 %v9381
        %v9584 = vunpack.c.l.b16 %v9382
        %v9585 = vunpack.c.h.b16 %v9382
        %v9586 = vunpack.c.l.b16 %v9383
        %v9587 = vunpack.c.h.b16 %v9383
        %v9588 = vunpack.c.l.b16 %v9384
        %v9589 = vunpack.c.h.b16 %v9384
        %v9590 = vpack.c.b16 %v9464, %v9462
        %v9591 = vpack.c.b16 %v9465, %v9463
        %v9592 = vpack.c.b16 %v9468, %v9466
        %v9593 = vpack.c.b16 %v9469, %v9467
        %v9594 = vpack.c.b16 %v9472, %v9470
        %v9595 = vpack.c.b16 %v9473, %v9471
        %v9596 = vpack.c.b16 %v9476, %v9474
        %v9597 = vpack.c.b16 %v9477, %v9475
        %v9598 = vpack.c.b16 %v9480, %v9478
        %v9599 = vpack.c.b16 %v9481, %v9479
        %v9600 = vpack.c.b16 %v9484, %v9482
        %v9601 = vpack.c.b16 %v9485, %v9483
        %v9602 = vpack.c.b16 %v9488, %v9486
        %v9603 = vpack.c.b16 %v9489, %v9487
        %v9604 = vpack.c.b16 %v9492, %v9490
        %v9605 = vpack.c.b16 %v9493, %v9491
        %v9606 = vpack.c.b16 %v9496, %v9494
        %v9607 = vpack.c.b16 %v9497, %v9495
        %v9608 = vpack.c.b16 %v9500, %v9498
        %v9609 = vpack.c.b16 %v9501, %v9499
        %v9610 = vpack.c.b16 %v9504, %v9502
        %v9611 = vpack.c.b16 %v9505, %v9503
        %v9612 = vpack.c.b16 %v9508, %v9506
        %v9613 = vpack.c.b16 %v9509, %v9507
        %v9614 = vpack.c.b16 %v9512, %v9510
        %v9615 = vpack.c.b16 %v9513, %v9511
        %v9616 = vpack.c.b16 %v9516, %v9514
        %v9617 = vpack.c.b16 %v9517, %v9515
        %v9618 = vpack.c.b16 %v9520, %v9518
        %v9619 = vpack.c.b16 %v9521, %v9519
        %v9620 = vpack.c.b16 %v9524, %v9522
        %v9621 = vpack.c.b16 %v9525, %v9523
        %v9622 = vpack.c.b16 %v9528, %v9526
        %v9623 = vpack.c.b16 %v9529, %v9527
        %v9624 = vpack.c.b16 %v9532, %v9530
        %v9625 = vpack.c.b16 %v9533, %v9531
        %v9626 = vpack.c.b16 %v9536, %v9534
        %v9627 = vpack.c.b16 %v9537, %v9535
        %v9628 = vpack.c.b16 %v9540, %v9538
        %v9629 = vpack.c.b16 %v9541, %v9539
        %v9630 = vpack.c.b16 %v9544, %v9542
        %v9631 = vpack.c.b16 %v9545, %v9543
        %v9632 = vpack.c.b16 %v9548, %v9546
        %v9633 = vpack.c.b16 %v9549, %v9547
        %v9634 = vpack.c.b16 %v9552, %v9550
        %v9635 = vpack.c.b16 %v9553, %v9551
        %v9636 = vpack.c.b16 %v9556, %v9554
        %v9637 = vpack.c.b16 %v9557, %v9555
        %v9638 = vpack.c.b16 %v9560, %v9558
        %v9639 = vpack.c.b16 %v9561, %v9559
        %v9640 = vpack.c.b16 %v9564, %v9562
        %v9641 = vpack.c.b16 %v9565, %v9563
        %v9642 = vpack.c.b16 %v9568, %v9566
        %v9643 = vpack.c.b16 %v9569, %v9567
        %v9644 = vpack.c.b16 %v9572, %v9570
        %v9645 = vpack.c.b16 %v9573, %v9571
        %v9646 = vpack.c.b16 %v9576, %v9574
        %v9647 = vpack.c.b16 %v9577, %v9575
        %v9648 = vpack.c.b16 %v9580, %v9578
        %v9649 = vpack.c.b16 %v9581, %v9579
        %v9650 = vpack.c.b16 %v9584, %v9582
        %v9651 = vpack.c.b16 %v9585, %v9583
        %v9652 = vpack.c.b16 %v9588, %v9586
        %v9653 = vpack.c.b16 %v9589, %v9587
        %9718 = vmatprep.subr.bf16.mxu0 %v9591
        %9719 = vmatpush1.bf16.msra.mxu0 %v9590
        %9720 = vmatprep.subr.bf16.mxu0 %v9593
        %9721 = vmatpush1.bf16.msra.mxu0 %v9592
        %9722 = vmatprep.subr.bf16.mxu0 %v9595
        %9723 = vmatpush1.bf16.msra.mxu0 %v9594
        %9724 = vmatprep.subr.bf16.mxu0 %v9597
        %9725 = vmatpush1.bf16.msra.mxu0 %v9596
        %9726 = vmatprep.subr.bf16.mxu0 %v9599
        %9727 = vmatpush1.bf16.msra.mxu0 %v9598
        %9728 = vmatprep.subr.bf16.mxu0 %v9601
        %9729 = vmatpush1.bf16.msra.mxu0 %v9600
        %9730 = vmatprep.subr.bf16.mxu0 %v9603
        %9731 = vmatpush1.bf16.msra.mxu0 %v9602
        %9732 = vmatprep.subr.bf16.mxu0 %v9605
        %9733 = vmatpush1.bf16.msra.mxu0 %v9604
        %9734 = vmatprep.subr.bf16.mxu0 %v9607
        %9735 = vmatpush1.bf16.msra.mxu0 %v9606
        %9736 = vmatprep.subr.bf16.mxu0 %v9609
        %9737 = vmatpush1.bf16.msra.mxu0 %v9608
        %9738 = vmatprep.subr.bf16.mxu0 %v9611
        %9739 = vmatpush1.bf16.msra.mxu0 %v9610
        %9740 = vmatprep.subr.bf16.mxu0 %v9613
        %9741 = vmatpush1.bf16.msra.mxu0 %v9612
        %9742 = vmatprep.subr.bf16.mxu0 %v9615
        %9743 = vmatpush1.bf16.msra.mxu0 %v9614
        %9744 = vmatprep.subr.bf16.mxu0 %v9617
        %9745 = vmatpush1.bf16.msra.mxu0 %v9616
        %9746 = vmatprep.subr.bf16.mxu0 %v9619
        %9747 = vmatpush1.bf16.msra.mxu0 %v9618
        %9748 = vmatprep.subr.bf16.mxu0 %v9621
        %9749 = vmatpush1.bf16.msra.mxu0 %v9620
        %9750 = vmatprep.mubr.bf16.mxu0 %v9289
        %9751 = vmatmul.mubr.bf16.gmra.mrb[0].mxu0 %v9288
        %v9752 = vpop.f32.mrb[0].mxu0
        %v9753 = vadd.f32 %v9391, %v9752
        %v9754 = vpop.f32.mrb[0].mxu0
        %v9755 = vadd.f32 %v9395, %v9754
        %v9756 = vpop.f32.mrb[0].mxu0
        %v9757 = vpop.f32.mrb[0].mxu0
        %9758 = vmatprep.mubr.bf16.mxu0 %v9293
        %9759 = vmatmul.mubr.bf16.gmra.mrb[0].mxu0 %v9292
        %v9760 = vpop.f32.mrb[0].mxu0
        %v9761 = vpop.f32.mrb[0].mxu0
        %v9762 = vpop.f32.mrb[0].mxu0
        %v9763 = vpop.f32.mrb[0].mxu0
        %9764 = vmatprep.mubr.bf16.mxu0 %v9297
        %9765 = vmatmul.mubr.bf16.gmra.mrb[0].mxu0 %v9296
        %v9766 = vpop.f32.mrb[0].mxu0
        %v9767 = vpop.f32.mrb[0].mxu0
        %v9768 = vpop.f32.mrb[0].mxu0
        %v9769 = vpop.f32.mrb[0].mxu0
        %9770 = vmatprep.mubr.bf16.mxu0 %v9301
        %9771 = vmatmul.mubr.bf16.gmra.mrb[0].mxu0 %v9300
        %v9772 = vpop.f32.mrb[0].mxu0
        %v9773 = vpop.f32.mrb[0].mxu0
        %v9774 = vpop.f32.mrb[0].mxu0
        %v9775 = vpop.f32.mrb[0].mxu0
        %9776 = vmatprep.mubr.bf16.mxu0 %v9305
        %9777 = vmatmul.mubr.bf16.gmra.mrb[0].mxu0 %v9304
        %v9778 = vpop.f32.mrb[0].mxu0
        %v9779 = vpop.f32.mrb[0].mxu0
        %v9780 = vpop.f32.mrb[0].mxu0
        %v9781 = vpop.f32.mrb[0].mxu0
        %9782 = vmatprep.mubr.bf16.mxu0 %v9309
        %9783 = vmatmul.mubr.bf16.gmra.mrb[0].mxu0 %v9308
        %v9784 = vpop.f32.mrb[0].mxu0
        %v9785 = vpop.f32.mrb[0].mxu0
        %v9786 = vpop.f32.mrb[0].mxu0
        %v9787 = vpop.f32.mrb[0].mxu0
        %9788 = vmatprep.mubr.bf16.mxu0 %v9313
        %9789 = vmatmul.mubr.bf16.gmra.mrb[0].mxu0 %v9312
        %v9790 = vpop.f32.mrb[0].mxu0
        %v9791 = vpop.f32.mrb[0].mxu0
        %v9792 = vpop.f32.mrb[0].mxu0
        %v9793 = vpop.f32.mrb[0].mxu0
        %9794 = vmatprep.mubr.bf16.mxu0 %v9317
        %9795 = vmatmul.mubr.bf16.gmra.mrb[0].mxu0 %v9316
        %v9796 = vpop.f32.mrb[0].mxu0
        %v9797 = vpop.f32.mrb[0].mxu0
        %v9798 = vpop.f32.mrb[0].mxu0
        %v9799 = vpop.f32.mrb[0].mxu0
        %9800 = vdwg.mxu0
        %9801 = vmatprep.subr.bf16.mxu0 %v9623
        %9802 = vmatpush1.bf16.msra.mxu0 %v9622
        %9803 = vmatprep.subr.bf16.mxu0 %v9625
        %9804 = vmatpush1.bf16.msra.mxu0 %v9624
        %9805 = vmatprep.subr.bf16.mxu0 %v9627
        %9806 = vmatpush1.bf16.msra.mxu0 %v9626
        %9807 = vmatprep.subr.bf16.mxu0 %v9629
        %9808 = vmatpush1.bf16.msra.mxu0 %v9628
        %9809 = vmatprep.subr.bf16.mxu0 %v9631
        %9810 = vmatpush1.bf16.msra.mxu0 %v9630
        %9811 = vmatprep.subr.bf16.mxu0 %v9633
        %9812 = vmatpush1.bf16.msra.mxu0 %v9632
        %9813 = vmatprep.subr.bf16.mxu0 %v9635
        %9814 = vmatpush1.bf16.msra.mxu0 %v9634
        %9815 = vmatprep.subr.bf16.mxu0 %v9637
        %9816 = vmatpush1.bf16.msra.mxu0 %v9636
        %9817 = vmatprep.subr.bf16.mxu0 %v9639
        %9818 = vmatpush1.bf16.msra.mxu0 %v9638
        %9819 = vmatprep.subr.bf16.mxu0 %v9641
        %9820 = vmatpush1.bf16.msra.mxu0 %v9640
        %9821 = vmatprep.subr.bf16.mxu0 %v9643
        %9822 = vmatpush1.bf16.msra.mxu0 %v9642
        %9823 = vmatprep.subr.bf16.mxu0 %v9645
        %9824 = vmatpush1.bf16.msra.mxu0 %v9644
        %9825 = vmatprep.subr.bf16.mxu0 %v9647
        %9826 = vmatpush1.bf16.msra.mxu0 %v9646
        %9827 = vmatprep.subr.bf16.mxu0 %v9649
        %9828 = vmatpush1.bf16.msra.mxu0 %v9648
        %9829 = vmatprep.subr.bf16.mxu0 %v9651
        %9830 = vmatpush1.bf16.msra.mxu0 %v9650
        %9831 = vmatprep.subr.bf16.mxu0 %v9653
        %9832 = vmatpush1.bf16.msra.mxu0 %v9652
        %9833 = vmatprep.mubr.bf16.mxu0 %v9291
        %9834 = vmatmul.mubr.bf16.gmra.mrb[0].mxu0 %v9290
        %v9835 = vpop.f32.mrb[0].mxu0
        %v9836 = vadd.f32 %v9753, %v9835
        %v9837 = vpop.f32.mrb[0].mxu0
        %v9838 = vadd.f32 %v9755, %v9837
        %v9839 = vpop.f32.mrb[0].mxu0
        %v9840 = vpop.f32.mrb[0].mxu0
        %9841 = vmatprep.mubr.bf16.mxu0 %v9295
        %9842 = vmatmul.mubr.bf16.gmra.mrb[0].mxu0 %v9294
        %v9843 = vpop.f32.mrb[0].mxu0
        %v9844 = vpop.f32.mrb[0].mxu0
        %v9845 = vpop.f32.mrb[0].mxu0
        %v9846 = vpop.f32.mrb[0].mxu0
        %9847 = vmatprep.mubr.bf16.mxu0 %v9299
        %9848 = vmatmul.mubr.bf16.gmra.mrb[0].mxu0 %v9298
        %v9849 = vpop.f32.mrb[0].mxu0
        %v9850 = vpop.f32.mrb[0].mxu0
        %v9851 = vpop.f32.mrb[0].mxu0
        %v9852 = vpop.f32.mrb[0].mxu0
        %9853 = vmatprep.mubr.bf16.mxu0 %v9303
        %9854 = vmatmul.mubr.bf16.gmra.mrb[0].mxu0 %v9302
        %v9855 = vpop.f32.mrb[0].mxu0
        %v9856 = vpop.f32.mrb[0].mxu0
        %v9857 = vpop.f32.mrb[0].mxu0
        %v9858 = vpop.f32.mrb[0].mxu0
        %9859 = vmatprep.mubr.bf16.mxu0 %v9307
        %9860 = vmatmul.mubr.bf16.gmra.mrb[0].mxu0 %v9306
        %v9861 = vpop.f32.mrb[0].mxu0
        %v9862 = vpop.f32.mrb[0].mxu0
        %v9863 = vpop.f32.mrb[0].mxu0
        %v9864 = vpop.f32.mrb[0].mxu0
        %9865 = vmatprep.mubr.bf16.mxu0 %v9311
        %9866 = vmatmul.mubr.bf16.gmra.mrb[0].mxu0 %v9310
        %v9867 = vpop.f32.mrb[0].mxu0
        %v9868 = vpop.f32.mrb[0].mxu0
        %v9869 = vpop.f32.mrb[0].mxu0
        %v9870 = vpop.f32.mrb[0].mxu0
        %9871 = vmatprep.mubr.bf16.mxu0 %v9315
        %9872 = vmatmul.mubr.bf16.gmra.mrb[0].mxu0 %v9314
        %v9873 = vpop.f32.mrb[0].mxu0
        %v9874 = vpop.f32.mrb[0].mxu0
        %v9875 = vpop.f32.mrb[0].mxu0
        %v9876 = vpop.f32.mrb[0].mxu0
        %9877 = vmatprep.mubr.bf16.mxu0 %v9319
        %9878 = vmatmul.mubr.bf16.gmra.mrb[0].mxu0 %v9318
        %v9879 = vpop.f32.mrb[0].mxu0
        %v9880 = vpop.f32.mrb[0].mxu0
        %v9881 = vpop.f32.mrb[0].mxu0
        %v9882 = vpop.f32.mrb[0].mxu0
        %9883 = vdwg.mxu0
        %v9884 = vadd.f32 %v8030, %v9836
        %v9885 = vadd.f32 %v8031, %v9838
        %s9886 = scalar_lea.vmem %s13, 2
        %v9887 = vld [vmem:[%s9886] sm:$0x3]
        %s9888 = scalar_lea.vmem %s14, 2
        %v9889 = vld [vmem:[%s9888] sm:$0x3]
        %v9890 = vadd.f32 %v9884, %v9885
        %9891 = vadd.xlane.f32.xlu0 %v9890
        %v9892 = vpop.xlane.xlu0 %9891
        %v9893 = vmul.f32 %v9892, %v683
        %v9894 = vsub.f32 %v9884, %v9893
        %v9895 = vsub.f32 %v9885, %v9893
        %v9896 = vmul.f32 %v9894, %v9894
        %v9897 = vmul.f32 %v9895, %v9895
        %v9898 = vadd.f32 %v9896, %v9897
        %9899 = vadd.xlane.f32.xlu0 %v9898
        %v9900 = vpop.xlane.xlu0 %9899
        %v9901 = vmul.f32 %v9900, %v683
        %v9902 = vadd.f32 %v9901, 1e-05
        %v9903 = vrsqrt.pop %v9902
        %v9904 = vmul.f32 %v9894, %v9903
        %v9905 = vmul.f32 %v9895, %v9903
        %v9907 = vlaneseq
        %v9908 = vshrl.u32 %v9907, 7
        %v9909 = vsub.s32 0, %v9908
        %v9910 = vrot.slane %v9887, %v9909
        %v9911 = vlaneseq
        %v9912 = vshrl.u32 %v9911, 7
        %v9913 = vsub.s32 1, %v9912
        %v9914 = vrot.slane %v9887, %v9913
        %v9917 = vmul.f32 %v9904, %v9910
        %v9918 = vmul.f32 %v9905, %v9914
        %v9920 = vlaneseq
        %v9921 = vshrl.u32 %v9920, 7
        %v9922 = vsub.s32 0, %v9921
        %v9923 = vrot.slane %v9889, %v9922
        %v9924 = vlaneseq
        %v9925 = vshrl.u32 %v9924, 7
        %v9926 = vsub.s32 1, %v9925
        %v9927 = vrot.slane %v9889, %v9926
        %v9930 = vadd.f32 %v9917, %v9923
        %v9931 = vadd.f32 %v9918, %v9927
        %v9932 = vpack.c.bf16 %v9930, %v9930
        %v9933 = vpack.c.bf16 %v9931, %v9931
        %v9934 = vld [vmem:[%s15] sm:$0xff]
        %v9935 = vld [vmem:[%s15 + $0x8] sm:$0xff]
        %v9936 = vld [vmem:[%s15 + $0x10] sm:$0xff]
        %v9937 = vld [vmem:[%s15 + $0x18] sm:$0xff]
        %v9938 = vld [vmem:[%s15 + $0x20] sm:$0xff]
        %v9939 = vld [vmem:[%s15 + $0x28] sm:$0xff]
        %v9940 = vld [vmem:[%s15 + $0x30] sm:$0xff]
        %v9941 = vld [vmem:[%s15 + $0x38] sm:$0xff]
        %v9942 = vld [vmem:[%s15 + $0x40] sm:$0xff]
        %v9943 = vld [vmem:[%s15 + $0x48] sm:$0xff]
        %v9944 = vld [vmem:[%s15 + $0x50] sm:$0xff]
        %v9945 = vld [vmem:[%s15 + $0x58] sm:$0xff]
        %v9946 = vld [vmem:[%s15 + $0x60] sm:$0xff]
        %v9947 = vld [vmem:[%s15 + $0x68] sm:$0xff]
        %v9948 = vld [vmem:[%s15 + $0x70] sm:$0xff]
        %v9949 = vld [vmem:[%s15 + $0x78] sm:$0xff]
        %v9950 = vld [vmem:[%s15 + $0x80] sm:$0xff]
        %v9951 = vld [vmem:[%s15 + $0x88] sm:$0xff]
        %v9952 = vld [vmem:[%s15 + $0x90] sm:$0xff]
        %v9953 = vld [vmem:[%s15 + $0x98] sm:$0xff]
        %v9954 = vld [vmem:[%s15 + $0xa0] sm:$0xff]
        %v9955 = vld [vmem:[%s15 + $0xa8] sm:$0xff]
        %v9956 = vld [vmem:[%s15 + $0xb0] sm:$0xff]
        %v9957 = vld [vmem:[%s15 + $0xb8] sm:$0xff]
        %v9958 = vld [vmem:[%s15 + $0xc0] sm:$0xff]
        %v9959 = vld [vmem:[%s15 + $0xc8] sm:$0xff]
        %v9960 = vld [vmem:[%s15 + $0xd0] sm:$0xff]
        %v9961 = vld [vmem:[%s15 + $0xd8] sm:$0xff]
        %v9962 = vld [vmem:[%s15 + $0xe0] sm:$0xff]
        %v9963 = vld [vmem:[%s15 + $0xe8] sm:$0xff]
        %v9964 = vld [vmem:[%s15 + $0xf0] sm:$0xff]
        %v9965 = vld [vmem:[%s15 + $0xf8] sm:$0xff]
        %v9966 = vld [vmem:[%s16] sm:$0x3]
        %v9999 = vunpack.c.l.b16 %v9934
        %v10000 = vunpack.c.h.b16 %v9934
        %v10001 = vunpack.c.l.b16 %v9935
        %v10002 = vunpack.c.h.b16 %v9935
        %v10003 = vunpack.c.l.b16 %v9936
        %v10004 = vunpack.c.h.b16 %v9936
        %v10005 = vunpack.c.l.b16 %v9937
        %v10006 = vunpack.c.h.b16 %v9937
        %v10007 = vunpack.c.l.b16 %v9938
        %v10008 = vunpack.c.h.b16 %v9938
        %v10009 = vunpack.c.l.b16 %v9939
        %v10010 = vunpack.c.h.b16 %v9939
        %v10011 = vunpack.c.l.b16 %v9940
        %v10012 = vunpack.c.h.b16 %v9940
        %v10013 = vunpack.c.l.b16 %v9941
        %v10014 = vunpack.c.h.b16 %v9941
        %v10015 = vunpack.c.l.b16 %v9942
        %v10016 = vunpack.c.h.b16 %v9942
        %v10017 = vunpack.c.l.b16 %v9943
        %v10018 = vunpack.c.h.b16 %v9943
        %v10019 = vunpack.c.l.b16 %v9944
        %v10020 = vunpack.c.h.b16 %v9944
        %v10021 = vunpack.c.l.b16 %v9945
        %v10022 = vunpack.c.h.b16 %v9945
        %v10023 = vunpack.c.l.b16 %v9946
        %v10024 = vunpack.c.h.b16 %v9946
        %v10025 = vunpack.c.l.b16 %v9947
        %v10026 = vunpack.c.h.b16 %v9947
        %v10027 = vunpack.c.l.b16 %v9948
        %v10028 = vunpack.c.h.b16 %v9948
        %v10029 = vunpack.c.l.b16 %v9949
        %v10030 = vunpack.c.h.b16 %v9949
        %v10031 = vunpack.c.l.b16 %v9950
        %v10032 = vunpack.c.h.b16 %v9950
        %v10033 = vunpack.c.l.b16 %v9951
        %v10034 = vunpack.c.h.b16 %v9951
        %v10035 = vunpack.c.l.b16 %v9952
        %v10036 = vunpack.c.h.b16 %v9952
        %v10037 = vunpack.c.l.b16 %v9953
        %v10038 = vunpack.c.h.b16 %v9953
        %v10039 = vunpack.c.l.b16 %v9954
        %v10040 = vunpack.c.h.b16 %v9954
        %v10041 = vunpack.c.l.b16 %v9955
        %v10042 = vunpack.c.h.b16 %v9955
        %v10043 = vunpack.c.l.b16 %v9956
        %v10044 = vunpack.c.h.b16 %v9956
        %v10045 = vunpack.c.l.b16 %v9957
        %v10046 = vunpack.c.h.b16 %v9957
        %v10047 = vunpack.c.l.b16 %v9958
        %v10048 = vunpack.c.h.b16 %v9958
        %v10049 = vunpack.c.l.b16 %v9959
        %v10050 = vunpack.c.h.b16 %v9959
        %v10051 = vunpack.c.l.b16 %v9960
        %v10052 = vunpack.c.h.b16 %v9960
        %v10053 = vunpack.c.l.b16 %v9961
        %v10054 = vunpack.c.h.b16 %v9961
        %v10055 = vunpack.c.l.b16 %v9962
        %v10056 = vunpack.c.h.b16 %v9962
        %v10057 = vunpack.c.l.b16 %v9963
        %v10058 = vunpack.c.h.b16 %v9963
        %v10059 = vunpack.c.l.b16 %v9964
        %v10060 = vunpack.c.h.b16 %v9964
        %v10061 = vunpack.c.l.b16 %v9965
        %v10062 = vunpack.c.h.b16 %v9965
        %v10063 = vpack.c.b16 %v10001, %v9999
        %v10064 = vpack.c.b16 %v10002, %v10000
        %v10065 = vpack.c.b16 %v10005, %v10003
        %v10066 = vpack.c.b16 %v10006, %v10004
        %v10067 = vpack.c.b16 %v10009, %v10007
        %v10068 = vpack.c.b16 %v10010, %v10008
        %v10069 = vpack.c.b16 %v10013, %v10011
        %v10070 = vpack.c.b16 %v10014, %v10012
        %v10071 = vpack.c.b16 %v10017, %v10015
        %v10072 = vpack.c.b16 %v10018, %v10016
        %v10073 = vpack.c.b16 %v10021, %v10019
        %v10074 = vpack.c.b16 %v10022, %v10020
        %v10075 = vpack.c.b16 %v10025, %v10023
        %v10076 = vpack.c.b16 %v10026, %v10024
        %v10077 = vpack.c.b16 %v10029, %v10027
        %v10078 = vpack.c.b16 %v10030, %v10028
        %v10079 = vpack.c.b16 %v10033, %v10031
        %v10080 = vpack.c.b16 %v10034, %v10032
        %v10081 = vpack.c.b16 %v10037, %v10035
        %v10082 = vpack.c.b16 %v10038, %v10036
        %v10083 = vpack.c.b16 %v10041, %v10039
        %v10084 = vpack.c.b16 %v10042, %v10040
        %v10085 = vpack.c.b16 %v10045, %v10043
        %v10086 = vpack.c.b16 %v10046, %v10044
        %v10087 = vpack.c.b16 %v10049, %v10047
        %v10088 = vpack.c.b16 %v10050, %v10048
        %v10089 = vpack.c.b16 %v10053, %v10051
        %v10090 = vpack.c.b16 %v10054, %v10052
        %v10091 = vpack.c.b16 %v10057, %v10055
        %v10092 = vpack.c.b16 %v10058, %v10056
        %v10093 = vpack.c.b16 %v10061, %v10059
        %v10094 = vpack.c.b16 %v10062, %v10060
        %v10128 = vlaneseq
        %v10129 = vshrl.u32 %v10128, 7
        %v10130 = vsub.s32 0, %v10129
        %v10131 = vrot.slane %v9966, %v10130
        %v10132 = vlaneseq
        %v10133 = vshrl.u32 %v10132, 7
        %v10134 = vsub.s32 1, %v10133
        %v10135 = vrot.slane %v9966, %v10134
        %10138 = vmatprep.subr.bf16.mxu0 %v10064
        %10139 = vmatpush1.bf16.msra.mxu0 %v10063
        %10140 = vmatprep.subr.bf16.mxu0 %v10066
        %10141 = vmatpush1.bf16.msra.mxu0 %v10065
        %10142 = vmatprep.subr.bf16.mxu0 %v10068
        %10143 = vmatpush1.bf16.msra.mxu0 %v10067
        %10144 = vmatprep.subr.bf16.mxu0 %v10070
        %10145 = vmatpush1.bf16.msra.mxu0 %v10069
        %10146 = vmatprep.subr.bf16.mxu0 %v10072
        %10147 = vmatpush1.bf16.msra.mxu0 %v10071
        %10148 = vmatprep.subr.bf16.mxu0 %v10074
        %10149 = vmatpush1.bf16.msra.mxu0 %v10073
        %10150 = vmatprep.subr.bf16.mxu0 %v10076
        %10151 = vmatpush1.bf16.msra.mxu0 %v10075
        %10152 = vmatprep.subr.bf16.mxu0 %v10078
        %10153 = vmatpush1.bf16.msra.mxu0 %v10077
        %10154 = vmatprep.subr.bf16.mxu0 %v10080
        %10155 = vmatpush1.bf16.msra.mxu0 %v10079
        %10156 = vmatprep.subr.bf16.mxu0 %v10082
        %10157 = vmatpush1.bf16.msra.mxu0 %v10081
        %10158 = vmatprep.subr.bf16.mxu0 %v10084
        %10159 = vmatpush1.bf16.msra.mxu0 %v10083
        %10160 = vmatprep.subr.bf16.mxu0 %v10086
        %10161 = vmatpush1.bf16.msra.mxu0 %v10085
        %10162 = vmatprep.subr.bf16.mxu0 %v10088
        %10163 = vmatpush1.bf16.msra.mxu0 %v10087
        %10164 = vmatprep.subr.bf16.mxu0 %v10090
        %10165 = vmatpush1.bf16.msra.mxu0 %v10089
        %10166 = vmatprep.subr.bf16.mxu0 %v10092
        %10167 = vmatpush1.bf16.msra.mxu0 %v10091
        %10168 = vmatprep.subr.bf16.mxu0 %v10094
        %10169 = vmatpush1.bf16.msra.mxu0 %v10093
        %10170 = vmatprep.mubr.bf16.mxu0 %v9933
        %10171 = vmatmul.mubr.bf16.gmra.mrb[0].mxu0 %v9932
        %v10172 = vpop.f32.mrb[0].mxu0
        %v10173 = vadd.f32 %v10131, %v10172
        %v10174 = vpop.f32.mrb[0].mxu0
        %v10175 = vadd.f32 %v10135, %v10174
        %v10176 = vpop.f32.mrb[0].mxu0
        %v10177 = vpop.f32.mrb[0].mxu0
        %10178 = vdwg.mxu0
        %v10179 = vtanh.pop %v10173
        %v10180 = vtanh.pop %v10175
        %v10181 = vpack.c.bf16 %v10179, %v10179
        %v10182 = vpack.c.bf16 %v10180, %v10180
        %v10183 = vld [vmem:[%s17] sm:$0xf]
        %v10184 = vld [vmem:[%s17 + $0x4] sm:$0xf]
        %v10185 = vld [vmem:[%s17 + $0x8] sm:$0xf]
        %v10186 = vld [vmem:[%s17 + $0xc] sm:$0xf]
        %v10187 = vld [vmem:[%s17 + $0x10] sm:$0xf]
        %v10188 = vld [vmem:[%s17 + $0x14] sm:$0xf]
        %v10189 = vld [vmem:[%s17 + $0x18] sm:$0xf]
        %v10190 = vld [vmem:[%s17 + $0x1c] sm:$0xf]
        %v10191 = vld [vmem:[%s17 + $0x20] sm:$0xf]
        %v10192 = vld [vmem:[%s17 + $0x24] sm:$0xf]
        %v10193 = vld [vmem:[%s17 + $0x28] sm:$0xf]
        %v10194 = vld [vmem:[%s17 + $0x2c] sm:$0xf]
        %v10195 = vld [vmem:[%s17 + $0x30] sm:$0xf]
        %v10196 = vld [vmem:[%s17 + $0x34] sm:$0xf]
        %v10197 = vld [vmem:[%s17 + $0x38] sm:$0xf]
        %v10198 = vld [vmem:[%s17 + $0x3c] sm:$0xf]
        %v10199 = vld [vmem:[%s17 + $0x40] sm:$0xf]
        %v10200 = vld [vmem:[%s17 + $0x44] sm:$0xf]
        %v10201 = vld [vmem:[%s17 + $0x48] sm:$0xf]
        %v10202 = vld [vmem:[%s17 + $0x4c] sm:$0xf]
        %v10203 = vld [vmem:[%s17 + $0x50] sm:$0xf]
        %v10204 = vld [vmem:[%s17 + $0x54] sm:$0xf]
        %v10205 = vld [vmem:[%s17 + $0x58] sm:$0xf]
        %v10206 = vld [vmem:[%s17 + $0x5c] sm:$0xf]
        %v10207 = vld [vmem:[%s17 + $0x60] sm:$0xf]
        %v10208 = vld [vmem:[%s17 + $0x64] sm:$0xf]
        %v10209 = vld [vmem:[%s17 + $0x68] sm:$0xf]
        %v10210 = vld [vmem:[%s17 + $0x6c] sm:$0xf]
        %v10211 = vld [vmem:[%s17 + $0x70] sm:$0xf]
        %v10212 = vld [vmem:[%s17 + $0x74] sm:$0xf]
        %v10213 = vld [vmem:[%s17 + $0x78] sm:$0xf]
        %v10214 = vld [vmem:[%s17 + $0x7c] sm:$0xf]
        %v10215 = vld [vmem:[%s18] sm:$0x1]
        %v10248 = vunpack.c.l.b16 %v10183
        %v10249 = vunpack.c.l.b16 %v10184
        %v10250 = vunpack.c.l.b16 %v10185
        %v10251 = vunpack.c.l.b16 %v10186
        %v10252 = vunpack.c.l.b16 %v10187
        %v10253 = vunpack.c.l.b16 %v10188
        %v10254 = vunpack.c.l.b16 %v10189
        %v10255 = vunpack.c.l.b16 %v10190
        %v10256 = vunpack.c.l.b16 %v10191
        %v10257 = vunpack.c.l.b16 %v10192
        %v10258 = vunpack.c.l.b16 %v10193
        %v10259 = vunpack.c.l.b16 %v10194
        %v10260 = vunpack.c.l.b16 %v10195
        %v10261 = vunpack.c.l.b16 %v10196
        %v10262 = vunpack.c.l.b16 %v10197
        %v10263 = vunpack.c.l.b16 %v10198
        %v10264 = vunpack.c.l.b16 %v10199
        %v10265 = vunpack.c.l.b16 %v10200
        %v10266 = vunpack.c.l.b16 %v10201
        %v10267 = vunpack.c.l.b16 %v10202
        %v10268 = vunpack.c.l.b16 %v10203
        %v10269 = vunpack.c.l.b16 %v10204
        %v10270 = vunpack.c.l.b16 %v10205
        %v10271 = vunpack.c.l.b16 %v10206
        %v10272 = vunpack.c.l.b16 %v10207
        %v10273 = vunpack.c.l.b16 %v10208
        %v10274 = vunpack.c.l.b16 %v10209
        %v10275 = vunpack.c.l.b16 %v10210
        %v10276 = vunpack.c.l.b16 %v10211
        %v10277 = vunpack.c.l.b16 %v10212
        %v10278 = vunpack.c.l.b16 %v10213
        %v10279 = vunpack.c.l.b16 %v10214
        %v10280 = vpack.c.b16 %v10249, %v10248
        %v10281 = vpack.c.b16 %v10251, %v10250
        %v10282 = vpack.c.b16 %v10253, %v10252
        %v10283 = vpack.c.b16 %v10255, %v10254
        %v10284 = vpack.c.b16 %v10257, %v10256
        %v10285 = vpack.c.b16 %v10259, %v10258
        %v10286 = vpack.c.b16 %v10261, %v10260
        %v10287 = vpack.c.b16 %v10263, %v10262
        %v10288 = vpack.c.b16 %v10265, %v10264
        %v10289 = vpack.c.b16 %v10267, %v10266
        %v10290 = vpack.c.b16 %v10269, %v10268
        %v10291 = vpack.c.b16 %v10271, %v10270
        %v10292 = vpack.c.b16 %v10273, %v10272
        %v10293 = vpack.c.b16 %v10275, %v10274
        %v10294 = vpack.c.b16 %v10277, %v10276
        %v10295 = vpack.c.b16 %v10279, %v10278
        %10312 = vmatprep.subr.bf16.mxu0 0
        %10313 = vmatpush1.bf16.msra.mxu0 %v10280
        %10314 = vmatprep.subr.bf16.mxu0 0
        %10315 = vmatpush1.bf16.msra.mxu0 %v10281
        %10316 = vmatprep.subr.bf16.mxu0 0
        %10317 = vmatpush1.bf16.msra.mxu0 %v10282
        %10318 = vmatprep.subr.bf16.mxu0 0
        %10319 = vmatpush1.bf16.msra.mxu0 %v10283
        %10320 = vmatprep.subr.bf16.mxu0 0
        %10321 = vmatpush1.bf16.msra.mxu0 %v10284
        %10322 = vmatprep.subr.bf16.mxu0 0
        %10323 = vmatpush1.bf16.msra.mxu0 %v10285
        %10324 = vmatprep.subr.bf16.mxu0 0
        %10325 = vmatpush1.bf16.msra.mxu0 %v10286
        %10326 = vmatprep.subr.bf16.mxu0 0
        %10327 = vmatpush1.bf16.msra.mxu0 %v10287
        %10328 = vmatprep.subr.bf16.mxu0 0
        %10329 = vmatpush1.bf16.msra.mxu0 %v10288
        %10330 = vmatprep.subr.bf16.mxu0 0
        %10331 = vmatpush1.bf16.msra.mxu0 %v10289
        %10332 = vmatprep.subr.bf16.mxu0 0
        %10333 = vmatpush1.bf16.msra.mxu0 %v10290
        %10334 = vmatprep.subr.bf16.mxu0 0
        %10335 = vmatpush1.bf16.msra.mxu0 %v10291
        %10336 = vmatprep.subr.bf16.mxu0 0
        %10337 = vmatpush1.bf16.msra.mxu0 %v10292
        %10338 = vmatprep.subr.bf16.mxu0 0
        %10339 = vmatpush1.bf16.msra.mxu0 %v10293
        %10340 = vmatprep.subr.bf16.mxu0 0
        %10341 = vmatpush1.bf16.msra.mxu0 %v10294
        %10342 = vmatprep.subr.bf16.mxu0 0
        %10343 = vmatpush1.bf16.msra.mxu0 %v10295
        %10344 = vmatprep.mubr.bf16.mxu0 %v10182
        %10345 = vmatmul.mubr.bf16.gmra.mrb[0].mxu0 %v10181
        %v10346 = vpop.f32.mrb[0].mxu0
        %v10347 = vadd.f32 %v10215, %v10346
        %v10348 = vpop.f32.mrb[0].mxu0
        %v10349 = vpop.f32.mrb[0].mxu0
        %v10350 = vpop.f32.mrb[0].mxu0
        %10351 = vdwg.mxu0
        %10352 = vst [vmem:[%s594] sm:$0x1] %v10347
        %s10353 = sand.u32 %s445, 1
        %s10354 = scalar_lea.sflag [#allocation3], %s10353
        %s10355 = sand.u32 %s445, 1
        %s10356 = scalar_lea.vmem [#allocation2], %s10355
        // Predicated region
        $region97: #{transformer_model_forward.1} parent=95 // pred_check
          %p10357 = pneg %p455
        $region98: #{transformer_model_forward.1} parent=95 // pred_check_branch
          %10359 = sbr.rel (%p10357) target = $region100
        $region99: #{transformer_model_forward.1} parent=95 // pred_region
          %s10361 = ssub.s32 16, 16
          %10362 = vsyncadd %s10354, %s10361
          %s10363 = smul.addr %s33, 16
          %s10364 = scalar_lea.hbm %s19, %s10363
          %s10366 = sshll.u32 %s10356, 4
          %s10367 = int_to_ptr.vmem [resolvable:$true] %s10366
          %10369 = dma.vmem_to_hbm [thread:$0]  %s10367, 16, %s10364, %s10354
        $region100: #{transformer_model_forward.1} parent=95 // pred_fallthru
          _
      $region96: #{transformer_model_forward.1} parent=5 // pred_fallthru
        _
      %p10370 = scmp.le.s32.totalorder 2, %s28
      // Predicated region
      $region101: #{transformer_model_forward.1} parent=5 // pred_check
        %p10371 = pneg %p10370
      $region102: #{transformer_model_forward.1} parent=5 // pred_check_branch
        %10373 = sbr.rel (%p10371) target = $region104
      $region103: #{transformer_model_forward.1} parent=5 // pred_region
        %s10374 = ssub.s32 %s28, 2
        // Predicated region
        $region105: #{transformer_model_forward.1} parent=103 // pred_check
          %p10375 = pneg %p461
        $region106: #{transformer_model_forward.1} parent=103 // pred_check_branch
          %10377 = sbr.rel (%p10375) target = $region108
        $region107: #{transformer_model_forward.1} parent=103 // pred_region
          %s10378 = sand.u32 %s446, 1
          %s10379 = scalar_lea.sflag [#allocation3], %s10378
          %s10380 = sand.u32 %s446, 1
          %s10381 = scalar_lea.vmem [#allocation2], %s10380
          %10382 = dma.done %s10379, 16
        $region108: #{transformer_model_forward.1} parent=103 // pred_fallthru
          _
      $region104: #{transformer_model_forward.1} parent=5 // pred_fallthru
        _
    $region6: #{transformer_model_forward.1} parent=1 // loop_footer
      %s32 = sadd.s32 1, %s28
    $region7: #{transformer_model_forward.1} parent=1 // loop_footer_branch
      %27 = sbr.rel target = $region3
    $region8: #{transformer_model_forward.1} parent=1 // loop_exit
      _
    %10383 = vsyncpa [#allocation3], 1
    %s10384 = scalar_lea.sflag [#allocation3], 1
    %10385 = vsyncpa %s10384, 1

</llo_original>
